<compile_context>
chip_gen: v7x
topology: tpu7x:2x2x1
jax: 0.10.0
libtpu: 0.0.40
codegen_flags: <defaults>
</compile_context>

<pallas_src>
import numpy as np

import jax
import jax.numpy as jnp
from jax.experimental import pallas as pl
from jax.experimental.pallas import tpu as pltpu


# ----------------------------------------------------------------------------
# Host-built constant operators.  Pixel index convention: p = h * W + w.
# ----------------------------------------------------------------------------
_CORNERS = ((0, 0), (0, 1), (1, 0), (1, 1))


def _tap_masks(H, W):
    """(9, HW) 0/1 masks: mask[k, p] = 1 iff the 3x3 tap k of output pixel p
    falls inside the (zero-padded) image."""
    HW = H * W
    m = np.zeros((9, HW), np.float32)
    for kh in range(3):
        for kw in range(3):
            k = kh * 3 + kw
            for h in range(H):
                if not (0 <= h + kh - 1 < H):
                    continue
                for w in range(W):
                    if 0 <= w + kw - 1 < W:
                        m[k, h * W + w] = 1.0
    return m


def _pool_decimate(H, W):
    """(HW, HW/4) 0/1 matrix: picks the top-left pixel of every 2x2 window."""
    Ho, Wo = H // 2, W // 2
    D = np.zeros((H * W, Ho * Wo), np.float32)
    for i in range(Ho):
        for j in range(Wo):
            D[(2 * i) * W + (2 * j), i * Wo + j] = 1.0
    return D


def _conv3x3_tap_ops(H, W):
    """S[k] (HW, HW): column q holds a single 1 at the source pixel of tap k
    (zero column at the padded border).  Used only for the small 8x8 stage."""
    HW = H * W
    S = np.zeros((9, HW, HW), np.float32)
    for kh in range(3):
        for kw in range(3):
            k = kh * 3 + kw
            for h in range(H):
                hi = h + kh - 1
                if not (0 <= hi < H):
                    continue
                for w in range(W):
                    wi = w + kw - 1
                    if 0 <= wi < W:
                        S[k, hi * W + wi, h * W + w] = 1.0
    return S


def _pool2x2_gather_ops(H, W):
    """G[a] (HW, HW/4): gathers corner a of every 2x2 window (8x8 stage)."""
    Ho, Wo = H // 2, W // 2
    G = np.zeros((4, H * W, Ho * Wo), np.float32)
    for a, (dh, dw) in enumerate(_CORNERS):
        for i in range(Ho):
            for j in range(Wo):
                G[a, (2 * i + dh) * W + (2 * j + dw), i * Wo + j] = 1.0
    return G


def _tconv2x2_scatter_ops(Hi, Wi):
    """U[a] (Hi*Wi, 4*Hi*Wi): scatters input pixel (i,j) to output pixel
    (2i+a_h, 2j+a_w) of the stride-2 transposed conv."""
    Ho, Wo = 2 * Hi, 2 * Wi
    U = np.zeros((4, Hi * Wi, Ho * Wo), np.float32)
    for a, (dh, dw) in enumerate(_CORNERS):
        for i in range(Hi):
            for j in range(Wi):
                U[a, i * Wi + j, (2 * i + dh) * Wo + (2 * j + dw)] = 1.0
    return U


# ----------------------------------------------------------------------------
# Weight prep (hoisted out of the jitted forward).  The batch tile B is folded
# into the weights as a block-diagonal (kron) structure so the whole tile is
# one dense matmul in the stacked (B*C rows, pixels lanes) layout.
# ----------------------------------------------------------------------------
def _conv_full_weight(w, B):
    # PyTorch Conv2d weight (Cout, Cin, 3, 3) -> (B*Cout, 9*B*Cin).
    Cout, Cin = w.shape[0], w.shape[1]
    wk = jnp.transpose(w, (2, 3, 0, 1)).reshape(9, Cout, Cin)       # k = kh*3+kw
    eye = jnp.eye(B, dtype=w.dtype)
    blk = jnp.einsum("xy,koc->kxoyc", eye, wk).reshape(9, B * Cout, B * Cin)
    return jnp.transpose(blk, (1, 0, 2)).reshape(B * Cout, 9 * B * Cin)


def _tconv_blk_weight(w, B):
    # PyTorch ConvTranspose2d weight (Cin, Cout, 2, 2) -> (4, B*Cout, B*Cin).
    Cin, Cout = w.shape[0], w.shape[1]
    wa = jnp.transpose(w, (2, 3, 1, 0)).reshape(4, Cout, Cin)       # a = dh*2+dw
    eye = jnp.eye(B, dtype=w.dtype)
    return jnp.einsum("xy,aoc->axoyc", eye, wa).reshape(4, B * Cout, B * Cin)


def _stack_bias(b, B):
    return jnp.tile(b, B).reshape(B * b.shape[0], 1)


# ----------------------------------------------------------------------------
# Fused forward pass (single Pallas kernel)
# ----------------------------------------------------------------------------
def build_forward(params, H=16, W=16, batch_tile=8):
    C_IN, C1, C2 = 3, 16, 4
    if batch_tile % 8 != 0:
        raise ValueError("batch_tile must be a multiple of 8 (sublane tiling).")
    B = batch_tile
    H2, W2 = H // 2, W // 2
    H3, W3 = H2 // 2, W2 // 2
    HW1, HW2, HW3 = H * W, H2 * W2, H3 * W3

    # Static lane-roll shifts (nonnegative; roll by HW-d == roll by -d).
    tap_sh1 = tuple((-((kh - 1) * W + (kw - 1))) % HW1
                    for kh in range(3) for kw in range(3))
    pool_sh1 = tuple((HW1 - d) % HW1 for d in (1, W, W + 1))

    # Constant operators (host-built).
    m1 = jnp.asarray(_tap_masks(H, W))                  # (9, 256)
    d1 = jnp.asarray(_pool_decimate(H, W))              # (256, 64)
    s2 = jnp.asarray(_conv3x3_tap_ops(H2, W2))          # (9, 64, 64)
    g2 = jnp.asarray(_pool2x2_gather_ops(H2, W2))       # (4, 64, 16)
    u1 = jnp.asarray(_tconv2x2_scatter_ops(H3, W3))     # (4, 16, 64)
    u2 = jnp.asarray(_tconv2x2_scatter_ops(H2, W2))     # (4, 64, 256)

    # Hoisted weight / bias prep (block-diagonal over the batch tile).
    w1f = _conv_full_weight(params["conv1_w"], B)       # (B*16, 9*B*3)
    w2f = _conv_full_weight(params["conv2_w"], B)       # (B*4,  9*B*16)
    wt1 = _tconv_blk_weight(params["tconv1_w"], B)      # (4, B*16, B*4)
    wt2 = _tconv_blk_weight(params["tconv2_w"], B)      # (4, B*3,  B*16)
    b1s = _stack_bias(params["conv1_b"], B)             # (B*16, 1)
    b2s = _stack_bias(params["conv2_b"], B)             # (B*4, 1)
    bt1s = _stack_bias(params["tconv1_b"], B)           # (B*16, 1)
    bt2s = _stack_bias(params["tconv2_b"], B)           # (B*3, 1)

    operands = (m1, w1f, b1s, d1, s2, w2f, b2s, g2, wt1, u1, bt1s, wt2, u2, bt2s)

    def _const_spec(shape):
        nd = len(shape)
        return pl.BlockSpec(shape, lambda i, _nd=nd: (0,) * _nd)

    const_specs = [_const_spec(op.shape) for op in operands]

    def kernel(x_ref,
               m1_ref, w1_ref, b1_ref, d1_ref,
               s2_ref, w2_ref, b2_ref, g2_ref,
               wt1_ref, u1_ref, bt1_ref,
               wt2_ref, u2_ref, bt2_ref,
               o_ref):
        f32 = jnp.float32
        x = x_ref[...]                                               # (B*3, 256)

        # ---- conv1 (3 -> 16, 3x3, pad 1) + ReLU ---------------------------
        # 3x3 taps = lane roll (XLU) + 0/1 border mask (VPU): exact zero
        # padding, no MXU gather.  Channel mix for the whole batch tile is
        # ONE block-diagonal matmul on the row-concatenated taps.
        taps1 = []
        for k, s in enumerate(tap_sh1):
            t = x if s == 0 else pltpu.roll(x, shift=s, axis=1)
            taps1.append(t * m1_ref[k:k + 1, :])
        t1 = jnp.concatenate(taps1, axis=0)                          # (9*B*3, 256)
        y1 = jnp.dot(w1_ref[...], t1, preferred_element_type=f32)    # (B*16, 256)
        y1 = jnp.maximum(y1 + b1_ref[...], 0.0)

        # ---- maxpool 2x2, stride 2 (16x16 -> 8x8) -------------------------
        # max over the 3 rolled neighbours, then one stride-2 decimation
        # matmul (decimated pixels never read wrapped lanes -> no mask).
        m = y1
        for s in pool_sh1:
            m = jnp.maximum(m, pltpu.roll(y1, shift=s, axis=1))
        p1 = jnp.dot(m, d1_ref[...], preferred_element_type=f32)     # (B*16, 64)

        # ---- conv2 (16 -> 4, 3x3, pad 1) + ReLU ---------------------------
        # 8x8 stage (64 lanes < one 128-lane tile): keep the small 0/1 gather
        # matmuls (robust lowering); with M = B*16 = 128 rows they are cheap.
        taps2 = [jnp.dot(p1, s2_ref[k], preferred_element_type=f32)
                 for k in range(9)]
        t2 = jnp.concatenate(taps2, axis=0)                          # (9*B*16, 64)
        y2 = jnp.dot(w2_ref[...], t2, preferred_element_type=f32)    # (B*4, 64)
        y2 = jnp.maximum(y2 + b2_ref[...], 0.0)

        # ---- maxpool 2x2, stride 2 (8x8 -> 4x4) ---------------------------
        p2 = jnp.dot(y2, g2_ref[0], preferred_element_type=f32)
        for a in range(1, 4):
            p2 = jnp.maximum(p2, jnp.dot(y2, g2_ref[a], preferred_element_type=f32))
        # p2: (B*4, 16)

        # ---- t_conv1 (4 -> 16, 2x2, stride 2) + ReLU ----------------------
        acc = None
        for a in range(4):
            z = jnp.dot(wt1_ref[a], p2, preferred_element_type=f32)      # (B*16, 16)
            term = jnp.dot(z, u1_ref[a], preferred_element_type=f32)     # (B*16, 64)
            acc = term if acc is None else acc + term
        y3 = jnp.maximum(acc + bt1_ref[...], 0.0)

        # ---- t_conv2 (16 -> 3, 2x2, stride 2) + sigmoid -------------------
        acc = None
        for a in range(4):
            z = jnp.dot(wt2_ref[a], y3, preferred_element_type=f32)      # (B*3, 64)
            term = jnp.dot(z, u2_ref[a], preferred_element_type=f32)     # (B*3, 256)
            acc = term if acc is None else acc + term
        o_ref[...] = jax.nn.sigmoid(acc + bt2_ref[...]).astype(o_ref.dtype)

    @jax.jit
    def forward(x):
        N = x.shape[0]
        Np = pl.cdiv(N, B) * B
        xf = x.astype(jnp.float32).reshape(N * C_IN, HW1)    # contiguous -> free
        if Np != N:
            xf = jnp.pad(xf, ((0, (Np - N) * C_IN), (0, 0)))
        out = pl.pallas_call(
            kernel,
            out_shape=jax.ShapeDtypeStruct((Np * C_IN, HW1), jnp.float32),
            grid=(Np // B,),
            in_specs=[pl.BlockSpec((B * C_IN, HW1), lambda i: (i, 0))]
                     + const_specs,
            out_specs=pl.BlockSpec((B * C_IN, HW1), lambda i: (i, 0)),
            compiler_params=pltpu.CompilerParams(
                dimension_semantics=("parallel",),
                vmem_limit_bytes=32 * 1024 * 1024,
            ),
        )(xf, *operands)
        return out[: N * C_IN].reshape(N, C_IN, H, W)

    return forward


# ----------------------------------------------------------------------------
# Plain-JAX reference (self-validation only; ordinary XLA ops)
# ----------------------------------------------------------------------------
def _ref_conv3x3_relu(x, w, b):
    N, C, H, W = x.shape
    Cout = w.shape[0]
    xp = jnp.pad(x, ((0, 0), (0, 0), (1, 1), (1, 1)))
    cols = [xp[:, :, kh:kh + H, kw:kw + W] for kh in range(3) for kw in range(3)]
    patches = jnp.transpose(jnp.stack(cols, 0), (1, 3, 4, 2, 0)).reshape(N * H * W, C * 9)
    y = patches @ w.reshape(Cout, C * 9).T + b
    y = jnp.maximum(y, 0.0).reshape(N, H, W, Cout)
    return jnp.transpose(y, (0, 3, 1, 2))


def _ref_maxpool2x2(x):
    N, C, H, W = x.shape
    return jnp.max(x.reshape(N, C, H // 2, 2, W // 2, 2), axis=(3, 5))


def _ref_tconv2x2_s2(x, w, b, act):
    N, Cin, H, W = x.shape
    Cout = w.shape[1]
    xm = jnp.transpose(x, (0, 2, 3, 1)).reshape(N * H * W, Cin)
    y = act(xm @ w.reshape(Cin, Cout * 4) + jnp.repeat(b, 4))
    y = y.reshape(N, H, W, Cout, 2, 2)
    return jnp.transpose(y, (0, 3, 1, 4, 2, 5)).reshape(N, Cout, 2 * H, 2 * W)


def reference_forward(x, params):
    x = _ref_conv3x3_relu(x, params["conv1_w"], params["conv1_b"])
    x = _ref_maxpool2x2(x)
    x = _ref_conv3x3_relu(x, params["conv2_w"], params["conv2_b"])
    x = _ref_maxpool2x2(x)
    x = _ref_tconv2x2_s2(x, params["tconv1_w"], params["tconv1_b"],
                         lambda v: jnp.maximum(v, 0.0))
    x = _ref_tconv2x2_s2(x, params["tconv2_w"], params["tconv2_b"], jax.nn.sigmoid)
    return x


# ----------------------------------------------------------------------------
# Params
# ----------------------------------------------------------------------------
def init_params(key):
    """Deterministic synthetic init (PyTorch-style uniform(-1/sqrt(fan_in), .))."""
    def uinit(k, shape, fan_in):
        bound = 1.0 / jnp.sqrt(jnp.asarray(fan_in, jnp.float32))
        return jax.random.uniform(k, shape, jnp.float32, -bound, bound)

    ks = jax.random.split(key, 8)
    return {
        "conv1_w": uinit(ks[0], (16, 3, 3, 3), 27),
        "conv1_b": uinit(ks[1], (16,), 27),
        "conv2_w": uinit(ks[2], (4, 16, 3, 3), 144),
        "conv2_b": uinit(ks[3], (4,), 144),
        "tconv1_w": uinit(ks[4], (4, 16, 2, 2), 64),
        "tconv1_b": uinit(ks[5], (16,), 64),
        "tconv2_w": uinit(ks[6], (16, 3, 2, 2), 12),
        "tconv2_b": uinit(ks[7], (3,), 12),
    }


if __name__ == "__main__":
    key = jax.random.PRNGKey(0)
    k_x, k_p = jax.random.split(key)

    # N=12 with batch_tile=8 -> padded to 16, grid=2 (>=2 so v7x megacore can
    # shard the batch), and exercises the remainder/pad path.
    N = 12
    x = jax.random.uniform(k_x, (N, 3, 16, 16), jnp.float32)
    params = init_params(k_p)

    forward = build_forward(params, H=16, W=16, batch_tile=8)
    out = jax.block_until_ready(forward(x))

    assert out.shape == (N, 3, 16, 16), out.shape
    assert out.dtype == jnp.float32
    # sigmoid output must be in (0, 1)
    assert bool(jnp.all(out > 0.0)) and bool(jnp.all(out < 1.0))

    # Cross-check against the plain-JAX reference.  Tolerance covers default
    # MXU precision (bf16 passes) on the remaining channel/operator matmuls;
    # the conv1 tap gather itself is now exact (roll + mask).
    ref = reference_forward(x, params)
    assert bool(jnp.allclose(out, ref, atol=2e-2, rtol=2e-2)), \
        float(jnp.max(jnp.abs(out - ref)))

    print("KERNEL_OK")
</pallas_src>

<mosaic_0001>
module attributes {stable_mosaic.version = 11 : i64} {
  func.func @kernel(%arg0: i32, %arg1: memref<24x256xf32, #tpu.memory_space<vmem>>, %arg2: memref<9x256xf32, #tpu.memory_space<vmem>>, %arg3: memref<128x216xf32, #tpu.memory_space<vmem>>, %arg4: memref<128x1xf32, #tpu.memory_space<vmem>>, %arg5: memref<256x64xf32, #tpu.memory_space<vmem>>, %arg6: memref<9x64x64xf32, #tpu.memory_space<vmem>>, %arg7: memref<32x1152xf32, #tpu.memory_space<vmem>>, %arg8: memref<32x1xf32, #tpu.memory_space<vmem>>, %arg9: memref<4x64x16xf32, #tpu.memory_space<vmem>>, %arg10: memref<4x128x32xf32, #tpu.memory_space<vmem>>, %arg11: memref<4x16x64xf32, #tpu.memory_space<vmem>>, %arg12: memref<128x1xf32, #tpu.memory_space<vmem>>, %arg13: memref<4x24x128xf32, #tpu.memory_space<vmem>>, %arg14: memref<4x64x256xf32, #tpu.memory_space<vmem>>, %arg15: memref<24x1xf32, #tpu.memory_space<vmem>>, %arg16: memref<24x256xf32, #tpu.memory_space<vmem>>) attributes {dimension_semantics = [#tpu.dimension_semantics<parallel>], iteration_bounds = array<i64: 2>, scalar_prefetch = 0 : i64, scratch_operands = 0 : i64, tpu.core_type = #tpu.core_type<tc>, window_params = [{transform_indices = @transform_0, window_bounds = array<i64: 24, 256>}, {pipeline_mode = #tpu.pipeline_mode<synchronous>, transform_indices = @transform_1, window_bounds = array<i64: 9, 256>}, {pipeline_mode = #tpu.pipeline_mode<synchronous>, transform_indices = @transform_2, window_bounds = array<i64: 128, 216>}, {pipeline_mode = #tpu.pipeline_mode<synchronous>, transform_indices = @transform_3, window_bounds = array<i64: 128, 1>}, {pipeline_mode = #tpu.pipeline_mode<synchronous>, transform_indices = @transform_4, window_bounds = array<i64: 256, 64>}, {pipeline_mode = #tpu.pipeline_mode<synchronous>, transform_indices = @transform_5, window_bounds = array<i64: 9, 64, 64>}, {pipeline_mode = #tpu.pipeline_mode<synchronous>, transform_indices = @transform_6, window_bounds = array<i64: 32, 1152>}, {pipeline_mode = #tpu.pipeline_mode<synchronous>, transform_indices = @transform_7, window_bounds = array<i64: 32, 1>}, {pipeline_mode = #tpu.pipeline_mode<synchronous>, transform_indices = @transform_8, window_bounds = array<i64: 4, 64, 16>}, {pipeline_mode = #tpu.pipeline_mode<synchronous>, transform_indices = @transform_9, window_bounds = array<i64: 4, 128, 32>}, {pipeline_mode = #tpu.pipeline_mode<synchronous>, transform_indices = @transform_10, window_bounds = array<i64: 4, 16, 64>}, {pipeline_mode = #tpu.pipeline_mode<synchronous>, transform_indices = @transform_11, window_bounds = array<i64: 128, 1>}, {pipeline_mode = #tpu.pipeline_mode<synchronous>, transform_indices = @transform_12, window_bounds = array<i64: 4, 24, 128>}, {pipeline_mode = #tpu.pipeline_mode<synchronous>, transform_indices = @transform_13, window_bounds = array<i64: 4, 64, 256>}, {pipeline_mode = #tpu.pipeline_mode<synchronous>, transform_indices = @transform_14, window_bounds = array<i64: 24, 1>}, {transform_indices = @transform_15, window_bounds = array<i64: 24, 256>}]} {
    %c0 = arith.constant 0 : index
    %c0_0 = arith.constant 0 : index
    %0 = vector.load %arg1[%c0, %c0_0] : memref<24x256xf32, #tpu.memory_space<vmem>>, vector<24x256xf32>
    %c17_i32 = arith.constant 17 : i32
    %1 = tpu.dynamic_rotate %0 by %c17_i32 dim 1 : vector<24x256xf32>, i32 -> vector<24x256xf32>
    %c0_1 = arith.constant 0 : index
    %c0_2 = arith.constant 0 : index
    %2 = vector.load %arg2[%c0_1, %c0_2] : memref<9x256xf32, #tpu.memory_space<vmem>>, vector<1x256xf32>
    %3 = vector.broadcast %2 : vector<1x256xf32> to vector<24x256xf32>
    %4 = arith.mulf %1, %3 : vector<24x256xf32>
    %c16_i32 = arith.constant 16 : i32
    %5 = tpu.dynamic_rotate %0 by %c16_i32 dim 1 : vector<24x256xf32>, i32 -> vector<24x256xf32>
    %c1 = arith.constant 1 : index
    %c0_3 = arith.constant 0 : index
    %6 = vector.load %arg2[%c1, %c0_3] : memref<9x256xf32, #tpu.memory_space<vmem>>, vector<1x256xf32>
    %7 = vector.broadcast %6 : vector<1x256xf32> to vector<24x256xf32>
    %8 = arith.mulf %5, %7 : vector<24x256xf32>
    %c15_i32 = arith.constant 15 : i32
    %9 = tpu.dynamic_rotate %0 by %c15_i32 dim 1 : vector<24x256xf32>, i32 -> vector<24x256xf32>
    %c2 = arith.constant 2 : index
    %c0_4 = arith.constant 0 : index
    %10 = vector.load %arg2[%c2, %c0_4] : memref<9x256xf32, #tpu.memory_space<vmem>>, vector<1x256xf32>
    %11 = vector.broadcast %10 : vector<1x256xf32> to vector<24x256xf32>
    %12 = arith.mulf %9, %11 : vector<24x256xf32>
    %c1_i32 = arith.constant 1 : i32
    %13 = tpu.dynamic_rotate %0 by %c1_i32 dim 1 : vector<24x256xf32>, i32 -> vector<24x256xf32>
    %c3 = arith.constant 3 : index
    %c0_5 = arith.constant 0 : index
    %14 = vector.load %arg2[%c3, %c0_5] : memref<9x256xf32, #tpu.memory_space<vmem>>, vector<1x256xf32>
    %15 = vector.broadcast %14 : vector<1x256xf32> to vector<24x256xf32>
    %16 = arith.mulf %13, %15 : vector<24x256xf32>
    %c4 = arith.constant 4 : index
    %c0_6 = arith.constant 0 : index
    %17 = vector.load %arg2[%c4, %c0_6] : memref<9x256xf32, #tpu.memory_space<vmem>>, vector<1x256xf32>
    %18 = vector.broadcast %17 : vector<1x256xf32> to vector<24x256xf32>
    %19 = arith.mulf %0, %18 : vector<24x256xf32>
    %c255_i32 = arith.constant 255 : i32
    %20 = tpu.dynamic_rotate %0 by %c255_i32 dim 1 : vector<24x256xf32>, i32 -> vector<24x256xf32>
    %c5 = arith.constant 5 : index
    %c0_7 = arith.constant 0 : index
    %21 = vector.load %arg2[%c5, %c0_7] : memref<9x256xf32, #tpu.memory_space<vmem>>, vector<1x256xf32>
    %22 = vector.broadcast %21 : vector<1x256xf32> to vector<24x256xf32>
    %23 = arith.mulf %20, %22 : vector<24x256xf32>
    %c241_i32 = arith.constant 241 : i32
    %24 = tpu.dynamic_rotate %0 by %c241_i32 dim 1 : vector<24x256xf32>, i32 -> vector<24x256xf32>
    %c6 = arith.constant 6 : index
    %c0_8 = arith.constant 0 : index
    %25 = vector.load %arg2[%c6, %c0_8] : memref<9x256xf32, #tpu.memory_space<vmem>>, vector<1x256xf32>
    %26 = vector.broadcast %25 : vector<1x256xf32> to vector<24x256xf32>
    %27 = arith.mulf %24, %26 : vector<24x256xf32>
    %c240_i32 = arith.constant 240 : i32
    %28 = tpu.dynamic_rotate %0 by %c240_i32 dim 1 : vector<24x256xf32>, i32 -> vector<24x256xf32>
    %c7 = arith.constant 7 : index
    %c0_9 = arith.constant 0 : index
    %29 = vector.load %arg2[%c7, %c0_9] : memref<9x256xf32, #tpu.memory_space<vmem>>, vector<1x256xf32>
    %30 = vector.broadcast %29 : vector<1x256xf32> to vector<24x256xf32>
    %31 = arith.mulf %28, %30 : vector<24x256xf32>
    %c239_i32 = arith.constant 239 : i32
    %32 = tpu.dynamic_rotate %0 by %c239_i32 dim 1 : vector<24x256xf32>, i32 -> vector<24x256xf32>
    %c8 = arith.constant 8 : index
    %c0_10 = arith.constant 0 : index
    %33 = vector.load %arg2[%c8, %c0_10] : memref<9x256xf32, #tpu.memory_space<vmem>>, vector<1x256xf32>
    %34 = vector.broadcast %33 : vector<1x256xf32> to vector<24x256xf32>
    %35 = arith.mulf %32, %34 : vector<24x256xf32>
    %36 = tpu.concatenate %4, %8, %12, %16, %19, %23, %27, %31, %35 in 0 : vector<24x256xf32>, vector<24x256xf32>, vector<24x256xf32>, vector<24x256xf32>, vector<24x256xf32>, vector<24x256xf32>, vector<24x256xf32>, vector<24x256xf32>, vector<24x256xf32> -> vector<216x256xf32>
    %c0_11 = arith.constant 0 : index
    %c0_12 = arith.constant 0 : index
    %37 = vector.load %arg3[%c0_11, %c0_12] : memref<128x216xf32, #tpu.memory_space<vmem>>, vector<128x216xf32>
    %cst = arith.constant dense<0.000000e+00> : vector<128x256xf32>
    %38 = tpu.matmul %37, %36, %cst {dimension_numbers = #tpu.dot_dimension_numbers<[1], [0], [0], [1], [0, 0, 1, 1], [], []>} : vector<128x216xf32>, vector<216x256xf32>, vector<128x256xf32> -> vector<128x256xf32>
    %c0_13 = arith.constant 0 : index
    %c0_14 = arith.constant 0 : index
    %39 = vector.load %arg4[%c0_13, %c0_14] : memref<128x1xf32, #tpu.memory_space<vmem>>, vector<128x1xf32>
    %40 = vector.broadcast %39 : vector<128x1xf32> to vector<128x256xf32>
    %41 = arith.addf %38, %40 : vector<128x256xf32>
    %cst_15 = arith.constant 0.000000e+00 : f32
    %42 = vector.broadcast %cst_15 : f32 to vector<128x256xf32>
    %43 = arith.maximumf %41, %42 : vector<128x256xf32>
    %c255_i32_16 = arith.constant 255 : i32
    %44 = tpu.dynamic_rotate %43 by %c255_i32_16 dim 1 : vector<128x256xf32>, i32 -> vector<128x256xf32>
    %45 = arith.maximumf %43, %44 : vector<128x256xf32>
    %c240_i32_17 = arith.constant 240 : i32
    %46 = tpu.dynamic_rotate %43 by %c240_i32_17 dim 1 : vector<128x256xf32>, i32 -> vector<128x256xf32>
    %47 = arith.maximumf %45, %46 : vector<128x256xf32>
    %c239_i32_18 = arith.constant 239 : i32
    %48 = tpu.dynamic_rotate %43 by %c239_i32_18 dim 1 : vector<128x256xf32>, i32 -> vector<128x256xf32>
    %49 = arith.maximumf %47, %48 : vector<128x256xf32>
    %c0_19 = arith.constant 0 : index
    %c0_20 = arith.constant 0 : index
    %50 = vector.load %arg5[%c0_19, %c0_20] : memref<256x64xf32, #tpu.memory_space<vmem>>, vector<256x64xf32>
    %cst_21 = arith.constant dense<0.000000e+00> : vector<128x64xf32>
    %51 = tpu.matmul %49, %50, %cst_21 {dimension_numbers = #tpu.dot_dimension_numbers<[1], [0], [0], [1], [0, 0, 1, 1], [], []>} : vector<128x256xf32>, vector<256x64xf32>, vector<128x64xf32> -> vector<128x64xf32>
    %c0_22 = arith.constant 0 : index
    %c0_23 = arith.constant 0 : index
    %c0_24 = arith.constant 0 : index
    %52 = vector.load %arg6[%c0_22, %c0_23, %c0_24] : memref<9x64x64xf32, #tpu.memory_space<vmem>>, vector<1x64x64xf32>
    %53 = vector.shape_cast %52 : vector<1x64x64xf32> to vector<64x64xf32>
    %cst_25 = arith.constant dense<0.000000e+00> : vector<128x64xf32>
    %54 = tpu.matmul %51, %53, %cst_25 {dimension_numbers = #tpu.dot_dimension_numbers<[1], [0], [0], [1], [0, 0, 1, 1], [], []>} : vector<128x64xf32>, vector<64x64xf32>, vector<128x64xf32> -> vector<128x64xf32>
    %c1_26 = arith.constant 1 : index
    %c0_27 = arith.constant 0 : index
    %c0_28 = arith.constant 0 : index
    %55 = vector.load %arg6[%c1_26, %c0_27, %c0_28] : memref<9x64x64xf32, #tpu.memory_space<vmem>>, vector<1x64x64xf32>
    %56 = vector.shape_cast %55 : vector<1x64x64xf32> to vector<64x64xf32>
    %cst_29 = arith.constant dense<0.000000e+00> : vector<128x64xf32>
    %57 = tpu.matmul %51, %56, %cst_29 {dimension_numbers = #tpu.dot_dimension_numbers<[1], [0], [0], [1], [0, 0, 1, 1], [], []>} : vector<128x64xf32>, vector<64x64xf32>, vector<128x64xf32> -> vector<128x64xf32>
    %c2_30 = arith.constant 2 : index
    %c0_31 = arith.constant 0 : index
    %c0_32 = arith.constant 0 : index
    %58 = vector.load %arg6[%c2_30, %c0_31, %c0_32] : memref<9x64x64xf32, #tpu.memory_space<vmem>>, vector<1x64x64xf32>
    %59 = vector.shape_cast %58 : vector<1x64x64xf32> to vector<64x64xf32>
    %cst_33 = arith.constant dense<0.000000e+00> : vector<128x64xf32>
    %60 = tpu.matmul %51, %59, %cst_33 {dimension_numbers = #tpu.dot_dimension_numbers<[1], [0], [0], [1], [0, 0, 1, 1], [], []>} : vector<128x64xf32>, vector<64x64xf32>, vector<128x64xf32> -> vector<128x64xf32>
    %c3_34 = arith.constant 3 : index
    %c0_35 = arith.constant 0 : index
    %c0_36 = arith.constant 0 : index
    %61 = vector.load %arg6[%c3_34, %c0_35, %c0_36] : memref<9x64x64xf32, #tpu.memory_space<vmem>>, vector<1x64x64xf32>
    %62 = vector.shape_cast %61 : vector<1x64x64xf32> to vector<64x64xf32>
    %cst_37 = arith.constant dense<0.000000e+00> : vector<128x64xf32>
    %63 = tpu.matmul %51, %62, %cst_37 {dimension_numbers = #tpu.dot_dimension_numbers<[1], [0], [0], [1], [0, 0, 1, 1], [], []>} : vector<128x64xf32>, vector<64x64xf32>, vector<128x64xf32> -> vector<128x64xf32>
    %c4_38 = arith.constant 4 : index
    %c0_39 = arith.constant 0 : index
    %c0_40 = arith.constant 0 : index
    %64 = vector.load %arg6[%c4_38, %c0_39, %c0_40] : memref<9x64x64xf32, #tpu.memory_space<vmem>>, vector<1x64x64xf32>
    %65 = vector.shape_cast %64 : vector<1x64x64xf32> to vector<64x64xf32>
    %cst_41 = arith.constant dense<0.000000e+00> : vector<128x64xf32>
    %66 = tpu.matmul %51, %65, %cst_41 {dimension_numbers = #tpu.dot_dimension_numbers<[1], [0], [0], [1], [0, 0, 1, 1], [], []>} : vector<128x64xf32>, vector<64x64xf32>, vector<128x64xf32> -> vector<128x64xf32>
    %c5_42 = arith.constant 5 : index
    %c0_43 = arith.constant 0 : index
    %c0_44 = arith.constant 0 : index
    %67 = vector.load %arg6[%c5_42, %c0_43, %c0_44] : memref<9x64x64xf32, #tpu.memory_space<vmem>>, vector<1x64x64xf32>
    %68 = vector.shape_cast %67 : vector<1x64x64xf32> to vector<64x64xf32>
    %cst_45 = arith.constant dense<0.000000e+00> : vector<128x64xf32>
    %69 = tpu.matmul %51, %68, %cst_45 {dimension_numbers = #tpu.dot_dimension_numbers<[1], [0], [0], [1], [0, 0, 1, 1], [], []>} : vector<128x64xf32>, vector<64x64xf32>, vector<128x64xf32> -> vector<128x64xf32>
    %c6_46 = arith.constant 6 : index
    %c0_47 = arith.constant 0 : index
    %c0_48 = arith.constant 0 : index
    %70 = vector.load %arg6[%c6_46, %c0_47, %c0_48] : memref<9x64x64xf32, #tpu.memory_space<vmem>>, vector<1x64x64xf32>
    %71 = vector.shape_cast %70 : vector<1x64x64xf32> to vector<64x64xf32>
    %cst_49 = arith.constant dense<0.000000e+00> : vector<128x64xf32>
    %72 = tpu.matmul %51, %71, %cst_49 {dimension_numbers = #tpu.dot_dimension_numbers<[1], [0], [0], [1], [0, 0, 1, 1], [], []>} : vector<128x64xf32>, vector<64x64xf32>, vector<128x64xf32> -> vector<128x64xf32>
    %c7_50 = arith.constant 7 : index
    %c0_51 = arith.constant 0 : index
    %c0_52 = arith.constant 0 : index
    %73 = vector.load %arg6[%c7_50, %c0_51, %c0_52] : memref<9x64x64xf32, #tpu.memory_space<vmem>>, vector<1x64x64xf32>
    %74 = vector.shape_cast %73 : vector<1x64x64xf32> to vector<64x64xf32>
    %cst_53 = arith.constant dense<0.000000e+00> : vector<128x64xf32>
    %75 = tpu.matmul %51, %74, %cst_53 {dimension_numbers = #tpu.dot_dimension_numbers<[1], [0], [0], [1], [0, 0, 1, 1], [], []>} : vector<128x64xf32>, vector<64x64xf32>, vector<128x64xf32> -> vector<128x64xf32>
    %c8_54 = arith.constant 8 : index
    %c0_55 = arith.constant 0 : index
    %c0_56 = arith.constant 0 : index
    %76 = vector.load %arg6[%c8_54, %c0_55, %c0_56] : memref<9x64x64xf32, #tpu.memory_space<vmem>>, vector<1x64x64xf32>
    %77 = vector.shape_cast %76 : vector<1x64x64xf32> to vector<64x64xf32>
    %cst_57 = arith.constant dense<0.000000e+00> : vector<128x64xf32>
    %78 = tpu.matmul %51, %77, %cst_57 {dimension_numbers = #tpu.dot_dimension_numbers<[1], [0], [0], [1], [0, 0, 1, 1], [], []>} : vector<128x64xf32>, vector<64x64xf32>, vector<128x64xf32> -> vector<128x64xf32>
    %79 = tpu.concatenate %54, %57, %60, %63, %66, %69, %72, %75, %78 in 0 : vector<128x64xf32>, vector<128x64xf32>, vector<128x64xf32>, vector<128x64xf32>, vector<128x64xf32>, vector<128x64xf32>, vector<128x64xf32>, vector<128x64xf32>, vector<128x64xf32> -> vector<1152x64xf32>
    %c0_58 = arith.constant 0 : index
    %c0_59 = arith.constant 0 : index
    %80 = vector.load %arg7[%c0_58, %c0_59] : memref<32x1152xf32, #tpu.memory_space<vmem>>, vector<32x1152xf32>
    %cst_60 = arith.constant dense<0.000000e+00> : vector<32x64xf32>
    %81 = tpu.matmul %80, %79, %cst_60 {dimension_numbers = #tpu.dot_dimension_numbers<[1], [0], [0], [1], [0, 0, 1, 1], [], []>} : vector<32x1152xf32>, vector<1152x64xf32>, vector<32x64xf32> -> vector<32x64xf32>
    %c0_61 = arith.constant 0 : index
    %c0_62 = arith.constant 0 : index
    %82 = vector.load %arg8[%c0_61, %c0_62] : memref<32x1xf32, #tpu.memory_space<vmem>>, vector<32x1xf32>
    %83 = vector.broadcast %82 : vector<32x1xf32> to vector<32x64xf32>
    %84 = arith.addf %81, %83 : vector<32x64xf32>
    %cst_63 = arith.constant 0.000000e+00 : f32
    %85 = vector.broadcast %cst_63 : f32 to vector<32x64xf32>
    %86 = arith.maximumf %84, %85 : vector<32x64xf32>
    %c0_64 = arith.constant 0 : index
    %c0_65 = arith.constant 0 : index
    %c0_66 = arith.constant 0 : index
    %87 = vector.load %arg9[%c0_64, %c0_65, %c0_66] : memref<4x64x16xf32, #tpu.memory_space<vmem>>, vector<1x64x16xf32>
    %88 = vector.shape_cast %87 : vector<1x64x16xf32> to vector<64x16xf32>
    %cst_67 = arith.constant dense<0.000000e+00> : vector<32x16xf32>
    %89 = tpu.matmul %86, %88, %cst_67 {dimension_numbers = #tpu.dot_dimension_numbers<[1], [0], [0], [1], [0, 0, 1, 1], [], []>} : vector<32x64xf32>, vector<64x16xf32>, vector<32x16xf32> -> vector<32x16xf32>
    %c1_68 = arith.constant 1 : index
    %c0_69 = arith.constant 0 : index
    %c0_70 = arith.constant 0 : index
    %90 = vector.load %arg9[%c1_68, %c0_69, %c0_70] : memref<4x64x16xf32, #tpu.memory_space<vmem>>, vector<1x64x16xf32>
    %91 = vector.shape_cast %90 : vector<1x64x16xf32> to vector<64x16xf32>
    %cst_71 = arith.constant dense<0.000000e+00> : vector<32x16xf32>
    %92 = tpu.matmul %86, %91, %cst_71 {dimension_numbers = #tpu.dot_dimension_numbers<[1], [0], [0], [1], [0, 0, 1, 1], [], []>} : vector<32x64xf32>, vector<64x16xf32>, vector<32x16xf32> -> vector<32x16xf32>
    %93 = arith.maximumf %89, %92 : vector<32x16xf32>
    %c2_72 = arith.constant 2 : index
    %c0_73 = arith.constant 0 : index
    %c0_74 = arith.constant 0 : index
    %94 = vector.load %arg9[%c2_72, %c0_73, %c0_74] : memref<4x64x16xf32, #tpu.memory_space<vmem>>, vector<1x64x16xf32>
    %95 = vector.shape_cast %94 : vector<1x64x16xf32> to vector<64x16xf32>
    %cst_75 = arith.constant dense<0.000000e+00> : vector<32x16xf32>
    %96 = tpu.matmul %86, %95, %cst_75 {dimension_numbers = #tpu.dot_dimension_numbers<[1], [0], [0], [1], [0, 0, 1, 1], [], []>} : vector<32x64xf32>, vector<64x16xf32>, vector<32x16xf32> -> vector<32x16xf32>
    %97 = arith.maximumf %93, %96 : vector<32x16xf32>
    %c3_76 = arith.constant 3 : index
    %c0_77 = arith.constant 0 : index
    %c0_78 = arith.constant 0 : index
    %98 = vector.load %arg9[%c3_76, %c0_77, %c0_78] : memref<4x64x16xf32, #tpu.memory_space<vmem>>, vector<1x64x16xf32>
    %99 = vector.shape_cast %98 : vector<1x64x16xf32> to vector<64x16xf32>
    %cst_79 = arith.constant dense<0.000000e+00> : vector<32x16xf32>
    %100 = tpu.matmul %86, %99, %cst_79 {dimension_numbers = #tpu.dot_dimension_numbers<[1], [0], [0], [1], [0, 0, 1, 1], [], []>} : vector<32x64xf32>, vector<64x16xf32>, vector<32x16xf32> -> vector<32x16xf32>
    %101 = arith.maximumf %97, %100 : vector<32x16xf32>
    %c0_80 = arith.constant 0 : index
    %c0_81 = arith.constant 0 : index
    %c0_82 = arith.constant 0 : index
    %102 = vector.load %arg10[%c0_80, %c0_81, %c0_82] : memref<4x128x32xf32, #tpu.memory_space<vmem>>, vector<1x128x32xf32>
    %103 = vector.shape_cast %102 : vector<1x128x32xf32> to vector<128x32xf32>
    %cst_83 = arith.constant dense<0.000000e+00> : vector<128x16xf32>
    %104 = tpu.matmul %103, %101, %cst_83 {dimension_numbers = #tpu.dot_dimension_numbers<[1], [0], [0], [1], [0, 0, 1, 1], [], []>} : vector<128x32xf32>, vector<32x16xf32>, vector<128x16xf32> -> vector<128x16xf32>
    %c0_84 = arith.constant 0 : index
    %c0_85 = arith.constant 0 : index
    %c0_86 = arith.constant 0 : index
    %105 = vector.load %arg11[%c0_84, %c0_85, %c0_86] : memref<4x16x64xf32, #tpu.memory_space<vmem>>, vector<1x16x64xf32>
    %106 = vector.shape_cast %105 : vector<1x16x64xf32> to vector<16x64xf32>
    %cst_87 = arith.constant dense<0.000000e+00> : vector<128x64xf32>
    %107 = tpu.matmul %104, %106, %cst_87 {dimension_numbers = #tpu.dot_dimension_numbers<[1], [0], [0], [1], [0, 0, 1, 1], [], []>} : vector<128x16xf32>, vector<16x64xf32>, vector<128x64xf32> -> vector<128x64xf32>
    %c1_88 = arith.constant 1 : index
    %c0_89 = arith.constant 0 : index
    %c0_90 = arith.constant 0 : index
    %108 = vector.load %arg10[%c1_88, %c0_89, %c0_90] : memref<4x128x32xf32, #tpu.memory_space<vmem>>, vector<1x128x32xf32>
    %109 = vector.shape_cast %108 : vector<1x128x32xf32> to vector<128x32xf32>
    %cst_91 = arith.constant dense<0.000000e+00> : vector<128x16xf32>
    %110 = tpu.matmul %109, %101, %cst_91 {dimension_numbers = #tpu.dot_dimension_numbers<[1], [0], [0], [1], [0, 0, 1, 1], [], []>} : vector<128x32xf32>, vector<32x16xf32>, vector<128x16xf32> -> vector<128x16xf32>
    %c1_92 = arith.constant 1 : index
    %c0_93 = arith.constant 0 : index
    %c0_94 = arith.constant 0 : index
    %111 = vector.load %arg11[%c1_92, %c0_93, %c0_94] : memref<4x16x64xf32, #tpu.memory_space<vmem>>, vector<1x16x64xf32>
    %112 = vector.shape_cast %111 : vector<1x16x64xf32> to vector<16x64xf32>
    %cst_95 = arith.constant dense<0.000000e+00> : vector<128x64xf32>
    %113 = tpu.matmul %110, %112, %cst_95 {dimension_numbers = #tpu.dot_dimension_numbers<[1], [0], [0], [1], [0, 0, 1, 1], [], []>} : vector<128x16xf32>, vector<16x64xf32>, vector<128x64xf32> -> vector<128x64xf32>
    %114 = arith.addf %107, %113 : vector<128x64xf32>
    %c2_96 = arith.constant 2 : index
    %c0_97 = arith.constant 0 : index
    %c0_98 = arith.constant 0 : index
    %115 = vector.load %arg10[%c2_96, %c0_97, %c0_98] : memref<4x128x32xf32, #tpu.memory_space<vmem>>, vector<1x128x32xf32>
    %116 = vector.shape_cast %115 : vector<1x128x32xf32> to vector<128x32xf32>
    %cst_99 = arith.constant dense<0.000000e+00> : vector<128x16xf32>
    %117 = tpu.matmul %116, %101, %cst_99 {dimension_numbers = #tpu.dot_dimension_numbers<[1], [0], [0], [1], [0, 0, 1, 1], [], []>} : vector<128x32xf32>, vector<32x16xf32>, vector<128x16xf32> -> vector<128x16xf32>
    %c2_100 = arith.constant 2 : index
    %c0_101 = arith.constant 0 : index
    %c0_102 = arith.constant 0 : index
    %118 = vector.load %arg11[%c2_100, %c0_101, %c0_102] : memref<4x16x64xf32, #tpu.memory_space<vmem>>, vector<1x16x64xf32>
    %119 = vector.shape_cast %118 : vector<1x16x64xf32> to vector<16x64xf32>
    %cst_103 = arith.constant dense<0.000000e+00> : vector<128x64xf32>
    %120 = tpu.matmul %117, %119, %cst_103 {dimension_numbers = #tpu.dot_dimension_numbers<[1], [0], [0], [1], [0, 0, 1, 1], [], []>} : vector<128x16xf32>, vector<16x64xf32>, vector<128x64xf32> -> vector<128x64xf32>
    %121 = arith.addf %114, %120 : vector<128x64xf32>
    %c3_104 = arith.constant 3 : index
    %c0_105 = arith.constant 0 : index
    %c0_106 = arith.constant 0 : index
    %122 = vector.load %arg10[%c3_104, %c0_105, %c0_106] : memref<4x128x32xf32, #tpu.memory_space<vmem>>, vector<1x128x32xf32>
    %123 = vector.shape_cast %122 : vector<1x128x32xf32> to vector<128x32xf32>
    %cst_107 = arith.constant dense<0.000000e+00> : vector<128x16xf32>
    %124 = tpu.matmul %123, %101, %cst_107 {dimension_numbers = #tpu.dot_dimension_numbers<[1], [0], [0], [1], [0, 0, 1, 1], [], []>} : vector<128x32xf32>, vector<32x16xf32>, vector<128x16xf32> -> vector<128x16xf32>
    %c3_108 = arith.constant 3 : index
    %c0_109 = arith.constant 0 : index
    %c0_110 = arith.constant 0 : index
    %125 = vector.load %arg11[%c3_108, %c0_109, %c0_110] : memref<4x16x64xf32, #tpu.memory_space<vmem>>, vector<1x16x64xf32>
    %126 = vector.shape_cast %125 : vector<1x16x64xf32> to vector<16x64xf32>
    %cst_111 = arith.constant dense<0.000000e+00> : vector<128x64xf32>
    %127 = tpu.matmul %124, %126, %cst_111 {dimension_numbers = #tpu.dot_dimension_numbers<[1], [0], [0], [1], [0, 0, 1, 1], [], []>} : vector<128x16xf32>, vector<16x64xf32>, vector<128x64xf32> -> vector<128x64xf32>
    %128 = arith.addf %121, %127 : vector<128x64xf32>
    %c0_112 = arith.constant 0 : index
    %c0_113 = arith.constant 0 : index
    %129 = vector.load %arg12[%c0_112, %c0_113] : memref<128x1xf32, #tpu.memory_space<vmem>>, vector<128x1xf32>
    %130 = vector.broadcast %129 : vector<128x1xf32> to vector<128x64xf32>
    %131 = arith.addf %128, %130 : vector<128x64xf32>
    %cst_114 = arith.constant 0.000000e+00 : f32
    %132 = vector.broadcast %cst_114 : f32 to vector<128x64xf32>
    %133 = arith.maximumf %131, %132 : vector<128x64xf32>
    %c0_115 = arith.constant 0 : index
    %c0_116 = arith.constant 0 : index
    %c0_117 = arith.constant 0 : index
    %134 = vector.load %arg13[%c0_115, %c0_116, %c0_117] : memref<4x24x128xf32, #tpu.memory_space<vmem>>, vector<1x24x128xf32>
    %135 = vector.shape_cast %134 : vector<1x24x128xf32> to vector<24x128xf32>
    %cst_118 = arith.constant dense<0.000000e+00> : vector<24x64xf32>
    %136 = tpu.matmul %135, %133, %cst_118 {dimension_numbers = #tpu.dot_dimension_numbers<[1], [0], [0], [1], [0, 0, 1, 1], [], []>} : vector<24x128xf32>, vector<128x64xf32>, vector<24x64xf32> -> vector<24x64xf32>
    %c0_119 = arith.constant 0 : index
    %c0_120 = arith.constant 0 : index
    %c0_121 = arith.constant 0 : index
    %137 = vector.load %arg14[%c0_119, %c0_120, %c0_121] : memref<4x64x256xf32, #tpu.memory_space<vmem>>, vector<1x64x256xf32>
    %138 = vector.shape_cast %137 : vector<1x64x256xf32> to vector<64x256xf32>
    %cst_122 = arith.constant dense<0.000000e+00> : vector<24x256xf32>
    %139 = tpu.matmul %136, %138, %cst_122 {dimension_numbers = #tpu.dot_dimension_numbers<[1], [0], [0], [1], [0, 0, 1, 1], [], []>} : vector<24x64xf32>, vector<64x256xf32>, vector<24x256xf32> -> vector<24x256xf32>
    %c1_123 = arith.constant 1 : index
    %c0_124 = arith.constant 0 : index
    %c0_125 = arith.constant 0 : index
    %140 = vector.load %arg13[%c1_123, %c0_124, %c0_125] : memref<4x24x128xf32, #tpu.memory_space<vmem>>, vector<1x24x128xf32>
    %141 = vector.shape_cast %140 : vector<1x24x128xf32> to vector<24x128xf32>
    %cst_126 = arith.constant dense<0.000000e+00> : vector<24x64xf32>
    %142 = tpu.matmul %141, %133, %cst_126 {dimension_numbers = #tpu.dot_dimension_numbers<[1], [0], [0], [1], [0, 0, 1, 1], [], []>} : vector<24x128xf32>, vector<128x64xf32>, vector<24x64xf32> -> vector<24x64xf32>
    %c1_127 = arith.constant 1 : index
    %c0_128 = arith.constant 0 : index
    %c0_129 = arith.constant 0 : index
    %143 = vector.load %arg14[%c1_127, %c0_128, %c0_129] : memref<4x64x256xf32, #tpu.memory_space<vmem>>, vector<1x64x256xf32>
    %144 = vector.shape_cast %143 : vector<1x64x256xf32> to vector<64x256xf32>
    %cst_130 = arith.constant dense<0.000000e+00> : vector<24x256xf32>
    %145 = tpu.matmul %142, %144, %cst_130 {dimension_numbers = #tpu.dot_dimension_numbers<[1], [0], [0], [1], [0, 0, 1, 1], [], []>} : vector<24x64xf32>, vector<64x256xf32>, vector<24x256xf32> -> vector<24x256xf32>
    %146 = arith.addf %139, %145 : vector<24x256xf32>
    %c2_131 = arith.constant 2 : index
    %c0_132 = arith.constant 0 : index
    %c0_133 = arith.constant 0 : index
    %147 = vector.load %arg13[%c2_131, %c0_132, %c0_133] : memref<4x24x128xf32, #tpu.memory_space<vmem>>, vector<1x24x128xf32>
    %148 = vector.shape_cast %147 : vector<1x24x128xf32> to vector<24x128xf32>
    %cst_134 = arith.constant dense<0.000000e+00> : vector<24x64xf32>
    %149 = tpu.matmul %148, %133, %cst_134 {dimension_numbers = #tpu.dot_dimension_numbers<[1], [0], [0], [1], [0, 0, 1, 1], [], []>} : vector<24x128xf32>, vector<128x64xf32>, vector<24x64xf32> -> vector<24x64xf32>
    %c2_135 = arith.constant 2 : index
    %c0_136 = arith.constant 0 : index
    %c0_137 = arith.constant 0 : index
    %150 = vector.load %arg14[%c2_135, %c0_136, %c0_137] : memref<4x64x256xf32, #tpu.memory_space<vmem>>, vector<1x64x256xf32>
    %151 = vector.shape_cast %150 : vector<1x64x256xf32> to vector<64x256xf32>
    %cst_138 = arith.constant dense<0.000000e+00> : vector<24x256xf32>
    %152 = tpu.matmul %149, %151, %cst_138 {dimension_numbers = #tpu.dot_dimension_numbers<[1], [0], [0], [1], [0, 0, 1, 1], [], []>} : vector<24x64xf32>, vector<64x256xf32>, vector<24x256xf32> -> vector<24x256xf32>
    %153 = arith.addf %146, %152 : vector<24x256xf32>
    %c3_139 = arith.constant 3 : index
    %c0_140 = arith.constant 0 : index
    %c0_141 = arith.constant 0 : index
    %154 = vector.load %arg13[%c3_139, %c0_140, %c0_141] : memref<4x24x128xf32, #tpu.memory_space<vmem>>, vector<1x24x128xf32>
    %155 = vector.shape_cast %154 : vector<1x24x128xf32> to vector<24x128xf32>
    %cst_142 = arith.constant dense<0.000000e+00> : vector<24x64xf32>
    %156 = tpu.matmul %155, %133, %cst_142 {dimension_numbers = #tpu.dot_dimension_numbers<[1], [0], [0], [1], [0, 0, 1, 1], [], []>} : vector<24x128xf32>, vector<128x64xf32>, vector<24x64xf32> -> vector<24x64xf32>
    %c3_143 = arith.constant 3 : index
    %c0_144 = arith.constant 0 : index
    %c0_145 = arith.constant 0 : index
    %157 = vector.load %arg14[%c3_143, %c0_144, %c0_145] : memref<4x64x256xf32, #tpu.memory_space<vmem>>, vector<1x64x256xf32>
    %158 = vector.shape_cast %157 : vector<1x64x256xf32> to vector<64x256xf32>
    %cst_146 = arith.constant dense<0.000000e+00> : vector<24x256xf32>
    %159 = tpu.matmul %156, %158, %cst_146 {dimension_numbers = #tpu.dot_dimension_numbers<[1], [0], [0], [1], [0, 0, 1, 1], [], []>} : vector<24x64xf32>, vector<64x256xf32>, vector<24x256xf32> -> vector<24x256xf32>
    %160 = arith.addf %153, %159 : vector<24x256xf32>
    %c0_147 = arith.constant 0 : index
    %c0_148 = arith.constant 0 : index
    %161 = vector.load %arg15[%c0_147, %c0_148] : memref<24x1xf32, #tpu.memory_space<vmem>>, vector<24x1xf32>
    %162 = vector.broadcast %161 : vector<24x1xf32> to vector<24x256xf32>
    %163 = arith.addf %160, %162 : vector<24x256xf32>
    %164 = arith.negf %163 : vector<24x256xf32>
    %165 = math.exp %164 : vector<24x256xf32>
    %cst_149 = arith.constant 1.000000e+00 : f32
    %166 = vector.broadcast %cst_149 : f32 to vector<24x256xf32>
    %167 = arith.addf %166, %165 : vector<24x256xf32>
    %168 = arith.divf %166, %167 : vector<24x256xf32>
    %c0_150 = arith.constant 0 : index
    %c0_151 = arith.constant 0 : index
    %169 = vector.load %arg16[%c0_150, %c0_151] : memref<24x256xf32, #tpu.memory_space<vmem>>, vector<24x256xf32>
    tpu.vector_store %arg16[%c0_150, %c0_151], %168 {strides = array<i32>} : memref<24x256xf32, #tpu.memory_space<vmem>>, vector<24x256xf32>,
    return
  }
  func.func @transform_0(%arg0: i32) -> (i32, i32) {
    %c0_i32 = arith.constant 0 : i32
    %c0_i32_0 = arith.constant 0 : i32
    return %arg0, %c0_i32 : i32, i32
  }
  func.func @transform_1(%arg0: i32) -> (i32, i32) {
    %c0_i32 = arith.constant 0 : i32
    %c0_i32_0 = arith.constant 0 : i32
    %c0_i32_1 = arith.constant 0 : i32
    return %c0_i32, %c0_i32_0 : i32, i32
  }
  func.func @transform_2(%arg0: i32) -> (i32, i32) {
    %c0_i32 = arith.constant 0 : i32
    %c0_i32_0 = arith.constant 0 : i32
    %c0_i32_1 = arith.constant 0 : i32
    return %c0_i32, %c0_i32_0 : i32, i32
  }
  func.func @transform_3(%arg0: i32) -> (i32, i32) {
    %c0_i32 = arith.constant 0 : i32
    %c0_i32_0 = arith.constant 0 : i32
    %c0_i32_1 = arith.constant 0 : i32
    return %c0_i32, %c0_i32_0 : i32, i32
  }
  func.func @transform_4(%arg0: i32) -> (i32, i32) {
    %c0_i32 = arith.constant 0 : i32
    %c0_i32_0 = arith.constant 0 : i32
    %c0_i32_1 = arith.constant 0 : i32
    return %c0_i32, %c0_i32_0 : i32, i32
  }
  func.func @transform_5(%arg0: i32) -> (i32, i32, i32) {
    %c0_i32 = arith.constant 0 : i32
    %c0_i32_0 = arith.constant 0 : i32
    %c0_i32_1 = arith.constant 0 : i32
    %c0_i32_2 = arith.constant 0 : i32
    return %c0_i32, %c0_i32_0, %c0_i32_1 : i32, i32, i32
  }
  func.func @transform_6(%arg0: i32) -> (i32, i32) {
    %c0_i32 = arith.constant 0 : i32
    %c0_i32_0 = arith.constant 0 : i32
    %c0_i32_1 = arith.constant 0 : i32
    return %c0_i32, %c0_i32_0 : i32, i32
  }
  func.func @transform_7(%arg0: i32) -> (i32, i32) {
    %c0_i32 = arith.constant 0 : i32
    %c0_i32_0 = arith.constant 0 : i32
    %c0_i32_1 = arith.constant 0 : i32
    return %c0_i32, %c0_i32_0 : i32, i32
  }
  func.func @transform_8(%arg0: i32) -> (i32, i32, i32) {
    %c0_i32 = arith.constant 0 : i32
    %c0_i32_0 = arith.constant 0 : i32
    %c0_i32_1 = arith.constant 0 : i32
    %c0_i32_2 = arith.constant 0 : i32
    return %c0_i32, %c0_i32_0, %c0_i32_1 : i32, i32, i32
  }
  func.func @transform_9(%arg0: i32) -> (i32, i32, i32) {
    %c0_i32 = arith.constant 0 : i32
    %c0_i32_0 = arith.constant 0 : i32
    %c0_i32_1 = arith.constant 0 : i32
    %c0_i32_2 = arith.constant 0 : i32
    return %c0_i32, %c0_i32_0, %c0_i32_1 : i32, i32, i32
  }
  func.func @transform_10(%arg0: i32) -> (i32, i32, i32) {
    %c0_i32 = arith.constant 0 : i32
    %c0_i32_0 = arith.constant 0 : i32
    %c0_i32_1 = arith.constant 0 : i32
    %c0_i32_2 = arith.constant 0 : i32
    return %c0_i32, %c0_i32_0, %c0_i32_1 : i32, i32, i32
  }
  func.func @transform_11(%arg0: i32) -> (i32, i32) {
    %c0_i32 = arith.constant 0 : i32
    %c0_i32_0 = arith.constant 0 : i32
    %c0_i32_1 = arith.constant 0 : i32
    return %c0_i32, %c0_i32_0 : i32, i32
  }
  func.func @transform_12(%arg0: i32) -> (i32, i32, i32) {
    %c0_i32 = arith.constant 0 : i32
    %c0_i32_0 = arith.constant 0 : i32
    %c0_i32_1 = arith.constant 0 : i32
    %c0_i32_2 = arith.constant 0 : i32
    return %c0_i32, %c0_i32_0, %c0_i32_1 : i32, i32, i32
  }
  func.func @transform_13(%arg0: i32) -> (i32, i32, i32) {
    %c0_i32 = arith.constant 0 : i32
    %c0_i32_0 = arith.constant 0 : i32
    %c0_i32_1 = arith.constant 0 : i32
    %c0_i32_2 = arith.constant 0 : i32
    return %c0_i32, %c0_i32_0, %c0_i32_1 : i32, i32, i32
  }
  func.func @transform_14(%arg0: i32) -> (i32, i32) {
    %c0_i32 = arith.constant 0 : i32
    %c0_i32_0 = arith.constant 0 : i32
    %c0_i32_1 = arith.constant 0 : i32
    return %c0_i32, %c0_i32_0 : i32, i32
  }
  func.func @transform_15(%arg0: i32) -> (i32, i32) {
    %c0_i32 = arith.constant 0 : i32
    %c0_i32_0 = arith.constant 0 : i32
    return %arg0, %c0_i32 : i32, i32
  }
}

</mosaic_0001>

<llo_original>
// kernel: forward.1
$region0: #{forward.1}
  #allocation0 [shape = 'u32[]', space=smem, size = 0x4, offset = 0x4, fixed_abs, tag = 'smem constant byte address 0x4 - core index']
  #allocation1 [shape = 'u32[144,128]{1,0:T(1,128)}', space=vmem, size = 0x12000, scoped, tag = 'internal scratch']
  %s0 = inlined_call_operand.vmem [shape: f32[48,256], index: 0, kind: input, shape index: {}]
  %s1 = inlined_call_operand.hbm [shape: f32[9,256], index: 1, kind: input, shape index: {}]
  %s2 = inlined_call_operand.hbm [shape: f32[128,216], index: 2, kind: input, shape index: {}]
  %s3 = inlined_call_operand.hbm [shape: f32[128,1], index: 3, kind: input, shape index: {}]
  %s4 = inlined_call_operand.hbm [shape: f32[256,64], index: 4, kind: input, shape index: {}]
  %s5 = inlined_call_operand.vmem [shape: f32[9,64,64], index: 5, kind: input, shape index: {}]
  %s6 = inlined_call_operand.hbm [shape: f32[32,1152], index: 6, kind: input, shape index: {}]
  %s7 = inlined_call_operand.hbm [shape: f32[32,1], index: 7, kind: input, shape index: {}]
  %s8 = inlined_call_operand.vmem [shape: f32[4,64,16], index: 8, kind: input, shape index: {}]
  %s9 = inlined_call_operand.hbm [shape: f32[4,128,32], index: 9, kind: input, shape index: {}]
  %s10 = inlined_call_operand.hbm [shape: f32[4,16,64], index: 10, kind: input, shape index: {}]
  %s11 = inlined_call_operand.hbm [shape: f32[128,1], index: 11, kind: input, shape index: {}]
  %s12 = inlined_call_operand.hbm [shape: f32[4,24,128], index: 12, kind: input, shape index: {}]
  %s13 = inlined_call_operand.hbm [shape: f32[4,64,256], index: 13, kind: input, shape index: {}]
  %s14 = inlined_call_operand.vmem [shape: f32[24,1], index: 14, kind: input, shape index: {}]
  %s15 = inlined_call_operand.vmem [shape: f32[48,256], index: 15, kind: output, shape index: {}]
  %s16 = sld [smem:[#allocation0]]
  $region137: #{forward.1} parent=0
    _
  %s18 = ssub.s32 1, %s16
  %s19 = scalar_select 0, %s18, %s16
  $region1: #{forward.1} parent=0
    #allocation2 [shape = 'u8[16384]{0}', space=vmem, size = 0x4000, scoped, tag = 'input window, operand 1, single buffered']
    #allocation3 [shape = 's32[2]{0}', space=sflag, size = 0x8, scoped, tag = 'scoped memory for forward.1']
    #allocation4 [shape = 'u8[131072]{0}', space=vmem, size = 0x20000, scoped, tag = 'input window, operand 2, single buffered']
    #allocation5 [shape = 's32[1]{0}', space=sflag, size = 0x4, scoped, tag = 'scoped memory for forward.1']
    #allocation6 [shape = 'u8[65536]{0}', space=vmem, size = 0x10000, scoped, tag = 'input window, operand 3, single buffered']
    #allocation7 [shape = 'u8[131072]{0}', space=vmem, size = 0x20000, scoped, tag = 'input window, operand 4, single buffered']
    #allocation8 [shape = 's32[1]{0}', space=sflag, size = 0x4, scoped, tag = 'scoped memory for forward.1']
    #allocation9 [shape = 'u8[147456]{0}', space=vmem, size = 0x24000, scoped, tag = 'input window, operand 6, single buffered']
    #allocation10 [shape = 'u8[16384]{0}', space=vmem, size = 0x4000, scoped, tag = 'input window, operand 7, single buffered']
    #allocation11 [shape = 's32[1]{0}', space=sflag, size = 0x4, scoped, tag = 'scoped memory for forward.1']
    #allocation12 [shape = 'u8[262144]{0}', space=vmem, size = 0x40000, scoped, tag = 'input window, operand 9, single buffered']
    #allocation13 [shape = 'u8[32768]{0}', space=vmem, size = 0x8000, scoped, tag = 'input window, operand 10, single buffered']
    #allocation14 [shape = 's32[1]{0}', space=sflag, size = 0x4, scoped, tag = 'scoped memory for forward.1']
    #allocation15 [shape = 'u8[65536]{0}', space=vmem, size = 0x10000, scoped, tag = 'input window, operand 11, single buffered']
    #allocation16 [shape = 'u8[49152]{0}', space=vmem, size = 0xc000, scoped, tag = 'input window, operand 12, single buffered']
    #allocation17 [shape = 's32[1]{0}', space=sflag, size = 0x4, scoped, tag = 'scoped memory for forward.1']
    #allocation18 [shape = 'u8[262144]{0}', space=vmem, size = 0x40000, scoped, tag = 'input window, operand 13, single buffered']
    %20 = vsyncpa [#allocation3], 0
    %21 = vsyncpa [#allocation5], 0
    %22 = vsyncpa [#allocation8], 0
    %23 = vsyncpa [#allocation11], 0
    %24 = vsyncpa [#allocation14], 0
    %25 = vsyncpa [#allocation17], 0
    loop: start=0, step=1, limit=4
    $region2: #{forward.1} parent=1 // loop_pre_header
      _
    $region3: #{forward.1} parent=1 // loop_header
      %s27 = sphi 0, %s31
      %p28 = scmp.ge.s32.totalorder %s27, 4
      %s37 = sphi 0, %s39
      %s40 = sphi 0, %s37
      %s41 = sphi 0, %s40
      %s57 = sphi 0, %s41
      %s61 = sphi 0, %s61
      %s63 = sphi 0, %s61
      %s64 = sphi 0, %s63
      %s78 = sphi 0, %s64
      %s82 = sphi 0, %s82
      %s84 = sphi 0, %s82
      %s85 = sphi 0, %s84
      %s99 = sphi 0, %s85
      %s103 = sphi 0, %s103
      %s105 = sphi 0, %s103
      %s106 = sphi 0, %s105
      %s120 = sphi 0, %s106
      %s124 = sphi 0, %s124
      %s126 = sphi 0, %s124
      %s127 = sphi 0, %s126
      %s141 = sphi 0, %s127
      %s145 = sphi 0, %s145
      %s147 = sphi 0, %s145
      %s148 = sphi 0, %s147
      %s162 = sphi 0, %s148
      %s166 = sphi 0, %s166
      %s168 = sphi 0, %s166
      %s169 = sphi 0, %s168
      %s183 = sphi 0, %s169
      %s187 = sphi 0, %s187
      %s189 = sphi 0, %s187
      %s190 = sphi 0, %s189
      %s204 = sphi 0, %s190
      %s208 = sphi 0, %s208
      %s210 = sphi 0, %s208
      %s211 = sphi 0, %s210
      %s225 = sphi 0, %s211
      %s229 = sphi 0, %s229
      %s231 = sphi 0, %s229
      %s232 = sphi 0, %s231
      %s246 = sphi 0, %s232
      %s250 = sphi 0, %s250
      %s252 = sphi 0, %s250
      %s253 = sphi 0, %s252
      %s267 = sphi 0, %s253
      %s271 = sphi 0, %s271
      %s273 = sphi 0, %s271
      %s274 = sphi 0, %s273
      %s288 = sphi 0, %s274
      %s292 = sphi 0, %s292
      %s294 = sphi 0, %s292
      %s295 = sphi 0, %s294
      %s309 = sphi 0, %s295
      %s313 = sphi 0, %s313
      %s315 = sphi 0, %s313
      %s316 = sphi 0, %s315
      %s330 = sphi 0, %s316
      %s334 = sphi 0, %s334
      %s336 = sphi 0, %s334
      %s337 = sphi 0, %s336
      %s351 = sphi 0, %s337
      %s357 = sphi 0, %s359
      %s360 = sphi 0, %s357
      %s361 = sphi 0, %s360
      %s377 = sphi 0, %s361
    $region4: #{forward.1} parent=1 // loop_header_branch
      %30 = sbr.rel (%p28) target = $region8
    $region5: #{forward.1} parent=1 // loop_body
      %s32 = ssub.s32 %s27, 1
      %s33 = ssub.s32 %s27, 2
      %s34 = sadd.s32 %s27, 1
      %s35 = ssub.s32 %s27, %s34
      %p36 = scmp.eq.s32.totalorder %s35, 0
      %s38 = sadd.s32 %s37, 1
      %s39 = scalar_select %p36, %s37, %s38
      %p42 = pneg %p36
      %p43 = scmp.eq.s32.totalorder %s27, 1
      %p44 = por %p42, %p43
      %p45 = scmp.ne.s32.totalorder %s37, %s40
      %p46 = scmp.eq.s32.totalorder %s27, 0
      %p47 = por %p45, %p46
      %p48 = scmp.ne.s32.totalorder %s37, %s40
      %p49 = scmp.eq.s32.totalorder %s32, 1
      %p50 = por %p48, %p49
      %p51 = scmp.ne.s32.totalorder %s40, %s41
      %p52 = scmp.eq.s32.totalorder %s32, 0
      %p53 = por %p51, %p52
      %p54 = scmp.ne.s32.totalorder %s40, %s41
      %p55 = scmp.eq.s32.totalorder %s33, 1
      %p56 = por %p54, %p55
      %p58 = scmp.ne.s32.totalorder %s41, %s57
      %p59 = scmp.eq.s32.totalorder %s33, 0
      %p60 = por %p58, %p59
      %s62 = sadd.s32 %s61, 1
      %p65 = scmp.eq.s32.totalorder %s27, 1
      %p66 = scmp.ne.s32.totalorder %s61, %s63
      %p67 = scmp.eq.s32.totalorder %s27, 0
      %p68 = por %p66, %p67
      %p69 = scmp.ne.s32.totalorder %s61, %s63
      %p70 = scmp.eq.s32.totalorder %s32, 1
      %p71 = por %p69, %p70
      %p72 = scmp.ne.s32.totalorder %s63, %s64
      %p73 = scmp.eq.s32.totalorder %s32, 0
      %p74 = por %p72, %p73
      %p75 = scmp.ne.s32.totalorder %s63, %s64
      %p76 = scmp.eq.s32.totalorder %s33, 1
      %p77 = por %p75, %p76
      %p79 = scmp.ne.s32.totalorder %s64, %s78
      %p80 = scmp.eq.s32.totalorder %s33, 0
      %p81 = por %p79, %p80
      %s83 = sadd.s32 %s82, 1
      %p86 = scmp.eq.s32.totalorder %s27, 1
      %p87 = scmp.ne.s32.totalorder %s82, %s84
      %p88 = scmp.eq.s32.totalorder %s27, 0
      %p89 = por %p87, %p88
      %p90 = scmp.ne.s32.totalorder %s82, %s84
      %p91 = scmp.eq.s32.totalorder %s32, 1
      %p92 = por %p90, %p91
      %p93 = scmp.ne.s32.totalorder %s84, %s85
      %p94 = scmp.eq.s32.totalorder %s32, 0
      %p95 = por %p93, %p94
      %p96 = scmp.ne.s32.totalorder %s84, %s85
      %p97 = scmp.eq.s32.totalorder %s33, 1
      %p98 = por %p96, %p97
      %p100 = scmp.ne.s32.totalorder %s85, %s99
      %p101 = scmp.eq.s32.totalorder %s33, 0
      %p102 = por %p100, %p101
      %s104 = sadd.s32 %s103, 1
      %p107 = scmp.eq.s32.totalorder %s27, 1
      %p108 = scmp.ne.s32.totalorder %s103, %s105
      %p109 = scmp.eq.s32.totalorder %s27, 0
      %p110 = por %p108, %p109
      %p111 = scmp.ne.s32.totalorder %s103, %s105
      %p112 = scmp.eq.s32.totalorder %s32, 1
      %p113 = por %p111, %p112
      %p114 = scmp.ne.s32.totalorder %s105, %s106
      %p115 = scmp.eq.s32.totalorder %s32, 0
      %p116 = por %p114, %p115
      %p117 = scmp.ne.s32.totalorder %s105, %s106
      %p118 = scmp.eq.s32.totalorder %s33, 1
      %p119 = por %p117, %p118
      %p121 = scmp.ne.s32.totalorder %s106, %s120
      %p122 = scmp.eq.s32.totalorder %s33, 0
      %p123 = por %p121, %p122
      %s125 = sadd.s32 %s124, 1
      %p128 = scmp.eq.s32.totalorder %s27, 1
      %p129 = scmp.ne.s32.totalorder %s124, %s126
      %p130 = scmp.eq.s32.totalorder %s27, 0
      %p131 = por %p129, %p130
      %p132 = scmp.ne.s32.totalorder %s124, %s126
      %p133 = scmp.eq.s32.totalorder %s32, 1
      %p134 = por %p132, %p133
      %p135 = scmp.ne.s32.totalorder %s126, %s127
      %p136 = scmp.eq.s32.totalorder %s32, 0
      %p137 = por %p135, %p136
      %p138 = scmp.ne.s32.totalorder %s126, %s127
      %p139 = scmp.eq.s32.totalorder %s33, 1
      %p140 = por %p138, %p139
      %p142 = scmp.ne.s32.totalorder %s127, %s141
      %p143 = scmp.eq.s32.totalorder %s33, 0
      %p144 = por %p142, %p143
      %s146 = sadd.s32 %s145, 1
      %p149 = scmp.eq.s32.totalorder %s27, 1
      %p150 = scmp.ne.s32.totalorder %s145, %s147
      %p151 = scmp.eq.s32.totalorder %s27, 0
      %p152 = por %p150, %p151
      %p153 = scmp.ne.s32.totalorder %s145, %s147
      %p154 = scmp.eq.s32.totalorder %s32, 1
      %p155 = por %p153, %p154
      %p156 = scmp.ne.s32.totalorder %s147, %s148
      %p157 = scmp.eq.s32.totalorder %s32, 0
      %p158 = por %p156, %p157
      %p159 = scmp.ne.s32.totalorder %s147, %s148
      %p160 = scmp.eq.s32.totalorder %s33, 1
      %p161 = por %p159, %p160
      %p163 = scmp.ne.s32.totalorder %s148, %s162
      %p164 = scmp.eq.s32.totalorder %s33, 0
      %p165 = por %p163, %p164
      %s167 = sadd.s32 %s166, 1
      %p170 = scmp.eq.s32.totalorder %s27, 1
      %p171 = scmp.ne.s32.totalorder %s166, %s168
      %p172 = scmp.eq.s32.totalorder %s27, 0
      %p173 = por %p171, %p172
      %p174 = scmp.ne.s32.totalorder %s166, %s168
      %p175 = scmp.eq.s32.totalorder %s32, 1
      %p176 = por %p174, %p175
      %p177 = scmp.ne.s32.totalorder %s168, %s169
      %p178 = scmp.eq.s32.totalorder %s32, 0
      %p179 = por %p177, %p178
      %p180 = scmp.ne.s32.totalorder %s168, %s169
      %p181 = scmp.eq.s32.totalorder %s33, 1
      %p182 = por %p180, %p181
      %p184 = scmp.ne.s32.totalorder %s169, %s183
      %p185 = scmp.eq.s32.totalorder %s33, 0
      %p186 = por %p184, %p185
      %s188 = sadd.s32 %s187, 1
      %p191 = scmp.eq.s32.totalorder %s27, 1
      %p192 = scmp.ne.s32.totalorder %s187, %s189
      %p193 = scmp.eq.s32.totalorder %s27, 0
      %p194 = por %p192, %p193
      %p195 = scmp.ne.s32.totalorder %s187, %s189
      %p196 = scmp.eq.s32.totalorder %s32, 1
      %p197 = por %p195, %p196
      %p198 = scmp.ne.s32.totalorder %s189, %s190
      %p199 = scmp.eq.s32.totalorder %s32, 0
      %p200 = por %p198, %p199
      %p201 = scmp.ne.s32.totalorder %s189, %s190
      %p202 = scmp.eq.s32.totalorder %s33, 1
      %p203 = por %p201, %p202
      %p205 = scmp.ne.s32.totalorder %s190, %s204
      %p206 = scmp.eq.s32.totalorder %s33, 0
      %p207 = por %p205, %p206
      %s209 = sadd.s32 %s208, 1
      %p212 = scmp.eq.s32.totalorder %s27, 1
      %p213 = scmp.ne.s32.totalorder %s208, %s210
      %p214 = scmp.eq.s32.totalorder %s27, 0
      %p215 = por %p213, %p214
      %p216 = scmp.ne.s32.totalorder %s208, %s210
      %p217 = scmp.eq.s32.totalorder %s32, 1
      %p218 = por %p216, %p217
      %p219 = scmp.ne.s32.totalorder %s210, %s211
      %p220 = scmp.eq.s32.totalorder %s32, 0
      %p221 = por %p219, %p220
      %p222 = scmp.ne.s32.totalorder %s210, %s211
      %p223 = scmp.eq.s32.totalorder %s33, 1
      %p224 = por %p222, %p223
      %p226 = scmp.ne.s32.totalorder %s211, %s225
      %p227 = scmp.eq.s32.totalorder %s33, 0
      %p228 = por %p226, %p227
      %s230 = sadd.s32 %s229, 1
      %p233 = scmp.eq.s32.totalorder %s27, 1
      %p234 = scmp.ne.s32.totalorder %s229, %s231
      %p235 = scmp.eq.s32.totalorder %s27, 0
      %p236 = por %p234, %p235
      %p237 = scmp.ne.s32.totalorder %s229, %s231
      %p238 = scmp.eq.s32.totalorder %s32, 1
      %p239 = por %p237, %p238
      %p240 = scmp.ne.s32.totalorder %s231, %s232
      %p241 = scmp.eq.s32.totalorder %s32, 0
      %p242 = por %p240, %p241
      %p243 = scmp.ne.s32.totalorder %s231, %s232
      %p244 = scmp.eq.s32.totalorder %s33, 1
      %p245 = por %p243, %p244
      %p247 = scmp.ne.s32.totalorder %s232, %s246
      %p248 = scmp.eq.s32.totalorder %s33, 0
      %p249 = por %p247, %p248
      %s251 = sadd.s32 %s250, 1
      %p254 = scmp.eq.s32.totalorder %s27, 1
      %p255 = scmp.ne.s32.totalorder %s250, %s252
      %p256 = scmp.eq.s32.totalorder %s27, 0
      %p257 = por %p255, %p256
      %p258 = scmp.ne.s32.totalorder %s250, %s252
      %p259 = scmp.eq.s32.totalorder %s32, 1
      %p260 = por %p258, %p259
      %p261 = scmp.ne.s32.totalorder %s252, %s253
      %p262 = scmp.eq.s32.totalorder %s32, 0
      %p263 = por %p261, %p262
      %p264 = scmp.ne.s32.totalorder %s252, %s253
      %p265 = scmp.eq.s32.totalorder %s33, 1
      %p266 = por %p264, %p265
      %p268 = scmp.ne.s32.totalorder %s253, %s267
      %p269 = scmp.eq.s32.totalorder %s33, 0
      %p270 = por %p268, %p269
      %s272 = sadd.s32 %s271, 1
      %p275 = scmp.eq.s32.totalorder %s27, 1
      %p276 = scmp.ne.s32.totalorder %s271, %s273
      %p277 = scmp.eq.s32.totalorder %s27, 0
      %p278 = por %p276, %p277
      %p279 = scmp.ne.s32.totalorder %s271, %s273
      %p280 = scmp.eq.s32.totalorder %s32, 1
      %p281 = por %p279, %p280
      %p282 = scmp.ne.s32.totalorder %s273, %s274
      %p283 = scmp.eq.s32.totalorder %s32, 0
      %p284 = por %p282, %p283
      %p285 = scmp.ne.s32.totalorder %s273, %s274
      %p286 = scmp.eq.s32.totalorder %s33, 1
      %p287 = por %p285, %p286
      %p289 = scmp.ne.s32.totalorder %s274, %s288
      %p290 = scmp.eq.s32.totalorder %s33, 0
      %p291 = por %p289, %p290
      %s293 = sadd.s32 %s292, 1
      %p296 = scmp.eq.s32.totalorder %s27, 1
      %p297 = scmp.ne.s32.totalorder %s292, %s294
      %p298 = scmp.eq.s32.totalorder %s27, 0
      %p299 = por %p297, %p298
      %p300 = scmp.ne.s32.totalorder %s292, %s294
      %p301 = scmp.eq.s32.totalorder %s32, 1
      %p302 = por %p300, %p301
      %p303 = scmp.ne.s32.totalorder %s294, %s295
      %p304 = scmp.eq.s32.totalorder %s32, 0
      %p305 = por %p303, %p304
      %p306 = scmp.ne.s32.totalorder %s294, %s295
      %p307 = scmp.eq.s32.totalorder %s33, 1
      %p308 = por %p306, %p307
      %p310 = scmp.ne.s32.totalorder %s295, %s309
      %p311 = scmp.eq.s32.totalorder %s33, 0
      %p312 = por %p310, %p311
      %s314 = sadd.s32 %s313, 1
      %p317 = scmp.eq.s32.totalorder %s27, 1
      %p318 = scmp.ne.s32.totalorder %s313, %s315
      %p319 = scmp.eq.s32.totalorder %s27, 0
      %p320 = por %p318, %p319
      %p321 = scmp.ne.s32.totalorder %s313, %s315
      %p322 = scmp.eq.s32.totalorder %s32, 1
      %p323 = por %p321, %p322
      %p324 = scmp.ne.s32.totalorder %s315, %s316
      %p325 = scmp.eq.s32.totalorder %s32, 0
      %p326 = por %p324, %p325
      %p327 = scmp.ne.s32.totalorder %s315, %s316
      %p328 = scmp.eq.s32.totalorder %s33, 1
      %p329 = por %p327, %p328
      %p331 = scmp.ne.s32.totalorder %s316, %s330
      %p332 = scmp.eq.s32.totalorder %s33, 0
      %p333 = por %p331, %p332
      %s335 = sadd.s32 %s334, 1
      %p338 = scmp.eq.s32.totalorder %s27, 1
      %p339 = scmp.ne.s32.totalorder %s334, %s336
      %p340 = scmp.eq.s32.totalorder %s27, 0
      %p341 = por %p339, %p340
      %p342 = scmp.ne.s32.totalorder %s334, %s336
      %p343 = scmp.eq.s32.totalorder %s32, 1
      %p344 = por %p342, %p343
      %p345 = scmp.ne.s32.totalorder %s336, %s337
      %p346 = scmp.eq.s32.totalorder %s32, 0
      %p347 = por %p345, %p346
      %p348 = scmp.ne.s32.totalorder %s336, %s337
      %p349 = scmp.eq.s32.totalorder %s33, 1
      %p350 = por %p348, %p349
      %p352 = scmp.ne.s32.totalorder %s337, %s351
      %p353 = scmp.eq.s32.totalorder %s33, 0
      %p354 = por %p352, %p353
      %s355 = ssub.s32 %s27, %s34
      %p356 = scmp.eq.s32.totalorder %s355, 0
      %s358 = sadd.s32 %s357, 1
      %s359 = scalar_select %p356, %s357, %s358
      %p362 = pneg %p356
      %p363 = scmp.eq.s32.totalorder %s27, 1
      %p364 = por %p362, %p363
      %p365 = scmp.ne.s32.totalorder %s357, %s360
      %p366 = scmp.eq.s32.totalorder %s27, 0
      %p367 = por %p365, %p366
      %p368 = scmp.ne.s32.totalorder %s357, %s360
      %p369 = scmp.eq.s32.totalorder %s32, 1
      %p370 = por %p368, %p369
      %p371 = scmp.ne.s32.totalorder %s360, %s361
      %p372 = scmp.eq.s32.totalorder %s32, 0
      %p373 = por %p371, %p372
      %p374 = scmp.ne.s32.totalorder %s360, %s361
      %p375 = scmp.eq.s32.totalorder %s33, 1
      %p376 = por %p374, %p375
      %p378 = scmp.ne.s32.totalorder %s361, %s377
      %p379 = scmp.eq.s32.totalorder %s33, 0
      %p380 = por %p378, %p379
      %p381 = scmp.le.s32.totalorder 1, %s27
      %p382 = scmp.lt.s32.totalorder %s27, 3
      %p383 = pnand %p381, %p382
      %p384 = pneg %p383
      // Predicated region
      $region9: #{forward.1} parent=5 // pred_check
        _
      $region10: #{forward.1} parent=5 // pred_check_branch
        %386 = sbr.rel (%p383) target = $region12
      $region11: #{forward.1} parent=5 // pred_region
        %s387 = ssub.s32 %s27, 1
        // Predicated region
        $region13: #{forward.1} parent=11 // pred_check
          %p388 = pneg %p74
        $region14: #{forward.1} parent=11 // pred_check_branch
          %390 = sbr.rel (%p388) target = $region16
        $region15: #{forward.1} parent=11 // pred_region
          %s392 = ssub.s32 512, 512
          %393 = vsyncadd [#allocation3], %s392
          %s394 = sshll.u32 [#allocation2], 4
          %s395 = int_to_ptr.vmem [resolvable:$true] %s394
          %400 = dma.hbm_to_vmem [thread:$0]  %s1, 512, %s395, [#allocation3], 256, 256, 16
        $region16: #{forward.1} parent=11 // pred_fallthru
          _
        // Predicated region
        $region17: #{forward.1} parent=11 // pred_check
          %p401 = pneg %p95
        $region18: #{forward.1} parent=11 // pred_check_branch
          %403 = sbr.rel (%p401) target = $region20
        $region19: #{forward.1} parent=11 // pred_region
          %s405 = ssub.s32 4096, 4096
          %406 = vsyncadd [#allocation5], %s405
          %s407 = sshll.u32 [#allocation4], 4
          %s408 = int_to_ptr.vmem [resolvable:$true] %s407
          %413 = dma.hbm_to_vmem [thread:$0]  %s2, 4096, %s408, [#allocation5], 256, 256, 16
        $region20: #{forward.1} parent=11 // pred_fallthru
          _
        // Predicated region
        $region21: #{forward.1} parent=11 // pred_check
          %p414 = pneg %p116
        $region22: #{forward.1} parent=11 // pred_check_branch
          %416 = sbr.rel (%p414) target = $region24
        $region23: #{forward.1} parent=11 // pred_region
          %s418 = ssub.s32 2048, 2048
          %419 = vsyncadd [#allocation5], %s418
          %s420 = sshll.u32 [#allocation6], 4
          %s421 = int_to_ptr.vmem [resolvable:$true] %s420
          %426 = dma.hbm_to_vmem [thread:$0]  %s3, 2048, %s421, [#allocation5], 128, 128, 8
        $region24: #{forward.1} parent=11 // pred_fallthru
          _
        // Predicated region
        $region25: #{forward.1} parent=11 // pred_check
          %p427 = pneg %p137
        $region26: #{forward.1} parent=11 // pred_check_branch
          %429 = sbr.rel (%p427) target = $region28
        $region27: #{forward.1} parent=11 // pred_region
          %s431 = ssub.s32 4096, 4096
          %432 = vsyncadd [#allocation8], %s431
          %s433 = sshll.u32 [#allocation7], 4
          %s434 = int_to_ptr.vmem [resolvable:$true] %s433
          %439 = dma.hbm_to_vmem [thread:$0]  %s4, 4096, %s434, [#allocation8], 128, 128, 8
        $region28: #{forward.1} parent=11 // pred_fallthru
          _
        // Predicated region
        $region29: #{forward.1} parent=11 // pred_check
          %p440 = pneg %p158
        $region30: #{forward.1} parent=11 // pred_check_branch
          %442 = sbr.rel (%p440) target = $region32
        $region31: #{forward.1} parent=11 // pred_region
          _
        $region32: #{forward.1} parent=11 // pred_fallthru
          _
        // Predicated region
        $region33: #{forward.1} parent=11 // pred_check
          %p443 = pneg %p179
        $region34: #{forward.1} parent=11 // pred_check_branch
          %445 = sbr.rel (%p443) target = $region36
        $region35: #{forward.1} parent=11 // pred_region
          %s447 = ssub.s32 4608, 4608
          %448 = vsyncadd [#allocation8], %s447
          %s449 = sshll.u32 [#allocation9], 4
          %s450 = int_to_ptr.vmem [resolvable:$true] %s449
          %455 = dma.hbm_to_vmem [thread:$0]  %s6, 4608, %s450, [#allocation8], 1152, 1152, 72
        $region36: #{forward.1} parent=11 // pred_fallthru
          _
        // Predicated region
        $region37: #{forward.1} parent=11 // pred_check
          %p456 = pneg %p200
        $region38: #{forward.1} parent=11 // pred_check_branch
          %458 = sbr.rel (%p456) target = $region40
        $region39: #{forward.1} parent=11 // pred_region
          %s460 = ssub.s32 512, 512
          %461 = vsyncadd [#allocation11], %s460
          %s462 = sshll.u32 [#allocation10], 4
          %s463 = int_to_ptr.vmem [resolvable:$true] %s462
          %468 = dma.hbm_to_vmem [thread:$0]  %s7, 512, %s463, [#allocation11], 128, 128, 8
        $region40: #{forward.1} parent=11 // pred_fallthru
          _
        // Predicated region
        $region41: #{forward.1} parent=11 // pred_check
          %p469 = pneg %p221
        $region42: #{forward.1} parent=11 // pred_check_branch
          %471 = sbr.rel (%p469) target = $region44
        $region43: #{forward.1} parent=11 // pred_region
          _
        $region44: #{forward.1} parent=11 // pred_fallthru
          _
        // Predicated region
        $region45: #{forward.1} parent=11 // pred_check
          %p472 = pneg %p242
        $region46: #{forward.1} parent=11 // pred_check_branch
          %474 = sbr.rel (%p472) target = $region48
        $region47: #{forward.1} parent=11 // pred_region
          %s476 = ssub.s32 8192, 8192
          %477 = vsyncadd [#allocation11], %s476
          %s478 = sshll.u32 [#allocation12], 4
          %s479 = int_to_ptr.vmem [resolvable:$true] %s478
          %484 = dma.hbm_to_vmem [thread:$0]  %s9, 8192, %s479, [#allocation11], 128, 128, 8
        $region48: #{forward.1} parent=11 // pred_fallthru
          _
        // Predicated region
        $region49: #{forward.1} parent=11 // pred_check
          %p485 = pneg %p263
        $region50: #{forward.1} parent=11 // pred_check_branch
          %487 = sbr.rel (%p485) target = $region52
        $region51: #{forward.1} parent=11 // pred_region
          %s489 = ssub.s32 1024, 1024
          %490 = vsyncadd [#allocation14], %s489
          %s491 = sshll.u32 [#allocation13], 4
          %s492 = int_to_ptr.vmem [resolvable:$true] %s491
          %497 = dma.hbm_to_vmem [thread:$0]  %s10, 1024, %s492, [#allocation14], 128, 128, 8
        $region52: #{forward.1} parent=11 // pred_fallthru
          _
        // Predicated region
        $region53: #{forward.1} parent=11 // pred_check
          %p498 = pneg %p284
        $region54: #{forward.1} parent=11 // pred_check_branch
          %500 = sbr.rel (%p498) target = $region56
        $region55: #{forward.1} parent=11 // pred_region
          %s502 = ssub.s32 2048, 2048
          %503 = vsyncadd [#allocation14], %s502
          %s504 = sshll.u32 [#allocation15], 4
          %s505 = int_to_ptr.vmem [resolvable:$true] %s504
          %510 = dma.hbm_to_vmem [thread:$0]  %s11, 2048, %s505, [#allocation14], 128, 128, 8
        $region56: #{forward.1} parent=11 // pred_fallthru
          _
        // Predicated region
        $region57: #{forward.1} parent=11 // pred_check
          %p511 = pneg %p305
        $region58: #{forward.1} parent=11 // pred_check_branch
          %513 = sbr.rel (%p511) target = $region60
        $region59: #{forward.1} parent=11 // pred_region
          %s515 = ssub.s32 1536, 1536
          %516 = vsyncadd [#allocation17], %s515
          %s517 = sshll.u32 [#allocation16], 4
          %s518 = int_to_ptr.vmem [resolvable:$true] %s517
          %523 = dma.hbm_to_vmem [thread:$0]  %s12, 1536, %s518, [#allocation17], 128, 128, 8
        $region60: #{forward.1} parent=11 // pred_fallthru
          _
        // Predicated region
        $region61: #{forward.1} parent=11 // pred_check
          %p524 = pneg %p326
        $region62: #{forward.1} parent=11 // pred_check_branch
          %526 = sbr.rel (%p524) target = $region64
        $region63: #{forward.1} parent=11 // pred_region
          %s528 = ssub.s32 8192, 8192
          %529 = vsyncadd [#allocation17], %s528
          %s530 = sshll.u32 [#allocation18], 4
          %s531 = int_to_ptr.vmem [resolvable:$true] %s530
          %536 = dma.hbm_to_vmem [thread:$0]  %s13, 8192, %s531, [#allocation17], 256, 256, 16
        $region64: #{forward.1} parent=11 // pred_fallthru
          _
        // Predicated region
        $region65: #{forward.1} parent=11 // pred_check
          %p537 = pneg %p347
        $region66: #{forward.1} parent=11 // pred_check_branch
          %539 = sbr.rel (%p537) target = $region68
        $region67: #{forward.1} parent=11 // pred_region
          _
        $region68: #{forward.1} parent=11 // pred_fallthru
          _
      $region12: #{forward.1} parent=5 // pred_fallthru
        _
      %p540 = scmp.lt.s32.totalorder %s27, 2
      // Predicated region
      $region69: #{forward.1} parent=5 // pred_check
        %p541 = pneg %p540
      $region70: #{forward.1} parent=5 // pred_check_branch
        %543 = sbr.rel (%p541) target = $region72
      $region71: #{forward.1} parent=5 // pred_region
        // Predicated region
        $region73: #{forward.1} parent=71 // pred_check
          %p544 = pneg %p47
        $region74: #{forward.1} parent=71 // pred_check_branch
          %546 = sbr.rel (%p544) target = $region76
        $region75: #{forward.1} parent=71 // pred_region
          %s547 = smul.u32 3, %s27
          %p548 = scmp.lt.s32.totalorder %s547, 5
          %s549 = scalar_select %p548, %s547, 5
          %s550 = smul.addr %s549, 2
          %s551 = smul.addr %s550, 8
          %s552 = scalar_lea.vmem %s0, %s551
          %s553 = smul.u32 3, %s27
        $region76: #{forward.1} parent=71 // pred_fallthru
          _
      $region72: #{forward.1} parent=5 // pred_fallthru
        _
      %p554 = scmp.le.s32.totalorder 1, %s27
      %p555 = scmp.lt.s32.totalorder %s27, 3
      %p556 = pnand %p554, %p555
      %p557 = pneg %p556
      // Predicated region
      $region77: #{forward.1} parent=5 // pred_check
        _
      $region78: #{forward.1} parent=5 // pred_check_branch
        %559 = sbr.rel (%p556) target = $region80
      $region79: #{forward.1} parent=5 // pred_region
        %s560 = ssub.s32 %s27, 1
        // Predicated region
        $region81: #{forward.1} parent=79 // pred_check
          %p561 = pneg %p74
        $region82: #{forward.1} parent=79 // pred_check_branch
          %563 = sbr.rel (%p561) target = $region84
        $region83: #{forward.1} parent=79 // pred_region
          %564 = dma.done [#allocation3], 512
        $region84: #{forward.1} parent=79 // pred_fallthru
          _
        // Predicated region
        $region85: #{forward.1} parent=79 // pred_check
          %p565 = pneg %p95
        $region86: #{forward.1} parent=79 // pred_check_branch
          %567 = sbr.rel (%p565) target = $region88
        $region87: #{forward.1} parent=79 // pred_region
          %568 = dma.done [#allocation5], 4096
        $region88: #{forward.1} parent=79 // pred_fallthru
          _
        // Predicated region
        $region89: #{forward.1} parent=79 // pred_check
          %p569 = pneg %p116
        $region90: #{forward.1} parent=79 // pred_check_branch
          %571 = sbr.rel (%p569) target = $region92
        $region91: #{forward.1} parent=79 // pred_region
          %572 = dma.done [#allocation5], 2048
        $region92: #{forward.1} parent=79 // pred_fallthru
          _
        // Predicated region
        $region93: #{forward.1} parent=79 // pred_check
          %p573 = pneg %p137
        $region94: #{forward.1} parent=79 // pred_check_branch
          %575 = sbr.rel (%p573) target = $region96
        $region95: #{forward.1} parent=79 // pred_region
          %576 = dma.done [#allocation8], 4096
        $region96: #{forward.1} parent=79 // pred_fallthru
          _
        // Predicated region
        $region97: #{forward.1} parent=79 // pred_check
          %p577 = pneg %p179
        $region98: #{forward.1} parent=79 // pred_check_branch
          %579 = sbr.rel (%p577) target = $region100
        $region99: #{forward.1} parent=79 // pred_region
          %580 = dma.done [#allocation8], 4608
        $region100: #{forward.1} parent=79 // pred_fallthru
          _
        // Predicated region
        $region101: #{forward.1} parent=79 // pred_check
          %p581 = pneg %p200
        $region102: #{forward.1} parent=79 // pred_check_branch
          %583 = sbr.rel (%p581) target = $region104
        $region103: #{forward.1} parent=79 // pred_region
          %584 = dma.done [#allocation11], 512
        $region104: #{forward.1} parent=79 // pred_fallthru
          _
        // Predicated region
        $region105: #{forward.1} parent=79 // pred_check
          %p585 = pneg %p242
        $region106: #{forward.1} parent=79 // pred_check_branch
          %587 = sbr.rel (%p585) target = $region108
        $region107: #{forward.1} parent=79 // pred_region
          %588 = dma.done [#allocation11], 8192
        $region108: #{forward.1} parent=79 // pred_fallthru
          _
        // Predicated region
        $region109: #{forward.1} parent=79 // pred_check
          %p589 = pneg %p263
        $region110: #{forward.1} parent=79 // pred_check_branch
          %591 = sbr.rel (%p589) target = $region112
        $region111: #{forward.1} parent=79 // pred_region
          %592 = dma.done [#allocation14], 1024
        $region112: #{forward.1} parent=79 // pred_fallthru
          _
        // Predicated region
        $region113: #{forward.1} parent=79 // pred_check
          %p593 = pneg %p284
        $region114: #{forward.1} parent=79 // pred_check_branch
          %595 = sbr.rel (%p593) target = $region116
        $region115: #{forward.1} parent=79 // pred_region
          %596 = dma.done [#allocation14], 2048
        $region116: #{forward.1} parent=79 // pred_fallthru
          _
        // Predicated region
        $region117: #{forward.1} parent=79 // pred_check
          %p597 = pneg %p305
        $region118: #{forward.1} parent=79 // pred_check_branch
          %599 = sbr.rel (%p597) target = $region120
        $region119: #{forward.1} parent=79 // pred_region
          %600 = dma.done [#allocation17], 1536
        $region120: #{forward.1} parent=79 // pred_fallthru
          _
        // Predicated region
        $region121: #{forward.1} parent=79 // pred_check
          %p601 = pneg %p326
        $region122: #{forward.1} parent=79 // pred_check_branch
          %603 = sbr.rel (%p601) target = $region124
        $region123: #{forward.1} parent=79 // pred_region
          %604 = dma.done [#allocation17], 8192
        $region124: #{forward.1} parent=79 // pred_fallthru
          _
        %s605 = smul.u32 3, %s32
        %p606 = scmp.lt.s32.totalorder %s605, 5
        %s607 = scalar_select %p606, %s605, 5
        %s608 = smul.addr %s607, 2
        %s609 = smul.addr %s608, 8
        %s610 = scalar_lea.vmem %s0, %s609
        %p611 = pneg %p53
        %p612 = pneg %p50
        %p613 = pneg %p74
        %p614 = pneg %p71
        %p615 = pneg %p95
        %p616 = pneg %p92
        %p617 = pneg %p116
        %p618 = pneg %p113
        %p619 = pneg %p137
        %p620 = pneg %p134
        %p621 = pneg %p158
        %p622 = pneg %p155
        %p623 = pneg %p179
        %p624 = pneg %p176
        %p625 = pneg %p200
        %p626 = pneg %p197
        %p627 = pneg %p221
        %p628 = pneg %p218
        %p629 = pneg %p242
        %p630 = pneg %p239
        %p631 = pneg %p263
        %p632 = pneg %p260
        %p633 = pneg %p284
        %p634 = pneg %p281
        %p635 = pneg %p305
        %p636 = pneg %p302
        %p637 = pneg %p326
        %p638 = pneg %p323
        %p639 = pneg %p347
        %p640 = pneg %p344
        %p641 = pneg %p373
        %p642 = pneg %p370
        %s643 = smul.u32 3, %s32
        %p644 = scmp.lt.s32.totalorder %s643, 5
        %s645 = scalar_select %p644, %s643, 5
        %s646 = smul.addr %s645, 2
        %s647 = smul.addr %s646, 8
        %s648 = scalar_lea.vmem %s15, %s647
        %s649 = smul.u32 3, %s32
        %p650 = scmp.lt.s32.totalorder %s649, 5
        %s651 = scalar_select %p650, %s649, 5
        %s652 = smul.addr %s651, 2
        %s653 = smul.addr %s652, 8
        %s654 = scalar_lea.vmem %s0, %s653
        %s655 = smul.u32 3, %s32
        %s656 = smul.u32 3, %s32
        %p657 = scmp.lt.s32.totalorder %s656, 5
        %s658 = scalar_select %p657, %s656, 5
        %s659 = smul.addr %s658, 2
        %s660 = smul.addr %s659, 8
        %s661 = scalar_lea.vmem %s15, %s660
        %s662 = smul.u32 3, %s32
        %v663 = vld [vmem:[%s654] sm:$0xff]
        %v664 = vld [vmem:[%s654 + $0x8] sm:$0xff]
        %v665 = vld [vmem:[%s654 + $0x10] sm:$0xff]
        %v666 = vld [vmem:[%s654 + $0x18] sm:$0xff]
        %v667 = vld [vmem:[%s654 + $0x20] sm:$0xff]
        %v668 = vld [vmem:[%s654 + $0x28] sm:$0xff]
        %669 = vrot.lane.b32.xlu0 %v663, 17
        %v670 = vpop.permute.xlu0 %669
        %671 = vrot.lane.b32.xlu0 %v665, 17
        %v672 = vpop.permute.xlu0 %671
        %673 = vrot.lane.b32.xlu0 %v667, 17
        %v674 = vpop.permute.xlu0 %673
        %675 = vrot.lane.b32.xlu0 %v664, 17
        %v676 = vpop.permute.xlu0 %675
        %677 = vrot.lane.b32.xlu0 %v666, 17
        %v678 = vpop.permute.xlu0 %677
        %679 = vrot.lane.b32.xlu0 %v668, 17
        %v680 = vpop.permute.xlu0 %679
        %v681 = vlaneseq
        %v682 = vand.u32 %v681, 127
        %vm683 = vcmp.lt.s32.totalorder %v682, 17
        %v684 = vsel %vm683, %v670, %v676
        %v685 = vsel %vm683, %v672, %v678
        %v686 = vsel %vm683, %v674, %v680
        %v687 = vsel %vm683, %v676, %v670
        %v688 = vsel %vm683, %v678, %v672
        %v689 = vsel %vm683, %v680, %v674
        %v690 = vld [vmem:[#allocation2] ss:$8 sm:$0x3]
        %v692 = vlaneseq
        %v693 = vshrl.u32 %v692, 7
        %v694 = vsub.s32 0, %v693
        %v695 = vrot.slane %v690, %v694
        %v696 = vlaneseq
        %v697 = vshrl.u32 %v696, 7
        %v698 = vsub.s32 1, %v697
        %v699 = vrot.slane %v690, %v698
        %v702 = vmul.f32 %v687, %v695
        %v703 = vmul.f32 %v684, %v699
        %v704 = vmul.f32 %v688, %v695
        %v705 = vmul.f32 %v685, %v699
        %v706 = vmul.f32 %v689, %v695
        %v707 = vmul.f32 %v686, %v699
        %708 = vrot.lane.b32.xlu0 %v663, 16
        %v709 = vpop.permute.xlu0 %708
        %710 = vrot.lane.b32.xlu0 %v665, 16
        %v711 = vpop.permute.xlu0 %710
        %712 = vrot.lane.b32.xlu0 %v667, 16
        %v713 = vpop.permute.xlu0 %712
        %714 = vrot.lane.b32.xlu0 %v664, 16
        %v715 = vpop.permute.xlu0 %714
        %716 = vrot.lane.b32.xlu0 %v666, 16
        %v717 = vpop.permute.xlu0 %716
        %718 = vrot.lane.b32.xlu0 %v668, 16
        %v719 = vpop.permute.xlu0 %718
        %vm720 = vcmp.lt.s32.totalorder %v682, 16
        %v721 = vsel %vm720, %v709, %v715
        %v722 = vsel %vm720, %v711, %v717
        %v723 = vsel %vm720, %v713, %v719
        %v724 = vsel %vm720, %v715, %v709
        %v725 = vsel %vm720, %v717, %v711
        %v726 = vsel %vm720, %v719, %v713
        %s727 = scalar_lea.vmem [#allocation2], 1
        %v728 = vld [vmem:[%s727] ss:$8 sm:$0x3]
        %v730 = vlaneseq
        %v731 = vshrl.u32 %v730, 7
        %v732 = vsub.s32 0, %v731
        %v733 = vrot.slane %v728, %v732
        %v734 = vlaneseq
        %v735 = vshrl.u32 %v734, 7
        %v736 = vsub.s32 1, %v735
        %v737 = vrot.slane %v728, %v736
        %v740 = vmul.f32 %v724, %v733
        %v741 = vmul.f32 %v721, %v737
        %v742 = vmul.f32 %v725, %v733
        %v743 = vmul.f32 %v722, %v737
        %v744 = vmul.f32 %v726, %v733
        %v745 = vmul.f32 %v723, %v737
        %746 = vrot.lane.b32.xlu0 %v663, 15
        %v747 = vpop.permute.xlu0 %746
        %748 = vrot.lane.b32.xlu0 %v665, 15
        %v749 = vpop.permute.xlu0 %748
        %750 = vrot.lane.b32.xlu0 %v667, 15
        %v751 = vpop.permute.xlu0 %750
        %752 = vrot.lane.b32.xlu0 %v664, 15
        %v753 = vpop.permute.xlu0 %752
        %754 = vrot.lane.b32.xlu0 %v666, 15
        %v755 = vpop.permute.xlu0 %754
        %756 = vrot.lane.b32.xlu0 %v668, 15
        %v757 = vpop.permute.xlu0 %756
        %vm758 = vcmp.lt.s32.totalorder %v682, 15
        %v759 = vsel %vm758, %v747, %v753
        %v760 = vsel %vm758, %v749, %v755
        %v761 = vsel %vm758, %v751, %v757
        %v762 = vsel %vm758, %v753, %v747
        %v763 = vsel %vm758, %v755, %v749
        %v764 = vsel %vm758, %v757, %v751
        %s765 = scalar_lea.vmem [#allocation2], 2
        %v766 = vld [vmem:[%s765] ss:$8 sm:$0x3]
        %v768 = vlaneseq
        %v769 = vshrl.u32 %v768, 7
        %v770 = vsub.s32 0, %v769
        %v771 = vrot.slane %v766, %v770
        %v772 = vlaneseq
        %v773 = vshrl.u32 %v772, 7
        %v774 = vsub.s32 1, %v773
        %v775 = vrot.slane %v766, %v774
        %v778 = vmul.f32 %v762, %v771
        %v779 = vmul.f32 %v759, %v775
        %v780 = vmul.f32 %v763, %v771
        %v781 = vmul.f32 %v760, %v775
        %v782 = vmul.f32 %v764, %v771
        %v783 = vmul.f32 %v761, %v775
        %784 = vrot.lane.b32.xlu0 %v663, 1
        %v785 = vpop.permute.xlu0 %784
        %786 = vrot.lane.b32.xlu0 %v665, 1
        %v787 = vpop.permute.xlu0 %786
        %788 = vrot.lane.b32.xlu0 %v667, 1
        %v789 = vpop.permute.xlu0 %788
        %790 = vrot.lane.b32.xlu0 %v664, 1
        %v791 = vpop.permute.xlu0 %790
        %792 = vrot.lane.b32.xlu0 %v666, 1
        %v793 = vpop.permute.xlu0 %792
        %794 = vrot.lane.b32.xlu0 %v668, 1
        %v795 = vpop.permute.xlu0 %794
        %vm796 = vcmp.lt.s32.totalorder %v682, 1
        %v797 = vsel %vm796, %v785, %v791
        %v798 = vsel %vm796, %v787, %v793
        %v799 = vsel %vm796, %v789, %v795
        %v800 = vsel %vm796, %v791, %v785
        %v801 = vsel %vm796, %v793, %v787
        %v802 = vsel %vm796, %v795, %v789
        %s803 = scalar_lea.vmem [#allocation2], 3
        %v804 = vld [vmem:[%s803] ss:$8 sm:$0x3]
        %v806 = vlaneseq
        %v807 = vshrl.u32 %v806, 7
        %v808 = vsub.s32 0, %v807
        %v809 = vrot.slane %v804, %v808
        %v810 = vlaneseq
        %v811 = vshrl.u32 %v810, 7
        %v812 = vsub.s32 1, %v811
        %v813 = vrot.slane %v804, %v812
        %v816 = vmul.f32 %v800, %v809
        %v817 = vmul.f32 %v797, %v813
        %v818 = vmul.f32 %v801, %v809
        %v819 = vmul.f32 %v798, %v813
        %v820 = vmul.f32 %v802, %v809
        %v821 = vmul.f32 %v799, %v813
        %s822 = scalar_lea.vmem [#allocation2], 4
        %v823 = vld [vmem:[%s822] ss:$8 sm:$0x3]
        %v825 = vlaneseq
        %v826 = vshrl.u32 %v825, 7
        %v827 = vsub.s32 0, %v826
        %v828 = vrot.slane %v823, %v827
        %v829 = vlaneseq
        %v830 = vshrl.u32 %v829, 7
        %v831 = vsub.s32 1, %v830
        %v832 = vrot.slane %v823, %v831
        %v835 = vmul.f32 %v663, %v828
        %v836 = vmul.f32 %v664, %v832
        %v837 = vmul.f32 %v665, %v828
        %v838 = vmul.f32 %v666, %v832
        %v839 = vmul.f32 %v667, %v828
        %v840 = vmul.f32 %v668, %v832
        %841 = vrot.lane.b32.xlu0 %v663, 127
        %v842 = vpop.permute.xlu0 %841
        %843 = vrot.lane.b32.xlu0 %v665, 127
        %v844 = vpop.permute.xlu0 %843
        %845 = vrot.lane.b32.xlu0 %v667, 127
        %v846 = vpop.permute.xlu0 %845
        %847 = vrot.lane.b32.xlu0 %v664, 127
        %v848 = vpop.permute.xlu0 %847
        %849 = vrot.lane.b32.xlu0 %v666, 127
        %v850 = vpop.permute.xlu0 %849
        %851 = vrot.lane.b32.xlu0 %v668, 127
        %v852 = vpop.permute.xlu0 %851
        %vm853 = vcmp.lt.s32.totalorder %v682, 127
        %v854 = vsel %vm853, %v842, %v848
        %v855 = vsel %vm853, %v844, %v850
        %v856 = vsel %vm853, %v846, %v852
        %v857 = vsel %vm853, %v848, %v842
        %v858 = vsel %vm853, %v850, %v844
        %v859 = vsel %vm853, %v852, %v846
        %s860 = scalar_lea.vmem [#allocation2], 5
        %v861 = vld [vmem:[%s860] ss:$8 sm:$0x3]
        %v863 = vlaneseq
        %v864 = vshrl.u32 %v863, 7
        %v865 = vsub.s32 0, %v864
        %v866 = vrot.slane %v861, %v865
        %v867 = vlaneseq
        %v868 = vshrl.u32 %v867, 7
        %v869 = vsub.s32 1, %v868
        %v870 = vrot.slane %v861, %v869
        %v873 = vmul.f32 %v854, %v866
        %v874 = vmul.f32 %v857, %v870
        %v875 = vmul.f32 %v855, %v866
        %v876 = vmul.f32 %v858, %v870
        %v877 = vmul.f32 %v856, %v866
        %v878 = vmul.f32 %v859, %v870
        %879 = vrot.lane.b32.xlu0 %v663, 113
        %v880 = vpop.permute.xlu0 %879
        %881 = vrot.lane.b32.xlu0 %v665, 113
        %v882 = vpop.permute.xlu0 %881
        %883 = vrot.lane.b32.xlu0 %v667, 113
        %v884 = vpop.permute.xlu0 %883
        %885 = vrot.lane.b32.xlu0 %v664, 113
        %v886 = vpop.permute.xlu0 %885
        %887 = vrot.lane.b32.xlu0 %v666, 113
        %v888 = vpop.permute.xlu0 %887
        %889 = vrot.lane.b32.xlu0 %v668, 113
        %v890 = vpop.permute.xlu0 %889
        %vm891 = vcmp.lt.s32.totalorder %v682, 113
        %v892 = vsel %vm891, %v880, %v886
        %v893 = vsel %vm891, %v882, %v888
        %v894 = vsel %vm891, %v884, %v890
        %v895 = vsel %vm891, %v886, %v880
        %v896 = vsel %vm891, %v888, %v882
        %v897 = vsel %vm891, %v890, %v884
        %s898 = scalar_lea.vmem [#allocation2], 6
        %v899 = vld [vmem:[%s898] ss:$8 sm:$0x3]
        %v901 = vlaneseq
        %v902 = vshrl.u32 %v901, 7
        %v903 = vsub.s32 0, %v902
        %v904 = vrot.slane %v899, %v903
        %v905 = vlaneseq
        %v906 = vshrl.u32 %v905, 7
        %v907 = vsub.s32 1, %v906
        %v908 = vrot.slane %v899, %v907
        %v911 = vmul.f32 %v892, %v904
        %v912 = vmul.f32 %v895, %v908
        %v913 = vmul.f32 %v893, %v904
        %v914 = vmul.f32 %v896, %v908
        %v915 = vmul.f32 %v894, %v904
        %v916 = vmul.f32 %v897, %v908
        %917 = vrot.lane.b32.xlu0 %v663, 112
        %v918 = vpop.permute.xlu0 %917
        %919 = vrot.lane.b32.xlu0 %v665, 112
        %v920 = vpop.permute.xlu0 %919
        %921 = vrot.lane.b32.xlu0 %v667, 112
        %v922 = vpop.permute.xlu0 %921
        %923 = vrot.lane.b32.xlu0 %v664, 112
        %v924 = vpop.permute.xlu0 %923
        %925 = vrot.lane.b32.xlu0 %v666, 112
        %v926 = vpop.permute.xlu0 %925
        %927 = vrot.lane.b32.xlu0 %v668, 112
        %v928 = vpop.permute.xlu0 %927
        %vm929 = vcmp.lt.s32.totalorder %v682, 112
        %v930 = vsel %vm929, %v918, %v924
        %v931 = vsel %vm929, %v920, %v926
        %v932 = vsel %vm929, %v922, %v928
        %v933 = vsel %vm929, %v924, %v918
        %v934 = vsel %vm929, %v926, %v920
        %v935 = vsel %vm929, %v928, %v922
        %s936 = scalar_lea.vmem [#allocation2], 7
        %v937 = vld [vmem:[%s936] ss:$8 sm:$0x3]
        %v939 = vlaneseq
        %v940 = vshrl.u32 %v939, 7
        %v941 = vsub.s32 0, %v940
        %v942 = vrot.slane %v937, %v941
        %v943 = vlaneseq
        %v944 = vshrl.u32 %v943, 7
        %v945 = vsub.s32 1, %v944
        %v946 = vrot.slane %v937, %v945
        %v949 = vmul.f32 %v930, %v942
        %v950 = vmul.f32 %v933, %v946
        %v951 = vmul.f32 %v931, %v942
        %v952 = vmul.f32 %v934, %v946
        %v953 = vmul.f32 %v932, %v942
        %v954 = vmul.f32 %v935, %v946
        %955 = vrot.lane.b32.xlu0 %v663, 111
        %v956 = vpop.permute.xlu0 %955
        %957 = vrot.lane.b32.xlu0 %v665, 111
        %v958 = vpop.permute.xlu0 %957
        %959 = vrot.lane.b32.xlu0 %v667, 111
        %v960 = vpop.permute.xlu0 %959
        %961 = vrot.lane.b32.xlu0 %v664, 111
        %v962 = vpop.permute.xlu0 %961
        %963 = vrot.lane.b32.xlu0 %v666, 111
        %v964 = vpop.permute.xlu0 %963
        %965 = vrot.lane.b32.xlu0 %v668, 111
        %v966 = vpop.permute.xlu0 %965
        %vm967 = vcmp.lt.s32.totalorder %v682, 111
        %v968 = vsel %vm967, %v956, %v962
        %v969 = vsel %vm967, %v958, %v964
        %v970 = vsel %vm967, %v960, %v966
        %v971 = vsel %vm967, %v962, %v956
        %v972 = vsel %vm967, %v964, %v958
        %v973 = vsel %vm967, %v966, %v960
        %s974 = scalar_lea.vmem [#allocation2], 16
        %v975 = vld [vmem:[%s974] ss:$8 sm:$0x3]
        %v977 = vlaneseq
        %v978 = vshrl.u32 %v977, 7
        %v979 = vsub.s32 0, %v978
        %v980 = vrot.slane %v975, %v979
        %v981 = vlaneseq
        %v982 = vshrl.u32 %v981, 7
        %v983 = vsub.s32 1, %v982
        %v984 = vrot.slane %v975, %v983
        %v987 = vmul.f32 %v968, %v980
        %v988 = vmul.f32 %v971, %v984
        %v989 = vmul.f32 %v969, %v980
        %v990 = vmul.f32 %v972, %v984
        %v991 = vmul.f32 %v970, %v980
        %v992 = vmul.f32 %v973, %v984
        %v993 = vld [vmem:[#allocation4] sm:$0xff]
        %v994 = vld [vmem:[#allocation4 + $0x8] sm:$0xff]
        %v995 = vld [vmem:[#allocation4 + $0x10] sm:$0xff]
        %v996 = vld [vmem:[#allocation4 + $0x18] sm:$0xff]
        %v997 = vld [vmem:[#allocation4 + $0x20] sm:$0xff]
        %v998 = vld [vmem:[#allocation4 + $0x28] sm:$0xff]
        %v999 = vld [vmem:[#allocation4 + $0x30] sm:$0xff]
        %v1000 = vld [vmem:[#allocation4 + $0x38] sm:$0xff]
        %v1001 = vld [vmem:[#allocation4 + $0x40] sm:$0xff]
        %v1002 = vld [vmem:[#allocation4 + $0x48] sm:$0xff]
        %v1003 = vld [vmem:[#allocation4 + $0x50] sm:$0xff]
        %v1004 = vld [vmem:[#allocation4 + $0x58] sm:$0xff]
        %v1005 = vld [vmem:[#allocation4 + $0x60] sm:$0xff]
        %v1006 = vld [vmem:[#allocation4 + $0x68] sm:$0xff]
        %v1007 = vld [vmem:[#allocation4 + $0x70] sm:$0xff]
        %v1008 = vld [vmem:[#allocation4 + $0x78] sm:$0xff]
        %v1009 = vld [vmem:[#allocation4 + $0x80] sm:$0xff]
        %v1010 = vld [vmem:[#allocation4 + $0x88] sm:$0xff]
        %v1011 = vld [vmem:[#allocation4 + $0x90] sm:$0xff]
        %v1012 = vld [vmem:[#allocation4 + $0x98] sm:$0xff]
        %v1013 = vld [vmem:[#allocation4 + $0xa0] sm:$0xff]
        %v1014 = vld [vmem:[#allocation4 + $0xa8] sm:$0xff]
        %v1015 = vld [vmem:[#allocation4 + $0xb0] sm:$0xff]
        %v1016 = vld [vmem:[#allocation4 + $0xb8] sm:$0xff]
        %v1017 = vld [vmem:[#allocation4 + $0xc0] sm:$0xff]
        %v1018 = vld [vmem:[#allocation4 + $0xc8] sm:$0xff]
        %v1019 = vld [vmem:[#allocation4 + $0xd0] sm:$0xff]
        %v1020 = vld [vmem:[#allocation4 + $0xd8] sm:$0xff]
        %v1021 = vld [vmem:[#allocation4 + $0xe0] sm:$0xff]
        %v1022 = vld [vmem:[#allocation4 + $0xe8] sm:$0xff]
        %v1023 = vld [vmem:[#allocation4 + $0xf0] sm:$0xff]
        %v1024 = vld [vmem:[#allocation4 + $0xf8] sm:$0xff]
        %v1025 = vld [vmem:[#allocation6] sm:$0xff]
        %v1026 = vld [vmem:[#allocation6 + $0x8] sm:$0xff]
        %v1027 = vld [vmem:[#allocation6 + $0x10] sm:$0xff]
        %v1028 = vld [vmem:[#allocation6 + $0x18] sm:$0xff]
        %v1029 = vld [vmem:[#allocation6 + $0x20] sm:$0xff]
        %v1030 = vld [vmem:[#allocation6 + $0x28] sm:$0xff]
        %v1031 = vld [vmem:[#allocation6 + $0x30] sm:$0xff]
        %v1032 = vld [vmem:[#allocation6 + $0x38] sm:$0xff]
        %v1033 = vld [vmem:[#allocation6 + $0x40] sm:$0xff]
        %v1034 = vld [vmem:[#allocation6 + $0x48] sm:$0xff]
        %v1035 = vld [vmem:[#allocation6 + $0x50] sm:$0xff]
        %v1036 = vld [vmem:[#allocation6 + $0x58] sm:$0xff]
        %v1037 = vld [vmem:[#allocation6 + $0x60] sm:$0xff]
        %v1038 = vld [vmem:[#allocation6 + $0x68] sm:$0xff]
        %v1039 = vld [vmem:[#allocation6 + $0x70] sm:$0xff]
        %v1040 = vld [vmem:[#allocation6 + $0x78] sm:$0xff]
        %1042 = vset.pattern.permute.xlu0 0
        %1043 = vperm.xlu0 %1042, %v1025
        %v1044 = vpop.permute.xlu0 %1043
        %1047 = vset.pattern.permute.xlu0 0
        %1048 = vperm.xlu0 %1047, %v1026
        %v1049 = vpop.permute.xlu0 %1048
        %1052 = vset.pattern.permute.xlu0 0
        %1053 = vperm.xlu0 %1052, %v1027
        %v1054 = vpop.permute.xlu0 %1053
        %1057 = vset.pattern.permute.xlu0 0
        %1058 = vperm.xlu0 %1057, %v1028
        %v1059 = vpop.permute.xlu0 %1058
        %1062 = vset.pattern.permute.xlu0 0
        %1063 = vperm.xlu0 %1062, %v1029
        %v1064 = vpop.permute.xlu0 %1063
        %1067 = vset.pattern.permute.xlu0 0
        %1068 = vperm.xlu0 %1067, %v1030
        %v1069 = vpop.permute.xlu0 %1068
        %1072 = vset.pattern.permute.xlu0 0
        %1073 = vperm.xlu0 %1072, %v1031
        %v1074 = vpop.permute.xlu0 %1073
        %1077 = vset.pattern.permute.xlu0 0
        %1078 = vperm.xlu0 %1077, %v1032
        %v1079 = vpop.permute.xlu0 %1078
        %1082 = vset.pattern.permute.xlu0 0
        %1083 = vperm.xlu0 %1082, %v1033
        %v1084 = vpop.permute.xlu0 %1083
        %1087 = vset.pattern.permute.xlu0 0
        %1088 = vperm.xlu0 %1087, %v1034
        %v1089 = vpop.permute.xlu0 %1088
        %1092 = vset.pattern.permute.xlu0 0
        %1093 = vperm.xlu0 %1092, %v1035
        %v1094 = vpop.permute.xlu0 %1093
        %1097 = vset.pattern.permute.xlu0 0
        %1098 = vperm.xlu0 %1097, %v1036
        %v1099 = vpop.permute.xlu0 %1098
        %1102 = vset.pattern.permute.xlu0 0
        %1103 = vperm.xlu0 %1102, %v1037
        %v1104 = vpop.permute.xlu0 %1103
        %1107 = vset.pattern.permute.xlu0 0
        %1108 = vperm.xlu0 %1107, %v1038
        %v1109 = vpop.permute.xlu0 %1108
        %1112 = vset.pattern.permute.xlu0 0
        %1113 = vperm.xlu0 %1112, %v1039
        %v1114 = vpop.permute.xlu0 %1113
        %1117 = vset.pattern.permute.xlu0 0
        %1118 = vperm.xlu0 %1117, %v1040
        %v1119 = vpop.permute.xlu0 %1118
        %vm1121 = vcmask 719872
        %v1123 = vsel %vm1121, %v994, 0
        %v1126 = vsel %vm1121, %v996, 0
        %v1129 = vsel %vm1121, %v998, 0
        %v1132 = vsel %vm1121, %v1000, 0
        %v1135 = vsel %vm1121, %v1002, 0
        %v1138 = vsel %vm1121, %v1004, 0
        %v1141 = vsel %vm1121, %v1006, 0
        %v1144 = vsel %vm1121, %v1008, 0
        %v1147 = vsel %vm1121, %v1010, 0
        %v1150 = vsel %vm1121, %v1012, 0
        %v1153 = vsel %vm1121, %v1014, 0
        %v1156 = vsel %vm1121, %v1016, 0
        %v1159 = vsel %vm1121, %v1018, 0
        %v1162 = vsel %vm1121, %v1020, 0
        %v1165 = vsel %vm1121, %v1022, 0
        %v1168 = vsel %vm1121, %v1024, 0
        %1170 = vmatprep.subr.mxu0 %v703
        %1171 = vmatpush1.msra.mxu0 %v702
        %1172 = vmatprep.subr.mxu0 %v705
        %1173 = vmatpush1.msra.mxu0 %v704
        %1174 = vmatprep.subr.mxu0 %v707
        %1175 = vmatpush1.msra.mxu0 %v706
        %1176 = vmatprep.subr.mxu0 %v741
        %1177 = vmatpush1.msra.mxu0 %v740
        %1178 = vmatprep.subr.mxu0 %v743
        %1179 = vmatpush1.msra.mxu0 %v742
        %1180 = vmatprep.subr.mxu0 %v745
        %1181 = vmatpush1.msra.mxu0 %v744
        %1182 = vmatprep.subr.mxu0 %v779
        %1183 = vmatpush1.msra.mxu0 %v778
        %1184 = vmatprep.subr.mxu0 %v781
        %1185 = vmatpush1.msra.mxu0 %v780
        %1186 = vmatprep.subr.mxu0 %v783
        %1187 = vmatpush1.msra.mxu0 %v782
        %1188 = vmatprep.subr.mxu0 %v817
        %1189 = vmatpush1.msra.mxu0 %v816
        %1190 = vmatprep.subr.mxu0 %v819
        %1191 = vmatpush1.msra.mxu0 %v818
        %1192 = vmatprep.subr.mxu0 %v821
        %1193 = vmatpush1.msra.mxu0 %v820
        %1194 = vmatprep.subr.mxu0 %v836
        %1195 = vmatpush1.msra.mxu0 %v835
        %1196 = vmatprep.subr.mxu0 %v838
        %1197 = vmatpush1.msra.mxu0 %v837
        %1198 = vmatprep.subr.mxu0 %v840
        %1199 = vmatpush1.msra.mxu0 %v839
        %1200 = vmatprep.subr.mxu0 %v874
        %1201 = vmatpush1.msra.mxu0 %v873
        %1202 = vmatprep.subr.mxu0 %v876
        %1203 = vmatpush1.msra.mxu0 %v875
        %1204 = vmatprep.subr.mxu0 %v878
        %1205 = vmatpush1.msra.mxu0 %v877
        %1206 = vmatprep.subr.mxu0 %v912
        %1207 = vmatpush1.msra.mxu0 %v911
        %1208 = vmatprep.subr.mxu0 %v914
        %1209 = vmatpush1.msra.mxu0 %v913
        %1210 = vmatprep.subr.mxu0 %v916
        %1211 = vmatpush1.msra.mxu0 %v915
        %1212 = vmatprep.subr.mxu0 %v950
        %1213 = vmatpush1.msra.mxu0 %v949
        %1214 = vmatprep.subr.mxu0 %v952
        %1215 = vmatpush1.msra.mxu0 %v951
        %1216 = vmatprep.subr.mxu0 %v954
        %1217 = vmatpush1.msra.mxu0 %v953
        %1218 = vmatprep.subr.mxu0 %v988
        %1219 = vmatpush1.msra.mxu0 %v987
        %1220 = vmatprep.subr.mxu0 %v990
        %1221 = vmatpush1.msra.mxu0 %v989
        %1222 = vmatprep.subr.mxu0 %v992
        %1223 = vmatpush1.msra.mxu0 %v991
        %1224 = vmatprep.subr.mxu0 0.0
        %1225 = vmatpush1.msra.mxu0 0.0
        %1226 = vmatprep.subr.mxu0 0.0
        %1227 = vmatpush1.msra.mxu0 0.0
        %1228 = vmatprep.subr.mxu0 0.0
        %1229 = vmatpush1.msra.mxu0 0.0
        %1230 = vmatprep.subr.mxu0 0.0
        %1231 = vmatpush1.msra.mxu0 0.0
        %1232 = vmatprep.subr.mxu0 0.0
        %1233 = vmatpush1.msra.mxu0 0.0
        %1234 = vmatprep.mubr.f32.mxu0 %v1123
        %1235 = vmatmul.mubr.f32.gmra.mrb[0].mxu0 %v993
        %v1236 = vpop.f32.mrb[0].mxu0
        %v1237 = vadd.f32 %v1044, %v1236
        %v1238 = vpop.f32.mrb[0].mxu0
        %v1239 = vadd.f32 %v1044, %v1238
        %1240 = vmatprep.mubr.f32.mxu0 %v1126
        %1241 = vmatmul.mubr.f32.gmra.mrb[0].mxu0 %v995
        %v1242 = vpop.f32.mrb[0].mxu0
        %v1243 = vadd.f32 %v1049, %v1242
        %v1244 = vpop.f32.mrb[0].mxu0
        %v1245 = vadd.f32 %v1049, %v1244
        %1246 = vmatprep.mubr.f32.mxu0 %v1129
        %1247 = vmatmul.mubr.f32.gmra.mrb[0].mxu0 %v997
        %v1248 = vpop.f32.mrb[0].mxu0
        %v1249 = vadd.f32 %v1054, %v1248
        %v1250 = vpop.f32.mrb[0].mxu0
        %v1251 = vadd.f32 %v1054, %v1250
        %1252 = vmatprep.mubr.f32.mxu0 %v1132
        %1253 = vmatmul.mubr.f32.gmra.mrb[0].mxu0 %v999
        %v1254 = vpop.f32.mrb[0].mxu0
        %v1255 = vadd.f32 %v1059, %v1254
        %v1256 = vpop.f32.mrb[0].mxu0
        %v1257 = vadd.f32 %v1059, %v1256
        %1258 = vmatprep.mubr.f32.mxu0 %v1135
        %1259 = vmatmul.mubr.f32.gmra.mrb[0].mxu0 %v1001
        %v1260 = vpop.f32.mrb[0].mxu0
        %v1261 = vadd.f32 %v1064, %v1260
        %v1262 = vpop.f32.mrb[0].mxu0
        %v1263 = vadd.f32 %v1064, %v1262
        %1264 = vmatprep.mubr.f32.mxu0 %v1138
        %1265 = vmatmul.mubr.f32.gmra.mrb[0].mxu0 %v1003
        %v1266 = vpop.f32.mrb[0].mxu0
        %v1267 = vadd.f32 %v1069, %v1266
        %v1268 = vpop.f32.mrb[0].mxu0
        %v1269 = vadd.f32 %v1069, %v1268
        %1270 = vmatprep.mubr.f32.mxu0 %v1141
        %1271 = vmatmul.mubr.f32.gmra.mrb[0].mxu0 %v1005
        %v1272 = vpop.f32.mrb[0].mxu0
        %v1273 = vadd.f32 %v1074, %v1272
        %v1274 = vpop.f32.mrb[0].mxu0
        %v1275 = vadd.f32 %v1074, %v1274
        %1276 = vmatprep.mubr.f32.mxu0 %v1144
        %1277 = vmatmul.mubr.f32.gmra.mrb[0].mxu0 %v1007
        %v1278 = vpop.f32.mrb[0].mxu0
        %v1279 = vadd.f32 %v1079, %v1278
        %v1280 = vpop.f32.mrb[0].mxu0
        %v1281 = vadd.f32 %v1079, %v1280
        %1282 = vmatprep.mubr.f32.mxu0 %v1147
        %1283 = vmatmul.mubr.f32.gmra.mrb[0].mxu0 %v1009
        %v1284 = vpop.f32.mrb[0].mxu0
        %v1285 = vadd.f32 %v1084, %v1284
        %v1286 = vpop.f32.mrb[0].mxu0
        %v1287 = vadd.f32 %v1084, %v1286
        %1288 = vmatprep.mubr.f32.mxu0 %v1150
        %1289 = vmatmul.mubr.f32.gmra.mrb[0].mxu0 %v1011
        %v1290 = vpop.f32.mrb[0].mxu0
        %v1291 = vadd.f32 %v1089, %v1290
        %v1292 = vpop.f32.mrb[0].mxu0
        %v1293 = vadd.f32 %v1089, %v1292
        %1294 = vmatprep.mubr.f32.mxu0 %v1153
        %1295 = vmatmul.mubr.f32.gmra.mrb[0].mxu0 %v1013
        %v1296 = vpop.f32.mrb[0].mxu0
        %v1297 = vadd.f32 %v1094, %v1296
        %v1298 = vpop.f32.mrb[0].mxu0
        %v1299 = vadd.f32 %v1094, %v1298
        %1300 = vmatprep.mubr.f32.mxu0 %v1156
        %1301 = vmatmul.mubr.f32.gmra.mrb[0].mxu0 %v1015
        %v1302 = vpop.f32.mrb[0].mxu0
        %v1303 = vadd.f32 %v1099, %v1302
        %v1304 = vpop.f32.mrb[0].mxu0
        %v1305 = vadd.f32 %v1099, %v1304
        %1306 = vmatprep.mubr.f32.mxu0 %v1159
        %1307 = vmatmul.mubr.f32.gmra.mrb[0].mxu0 %v1017
        %v1308 = vpop.f32.mrb[0].mxu0
        %v1309 = vadd.f32 %v1104, %v1308
        %v1310 = vpop.f32.mrb[0].mxu0
        %v1311 = vadd.f32 %v1104, %v1310
        %1312 = vmatprep.mubr.f32.mxu0 %v1162
        %1313 = vmatmul.mubr.f32.gmra.mrb[0].mxu0 %v1019
        %v1314 = vpop.f32.mrb[0].mxu0
        %v1315 = vadd.f32 %v1109, %v1314
        %v1316 = vpop.f32.mrb[0].mxu0
        %v1317 = vadd.f32 %v1109, %v1316
        %1318 = vmatprep.mubr.f32.mxu0 %v1165
        %1319 = vmatmul.mubr.f32.gmra.mrb[0].mxu0 %v1021
        %v1320 = vpop.f32.mrb[0].mxu0
        %v1321 = vadd.f32 %v1114, %v1320
        %v1322 = vpop.f32.mrb[0].mxu0
        %v1323 = vadd.f32 %v1114, %v1322
        %1324 = vmatprep.mubr.f32.mxu0 %v1168
        %1325 = vmatmul.mubr.f32.gmra.mrb[0].mxu0 %v1023
        %v1326 = vpop.f32.mrb[0].mxu0
        %v1327 = vadd.f32 %v1119, %v1326
        %v1328 = vpop.f32.mrb[0].mxu0
        %v1329 = vadd.f32 %v1119, %v1328
        %1330 = vdwg.mxu0
        %v1331 = vmax.f32 %v1237, 0.0
        %v1332 = vmax.f32 %v1239, 0.0
        %v1333 = vmax.f32 %v1243, 0.0
        %v1334 = vmax.f32 %v1245, 0.0
        %v1335 = vmax.f32 %v1249, 0.0
        %v1336 = vmax.f32 %v1251, 0.0
        %v1337 = vmax.f32 %v1255, 0.0
        %v1338 = vmax.f32 %v1257, 0.0
        %v1339 = vmax.f32 %v1261, 0.0
        %v1340 = vmax.f32 %v1263, 0.0
        %v1341 = vmax.f32 %v1267, 0.0
        %v1342 = vmax.f32 %v1269, 0.0
        %v1343 = vmax.f32 %v1273, 0.0
        %v1344 = vmax.f32 %v1275, 0.0
        %v1345 = vmax.f32 %v1279, 0.0
        %v1346 = vmax.f32 %v1281, 0.0
        %v1347 = vmax.f32 %v1285, 0.0
        %v1348 = vmax.f32 %v1287, 0.0
        %v1349 = vmax.f32 %v1291, 0.0
        %v1350 = vmax.f32 %v1293, 0.0
        %v1351 = vmax.f32 %v1297, 0.0
        %v1352 = vmax.f32 %v1299, 0.0
        %v1353 = vmax.f32 %v1303, 0.0
        %v1354 = vmax.f32 %v1305, 0.0
        %v1355 = vmax.f32 %v1309, 0.0
        %v1356 = vmax.f32 %v1311, 0.0
        %v1357 = vmax.f32 %v1315, 0.0
        %v1358 = vmax.f32 %v1317, 0.0
        %v1359 = vmax.f32 %v1321, 0.0
        %v1360 = vmax.f32 %v1323, 0.0
        %v1361 = vmax.f32 %v1327, 0.0
        %v1362 = vmax.f32 %v1329, 0.0
        %1363 = vrot.lane.b32.xlu0 %v1331, 127
        %v1364 = vpop.permute.xlu0 %1363
        %1365 = vrot.lane.b32.xlu0 %v1333, 127
        %v1366 = vpop.permute.xlu0 %1365
        %1367 = vrot.lane.b32.xlu0 %v1335, 127
        %v1368 = vpop.permute.xlu0 %1367
        %1369 = vrot.lane.b32.xlu0 %v1337, 127
        %v1370 = vpop.permute.xlu0 %1369
        %1371 = vrot.lane.b32.xlu0 %v1339, 127
        %v1372 = vpop.permute.xlu0 %1371
        %1373 = vrot.lane.b32.xlu0 %v1341, 127
        %v1374 = vpop.permute.xlu0 %1373
        %1375 = vrot.lane.b32.xlu0 %v1343, 127
        %v1376 = vpop.permute.xlu0 %1375
        %1377 = vrot.lane.b32.xlu0 %v1345, 127
        %v1378 = vpop.permute.xlu0 %1377
        %1379 = vrot.lane.b32.xlu0 %v1347, 127
        %v1380 = vpop.permute.xlu0 %1379
        %1381 = vrot.lane.b32.xlu0 %v1349, 127
        %v1382 = vpop.permute.xlu0 %1381
        %1383 = vrot.lane.b32.xlu0 %v1351, 127
        %v1384 = vpop.permute.xlu0 %1383
        %1385 = vrot.lane.b32.xlu0 %v1353, 127
        %v1386 = vpop.permute.xlu0 %1385
        %1387 = vrot.lane.b32.xlu0 %v1355, 127
        %v1388 = vpop.permute.xlu0 %1387
        %1389 = vrot.lane.b32.xlu0 %v1357, 127
        %v1390 = vpop.permute.xlu0 %1389
        %1391 = vrot.lane.b32.xlu0 %v1359, 127
        %v1392 = vpop.permute.xlu0 %1391
        %1393 = vrot.lane.b32.xlu0 %v1361, 127
        %v1394 = vpop.permute.xlu0 %1393
        %1395 = vrot.lane.b32.xlu0 %v1332, 127
        %v1396 = vpop.permute.xlu0 %1395
        %1397 = vrot.lane.b32.xlu0 %v1334, 127
        %v1398 = vpop.permute.xlu0 %1397
        %1399 = vrot.lane.b32.xlu0 %v1336, 127
        %v1400 = vpop.permute.xlu0 %1399
        %1401 = vrot.lane.b32.xlu0 %v1338, 127
        %v1402 = vpop.permute.xlu0 %1401
        %1403 = vrot.lane.b32.xlu0 %v1340, 127
        %v1404 = vpop.permute.xlu0 %1403
        %1405 = vrot.lane.b32.xlu0 %v1342, 127
        %v1406 = vpop.permute.xlu0 %1405
        %1407 = vrot.lane.b32.xlu0 %v1344, 127
        %v1408 = vpop.permute.xlu0 %1407
        %1409 = vrot.lane.b32.xlu0 %v1346, 127
        %v1410 = vpop.permute.xlu0 %1409
        %1411 = vrot.lane.b32.xlu0 %v1348, 127
        %v1412 = vpop.permute.xlu0 %1411
        %1413 = vrot.lane.b32.xlu0 %v1350, 127
        %v1414 = vpop.permute.xlu0 %1413
        %1415 = vrot.lane.b32.xlu0 %v1352, 127
        %v1416 = vpop.permute.xlu0 %1415
        %1417 = vrot.lane.b32.xlu0 %v1354, 127
        %v1418 = vpop.permute.xlu0 %1417
        %1419 = vrot.lane.b32.xlu0 %v1356, 127
        %v1420 = vpop.permute.xlu0 %1419
        %1421 = vrot.lane.b32.xlu0 %v1358, 127
        %v1422 = vpop.permute.xlu0 %1421
        %1423 = vrot.lane.b32.xlu0 %v1360, 127
        %v1424 = vpop.permute.xlu0 %1423
        %1425 = vrot.lane.b32.xlu0 %v1362, 127
        %v1426 = vpop.permute.xlu0 %1425
        %v1427 = vsel %vm853, %v1364, %v1396
        %v1428 = vsel %vm853, %v1366, %v1398
        %v1429 = vsel %vm853, %v1368, %v1400
        %v1430 = vsel %vm853, %v1370, %v1402
        %v1431 = vsel %vm853, %v1372, %v1404
        %v1432 = vsel %vm853, %v1374, %v1406
        %v1433 = vsel %vm853, %v1376, %v1408
        %v1434 = vsel %vm853, %v1378, %v1410
        %v1435 = vsel %vm853, %v1380, %v1412
        %v1436 = vsel %vm853, %v1382, %v1414
        %v1437 = vsel %vm853, %v1384, %v1416
        %v1438 = vsel %vm853, %v1386, %v1418
        %v1439 = vsel %vm853, %v1388, %v1420
        %v1440 = vsel %vm853, %v1390, %v1422
        %v1441 = vsel %vm853, %v1392, %v1424
        %v1442 = vsel %vm853, %v1394, %v1426
        %v1443 = vsel %vm853, %v1396, %v1364
        %v1444 = vsel %vm853, %v1398, %v1366
        %v1445 = vsel %vm853, %v1400, %v1368
        %v1446 = vsel %vm853, %v1402, %v1370
        %v1447 = vsel %vm853, %v1404, %v1372
        %v1448 = vsel %vm853, %v1406, %v1374
        %v1449 = vsel %vm853, %v1408, %v1376
        %v1450 = vsel %vm853, %v1410, %v1378
        %v1451 = vsel %vm853, %v1412, %v1380
        %v1452 = vsel %vm853, %v1414, %v1382
        %v1453 = vsel %vm853, %v1416, %v1384
        %v1454 = vsel %vm853, %v1418, %v1386
        %v1455 = vsel %vm853, %v1420, %v1388
        %v1456 = vsel %vm853, %v1422, %v1390
        %v1457 = vsel %vm853, %v1424, %v1392
        %v1458 = vsel %vm853, %v1426, %v1394
        %v1459 = vmax.f32 %v1331, %v1427
        %v1460 = vmax.f32 %v1332, %v1443
        %v1461 = vmax.f32 %v1333, %v1428
        %v1462 = vmax.f32 %v1334, %v1444
        %v1463 = vmax.f32 %v1335, %v1429
        %v1464 = vmax.f32 %v1336, %v1445
        %v1465 = vmax.f32 %v1337, %v1430
        %v1466 = vmax.f32 %v1338, %v1446
        %v1467 = vmax.f32 %v1339, %v1431
        %v1468 = vmax.f32 %v1340, %v1447
        %v1469 = vmax.f32 %v1341, %v1432
        %v1470 = vmax.f32 %v1342, %v1448
        %v1471 = vmax.f32 %v1343, %v1433
        %v1472 = vmax.f32 %v1344, %v1449
        %v1473 = vmax.f32 %v1345, %v1434
        %v1474 = vmax.f32 %v1346, %v1450
        %v1475 = vmax.f32 %v1347, %v1435
        %v1476 = vmax.f32 %v1348, %v1451
        %v1477 = vmax.f32 %v1349, %v1436
        %v1478 = vmax.f32 %v1350, %v1452
        %v1479 = vmax.f32 %v1351, %v1437
        %v1480 = vmax.f32 %v1352, %v1453
        %v1481 = vmax.f32 %v1353, %v1438
        %v1482 = vmax.f32 %v1354, %v1454
        %v1483 = vmax.f32 %v1355, %v1439
        %v1484 = vmax.f32 %v1356, %v1455
        %v1485 = vmax.f32 %v1357, %v1440
        %v1486 = vmax.f32 %v1358, %v1456
        %v1487 = vmax.f32 %v1359, %v1441
        %v1488 = vmax.f32 %v1360, %v1457
        %v1489 = vmax.f32 %v1361, %v1442
        %v1490 = vmax.f32 %v1362, %v1458
        %1491 = vrot.lane.b32.xlu0 %v1331, 112
        %v1492 = vpop.permute.xlu0 %1491
        %1493 = vrot.lane.b32.xlu0 %v1333, 112
        %v1494 = vpop.permute.xlu0 %1493
        %1495 = vrot.lane.b32.xlu0 %v1335, 112
        %v1496 = vpop.permute.xlu0 %1495
        %1497 = vrot.lane.b32.xlu0 %v1337, 112
        %v1498 = vpop.permute.xlu0 %1497
        %1499 = vrot.lane.b32.xlu0 %v1339, 112
        %v1500 = vpop.permute.xlu0 %1499
        %1501 = vrot.lane.b32.xlu0 %v1341, 112
        %v1502 = vpop.permute.xlu0 %1501
        %1503 = vrot.lane.b32.xlu0 %v1343, 112
        %v1504 = vpop.permute.xlu0 %1503
        %1505 = vrot.lane.b32.xlu0 %v1345, 112
        %v1506 = vpop.permute.xlu0 %1505
        %1507 = vrot.lane.b32.xlu0 %v1347, 112
        %v1508 = vpop.permute.xlu0 %1507
        %1509 = vrot.lane.b32.xlu0 %v1349, 112
        %v1510 = vpop.permute.xlu0 %1509
        %1511 = vrot.lane.b32.xlu0 %v1351, 112
        %v1512 = vpop.permute.xlu0 %1511
        %1513 = vrot.lane.b32.xlu0 %v1353, 112
        %v1514 = vpop.permute.xlu0 %1513
        %1515 = vrot.lane.b32.xlu0 %v1355, 112
        %v1516 = vpop.permute.xlu0 %1515
        %1517 = vrot.lane.b32.xlu0 %v1357, 112
        %v1518 = vpop.permute.xlu0 %1517
        %1519 = vrot.lane.b32.xlu0 %v1359, 112
        %v1520 = vpop.permute.xlu0 %1519
        %1521 = vrot.lane.b32.xlu0 %v1361, 112
        %v1522 = vpop.permute.xlu0 %1521
        %1523 = vrot.lane.b32.xlu0 %v1332, 112
        %v1524 = vpop.permute.xlu0 %1523
        %1525 = vrot.lane.b32.xlu0 %v1334, 112
        %v1526 = vpop.permute.xlu0 %1525
        %1527 = vrot.lane.b32.xlu0 %v1336, 112
        %v1528 = vpop.permute.xlu0 %1527
        %1529 = vrot.lane.b32.xlu0 %v1338, 112
        %v1530 = vpop.permute.xlu0 %1529
        %1531 = vrot.lane.b32.xlu0 %v1340, 112
        %v1532 = vpop.permute.xlu0 %1531
        %1533 = vrot.lane.b32.xlu0 %v1342, 112
        %v1534 = vpop.permute.xlu0 %1533
        %1535 = vrot.lane.b32.xlu0 %v1344, 112
        %v1536 = vpop.permute.xlu0 %1535
        %1537 = vrot.lane.b32.xlu0 %v1346, 112
        %v1538 = vpop.permute.xlu0 %1537
        %1539 = vrot.lane.b32.xlu0 %v1348, 112
        %v1540 = vpop.permute.xlu0 %1539
        %1541 = vrot.lane.b32.xlu0 %v1350, 112
        %v1542 = vpop.permute.xlu0 %1541
        %1543 = vrot.lane.b32.xlu0 %v1352, 112
        %v1544 = vpop.permute.xlu0 %1543
        %1545 = vrot.lane.b32.xlu0 %v1354, 112
        %v1546 = vpop.permute.xlu0 %1545
        %1547 = vrot.lane.b32.xlu0 %v1356, 112
        %v1548 = vpop.permute.xlu0 %1547
        %1549 = vrot.lane.b32.xlu0 %v1358, 112
        %v1550 = vpop.permute.xlu0 %1549
        %1551 = vrot.lane.b32.xlu0 %v1360, 112
        %v1552 = vpop.permute.xlu0 %1551
        %1553 = vrot.lane.b32.xlu0 %v1362, 112
        %v1554 = vpop.permute.xlu0 %1553
        %v1555 = vsel %vm929, %v1492, %v1524
        %v1556 = vsel %vm929, %v1494, %v1526
        %v1557 = vsel %vm929, %v1496, %v1528
        %v1558 = vsel %vm929, %v1498, %v1530
        %v1559 = vsel %vm929, %v1500, %v1532
        %v1560 = vsel %vm929, %v1502, %v1534
        %v1561 = vsel %vm929, %v1504, %v1536
        %v1562 = vsel %vm929, %v1506, %v1538
        %v1563 = vsel %vm929, %v1508, %v1540
        %v1564 = vsel %vm929, %v1510, %v1542
        %v1565 = vsel %vm929, %v1512, %v1544
        %v1566 = vsel %vm929, %v1514, %v1546
        %v1567 = vsel %vm929, %v1516, %v1548
        %v1568 = vsel %vm929, %v1518, %v1550
        %v1569 = vsel %vm929, %v1520, %v1552
        %v1570 = vsel %vm929, %v1522, %v1554
        %v1571 = vsel %vm929, %v1524, %v1492
        %v1572 = vsel %vm929, %v1526, %v1494
        %v1573 = vsel %vm929, %v1528, %v1496
        %v1574 = vsel %vm929, %v1530, %v1498
        %v1575 = vsel %vm929, %v1532, %v1500
        %v1576 = vsel %vm929, %v1534, %v1502
        %v1577 = vsel %vm929, %v1536, %v1504
        %v1578 = vsel %vm929, %v1538, %v1506
        %v1579 = vsel %vm929, %v1540, %v1508
        %v1580 = vsel %vm929, %v1542, %v1510
        %v1581 = vsel %vm929, %v1544, %v1512
        %v1582 = vsel %vm929, %v1546, %v1514
        %v1583 = vsel %vm929, %v1548, %v1516
        %v1584 = vsel %vm929, %v1550, %v1518
        %v1585 = vsel %vm929, %v1552, %v1520
        %v1586 = vsel %vm929, %v1554, %v1522
        %v1587 = vmax.f32 %v1459, %v1555
        %v1588 = vmax.f32 %v1460, %v1571
        %v1589 = vmax.f32 %v1461, %v1556
        %v1590 = vmax.f32 %v1462, %v1572
        %v1591 = vmax.f32 %v1463, %v1557
        %v1592 = vmax.f32 %v1464, %v1573
        %v1593 = vmax.f32 %v1465, %v1558
        %v1594 = vmax.f32 %v1466, %v1574
        %v1595 = vmax.f32 %v1467, %v1559
        %v1596 = vmax.f32 %v1468, %v1575
        %v1597 = vmax.f32 %v1469, %v1560
        %v1598 = vmax.f32 %v1470, %v1576
        %v1599 = vmax.f32 %v1471, %v1561
        %v1600 = vmax.f32 %v1472, %v1577
        %v1601 = vmax.f32 %v1473, %v1562
        %v1602 = vmax.f32 %v1474, %v1578
        %v1603 = vmax.f32 %v1475, %v1563
        %v1604 = vmax.f32 %v1476, %v1579
        %v1605 = vmax.f32 %v1477, %v1564
        %v1606 = vmax.f32 %v1478, %v1580
        %v1607 = vmax.f32 %v1479, %v1565
        %v1608 = vmax.f32 %v1480, %v1581
        %v1609 = vmax.f32 %v1481, %v1566
        %v1610 = vmax.f32 %v1482, %v1582
        %v1611 = vmax.f32 %v1483, %v1567
        %v1612 = vmax.f32 %v1484, %v1583
        %v1613 = vmax.f32 %v1485, %v1568
        %v1614 = vmax.f32 %v1486, %v1584
        %v1615 = vmax.f32 %v1487, %v1569
        %v1616 = vmax.f32 %v1488, %v1585
        %v1617 = vmax.f32 %v1489, %v1570
        %v1618 = vmax.f32 %v1490, %v1586
        %1619 = vrot.lane.b32.xlu0 %v1331, 111
        %v1620 = vpop.permute.xlu0 %1619
        %1621 = vrot.lane.b32.xlu0 %v1333, 111
        %v1622 = vpop.permute.xlu0 %1621
        %1623 = vrot.lane.b32.xlu0 %v1335, 111
        %v1624 = vpop.permute.xlu0 %1623
        %1625 = vrot.lane.b32.xlu0 %v1337, 111
        %v1626 = vpop.permute.xlu0 %1625
        %1627 = vrot.lane.b32.xlu0 %v1339, 111
        %v1628 = vpop.permute.xlu0 %1627
        %1629 = vrot.lane.b32.xlu0 %v1341, 111
        %v1630 = vpop.permute.xlu0 %1629
        %1631 = vrot.lane.b32.xlu0 %v1343, 111
        %v1632 = vpop.permute.xlu0 %1631
        %1633 = vrot.lane.b32.xlu0 %v1345, 111
        %v1634 = vpop.permute.xlu0 %1633
        %1635 = vrot.lane.b32.xlu0 %v1347, 111
        %v1636 = vpop.permute.xlu0 %1635
        %1637 = vrot.lane.b32.xlu0 %v1349, 111
        %v1638 = vpop.permute.xlu0 %1637
        %1639 = vrot.lane.b32.xlu0 %v1351, 111
        %v1640 = vpop.permute.xlu0 %1639
        %1641 = vrot.lane.b32.xlu0 %v1353, 111
        %v1642 = vpop.permute.xlu0 %1641
        %1643 = vrot.lane.b32.xlu0 %v1355, 111
        %v1644 = vpop.permute.xlu0 %1643
        %1645 = vrot.lane.b32.xlu0 %v1357, 111
        %v1646 = vpop.permute.xlu0 %1645
        %1647 = vrot.lane.b32.xlu0 %v1359, 111
        %v1648 = vpop.permute.xlu0 %1647
        %1649 = vrot.lane.b32.xlu0 %v1361, 111
        %v1650 = vpop.permute.xlu0 %1649
        %1651 = vrot.lane.b32.xlu0 %v1332, 111
        %v1652 = vpop.permute.xlu0 %1651
        %1653 = vrot.lane.b32.xlu0 %v1334, 111
        %v1654 = vpop.permute.xlu0 %1653
        %1655 = vrot.lane.b32.xlu0 %v1336, 111
        %v1656 = vpop.permute.xlu0 %1655
        %1657 = vrot.lane.b32.xlu0 %v1338, 111
        %v1658 = vpop.permute.xlu0 %1657
        %1659 = vrot.lane.b32.xlu0 %v1340, 111
        %v1660 = vpop.permute.xlu0 %1659
        %1661 = vrot.lane.b32.xlu0 %v1342, 111
        %v1662 = vpop.permute.xlu0 %1661
        %1663 = vrot.lane.b32.xlu0 %v1344, 111
        %v1664 = vpop.permute.xlu0 %1663
        %1665 = vrot.lane.b32.xlu0 %v1346, 111
        %v1666 = vpop.permute.xlu0 %1665
        %1667 = vrot.lane.b32.xlu0 %v1348, 111
        %v1668 = vpop.permute.xlu0 %1667
        %1669 = vrot.lane.b32.xlu0 %v1350, 111
        %v1670 = vpop.permute.xlu0 %1669
        %1671 = vrot.lane.b32.xlu0 %v1352, 111
        %v1672 = vpop.permute.xlu0 %1671
        %1673 = vrot.lane.b32.xlu0 %v1354, 111
        %v1674 = vpop.permute.xlu0 %1673
        %1675 = vrot.lane.b32.xlu0 %v1356, 111
        %v1676 = vpop.permute.xlu0 %1675
        %1677 = vrot.lane.b32.xlu0 %v1358, 111
        %v1678 = vpop.permute.xlu0 %1677
        %1679 = vrot.lane.b32.xlu0 %v1360, 111
        %v1680 = vpop.permute.xlu0 %1679
        %1681 = vrot.lane.b32.xlu0 %v1362, 111
        %v1682 = vpop.permute.xlu0 %1681
        %v1683 = vsel %vm967, %v1620, %v1652
        %v1684 = vsel %vm967, %v1622, %v1654
        %v1685 = vsel %vm967, %v1624, %v1656
        %v1686 = vsel %vm967, %v1626, %v1658
        %v1687 = vsel %vm967, %v1628, %v1660
        %v1688 = vsel %vm967, %v1630, %v1662
        %v1689 = vsel %vm967, %v1632, %v1664
        %v1690 = vsel %vm967, %v1634, %v1666
        %v1691 = vsel %vm967, %v1636, %v1668
        %v1692 = vsel %vm967, %v1638, %v1670
        %v1693 = vsel %vm967, %v1640, %v1672
        %v1694 = vsel %vm967, %v1642, %v1674
        %v1695 = vsel %vm967, %v1644, %v1676
        %v1696 = vsel %vm967, %v1646, %v1678
        %v1697 = vsel %vm967, %v1648, %v1680
        %v1698 = vsel %vm967, %v1650, %v1682
        %v1699 = vsel %vm967, %v1652, %v1620
        %v1700 = vsel %vm967, %v1654, %v1622
        %v1701 = vsel %vm967, %v1656, %v1624
        %v1702 = vsel %vm967, %v1658, %v1626
        %v1703 = vsel %vm967, %v1660, %v1628
        %v1704 = vsel %vm967, %v1662, %v1630
        %v1705 = vsel %vm967, %v1664, %v1632
        %v1706 = vsel %vm967, %v1666, %v1634
        %v1707 = vsel %vm967, %v1668, %v1636
        %v1708 = vsel %vm967, %v1670, %v1638
        %v1709 = vsel %vm967, %v1672, %v1640
        %v1710 = vsel %vm967, %v1674, %v1642
        %v1711 = vsel %vm967, %v1676, %v1644
        %v1712 = vsel %vm967, %v1678, %v1646
        %v1713 = vsel %vm967, %v1680, %v1648
        %v1714 = vsel %vm967, %v1682, %v1650
        %v1715 = vmax.f32 %v1587, %v1683
        %v1716 = vmax.f32 %v1588, %v1699
        %v1717 = vmax.f32 %v1589, %v1684
        %v1718 = vmax.f32 %v1590, %v1700
        %v1719 = vmax.f32 %v1591, %v1685
        %v1720 = vmax.f32 %v1592, %v1701
        %v1721 = vmax.f32 %v1593, %v1686
        %v1722 = vmax.f32 %v1594, %v1702
        %v1723 = vmax.f32 %v1595, %v1687
        %v1724 = vmax.f32 %v1596, %v1703
        %v1725 = vmax.f32 %v1597, %v1688
        %v1726 = vmax.f32 %v1598, %v1704
        %v1727 = vmax.f32 %v1599, %v1689
        %v1728 = vmax.f32 %v1600, %v1705
        %v1729 = vmax.f32 %v1601, %v1690
        %v1730 = vmax.f32 %v1602, %v1706
        %v1731 = vmax.f32 %v1603, %v1691
        %v1732 = vmax.f32 %v1604, %v1707
        %v1733 = vmax.f32 %v1605, %v1692
        %v1734 = vmax.f32 %v1606, %v1708
        %v1735 = vmax.f32 %v1607, %v1693
        %v1736 = vmax.f32 %v1608, %v1709
        %v1737 = vmax.f32 %v1609, %v1694
        %v1738 = vmax.f32 %v1610, %v1710
        %v1739 = vmax.f32 %v1611, %v1695
        %v1740 = vmax.f32 %v1612, %v1711
        %v1741 = vmax.f32 %v1613, %v1696
        %v1742 = vmax.f32 %v1614, %v1712
        %v1743 = vmax.f32 %v1615, %v1697
        %v1744 = vmax.f32 %v1616, %v1713
        %v1745 = vmax.f32 %v1617, %v1698
        %v1746 = vmax.f32 %v1618, %v1714
        %v1747 = vld [vmem:[#allocation7] sm:$0xff]
        %v1748 = vld [vmem:[#allocation7 + $0x8] sm:$0xff]
        %v1749 = vld [vmem:[#allocation7 + $0x10] sm:$0xff]
        %v1750 = vld [vmem:[#allocation7 + $0x18] sm:$0xff]
        %v1751 = vld [vmem:[#allocation7 + $0x20] sm:$0xff]
        %v1752 = vld [vmem:[#allocation7 + $0x28] sm:$0xff]
        %v1753 = vld [vmem:[#allocation7 + $0x30] sm:$0xff]
        %v1754 = vld [vmem:[#allocation7 + $0x38] sm:$0xff]
        %v1755 = vld [vmem:[#allocation7 + $0x40] sm:$0xff]
        %v1756 = vld [vmem:[#allocation7 + $0x48] sm:$0xff]
        %v1757 = vld [vmem:[#allocation7 + $0x50] sm:$0xff]
        %v1758 = vld [vmem:[#allocation7 + $0x58] sm:$0xff]
        %v1759 = vld [vmem:[#allocation7 + $0x60] sm:$0xff]
        %v1760 = vld [vmem:[#allocation7 + $0x68] sm:$0xff]
        %v1761 = vld [vmem:[#allocation7 + $0x70] sm:$0xff]
        %v1762 = vld [vmem:[#allocation7 + $0x78] sm:$0xff]
        %v1763 = vld [vmem:[#allocation7 + $0x80] sm:$0xff]
        %v1764 = vld [vmem:[#allocation7 + $0x88] sm:$0xff]
        %v1765 = vld [vmem:[#allocation7 + $0x90] sm:$0xff]
        %v1766 = vld [vmem:[#allocation7 + $0x98] sm:$0xff]
        %v1767 = vld [vmem:[#allocation7 + $0xa0] sm:$0xff]
        %v1768 = vld [vmem:[#allocation7 + $0xa8] sm:$0xff]
        %v1769 = vld [vmem:[#allocation7 + $0xb0] sm:$0xff]
        %v1770 = vld [vmem:[#allocation7 + $0xb8] sm:$0xff]
        %v1771 = vld [vmem:[#allocation7 + $0xc0] sm:$0xff]
        %v1772 = vld [vmem:[#allocation7 + $0xc8] sm:$0xff]
        %v1773 = vld [vmem:[#allocation7 + $0xd0] sm:$0xff]
        %v1774 = vld [vmem:[#allocation7 + $0xd8] sm:$0xff]
        %v1775 = vld [vmem:[#allocation7 + $0xe0] sm:$0xff]
        %v1776 = vld [vmem:[#allocation7 + $0xe8] sm:$0xff]
        %v1777 = vld [vmem:[#allocation7 + $0xf0] sm:$0xff]
        %v1778 = vld [vmem:[#allocation7 + $0xf8] sm:$0xff]
        %1779 = vmatprep.subr.mxu0 0.0
        %1780 = vmatpush1.msra.mxu0 %v1747
        %1781 = vmatprep.subr.mxu0 0.0
        %1782 = vmatpush1.msra.mxu0 %v1748
        %1783 = vmatprep.subr.mxu0 0.0
        %1784 = vmatpush1.msra.mxu0 %v1749
        %1785 = vmatprep.subr.mxu0 0.0
        %1786 = vmatpush1.msra.mxu0 %v1750
        %1787 = vmatprep.subr.mxu0 0.0
        %1788 = vmatpush1.msra.mxu0 %v1751
        %1789 = vmatprep.subr.mxu0 0.0
        %1790 = vmatpush1.msra.mxu0 %v1752
        %1791 = vmatprep.subr.mxu0 0.0
        %1792 = vmatpush1.msra.mxu0 %v1753
        %1793 = vmatprep.subr.mxu0 0.0
        %1794 = vmatpush1.msra.mxu0 %v1754
        %1795 = vmatprep.subr.mxu0 0.0
        %1796 = vmatpush1.msra.mxu0 %v1755
        %1797 = vmatprep.subr.mxu0 0.0
        %1798 = vmatpush1.msra.mxu0 %v1756
        %1799 = vmatprep.subr.mxu0 0.0
        %1800 = vmatpush1.msra.mxu0 %v1757
        %1801 = vmatprep.subr.mxu0 0.0
        %1802 = vmatpush1.msra.mxu0 %v1758
        %1803 = vmatprep.subr.mxu0 0.0
        %1804 = vmatpush1.msra.mxu0 %v1759
        %1805 = vmatprep.subr.mxu0 0.0
        %1806 = vmatpush1.msra.mxu0 %v1760
        %1807 = vmatprep.subr.mxu0 0.0
        %1808 = vmatpush1.msra.mxu0 %v1761
        %1809 = vmatprep.subr.mxu0 0.0
        %1810 = vmatpush1.msra.mxu0 %v1762
        %1811 = vmatprep.subr.mxu0 0.0
        %1812 = vmatpush1.msra.mxu0 %v1763
        %1813 = vmatprep.subr.mxu0 0.0
        %1814 = vmatpush1.msra.mxu0 %v1764
        %1815 = vmatprep.subr.mxu0 0.0
        %1816 = vmatpush1.msra.mxu0 %v1765
        %1817 = vmatprep.subr.mxu0 0.0
        %1818 = vmatpush1.msra.mxu0 %v1766
        %1819 = vmatprep.subr.mxu0 0.0
        %1820 = vmatpush1.msra.mxu0 %v1767
        %1821 = vmatprep.subr.mxu0 0.0
        %1822 = vmatpush1.msra.mxu0 %v1768
        %1823 = vmatprep.subr.mxu0 0.0
        %1824 = vmatpush1.msra.mxu0 %v1769
        %1825 = vmatprep.subr.mxu0 0.0
        %1826 = vmatpush1.msra.mxu0 %v1770
        %1827 = vmatprep.subr.mxu0 0.0
        %1828 = vmatpush1.msra.mxu0 %v1771
        %1829 = vmatprep.subr.mxu0 0.0
        %1830 = vmatpush1.msra.mxu0 %v1772
        %1831 = vmatprep.subr.mxu0 0.0
        %1832 = vmatpush1.msra.mxu0 %v1773
        %1833 = vmatprep.subr.mxu0 0.0
        %1834 = vmatpush1.msra.mxu0 %v1774
        %1835 = vmatprep.subr.mxu0 0.0
        %1836 = vmatpush1.msra.mxu0 %v1775
        %1837 = vmatprep.subr.mxu0 0.0
        %1838 = vmatpush1.msra.mxu0 %v1776
        %1839 = vmatprep.subr.mxu0 0.0
        %1840 = vmatpush1.msra.mxu0 %v1777
        %1841 = vmatprep.subr.mxu0 0.0
        %1842 = vmatpush1.msra.mxu0 %v1778
        %1843 = vmatprep.mubr.f32.mxu0 %v1716
        %1844 = vmatmul.mubr.f32.gmra.mrb[0].mxu0 %v1715
        %v1845 = vpop.f32.mrb[0].mxu0
        %v1846 = vadd.f32 0.0, %v1845
        %v1847 = vpop.f32.mrb[0].mxu0
        %1848 = vmatprep.mubr.f32.mxu0 %v1718
        %1849 = vmatmul.mubr.f32.gmra.mrb[0].mxu0 %v1717
        %v1850 = vpop.f32.mrb[0].mxu0
        %v1851 = vadd.f32 0.0, %v1850
        %v1852 = vpop.f32.mrb[0].mxu0
        %1853 = vmatprep.mubr.f32.mxu0 %v1720
        %1854 = vmatmul.mubr.f32.gmra.mrb[0].mxu0 %v1719
        %v1855 = vpop.f32.mrb[0].mxu0
        %v1856 = vadd.f32 0.0, %v1855
        %v1857 = vpop.f32.mrb[0].mxu0
        %1858 = vmatprep.mubr.f32.mxu0 %v1722
        %1859 = vmatmul.mubr.f32.gmra.mrb[0].mxu0 %v1721
        %v1860 = vpop.f32.mrb[0].mxu0
        %v1861 = vadd.f32 0.0, %v1860
        %v1862 = vpop.f32.mrb[0].mxu0
        %1863 = vmatprep.mubr.f32.mxu0 %v1724
        %1864 = vmatmul.mubr.f32.gmra.mrb[0].mxu0 %v1723
        %v1865 = vpop.f32.mrb[0].mxu0
        %v1866 = vadd.f32 0.0, %v1865
        %v1867 = vpop.f32.mrb[0].mxu0
        %1868 = vmatprep.mubr.f32.mxu0 %v1726
        %1869 = vmatmul.mubr.f32.gmra.mrb[0].mxu0 %v1725
        %v1870 = vpop.f32.mrb[0].mxu0
        %v1871 = vadd.f32 0.0, %v1870
        %v1872 = vpop.f32.mrb[0].mxu0
        %1873 = vmatprep.mubr.f32.mxu0 %v1728
        %1874 = vmatmul.mubr.f32.gmra.mrb[0].mxu0 %v1727
        %v1875 = vpop.f32.mrb[0].mxu0
        %v1876 = vadd.f32 0.0, %v1875
        %v1877 = vpop.f32.mrb[0].mxu0
        %1878 = vmatprep.mubr.f32.mxu0 %v1730
        %1879 = vmatmul.mubr.f32.gmra.mrb[0].mxu0 %v1729
        %v1880 = vpop.f32.mrb[0].mxu0
        %v1881 = vadd.f32 0.0, %v1880
        %v1882 = vpop.f32.mrb[0].mxu0
        %1883 = vmatprep.mubr.f32.mxu0 %v1732
        %1884 = vmatmul.mubr.f32.gmra.mrb[0].mxu0 %v1731
        %v1885 = vpop.f32.mrb[0].mxu0
        %v1886 = vadd.f32 0.0, %v1885
        %v1887 = vpop.f32.mrb[0].mxu0
        %1888 = vmatprep.mubr.f32.mxu0 %v1734
        %1889 = vmatmul.mubr.f32.gmra.mrb[0].mxu0 %v1733
        %v1890 = vpop.f32.mrb[0].mxu0
        %v1891 = vadd.f32 0.0, %v1890
        %v1892 = vpop.f32.mrb[0].mxu0
        %1893 = vmatprep.mubr.f32.mxu0 %v1736
        %1894 = vmatmul.mubr.f32.gmra.mrb[0].mxu0 %v1735
        %v1895 = vpop.f32.mrb[0].mxu0
        %v1896 = vadd.f32 0.0, %v1895
        %v1897 = vpop.f32.mrb[0].mxu0
        %1898 = vmatprep.mubr.f32.mxu0 %v1738
        %1899 = vmatmul.mubr.f32.gmra.mrb[0].mxu0 %v1737
        %v1900 = vpop.f32.mrb[0].mxu0
        %v1901 = vadd.f32 0.0, %v1900
        %v1902 = vpop.f32.mrb[0].mxu0
        %1903 = vmatprep.mubr.f32.mxu0 %v1740
        %1904 = vmatmul.mubr.f32.gmra.mrb[0].mxu0 %v1739
        %v1905 = vpop.f32.mrb[0].mxu0
        %v1906 = vadd.f32 0.0, %v1905
        %v1907 = vpop.f32.mrb[0].mxu0
        %1908 = vmatprep.mubr.f32.mxu0 %v1742
        %1909 = vmatmul.mubr.f32.gmra.mrb[0].mxu0 %v1741
        %v1910 = vpop.f32.mrb[0].mxu0
        %v1911 = vadd.f32 0.0, %v1910
        %v1912 = vpop.f32.mrb[0].mxu0
        %1913 = vmatprep.mubr.f32.mxu0 %v1744
        %1914 = vmatmul.mubr.f32.gmra.mrb[0].mxu0 %v1743
        %v1915 = vpop.f32.mrb[0].mxu0
        %v1916 = vadd.f32 0.0, %v1915
        %v1917 = vpop.f32.mrb[0].mxu0
        %1918 = vmatprep.mubr.f32.mxu0 %v1746
        %1919 = vmatmul.mubr.f32.gmra.mrb[0].mxu0 %v1745
        %v1920 = vpop.f32.mrb[0].mxu0
        %v1921 = vadd.f32 0.0, %v1920
        %v1922 = vpop.f32.mrb[0].mxu0
        %1923 = vdwg.mxu0
        %v1924 = vld [vmem:[%s5] sm:$0xff]
        %v1925 = vld [vmem:[%s5 + $0x8] sm:$0xff]
        %v1926 = vld [vmem:[%s5 + $0x10] sm:$0xff]
        %v1927 = vld [vmem:[%s5 + $0x18] sm:$0xff]
        %v1928 = vld [vmem:[%s5 + $0x20] sm:$0xff]
        %v1929 = vld [vmem:[%s5 + $0x28] sm:$0xff]
        %v1930 = vld [vmem:[%s5 + $0x30] sm:$0xff]
        %v1931 = vld [vmem:[%s5 + $0x38] sm:$0xff]
        %vm1932 = vcmask 523264
        %v1934 = vsel %vm1932, %v1846, 0
        %v1937 = vsel %vm1932, %v1851, 0
        %v1940 = vsel %vm1932, %v1856, 0
        %v1943 = vsel %vm1932, %v1861, 0
        %v1946 = vsel %vm1932, %v1866, 0
        %v1949 = vsel %vm1932, %v1871, 0
        %v1952 = vsel %vm1932, %v1876, 0
        %v1955 = vsel %vm1932, %v1881, 0
        %v1958 = vsel %vm1932, %v1886, 0
        %v1961 = vsel %vm1932, %v1891, 0
        %v1964 = vsel %vm1932, %v1896, 0
        %v1967 = vsel %vm1932, %v1901, 0
        %v1970 = vsel %vm1932, %v1906, 0
        %v1973 = vsel %vm1932, %v1911, 0
        %v1976 = vsel %vm1932, %v1916, 0
        %v1979 = vsel %vm1932, %v1921, 0
        %1981 = vmatprep.subr.mxu0 0.0
        %1982 = vmatpush1.msra.mxu0 %v1924
        %1983 = vmatprep.subr.mxu0 0.0
        %1984 = vmatpush1.msra.mxu0 %v1925
        %1985 = vmatprep.subr.mxu0 0.0
        %1986 = vmatpush1.msra.mxu0 %v1926
        %1987 = vmatprep.subr.mxu0 0.0
        %1988 = vmatpush1.msra.mxu0 %v1927
        %1989 = vmatprep.subr.mxu0 0.0
        %1990 = vmatpush1.msra.mxu0 %v1928
        %1991 = vmatprep.subr.mxu0 0.0
        %1992 = vmatpush1.msra.mxu0 %v1929
        %1993 = vmatprep.subr.mxu0 0.0
        %1994 = vmatpush1.msra.mxu0 %v1930
        %1995 = vmatprep.subr.mxu0 0.0
        %1996 = vmatpush1.msra.mxu0 %v1931
        %1997 = vmatprep.subr.mxu0 0.0
        %1998 = vmatpush1.msra.mxu0 0.0
        %1999 = vmatprep.subr.mxu0 0.0
        %2000 = vmatpush1.msra.mxu0 0.0
        %2001 = vmatprep.subr.mxu0 0.0
        %2002 = vmatpush1.msra.mxu0 0.0
        %2003 = vmatprep.subr.mxu0 0.0
        %2004 = vmatpush1.msra.mxu0 0.0
        %2005 = vmatprep.subr.mxu0 0.0
        %2006 = vmatpush1.msra.mxu0 0.0
        %2007 = vmatprep.subr.mxu0 0.0
        %2008 = vmatpush1.msra.mxu0 0.0
        %2009 = vmatprep.subr.mxu0 0.0
        %2010 = vmatpush1.msra.mxu0 0.0
        %2011 = vmatprep.subr.mxu0 0.0
        %2012 = vmatpush1.msra.mxu0 0.0
        %2013 = vmatprep.subr.mxu0 0.0
        %2014 = vmatpush1.msra.mxu0 0.0
        %2015 = vmatprep.subr.mxu0 0.0
        %2016 = vmatpush1.msra.mxu0 0.0
        %2017 = vmatprep.subr.mxu0 0.0
        %2018 = vmatpush1.msra.mxu0 0.0
        %2019 = vmatprep.subr.mxu0 0.0
        %2020 = vmatpush1.msra.mxu0 0.0
        %2021 = vmatprep.subr.mxu0 0.0
        %2022 = vmatpush1.msra.mxu0 0.0
        %2023 = vmatprep.subr.mxu0 0.0
        %2024 = vmatpush1.msra.mxu0 0.0
        %2025 = vmatprep.subr.mxu0 0.0
        %2026 = vmatpush1.msra.mxu0 0.0
        %2027 = vmatprep.subr.mxu0 0.0
        %2028 = vmatpush1.msra.mxu0 0.0
        %2029 = vmatprep.subr.mxu0 0.0
        %2030 = vmatpush1.msra.mxu0 0.0
        %2031 = vmatprep.subr.mxu0 0.0
        %2032 = vmatpush1.msra.mxu0 0.0
        %2033 = vmatprep.subr.mxu0 0.0
        %2034 = vmatpush1.msra.mxu0 0.0
        %2035 = vmatprep.subr.mxu0 0.0
        %2036 = vmatpush1.msra.mxu0 0.0
        %2037 = vmatprep.subr.mxu0 0.0
        %2038 = vmatpush1.msra.mxu0 0.0
        %2039 = vmatprep.subr.mxu0 0.0
        %2040 = vmatpush1.msra.mxu0 0.0
        %2041 = vmatprep.subr.mxu0 0.0
        %2042 = vmatpush1.msra.mxu0 0.0
        %2043 = vmatprep.subr.mxu0 0.0
        %2044 = vmatpush1.msra.mxu0 0.0
        %2045 = vmatprep.mubr.f32.mxu0 0.0
        %2046 = vmatmul.mubr.f32.gmra.mrb[0].mxu0 %v1934
        %v2047 = vpop.f32.mrb[0].mxu0
        %v2048 = vadd.f32 0.0, %v2047
        %v2049 = vpop.f32.mrb[0].mxu0
        %2050 = vmatprep.mubr.f32.mxu0 0.0
        %2051 = vmatmul.mubr.f32.gmra.mrb[0].mxu0 %v1937
        %v2052 = vpop.f32.mrb[0].mxu0
        %v2053 = vadd.f32 0.0, %v2052
        %v2054 = vpop.f32.mrb[0].mxu0
        %2055 = vmatprep.mubr.f32.mxu0 0.0
        %2056 = vmatmul.mubr.f32.gmra.mrb[0].mxu0 %v1940
        %v2057 = vpop.f32.mrb[0].mxu0
        %v2058 = vadd.f32 0.0, %v2057
        %v2059 = vpop.f32.mrb[0].mxu0
        %2060 = vmatprep.mubr.f32.mxu0 0.0
        %2061 = vmatmul.mubr.f32.gmra.mrb[0].mxu0 %v1943
        %v2062 = vpop.f32.mrb[0].mxu0
        %v2063 = vadd.f32 0.0, %v2062
        %v2064 = vpop.f32.mrb[0].mxu0
        %2065 = vmatprep.mubr.f32.mxu0 0.0
        %2066 = vmatmul.mubr.f32.gmra.mrb[0].mxu0 %v1946
        %v2067 = vpop.f32.mrb[0].mxu0
        %v2068 = vadd.f32 0.0, %v2067
        %v2069 = vpop.f32.mrb[0].mxu0
        %2070 = vmatprep.mubr.f32.mxu0 0.0
        %2071 = vmatmul.mubr.f32.gmra.mrb[0].mxu0 %v1949
        %v2072 = vpop.f32.mrb[0].mxu0
        %v2073 = vadd.f32 0.0, %v2072
        %v2074 = vpop.f32.mrb[0].mxu0
        %2075 = vmatprep.mubr.f32.mxu0 0.0
        %2076 = vmatmul.mubr.f32.gmra.mrb[0].mxu0 %v1952
        %v2077 = vpop.f32.mrb[0].mxu0
        %v2078 = vadd.f32 0.0, %v2077
        %v2079 = vpop.f32.mrb[0].mxu0
        %2080 = vmatprep.mubr.f32.mxu0 0.0
        %2081 = vmatmul.mubr.f32.gmra.mrb[0].mxu0 %v1955
        %v2082 = vpop.f32.mrb[0].mxu0
        %v2083 = vadd.f32 0.0, %v2082
        %v2084 = vpop.f32.mrb[0].mxu0
        %2085 = vmatprep.mubr.f32.mxu0 0.0
        %2086 = vmatmul.mubr.f32.gmra.mrb[0].mxu0 %v1958
        %v2087 = vpop.f32.mrb[0].mxu0
        %v2088 = vadd.f32 0.0, %v2087
        %v2089 = vpop.f32.mrb[0].mxu0
        %2090 = vmatprep.mubr.f32.mxu0 0.0
        %2091 = vmatmul.mubr.f32.gmra.mrb[0].mxu0 %v1961
        %v2092 = vpop.f32.mrb[0].mxu0
        %v2093 = vadd.f32 0.0, %v2092
        %v2094 = vpop.f32.mrb[0].mxu0
        %2095 = vmatprep.mubr.f32.mxu0 0.0
        %2096 = vmatmul.mubr.f32.gmra.mrb[0].mxu0 %v1964
        %v2097 = vpop.f32.mrb[0].mxu0
        %v2098 = vadd.f32 0.0, %v2097
        %v2099 = vpop.f32.mrb[0].mxu0
        %2100 = vmatprep.mubr.f32.mxu0 0.0
        %2101 = vmatmul.mubr.f32.gmra.mrb[0].mxu0 %v1967
        %v2102 = vpop.f32.mrb[0].mxu0
        %v2103 = vadd.f32 0.0, %v2102
        %v2104 = vpop.f32.mrb[0].mxu0
        %2105 = vmatprep.mubr.f32.mxu0 0.0
        %2106 = vmatmul.mubr.f32.gmra.mrb[0].mxu0 %v1970
        %v2107 = vpop.f32.mrb[0].mxu0
        %v2108 = vadd.f32 0.0, %v2107
        %v2109 = vpop.f32.mrb[0].mxu0
        %2110 = vmatprep.mubr.f32.mxu0 0.0
        %2111 = vmatmul.mubr.f32.gmra.mrb[0].mxu0 %v1973
        %v2112 = vpop.f32.mrb[0].mxu0
        %v2113 = vadd.f32 0.0, %v2112
        %v2114 = vpop.f32.mrb[0].mxu0
        %2115 = vmatprep.mubr.f32.mxu0 0.0
        %2116 = vmatmul.mubr.f32.gmra.mrb[0].mxu0 %v1976
        %v2117 = vpop.f32.mrb[0].mxu0
        %v2118 = vadd.f32 0.0, %v2117
        %v2119 = vpop.f32.mrb[0].mxu0
        %2120 = vmatprep.mubr.f32.mxu0 0.0
        %2121 = vmatmul.mubr.f32.gmra.mrb[0].mxu0 %v1979
        %v2122 = vpop.f32.mrb[0].mxu0
        %v2123 = vadd.f32 0.0, %v2122
        %v2124 = vpop.f32.mrb[0].mxu0
        %2125 = vdwg.mxu0
        %s2126 = scalar_lea.vmem %s5, 64
        %v2127 = vld [vmem:[%s2126] sm:$0xff]
        %v2128 = vld [vmem:[%s2126 + $0x8] sm:$0xff]
        %v2129 = vld [vmem:[%s2126 + $0x10] sm:$0xff]
        %v2130 = vld [vmem:[%s2126 + $0x18] sm:$0xff]
        %v2131 = vld [vmem:[%s2126 + $0x20] sm:$0xff]
        %v2132 = vld [vmem:[%s2126 + $0x28] sm:$0xff]
        %v2133 = vld [vmem:[%s2126 + $0x30] sm:$0xff]
        %v2134 = vld [vmem:[%s2126 + $0x38] sm:$0xff]
        %2135 = vmatprep.subr.mxu0 0.0
        %2136 = vmatpush1.msra.mxu0 %v2127
        %2137 = vmatprep.subr.mxu0 0.0
        %2138 = vmatpush1.msra.mxu0 %v2128
        %2139 = vmatprep.subr.mxu0 0.0
        %2140 = vmatpush1.msra.mxu0 %v2129
        %2141 = vmatprep.subr.mxu0 0.0
        %2142 = vmatpush1.msra.mxu0 %v2130
        %2143 = vmatprep.subr.mxu0 0.0
        %2144 = vmatpush1.msra.mxu0 %v2131
        %2145 = vmatprep.subr.mxu0 0.0
        %2146 = vmatpush1.msra.mxu0 %v2132
        %2147 = vmatprep.subr.mxu0 0.0
        %2148 = vmatpush1.msra.mxu0 %v2133
        %2149 = vmatprep.subr.mxu0 0.0
        %2150 = vmatpush1.msra.mxu0 %v2134
        %2151 = vmatprep.subr.mxu0 0.0
        %2152 = vmatpush1.msra.mxu0 0.0
        %2153 = vmatprep.subr.mxu0 0.0
        %2154 = vmatpush1.msra.mxu0 0.0
        %2155 = vmatprep.subr.mxu0 0.0
        %2156 = vmatpush1.msra.mxu0 0.0
        %2157 = vmatprep.subr.mxu0 0.0
        %2158 = vmatpush1.msra.mxu0 0.0
        %2159 = vmatprep.subr.mxu0 0.0
        %2160 = vmatpush1.msra.mxu0 0.0
        %2161 = vmatprep.subr.mxu0 0.0
        %2162 = vmatpush1.msra.mxu0 0.0
        %2163 = vmatprep.subr.mxu0 0.0
        %2164 = vmatpush1.msra.mxu0 0.0
        %2165 = vmatprep.subr.mxu0 0.0
        %2166 = vmatpush1.msra.mxu0 0.0
        %2167 = vmatprep.subr.mxu0 0.0
        %2168 = vmatpush1.msra.mxu0 0.0
        %2169 = vmatprep.subr.mxu0 0.0
        %2170 = vmatpush1.msra.mxu0 0.0
        %2171 = vmatprep.subr.mxu0 0.0
        %2172 = vmatpush1.msra.mxu0 0.0
        %2173 = vmatprep.subr.mxu0 0.0
        %2174 = vmatpush1.msra.mxu0 0.0
        %2175 = vmatprep.subr.mxu0 0.0
        %2176 = vmatpush1.msra.mxu0 0.0
        %2177 = vmatprep.subr.mxu0 0.0
        %2178 = vmatpush1.msra.mxu0 0.0
        %2179 = vmatprep.subr.mxu0 0.0
        %2180 = vmatpush1.msra.mxu0 0.0
        %2181 = vmatprep.subr.mxu0 0.0
        %2182 = vmatpush1.msra.mxu0 0.0
        %2183 = vmatprep.subr.mxu0 0.0
        %2184 = vmatpush1.msra.mxu0 0.0
        %2185 = vmatprep.subr.mxu0 0.0
        %2186 = vmatpush1.msra.mxu0 0.0
        %2187 = vmatprep.subr.mxu0 0.0
        %2188 = vmatpush1.msra.mxu0 0.0
        %2189 = vmatprep.subr.mxu0 0.0
        %2190 = vmatpush1.msra.mxu0 0.0
        %2191 = vmatprep.subr.mxu0 0.0
        %2192 = vmatpush1.msra.mxu0 0.0
        %2193 = vmatprep.subr.mxu0 0.0
        %2194 = vmatpush1.msra.mxu0 0.0
        %2195 = vmatprep.subr.mxu0 0.0
        %2196 = vmatpush1.msra.mxu0 0.0
        %2197 = vmatprep.subr.mxu0 0.0
        %2198 = vmatpush1.msra.mxu0 0.0
        %2199 = vmatprep.mubr.f32.mxu0 0.0
        %2200 = vmatmul.mubr.f32.gmra.mrb[0].mxu0 %v1934
        %v2201 = vpop.f32.mrb[0].mxu0
        %v2202 = vadd.f32 0.0, %v2201
        %v2203 = vpop.f32.mrb[0].mxu0
        %2204 = vmatprep.mubr.f32.mxu0 0.0
        %2205 = vmatmul.mubr.f32.gmra.mrb[0].mxu0 %v1937
        %v2206 = vpop.f32.mrb[0].mxu0
        %v2207 = vadd.f32 0.0, %v2206
        %v2208 = vpop.f32.mrb[0].mxu0
        %2209 = vmatprep.mubr.f32.mxu0 0.0
        %2210 = vmatmul.mubr.f32.gmra.mrb[0].mxu0 %v1940
        %v2211 = vpop.f32.mrb[0].mxu0
        %v2212 = vadd.f32 0.0, %v2211
        %v2213 = vpop.f32.mrb[0].mxu0
        %2214 = vmatprep.mubr.f32.mxu0 0.0
        %2215 = vmatmul.mubr.f32.gmra.mrb[0].mxu0 %v1943
        %v2216 = vpop.f32.mrb[0].mxu0
        %v2217 = vadd.f32 0.0, %v2216
        %v2218 = vpop.f32.mrb[0].mxu0
        %2219 = vmatprep.mubr.f32.mxu0 0.0
        %2220 = vmatmul.mubr.f32.gmra.mrb[0].mxu0 %v1946
        %v2221 = vpop.f32.mrb[0].mxu0
        %v2222 = vadd.f32 0.0, %v2221
        %v2223 = vpop.f32.mrb[0].mxu0
        %2224 = vmatprep.mubr.f32.mxu0 0.0
        %2225 = vmatmul.mubr.f32.gmra.mrb[0].mxu0 %v1949
        %v2226 = vpop.f32.mrb[0].mxu0
        %v2227 = vadd.f32 0.0, %v2226
        %v2228 = vpop.f32.mrb[0].mxu0
        %2229 = vmatprep.mubr.f32.mxu0 0.0
        %2230 = vmatmul.mubr.f32.gmra.mrb[0].mxu0 %v1952
        %v2231 = vpop.f32.mrb[0].mxu0
        %v2232 = vadd.f32 0.0, %v2231
        %v2233 = vpop.f32.mrb[0].mxu0
        %2234 = vmatprep.mubr.f32.mxu0 0.0
        %2235 = vmatmul.mubr.f32.gmra.mrb[0].mxu0 %v1955
        %v2236 = vpop.f32.mrb[0].mxu0
        %v2237 = vadd.f32 0.0, %v2236
        %v2238 = vpop.f32.mrb[0].mxu0
        %2239 = vmatprep.mubr.f32.mxu0 0.0
        %2240 = vmatmul.mubr.f32.gmra.mrb[0].mxu0 %v1958
        %v2241 = vpop.f32.mrb[0].mxu0
        %v2242 = vadd.f32 0.0, %v2241
        %v2243 = vpop.f32.mrb[0].mxu0
        %2244 = vmatprep.mubr.f32.mxu0 0.0
        %2245 = vmatmul.mubr.f32.gmra.mrb[0].mxu0 %v1961
        %v2246 = vpop.f32.mrb[0].mxu0
        %v2247 = vadd.f32 0.0, %v2246
        %v2248 = vpop.f32.mrb[0].mxu0
        %2249 = vmatprep.mubr.f32.mxu0 0.0
        %2250 = vmatmul.mubr.f32.gmra.mrb[0].mxu0 %v1964
        %v2251 = vpop.f32.mrb[0].mxu0
        %v2252 = vadd.f32 0.0, %v2251
        %v2253 = vpop.f32.mrb[0].mxu0
        %2254 = vmatprep.mubr.f32.mxu0 0.0
        %2255 = vmatmul.mubr.f32.gmra.mrb[0].mxu0 %v1967
        %v2256 = vpop.f32.mrb[0].mxu0
        %v2257 = vadd.f32 0.0, %v2256
        %v2258 = vpop.f32.mrb[0].mxu0
        %2259 = vmatprep.mubr.f32.mxu0 0.0
        %2260 = vmatmul.mubr.f32.gmra.mrb[0].mxu0 %v1970
        %v2261 = vpop.f32.mrb[0].mxu0
        %v2262 = vadd.f32 0.0, %v2261
        %v2263 = vpop.f32.mrb[0].mxu0
        %2264 = vmatprep.mubr.f32.mxu0 0.0
        %2265 = vmatmul.mubr.f32.gmra.mrb[0].mxu0 %v1973
        %v2266 = vpop.f32.mrb[0].mxu0
        %v2267 = vadd.f32 0.0, %v2266
        %v2268 = vpop.f32.mrb[0].mxu0
        %2269 = vmatprep.mubr.f32.mxu0 0.0
        %2270 = vmatmul.mubr.f32.gmra.mrb[0].mxu0 %v1976
        %v2271 = vpop.f32.mrb[0].mxu0
        %v2272 = vadd.f32 0.0, %v2271
        %v2273 = vpop.f32.mrb[0].mxu0
        %2274 = vmatprep.mubr.f32.mxu0 0.0
        %2275 = vmatmul.mubr.f32.gmra.mrb[0].mxu0 %v1979
        %v2276 = vpop.f32.mrb[0].mxu0
        %v2277 = vadd.f32 0.0, %v2276
        %v2278 = vpop.f32.mrb[0].mxu0
        %2279 = vdwg.mxu0
        %s2280 = scalar_lea.vmem %s5, 128
        %v2281 = vld [vmem:[%s2280] sm:$0xff]
        %v2282 = vld [vmem:[%s2280 + $0x8] sm:$0xff]
        %v2283 = vld [vmem:[%s2280 + $0x10] sm:$0xff]
        %v2284 = vld [vmem:[%s2280 + $0x18] sm:$0xff]
        %v2285 = vld [vmem:[%s2280 + $0x20] sm:$0xff]
        %v2286 = vld [vmem:[%s2280 + $0x28] sm:$0xff]
        %v2287 = vld [vmem:[%s2280 + $0x30] sm:$0xff]
        %v2288 = vld [vmem:[%s2280 + $0x38] sm:$0xff]
        %2289 = vmatprep.subr.mxu0 0.0
        %2290 = vmatpush1.msra.mxu0 %v2281
        %2291 = vmatprep.subr.mxu0 0.0
        %2292 = vmatpush1.msra.mxu0 %v2282
        %2293 = vmatprep.subr.mxu0 0.0
        %2294 = vmatpush1.msra.mxu0 %v2283
        %2295 = vmatprep.subr.mxu0 0.0
        %2296 = vmatpush1.msra.mxu0 %v2284
        %2297 = vmatprep.subr.mxu0 0.0
        %2298 = vmatpush1.msra.mxu0 %v2285
        %2299 = vmatprep.subr.mxu0 0.0
        %2300 = vmatpush1.msra.mxu0 %v2286
        %2301 = vmatprep.subr.mxu0 0.0
        %2302 = vmatpush1.msra.mxu0 %v2287
        %2303 = vmatprep.subr.mxu0 0.0
        %2304 = vmatpush1.msra.mxu0 %v2288
        %2305 = vmatprep.subr.mxu0 0.0
        %2306 = vmatpush1.msra.mxu0 0.0
        %2307 = vmatprep.subr.mxu0 0.0
        %2308 = vmatpush1.msra.mxu0 0.0
        %2309 = vmatprep.subr.mxu0 0.0
        %2310 = vmatpush1.msra.mxu0 0.0
        %2311 = vmatprep.subr.mxu0 0.0
        %2312 = vmatpush1.msra.mxu0 0.0
        %2313 = vmatprep.subr.mxu0 0.0
        %2314 = vmatpush1.msra.mxu0 0.0
        %2315 = vmatprep.subr.mxu0 0.0
        %2316 = vmatpush1.msra.mxu0 0.0
        %2317 = vmatprep.subr.mxu0 0.0
        %2318 = vmatpush1.msra.mxu0 0.0
        %2319 = vmatprep.subr.mxu0 0.0
        %2320 = vmatpush1.msra.mxu0 0.0
        %2321 = vmatprep.subr.mxu0 0.0
        %2322 = vmatpush1.msra.mxu0 0.0
        %2323 = vmatprep.subr.mxu0 0.0
        %2324 = vmatpush1.msra.mxu0 0.0
        %2325 = vmatprep.subr.mxu0 0.0
        %2326 = vmatpush1.msra.mxu0 0.0
        %2327 = vmatprep.subr.mxu0 0.0
        %2328 = vmatpush1.msra.mxu0 0.0
        %2329 = vmatprep.subr.mxu0 0.0
        %2330 = vmatpush1.msra.mxu0 0.0
        %2331 = vmatprep.subr.mxu0 0.0
        %2332 = vmatpush1.msra.mxu0 0.0
        %2333 = vmatprep.subr.mxu0 0.0
        %2334 = vmatpush1.msra.mxu0 0.0
        %2335 = vmatprep.subr.mxu0 0.0
        %2336 = vmatpush1.msra.mxu0 0.0
        %2337 = vmatprep.subr.mxu0 0.0
        %2338 = vmatpush1.msra.mxu0 0.0
        %2339 = vmatprep.subr.mxu0 0.0
        %2340 = vmatpush1.msra.mxu0 0.0
        %2341 = vmatprep.subr.mxu0 0.0
        %2342 = vmatpush1.msra.mxu0 0.0
        %2343 = vmatprep.subr.mxu0 0.0
        %2344 = vmatpush1.msra.mxu0 0.0
        %2345 = vmatprep.subr.mxu0 0.0
        %2346 = vmatpush1.msra.mxu0 0.0
        %2347 = vmatprep.subr.mxu0 0.0
        %2348 = vmatpush1.msra.mxu0 0.0
        %2349 = vmatprep.subr.mxu0 0.0
        %2350 = vmatpush1.msra.mxu0 0.0
        %2351 = vmatprep.subr.mxu0 0.0
        %2352 = vmatpush1.msra.mxu0 0.0
        %2353 = vmatprep.mubr.f32.mxu0 0.0
        %2354 = vmatmul.mubr.f32.gmra.mrb[0].mxu0 %v1934
        %v2355 = vpop.f32.mrb[0].mxu0
        %v2356 = vadd.f32 0.0, %v2355
        %v2357 = vpop.f32.mrb[0].mxu0
        %2358 = vmatprep.mubr.f32.mxu0 0.0
        %2359 = vmatmul.mubr.f32.gmra.mrb[0].mxu0 %v1937
        %v2360 = vpop.f32.mrb[0].mxu0
        %v2361 = vadd.f32 0.0, %v2360
        %v2362 = vpop.f32.mrb[0].mxu0
        %2363 = vmatprep.mubr.f32.mxu0 0.0
        %2364 = vmatmul.mubr.f32.gmra.mrb[0].mxu0 %v1940
        %v2365 = vpop.f32.mrb[0].mxu0
        %v2366 = vadd.f32 0.0, %v2365
        %v2367 = vpop.f32.mrb[0].mxu0
        %2368 = vmatprep.mubr.f32.mxu0 0.0
        %2369 = vmatmul.mubr.f32.gmra.mrb[0].mxu0 %v1943
        %v2370 = vpop.f32.mrb[0].mxu0
        %v2371 = vadd.f32 0.0, %v2370
        %v2372 = vpop.f32.mrb[0].mxu0
        %2373 = vmatprep.mubr.f32.mxu0 0.0
        %2374 = vmatmul.mubr.f32.gmra.mrb[0].mxu0 %v1946
        %v2375 = vpop.f32.mrb[0].mxu0
        %v2376 = vadd.f32 0.0, %v2375
        %v2377 = vpop.f32.mrb[0].mxu0
        %2378 = vmatprep.mubr.f32.mxu0 0.0
        %2379 = vmatmul.mubr.f32.gmra.mrb[0].mxu0 %v1949
        %v2380 = vpop.f32.mrb[0].mxu0
        %v2381 = vadd.f32 0.0, %v2380
        %v2382 = vpop.f32.mrb[0].mxu0
        %2383 = vmatprep.mubr.f32.mxu0 0.0
        %2384 = vmatmul.mubr.f32.gmra.mrb[0].mxu0 %v1952
        %v2385 = vpop.f32.mrb[0].mxu0
        %v2386 = vadd.f32 0.0, %v2385
        %v2387 = vpop.f32.mrb[0].mxu0
        %2388 = vmatprep.mubr.f32.mxu0 0.0
        %2389 = vmatmul.mubr.f32.gmra.mrb[0].mxu0 %v1955
        %v2390 = vpop.f32.mrb[0].mxu0
        %v2391 = vadd.f32 0.0, %v2390
        %v2392 = vpop.f32.mrb[0].mxu0
        %2393 = vmatprep.mubr.f32.mxu0 0.0
        %2394 = vmatmul.mubr.f32.gmra.mrb[0].mxu0 %v1958
        %v2395 = vpop.f32.mrb[0].mxu0
        %v2396 = vadd.f32 0.0, %v2395
        %v2397 = vpop.f32.mrb[0].mxu0
        %2398 = vmatprep.mubr.f32.mxu0 0.0
        %2399 = vmatmul.mubr.f32.gmra.mrb[0].mxu0 %v1961
        %v2400 = vpop.f32.mrb[0].mxu0
        %v2401 = vadd.f32 0.0, %v2400
        %v2402 = vpop.f32.mrb[0].mxu0
        %2403 = vmatprep.mubr.f32.mxu0 0.0
        %2404 = vmatmul.mubr.f32.gmra.mrb[0].mxu0 %v1964
        %v2405 = vpop.f32.mrb[0].mxu0
        %v2406 = vadd.f32 0.0, %v2405
        %v2407 = vpop.f32.mrb[0].mxu0
        %2408 = vmatprep.mubr.f32.mxu0 0.0
        %2409 = vmatmul.mubr.f32.gmra.mrb[0].mxu0 %v1967
        %v2410 = vpop.f32.mrb[0].mxu0
        %v2411 = vadd.f32 0.0, %v2410
        %v2412 = vpop.f32.mrb[0].mxu0
        %2413 = vmatprep.mubr.f32.mxu0 0.0
        %2414 = vmatmul.mubr.f32.gmra.mrb[0].mxu0 %v1970
        %v2415 = vpop.f32.mrb[0].mxu0
        %v2416 = vadd.f32 0.0, %v2415
        %v2417 = vpop.f32.mrb[0].mxu0
        %2418 = vmatprep.mubr.f32.mxu0 0.0
        %2419 = vmatmul.mubr.f32.gmra.mrb[0].mxu0 %v1973
        %v2420 = vpop.f32.mrb[0].mxu0
        %v2421 = vadd.f32 0.0, %v2420
        %v2422 = vpop.f32.mrb[0].mxu0
        %2423 = vmatprep.mubr.f32.mxu0 0.0
        %2424 = vmatmul.mubr.f32.gmra.mrb[0].mxu0 %v1976
        %v2425 = vpop.f32.mrb[0].mxu0
        %v2426 = vadd.f32 0.0, %v2425
        %v2427 = vpop.f32.mrb[0].mxu0
        %2428 = vmatprep.mubr.f32.mxu0 0.0
        %2429 = vmatmul.mubr.f32.gmra.mrb[0].mxu0 %v1979
        %v2430 = vpop.f32.mrb[0].mxu0
        %v2431 = vadd.f32 0.0, %v2430
        %v2432 = vpop.f32.mrb[0].mxu0
        %2433 = vdwg.mxu0
        %s2434 = scalar_lea.vmem %s5, 192
        %v2435 = vld [vmem:[%s2434] sm:$0xff]
        %v2436 = vld [vmem:[%s2434 + $0x8] sm:$0xff]
        %v2437 = vld [vmem:[%s2434 + $0x10] sm:$0xff]
        %v2438 = vld [vmem:[%s2434 + $0x18] sm:$0xff]
        %v2439 = vld [vmem:[%s2434 + $0x20] sm:$0xff]
        %v2440 = vld [vmem:[%s2434 + $0x28] sm:$0xff]
        %v2441 = vld [vmem:[%s2434 + $0x30] sm:$0xff]
        %v2442 = vld [vmem:[%s2434 + $0x38] sm:$0xff]
        %2443 = vmatprep.subr.mxu0 0.0
        %2444 = vmatpush1.msra.mxu0 %v2435
        %2445 = vmatprep.subr.mxu0 0.0
        %2446 = vmatpush1.msra.mxu0 %v2436
        %2447 = vmatprep.subr.mxu0 0.0
        %2448 = vmatpush1.msra.mxu0 %v2437
        %2449 = vmatprep.subr.mxu0 0.0
        %2450 = vmatpush1.msra.mxu0 %v2438
        %2451 = vmatprep.subr.mxu0 0.0
        %2452 = vmatpush1.msra.mxu0 %v2439
        %2453 = vmatprep.subr.mxu0 0.0
        %2454 = vmatpush1.msra.mxu0 %v2440
        %2455 = vmatprep.subr.mxu0 0.0
        %2456 = vmatpush1.msra.mxu0 %v2441
        %2457 = vmatprep.subr.mxu0 0.0
        %2458 = vmatpush1.msra.mxu0 %v2442
        %2459 = vmatprep.subr.mxu0 0.0
        %2460 = vmatpush1.msra.mxu0 0.0
        %2461 = vmatprep.subr.mxu0 0.0
        %2462 = vmatpush1.msra.mxu0 0.0
        %2463 = vmatprep.subr.mxu0 0.0
        %2464 = vmatpush1.msra.mxu0 0.0
        %2465 = vmatprep.subr.mxu0 0.0
        %2466 = vmatpush1.msra.mxu0 0.0
        %2467 = vmatprep.subr.mxu0 0.0
        %2468 = vmatpush1.msra.mxu0 0.0
        %2469 = vmatprep.subr.mxu0 0.0
        %2470 = vmatpush1.msra.mxu0 0.0
        %2471 = vmatprep.subr.mxu0 0.0
        %2472 = vmatpush1.msra.mxu0 0.0
        %2473 = vmatprep.subr.mxu0 0.0
        %2474 = vmatpush1.msra.mxu0 0.0
        %2475 = vmatprep.subr.mxu0 0.0
        %2476 = vmatpush1.msra.mxu0 0.0
        %2477 = vmatprep.subr.mxu0 0.0
        %2478 = vmatpush1.msra.mxu0 0.0
        %2479 = vmatprep.subr.mxu0 0.0
        %2480 = vmatpush1.msra.mxu0 0.0
        %2481 = vmatprep.subr.mxu0 0.0
        %2482 = vmatpush1.msra.mxu0 0.0
        %2483 = vmatprep.subr.mxu0 0.0
        %2484 = vmatpush1.msra.mxu0 0.0
        %2485 = vmatprep.subr.mxu0 0.0
        %2486 = vmatpush1.msra.mxu0 0.0
        %2487 = vmatprep.subr.mxu0 0.0
        %2488 = vmatpush1.msra.mxu0 0.0
        %2489 = vmatprep.subr.mxu0 0.0
        %2490 = vmatpush1.msra.mxu0 0.0
        %2491 = vmatprep.subr.mxu0 0.0
        %2492 = vmatpush1.msra.mxu0 0.0
        %2493 = vmatprep.subr.mxu0 0.0
        %2494 = vmatpush1.msra.mxu0 0.0
        %2495 = vmatprep.subr.mxu0 0.0
        %2496 = vmatpush1.msra.mxu0 0.0
        %2497 = vmatprep.subr.mxu0 0.0
        %2498 = vmatpush1.msra.mxu0 0.0
        %2499 = vmatprep.subr.mxu0 0.0
        %2500 = vmatpush1.msra.mxu0 0.0
        %2501 = vmatprep.subr.mxu0 0.0
        %2502 = vmatpush1.msra.mxu0 0.0
        %2503 = vmatprep.subr.mxu0 0.0
        %2504 = vmatpush1.msra.mxu0 0.0
        %2505 = vmatprep.subr.mxu0 0.0
        %2506 = vmatpush1.msra.mxu0 0.0
        %2507 = vmatprep.mubr.f32.mxu0 0.0
        %2508 = vmatmul.mubr.f32.gmra.mrb[0].mxu0 %v1934
        %v2509 = vpop.f32.mrb[0].mxu0
        %v2510 = vadd.f32 0.0, %v2509
        %v2511 = vpop.f32.mrb[0].mxu0
        %2512 = vmatprep.mubr.f32.mxu0 0.0
        %2513 = vmatmul.mubr.f32.gmra.mrb[0].mxu0 %v1937
        %v2514 = vpop.f32.mrb[0].mxu0
        %v2515 = vadd.f32 0.0, %v2514
        %v2516 = vpop.f32.mrb[0].mxu0
        %2517 = vmatprep.mubr.f32.mxu0 0.0
        %2518 = vmatmul.mubr.f32.gmra.mrb[0].mxu0 %v1940
        %v2519 = vpop.f32.mrb[0].mxu0
        %v2520 = vadd.f32 0.0, %v2519
        %v2521 = vpop.f32.mrb[0].mxu0
        %2522 = vmatprep.mubr.f32.mxu0 0.0
        %2523 = vmatmul.mubr.f32.gmra.mrb[0].mxu0 %v1943
        %v2524 = vpop.f32.mrb[0].mxu0
        %v2525 = vadd.f32 0.0, %v2524
        %v2526 = vpop.f32.mrb[0].mxu0
        %2527 = vmatprep.mubr.f32.mxu0 0.0
        %2528 = vmatmul.mubr.f32.gmra.mrb[0].mxu0 %v1946
        %v2529 = vpop.f32.mrb[0].mxu0
        %v2530 = vadd.f32 0.0, %v2529
        %v2531 = vpop.f32.mrb[0].mxu0
        %2532 = vmatprep.mubr.f32.mxu0 0.0
        %2533 = vmatmul.mubr.f32.gmra.mrb[0].mxu0 %v1949
        %v2534 = vpop.f32.mrb[0].mxu0
        %v2535 = vadd.f32 0.0, %v2534
        %v2536 = vpop.f32.mrb[0].mxu0
        %2537 = vmatprep.mubr.f32.mxu0 0.0
        %2538 = vmatmul.mubr.f32.gmra.mrb[0].mxu0 %v1952
        %v2539 = vpop.f32.mrb[0].mxu0
        %v2540 = vadd.f32 0.0, %v2539
        %v2541 = vpop.f32.mrb[0].mxu0
        %2542 = vmatprep.mubr.f32.mxu0 0.0
        %2543 = vmatmul.mubr.f32.gmra.mrb[0].mxu0 %v1955
        %v2544 = vpop.f32.mrb[0].mxu0
        %v2545 = vadd.f32 0.0, %v2544
        %v2546 = vpop.f32.mrb[0].mxu0
        %2547 = vmatprep.mubr.f32.mxu0 0.0
        %2548 = vmatmul.mubr.f32.gmra.mrb[0].mxu0 %v1958
        %v2549 = vpop.f32.mrb[0].mxu0
        %v2550 = vadd.f32 0.0, %v2549
        %v2551 = vpop.f32.mrb[0].mxu0
        %2552 = vmatprep.mubr.f32.mxu0 0.0
        %2553 = vmatmul.mubr.f32.gmra.mrb[0].mxu0 %v1961
        %v2554 = vpop.f32.mrb[0].mxu0
        %v2555 = vadd.f32 0.0, %v2554
        %v2556 = vpop.f32.mrb[0].mxu0
        %2557 = vmatprep.mubr.f32.mxu0 0.0
        %2558 = vmatmul.mubr.f32.gmra.mrb[0].mxu0 %v1964
        %v2559 = vpop.f32.mrb[0].mxu0
        %v2560 = vadd.f32 0.0, %v2559
        %v2561 = vpop.f32.mrb[0].mxu0
        %2562 = vmatprep.mubr.f32.mxu0 0.0
        %2563 = vmatmul.mubr.f32.gmra.mrb[0].mxu0 %v1967
        %v2564 = vpop.f32.mrb[0].mxu0
        %v2565 = vadd.f32 0.0, %v2564
        %v2566 = vpop.f32.mrb[0].mxu0
        %2567 = vmatprep.mubr.f32.mxu0 0.0
        %2568 = vmatmul.mubr.f32.gmra.mrb[0].mxu0 %v1970
        %v2569 = vpop.f32.mrb[0].mxu0
        %v2570 = vadd.f32 0.0, %v2569
        %v2571 = vpop.f32.mrb[0].mxu0
        %2572 = vmatprep.mubr.f32.mxu0 0.0
        %2573 = vmatmul.mubr.f32.gmra.mrb[0].mxu0 %v1973
        %v2574 = vpop.f32.mrb[0].mxu0
        %v2575 = vadd.f32 0.0, %v2574
        %v2576 = vpop.f32.mrb[0].mxu0
        %2577 = vmatprep.mubr.f32.mxu0 0.0
        %2578 = vmatmul.mubr.f32.gmra.mrb[0].mxu0 %v1976
        %v2579 = vpop.f32.mrb[0].mxu0
        %v2580 = vadd.f32 0.0, %v2579
        %v2581 = vpop.f32.mrb[0].mxu0
        %2582 = vmatprep.mubr.f32.mxu0 0.0
        %2583 = vmatmul.mubr.f32.gmra.mrb[0].mxu0 %v1979
        %v2584 = vpop.f32.mrb[0].mxu0
        %v2585 = vadd.f32 0.0, %v2584
        %v2586 = vpop.f32.mrb[0].mxu0
        %2587 = vdwg.mxu0
        %s2588 = scalar_lea.vmem %s5, 256
        %v2589 = vld [vmem:[%s2588] sm:$0xff]
        %v2590 = vld [vmem:[%s2588 + $0x8] sm:$0xff]
        %v2591 = vld [vmem:[%s2588 + $0x10] sm:$0xff]
        %v2592 = vld [vmem:[%s2588 + $0x18] sm:$0xff]
        %v2593 = vld [vmem:[%s2588 + $0x20] sm:$0xff]
        %v2594 = vld [vmem:[%s2588 + $0x28] sm:$0xff]
        %v2595 = vld [vmem:[%s2588 + $0x30] sm:$0xff]
        %v2596 = vld [vmem:[%s2588 + $0x38] sm:$0xff]
        %2597 = vmatprep.subr.mxu0 0.0
        %2598 = vmatpush1.msra.mxu0 %v2589
        %2599 = vmatprep.subr.mxu0 0.0
        %2600 = vmatpush1.msra.mxu0 %v2590
        %2601 = vmatprep.subr.mxu0 0.0
        %2602 = vmatpush1.msra.mxu0 %v2591
        %2603 = vmatprep.subr.mxu0 0.0
        %2604 = vmatpush1.msra.mxu0 %v2592
        %2605 = vmatprep.subr.mxu0 0.0
        %2606 = vmatpush1.msra.mxu0 %v2593
        %2607 = vmatprep.subr.mxu0 0.0
        %2608 = vmatpush1.msra.mxu0 %v2594
        %2609 = vmatprep.subr.mxu0 0.0
        %2610 = vmatpush1.msra.mxu0 %v2595
        %2611 = vmatprep.subr.mxu0 0.0
        %2612 = vmatpush1.msra.mxu0 %v2596
        %2613 = vmatprep.subr.mxu0 0.0
        %2614 = vmatpush1.msra.mxu0 0.0
        %2615 = vmatprep.subr.mxu0 0.0
        %2616 = vmatpush1.msra.mxu0 0.0
        %2617 = vmatprep.subr.mxu0 0.0
        %2618 = vmatpush1.msra.mxu0 0.0
        %2619 = vmatprep.subr.mxu0 0.0
        %2620 = vmatpush1.msra.mxu0 0.0
        %2621 = vmatprep.subr.mxu0 0.0
        %2622 = vmatpush1.msra.mxu0 0.0
        %2623 = vmatprep.subr.mxu0 0.0
        %2624 = vmatpush1.msra.mxu0 0.0
        %2625 = vmatprep.subr.mxu0 0.0
        %2626 = vmatpush1.msra.mxu0 0.0
        %2627 = vmatprep.subr.mxu0 0.0
        %2628 = vmatpush1.msra.mxu0 0.0
        %2629 = vmatprep.subr.mxu0 0.0
        %2630 = vmatpush1.msra.mxu0 0.0
        %2631 = vmatprep.subr.mxu0 0.0
        %2632 = vmatpush1.msra.mxu0 0.0
        %2633 = vmatprep.subr.mxu0 0.0
        %2634 = vmatpush1.msra.mxu0 0.0
        %2635 = vmatprep.subr.mxu0 0.0
        %2636 = vmatpush1.msra.mxu0 0.0
        %2637 = vmatprep.subr.mxu0 0.0
        %2638 = vmatpush1.msra.mxu0 0.0
        %2639 = vmatprep.subr.mxu0 0.0
        %2640 = vmatpush1.msra.mxu0 0.0
        %2641 = vmatprep.subr.mxu0 0.0
        %2642 = vmatpush1.msra.mxu0 0.0
        %2643 = vmatprep.subr.mxu0 0.0
        %2644 = vmatpush1.msra.mxu0 0.0
        %2645 = vmatprep.subr.mxu0 0.0
        %2646 = vmatpush1.msra.mxu0 0.0
        %2647 = vmatprep.subr.mxu0 0.0
        %2648 = vmatpush1.msra.mxu0 0.0
        %2649 = vmatprep.subr.mxu0 0.0
        %2650 = vmatpush1.msra.mxu0 0.0
        %2651 = vmatprep.subr.mxu0 0.0
        %2652 = vmatpush1.msra.mxu0 0.0
        %2653 = vmatprep.subr.mxu0 0.0
        %2654 = vmatpush1.msra.mxu0 0.0
        %2655 = vmatprep.subr.mxu0 0.0
        %2656 = vmatpush1.msra.mxu0 0.0
        %2657 = vmatprep.subr.mxu0 0.0
        %2658 = vmatpush1.msra.mxu0 0.0
        %2659 = vmatprep.subr.mxu0 0.0
        %2660 = vmatpush1.msra.mxu0 0.0
        %2661 = vmatprep.mubr.f32.mxu0 0.0
        %2662 = vmatmul.mubr.f32.gmra.mrb[0].mxu0 %v1934
        %v2663 = vpop.f32.mrb[0].mxu0
        %v2664 = vadd.f32 0.0, %v2663
        %v2665 = vpop.f32.mrb[0].mxu0
        %2666 = vmatprep.mubr.f32.mxu0 0.0
        %2667 = vmatmul.mubr.f32.gmra.mrb[0].mxu0 %v1937
        %v2668 = vpop.f32.mrb[0].mxu0
        %v2669 = vadd.f32 0.0, %v2668
        %v2670 = vpop.f32.mrb[0].mxu0
        %2671 = vmatprep.mubr.f32.mxu0 0.0
        %2672 = vmatmul.mubr.f32.gmra.mrb[0].mxu0 %v1940
        %v2673 = vpop.f32.mrb[0].mxu0
        %v2674 = vadd.f32 0.0, %v2673
        %v2675 = vpop.f32.mrb[0].mxu0
        %2676 = vmatprep.mubr.f32.mxu0 0.0
        %2677 = vmatmul.mubr.f32.gmra.mrb[0].mxu0 %v1943
        %v2678 = vpop.f32.mrb[0].mxu0
        %v2679 = vadd.f32 0.0, %v2678
        %v2680 = vpop.f32.mrb[0].mxu0
        %2681 = vmatprep.mubr.f32.mxu0 0.0
        %2682 = vmatmul.mubr.f32.gmra.mrb[0].mxu0 %v1946
        %v2683 = vpop.f32.mrb[0].mxu0
        %v2684 = vadd.f32 0.0, %v2683
        %v2685 = vpop.f32.mrb[0].mxu0
        %2686 = vmatprep.mubr.f32.mxu0 0.0
        %2687 = vmatmul.mubr.f32.gmra.mrb[0].mxu0 %v1949
        %v2688 = vpop.f32.mrb[0].mxu0
        %v2689 = vadd.f32 0.0, %v2688
        %v2690 = vpop.f32.mrb[0].mxu0
        %2691 = vmatprep.mubr.f32.mxu0 0.0
        %2692 = vmatmul.mubr.f32.gmra.mrb[0].mxu0 %v1952
        %v2693 = vpop.f32.mrb[0].mxu0
        %v2694 = vadd.f32 0.0, %v2693
        %v2695 = vpop.f32.mrb[0].mxu0
        %2696 = vmatprep.mubr.f32.mxu0 0.0
        %2697 = vmatmul.mubr.f32.gmra.mrb[0].mxu0 %v1955
        %v2698 = vpop.f32.mrb[0].mxu0
        %v2699 = vadd.f32 0.0, %v2698
        %v2700 = vpop.f32.mrb[0].mxu0
        %2701 = vmatprep.mubr.f32.mxu0 0.0
        %2702 = vmatmul.mubr.f32.gmra.mrb[0].mxu0 %v1958
        %v2703 = vpop.f32.mrb[0].mxu0
        %v2704 = vadd.f32 0.0, %v2703
        %v2705 = vpop.f32.mrb[0].mxu0
        %2706 = vmatprep.mubr.f32.mxu0 0.0
        %2707 = vmatmul.mubr.f32.gmra.mrb[0].mxu0 %v1961
        %v2708 = vpop.f32.mrb[0].mxu0
        %v2709 = vadd.f32 0.0, %v2708
        %v2710 = vpop.f32.mrb[0].mxu0
        %2711 = vmatprep.mubr.f32.mxu0 0.0
        %2712 = vmatmul.mubr.f32.gmra.mrb[0].mxu0 %v1964
        %v2713 = vpop.f32.mrb[0].mxu0
        %v2714 = vadd.f32 0.0, %v2713
        %v2715 = vpop.f32.mrb[0].mxu0
        %2716 = vmatprep.mubr.f32.mxu0 0.0
        %2717 = vmatmul.mubr.f32.gmra.mrb[0].mxu0 %v1967
        %v2718 = vpop.f32.mrb[0].mxu0
        %v2719 = vadd.f32 0.0, %v2718
        %v2720 = vpop.f32.mrb[0].mxu0
        %2721 = vmatprep.mubr.f32.mxu0 0.0
        %2722 = vmatmul.mubr.f32.gmra.mrb[0].mxu0 %v1970
        %v2723 = vpop.f32.mrb[0].mxu0
        %v2724 = vadd.f32 0.0, %v2723
        %v2725 = vpop.f32.mrb[0].mxu0
        %2726 = vmatprep.mubr.f32.mxu0 0.0
        %2727 = vmatmul.mubr.f32.gmra.mrb[0].mxu0 %v1973
        %v2728 = vpop.f32.mrb[0].mxu0
        %v2729 = vadd.f32 0.0, %v2728
        %v2730 = vpop.f32.mrb[0].mxu0
        %2731 = vmatprep.mubr.f32.mxu0 0.0
        %2732 = vmatmul.mubr.f32.gmra.mrb[0].mxu0 %v1976
        %v2733 = vpop.f32.mrb[0].mxu0
        %v2734 = vadd.f32 0.0, %v2733
        %v2735 = vpop.f32.mrb[0].mxu0
        %2736 = vmatprep.mubr.f32.mxu0 0.0
        %2737 = vmatmul.mubr.f32.gmra.mrb[0].mxu0 %v1979
        %v2738 = vpop.f32.mrb[0].mxu0
        %v2739 = vadd.f32 0.0, %v2738
        %v2740 = vpop.f32.mrb[0].mxu0
        %2741 = vdwg.mxu0
        %s2742 = scalar_lea.vmem %s5, 320
        %v2743 = vld [vmem:[%s2742] sm:$0xff]
        %v2744 = vld [vmem:[%s2742 + $0x8] sm:$0xff]
        %v2745 = vld [vmem:[%s2742 + $0x10] sm:$0xff]
        %v2746 = vld [vmem:[%s2742 + $0x18] sm:$0xff]
        %v2747 = vld [vmem:[%s2742 + $0x20] sm:$0xff]
        %v2748 = vld [vmem:[%s2742 + $0x28] sm:$0xff]
        %v2749 = vld [vmem:[%s2742 + $0x30] sm:$0xff]
        %v2750 = vld [vmem:[%s2742 + $0x38] sm:$0xff]
        %2751 = vmatprep.subr.mxu0 0.0
        %2752 = vmatpush1.msra.mxu0 %v2743
        %2753 = vmatprep.subr.mxu0 0.0
        %2754 = vmatpush1.msra.mxu0 %v2744
        %2755 = vmatprep.subr.mxu0 0.0
        %2756 = vmatpush1.msra.mxu0 %v2745
        %2757 = vmatprep.subr.mxu0 0.0
        %2758 = vmatpush1.msra.mxu0 %v2746
        %2759 = vmatprep.subr.mxu0 0.0
        %2760 = vmatpush1.msra.mxu0 %v2747
        %2761 = vmatprep.subr.mxu0 0.0
        %2762 = vmatpush1.msra.mxu0 %v2748
        %2763 = vmatprep.subr.mxu0 0.0
        %2764 = vmatpush1.msra.mxu0 %v2749
        %2765 = vmatprep.subr.mxu0 0.0
        %2766 = vmatpush1.msra.mxu0 %v2750
        %2767 = vmatprep.subr.mxu0 0.0
        %2768 = vmatpush1.msra.mxu0 0.0
        %2769 = vmatprep.subr.mxu0 0.0
        %2770 = vmatpush1.msra.mxu0 0.0
        %2771 = vmatprep.subr.mxu0 0.0
        %2772 = vmatpush1.msra.mxu0 0.0
        %2773 = vmatprep.subr.mxu0 0.0
        %2774 = vmatpush1.msra.mxu0 0.0
        %2775 = vmatprep.subr.mxu0 0.0
        %2776 = vmatpush1.msra.mxu0 0.0
        %2777 = vmatprep.subr.mxu0 0.0
        %2778 = vmatpush1.msra.mxu0 0.0
        %2779 = vmatprep.subr.mxu0 0.0
        %2780 = vmatpush1.msra.mxu0 0.0
        %2781 = vmatprep.subr.mxu0 0.0
        %2782 = vmatpush1.msra.mxu0 0.0
        %2783 = vmatprep.subr.mxu0 0.0
        %2784 = vmatpush1.msra.mxu0 0.0
        %2785 = vmatprep.subr.mxu0 0.0
        %2786 = vmatpush1.msra.mxu0 0.0
        %2787 = vmatprep.subr.mxu0 0.0
        %2788 = vmatpush1.msra.mxu0 0.0
        %2789 = vmatprep.subr.mxu0 0.0
        %2790 = vmatpush1.msra.mxu0 0.0
        %2791 = vmatprep.subr.mxu0 0.0
        %2792 = vmatpush1.msra.mxu0 0.0
        %2793 = vmatprep.subr.mxu0 0.0
        %2794 = vmatpush1.msra.mxu0 0.0
        %2795 = vmatprep.subr.mxu0 0.0
        %2796 = vmatpush1.msra.mxu0 0.0
        %2797 = vmatprep.subr.mxu0 0.0
        %2798 = vmatpush1.msra.mxu0 0.0
        %2799 = vmatprep.subr.mxu0 0.0
        %2800 = vmatpush1.msra.mxu0 0.0
        %2801 = vmatprep.subr.mxu0 0.0
        %2802 = vmatpush1.msra.mxu0 0.0
        %2803 = vmatprep.subr.mxu0 0.0
        %2804 = vmatpush1.msra.mxu0 0.0
        %2805 = vmatprep.subr.mxu0 0.0
        %2806 = vmatpush1.msra.mxu0 0.0
        %2807 = vmatprep.subr.mxu0 0.0
        %2808 = vmatpush1.msra.mxu0 0.0
        %2809 = vmatprep.subr.mxu0 0.0
        %2810 = vmatpush1.msra.mxu0 0.0
        %2811 = vmatprep.subr.mxu0 0.0
        %2812 = vmatpush1.msra.mxu0 0.0
        %2813 = vmatprep.subr.mxu0 0.0
        %2814 = vmatpush1.msra.mxu0 0.0
        %2815 = vmatprep.mubr.f32.mxu0 0.0
        %2816 = vmatmul.mubr.f32.gmra.mrb[0].mxu0 %v1934
        %v2817 = vpop.f32.mrb[0].mxu0
        %v2818 = vadd.f32 0.0, %v2817
        %v2819 = vpop.f32.mrb[0].mxu0
        %2820 = vmatprep.mubr.f32.mxu0 0.0
        %2821 = vmatmul.mubr.f32.gmra.mrb[0].mxu0 %v1937
        %v2822 = vpop.f32.mrb[0].mxu0
        %v2823 = vadd.f32 0.0, %v2822
        %v2824 = vpop.f32.mrb[0].mxu0
        %2825 = vmatprep.mubr.f32.mxu0 0.0
        %2826 = vmatmul.mubr.f32.gmra.mrb[0].mxu0 %v1940
        %v2827 = vpop.f32.mrb[0].mxu0
        %v2828 = vadd.f32 0.0, %v2827
        %v2829 = vpop.f32.mrb[0].mxu0
        %2830 = vmatprep.mubr.f32.mxu0 0.0
        %2831 = vmatmul.mubr.f32.gmra.mrb[0].mxu0 %v1943
        %v2832 = vpop.f32.mrb[0].mxu0
        %v2833 = vadd.f32 0.0, %v2832
        %v2834 = vpop.f32.mrb[0].mxu0
        %2835 = vmatprep.mubr.f32.mxu0 0.0
        %2836 = vmatmul.mubr.f32.gmra.mrb[0].mxu0 %v1946
        %v2837 = vpop.f32.mrb[0].mxu0
        %v2838 = vadd.f32 0.0, %v2837
        %v2839 = vpop.f32.mrb[0].mxu0
        %2840 = vmatprep.mubr.f32.mxu0 0.0
        %2841 = vmatmul.mubr.f32.gmra.mrb[0].mxu0 %v1949
        %v2842 = vpop.f32.mrb[0].mxu0
        %v2843 = vadd.f32 0.0, %v2842
        %v2844 = vpop.f32.mrb[0].mxu0
        %2845 = vmatprep.mubr.f32.mxu0 0.0
        %2846 = vmatmul.mubr.f32.gmra.mrb[0].mxu0 %v1952
        %v2847 = vpop.f32.mrb[0].mxu0
        %v2848 = vadd.f32 0.0, %v2847
        %v2849 = vpop.f32.mrb[0].mxu0
        %2850 = vmatprep.mubr.f32.mxu0 0.0
        %2851 = vmatmul.mubr.f32.gmra.mrb[0].mxu0 %v1955
        %v2852 = vpop.f32.mrb[0].mxu0
        %v2853 = vadd.f32 0.0, %v2852
        %v2854 = vpop.f32.mrb[0].mxu0
        %2855 = vmatprep.mubr.f32.mxu0 0.0
        %2856 = vmatmul.mubr.f32.gmra.mrb[0].mxu0 %v1958
        %v2857 = vpop.f32.mrb[0].mxu0
        %v2858 = vadd.f32 0.0, %v2857
        %v2859 = vpop.f32.mrb[0].mxu0
        %2860 = vmatprep.mubr.f32.mxu0 0.0
        %2861 = vmatmul.mubr.f32.gmra.mrb[0].mxu0 %v1961
        %v2862 = vpop.f32.mrb[0].mxu0
        %v2863 = vadd.f32 0.0, %v2862
        %v2864 = vpop.f32.mrb[0].mxu0
        %2865 = vmatprep.mubr.f32.mxu0 0.0
        %2866 = vmatmul.mubr.f32.gmra.mrb[0].mxu0 %v1964
        %v2867 = vpop.f32.mrb[0].mxu0
        %v2868 = vadd.f32 0.0, %v2867
        %v2869 = vpop.f32.mrb[0].mxu0
        %2870 = vmatprep.mubr.f32.mxu0 0.0
        %2871 = vmatmul.mubr.f32.gmra.mrb[0].mxu0 %v1967
        %v2872 = vpop.f32.mrb[0].mxu0
        %v2873 = vadd.f32 0.0, %v2872
        %v2874 = vpop.f32.mrb[0].mxu0
        %2875 = vmatprep.mubr.f32.mxu0 0.0
        %2876 = vmatmul.mubr.f32.gmra.mrb[0].mxu0 %v1970
        %v2877 = vpop.f32.mrb[0].mxu0
        %v2878 = vadd.f32 0.0, %v2877
        %v2879 = vpop.f32.mrb[0].mxu0
        %2880 = vmatprep.mubr.f32.mxu0 0.0
        %2881 = vmatmul.mubr.f32.gmra.mrb[0].mxu0 %v1973
        %v2882 = vpop.f32.mrb[0].mxu0
        %v2883 = vadd.f32 0.0, %v2882
        %v2884 = vpop.f32.mrb[0].mxu0
        %2885 = vmatprep.mubr.f32.mxu0 0.0
        %2886 = vmatmul.mubr.f32.gmra.mrb[0].mxu0 %v1976
        %v2887 = vpop.f32.mrb[0].mxu0
        %v2888 = vadd.f32 0.0, %v2887
        %v2889 = vpop.f32.mrb[0].mxu0
        %2890 = vmatprep.mubr.f32.mxu0 0.0
        %2891 = vmatmul.mubr.f32.gmra.mrb[0].mxu0 %v1979
        %v2892 = vpop.f32.mrb[0].mxu0
        %v2893 = vadd.f32 0.0, %v2892
        %v2894 = vpop.f32.mrb[0].mxu0
        %2895 = vdwg.mxu0
        %s2896 = scalar_lea.vmem %s5, 384
        %v2897 = vld [vmem:[%s2896] sm:$0xff]
        %v2898 = vld [vmem:[%s2896 + $0x8] sm:$0xff]
        %v2899 = vld [vmem:[%s2896 + $0x10] sm:$0xff]
        %v2900 = vld [vmem:[%s2896 + $0x18] sm:$0xff]
        %v2901 = vld [vmem:[%s2896 + $0x20] sm:$0xff]
        %v2902 = vld [vmem:[%s2896 + $0x28] sm:$0xff]
        %v2903 = vld [vmem:[%s2896 + $0x30] sm:$0xff]
        %v2904 = vld [vmem:[%s2896 + $0x38] sm:$0xff]
        %2905 = vmatprep.subr.mxu0 0.0
        %2906 = vmatpush1.msra.mxu0 %v2897
        %2907 = vmatprep.subr.mxu0 0.0
        %2908 = vmatpush1.msra.mxu0 %v2898
        %2909 = vmatprep.subr.mxu0 0.0
        %2910 = vmatpush1.msra.mxu0 %v2899
        %2911 = vmatprep.subr.mxu0 0.0
        %2912 = vmatpush1.msra.mxu0 %v2900
        %2913 = vmatprep.subr.mxu0 0.0
        %2914 = vmatpush1.msra.mxu0 %v2901
        %2915 = vmatprep.subr.mxu0 0.0
        %2916 = vmatpush1.msra.mxu0 %v2902
        %2917 = vmatprep.subr.mxu0 0.0
        %2918 = vmatpush1.msra.mxu0 %v2903
        %2919 = vmatprep.subr.mxu0 0.0
        %2920 = vmatpush1.msra.mxu0 %v2904
        %2921 = vmatprep.subr.mxu0 0.0
        %2922 = vmatpush1.msra.mxu0 0.0
        %2923 = vmatprep.subr.mxu0 0.0
        %2924 = vmatpush1.msra.mxu0 0.0
        %2925 = vmatprep.subr.mxu0 0.0
        %2926 = vmatpush1.msra.mxu0 0.0
        %2927 = vmatprep.subr.mxu0 0.0
        %2928 = vmatpush1.msra.mxu0 0.0
        %2929 = vmatprep.subr.mxu0 0.0
        %2930 = vmatpush1.msra.mxu0 0.0
        %2931 = vmatprep.subr.mxu0 0.0
        %2932 = vmatpush1.msra.mxu0 0.0
        %2933 = vmatprep.subr.mxu0 0.0
        %2934 = vmatpush1.msra.mxu0 0.0
        %2935 = vmatprep.subr.mxu0 0.0
        %2936 = vmatpush1.msra.mxu0 0.0
        %2937 = vmatprep.subr.mxu0 0.0
        %2938 = vmatpush1.msra.mxu0 0.0
        %2939 = vmatprep.subr.mxu0 0.0
        %2940 = vmatpush1.msra.mxu0 0.0
        %2941 = vmatprep.subr.mxu0 0.0
        %2942 = vmatpush1.msra.mxu0 0.0
        %2943 = vmatprep.subr.mxu0 0.0
        %2944 = vmatpush1.msra.mxu0 0.0
        %2945 = vmatprep.subr.mxu0 0.0
        %2946 = vmatpush1.msra.mxu0 0.0
        %2947 = vmatprep.subr.mxu0 0.0
        %2948 = vmatpush1.msra.mxu0 0.0
        %2949 = vmatprep.subr.mxu0 0.0
        %2950 = vmatpush1.msra.mxu0 0.0
        %2951 = vmatprep.subr.mxu0 0.0
        %2952 = vmatpush1.msra.mxu0 0.0
        %2953 = vmatprep.subr.mxu0 0.0
        %2954 = vmatpush1.msra.mxu0 0.0
        %2955 = vmatprep.subr.mxu0 0.0
        %2956 = vmatpush1.msra.mxu0 0.0
        %2957 = vmatprep.subr.mxu0 0.0
        %2958 = vmatpush1.msra.mxu0 0.0
        %2959 = vmatprep.subr.mxu0 0.0
        %2960 = vmatpush1.msra.mxu0 0.0
        %2961 = vmatprep.subr.mxu0 0.0
        %2962 = vmatpush1.msra.mxu0 0.0
        %2963 = vmatprep.subr.mxu0 0.0
        %2964 = vmatpush1.msra.mxu0 0.0
        %2965 = vmatprep.subr.mxu0 0.0
        %2966 = vmatpush1.msra.mxu0 0.0
        %2967 = vmatprep.subr.mxu0 0.0
        %2968 = vmatpush1.msra.mxu0 0.0
        %2969 = vmatprep.mubr.f32.mxu0 0.0
        %2970 = vmatmul.mubr.f32.gmra.mrb[0].mxu0 %v1934
        %v2971 = vpop.f32.mrb[0].mxu0
        %v2972 = vadd.f32 0.0, %v2971
        %v2973 = vpop.f32.mrb[0].mxu0
        %2974 = vmatprep.mubr.f32.mxu0 0.0
        %2975 = vmatmul.mubr.f32.gmra.mrb[0].mxu0 %v1937
        %v2976 = vpop.f32.mrb[0].mxu0
        %v2977 = vadd.f32 0.0, %v2976
        %v2978 = vpop.f32.mrb[0].mxu0
        %2979 = vmatprep.mubr.f32.mxu0 0.0
        %2980 = vmatmul.mubr.f32.gmra.mrb[0].mxu0 %v1940
        %v2981 = vpop.f32.mrb[0].mxu0
        %v2982 = vadd.f32 0.0, %v2981
        %v2983 = vpop.f32.mrb[0].mxu0
        %2984 = vmatprep.mubr.f32.mxu0 0.0
        %2985 = vmatmul.mubr.f32.gmra.mrb[0].mxu0 %v1943
        %v2986 = vpop.f32.mrb[0].mxu0
        %v2987 = vadd.f32 0.0, %v2986
        %v2988 = vpop.f32.mrb[0].mxu0
        %2989 = vmatprep.mubr.f32.mxu0 0.0
        %2990 = vmatmul.mubr.f32.gmra.mrb[0].mxu0 %v1946
        %v2991 = vpop.f32.mrb[0].mxu0
        %v2992 = vadd.f32 0.0, %v2991
        %v2993 = vpop.f32.mrb[0].mxu0
        %2994 = vmatprep.mubr.f32.mxu0 0.0
        %2995 = vmatmul.mubr.f32.gmra.mrb[0].mxu0 %v1949
        %v2996 = vpop.f32.mrb[0].mxu0
        %v2997 = vadd.f32 0.0, %v2996
        %v2998 = vpop.f32.mrb[0].mxu0
        %2999 = vmatprep.mubr.f32.mxu0 0.0
        %3000 = vmatmul.mubr.f32.gmra.mrb[0].mxu0 %v1952
        %v3001 = vpop.f32.mrb[0].mxu0
        %v3002 = vadd.f32 0.0, %v3001
        %v3003 = vpop.f32.mrb[0].mxu0
        %3004 = vmatprep.mubr.f32.mxu0 0.0
        %3005 = vmatmul.mubr.f32.gmra.mrb[0].mxu0 %v1955
        %v3006 = vpop.f32.mrb[0].mxu0
        %v3007 = vadd.f32 0.0, %v3006
        %v3008 = vpop.f32.mrb[0].mxu0
        %3009 = vmatprep.mubr.f32.mxu0 0.0
        %3010 = vmatmul.mubr.f32.gmra.mrb[0].mxu0 %v1958
        %v3011 = vpop.f32.mrb[0].mxu0
        %v3012 = vadd.f32 0.0, %v3011
        %v3013 = vpop.f32.mrb[0].mxu0
        %3014 = vmatprep.mubr.f32.mxu0 0.0
        %3015 = vmatmul.mubr.f32.gmra.mrb[0].mxu0 %v1961
        %v3016 = vpop.f32.mrb[0].mxu0
        %v3017 = vadd.f32 0.0, %v3016
        %v3018 = vpop.f32.mrb[0].mxu0
        %3019 = vmatprep.mubr.f32.mxu0 0.0
        %3020 = vmatmul.mubr.f32.gmra.mrb[0].mxu0 %v1964
        %v3021 = vpop.f32.mrb[0].mxu0
        %v3022 = vadd.f32 0.0, %v3021
        %v3023 = vpop.f32.mrb[0].mxu0
        %3024 = vmatprep.mubr.f32.mxu0 0.0
        %3025 = vmatmul.mubr.f32.gmra.mrb[0].mxu0 %v1967
        %v3026 = vpop.f32.mrb[0].mxu0
        %v3027 = vadd.f32 0.0, %v3026
        %v3028 = vpop.f32.mrb[0].mxu0
        %3029 = vmatprep.mubr.f32.mxu0 0.0
        %3030 = vmatmul.mubr.f32.gmra.mrb[0].mxu0 %v1970
        %v3031 = vpop.f32.mrb[0].mxu0
        %v3032 = vadd.f32 0.0, %v3031
        %v3033 = vpop.f32.mrb[0].mxu0
        %3034 = vmatprep.mubr.f32.mxu0 0.0
        %3035 = vmatmul.mubr.f32.gmra.mrb[0].mxu0 %v1973
        %v3036 = vpop.f32.mrb[0].mxu0
        %v3037 = vadd.f32 0.0, %v3036
        %v3038 = vpop.f32.mrb[0].mxu0
        %3039 = vmatprep.mubr.f32.mxu0 0.0
        %3040 = vmatmul.mubr.f32.gmra.mrb[0].mxu0 %v1976
        %v3041 = vpop.f32.mrb[0].mxu0
        %v3042 = vadd.f32 0.0, %v3041
        %v3043 = vpop.f32.mrb[0].mxu0
        %3044 = vmatprep.mubr.f32.mxu0 0.0
        %3045 = vmatmul.mubr.f32.gmra.mrb[0].mxu0 %v1979
        %v3046 = vpop.f32.mrb[0].mxu0
        %v3047 = vadd.f32 0.0, %v3046
        %v3048 = vpop.f32.mrb[0].mxu0
        %3049 = vdwg.mxu0
        %s3050 = scalar_lea.vmem %s5, 448
        %v3051 = vld [vmem:[%s3050] sm:$0xff]
        %v3052 = vld [vmem:[%s3050 + $0x8] sm:$0xff]
        %v3053 = vld [vmem:[%s3050 + $0x10] sm:$0xff]
        %v3054 = vld [vmem:[%s3050 + $0x18] sm:$0xff]
        %v3055 = vld [vmem:[%s3050 + $0x20] sm:$0xff]
        %v3056 = vld [vmem:[%s3050 + $0x28] sm:$0xff]
        %v3057 = vld [vmem:[%s3050 + $0x30] sm:$0xff]
        %v3058 = vld [vmem:[%s3050 + $0x38] sm:$0xff]
        %3059 = vmatprep.subr.mxu0 0.0
        %3060 = vmatpush1.msra.mxu0 %v3051
        %3061 = vmatprep.subr.mxu0 0.0
        %3062 = vmatpush1.msra.mxu0 %v3052
        %3063 = vmatprep.subr.mxu0 0.0
        %3064 = vmatpush1.msra.mxu0 %v3053
        %3065 = vmatprep.subr.mxu0 0.0
        %3066 = vmatpush1.msra.mxu0 %v3054
        %3067 = vmatprep.subr.mxu0 0.0
        %3068 = vmatpush1.msra.mxu0 %v3055
        %3069 = vmatprep.subr.mxu0 0.0
        %3070 = vmatpush1.msra.mxu0 %v3056
        %3071 = vmatprep.subr.mxu0 0.0
        %3072 = vmatpush1.msra.mxu0 %v3057
        %3073 = vmatprep.subr.mxu0 0.0
        %3074 = vmatpush1.msra.mxu0 %v3058
        %3075 = vmatprep.subr.mxu0 0.0
        %3076 = vmatpush1.msra.mxu0 0.0
        %3077 = vmatprep.subr.mxu0 0.0
        %3078 = vmatpush1.msra.mxu0 0.0
        %3079 = vmatprep.subr.mxu0 0.0
        %3080 = vmatpush1.msra.mxu0 0.0
        %3081 = vmatprep.subr.mxu0 0.0
        %3082 = vmatpush1.msra.mxu0 0.0
        %3083 = vmatprep.subr.mxu0 0.0
        %3084 = vmatpush1.msra.mxu0 0.0
        %3085 = vmatprep.subr.mxu0 0.0
        %3086 = vmatpush1.msra.mxu0 0.0
        %3087 = vmatprep.subr.mxu0 0.0
        %3088 = vmatpush1.msra.mxu0 0.0
        %3089 = vmatprep.subr.mxu0 0.0
        %3090 = vmatpush1.msra.mxu0 0.0
        %3091 = vmatprep.subr.mxu0 0.0
        %3092 = vmatpush1.msra.mxu0 0.0
        %3093 = vmatprep.subr.mxu0 0.0
        %3094 = vmatpush1.msra.mxu0 0.0
        %3095 = vmatprep.subr.mxu0 0.0
        %3096 = vmatpush1.msra.mxu0 0.0
        %3097 = vmatprep.subr.mxu0 0.0
        %3098 = vmatpush1.msra.mxu0 0.0
        %3099 = vmatprep.subr.mxu0 0.0
        %3100 = vmatpush1.msra.mxu0 0.0
        %3101 = vmatprep.subr.mxu0 0.0
        %3102 = vmatpush1.msra.mxu0 0.0
        %3103 = vmatprep.subr.mxu0 0.0
        %3104 = vmatpush1.msra.mxu0 0.0
        %3105 = vmatprep.subr.mxu0 0.0
        %3106 = vmatpush1.msra.mxu0 0.0
        %3107 = vmatprep.subr.mxu0 0.0
        %3108 = vmatpush1.msra.mxu0 0.0
        %3109 = vmatprep.subr.mxu0 0.0
        %3110 = vmatpush1.msra.mxu0 0.0
        %3111 = vmatprep.subr.mxu0 0.0
        %3112 = vmatpush1.msra.mxu0 0.0
        %3113 = vmatprep.subr.mxu0 0.0
        %3114 = vmatpush1.msra.mxu0 0.0
        %3115 = vmatprep.subr.mxu0 0.0
        %3116 = vmatpush1.msra.mxu0 0.0
        %3117 = vmatprep.subr.mxu0 0.0
        %3118 = vmatpush1.msra.mxu0 0.0
        %3119 = vmatprep.subr.mxu0 0.0
        %3120 = vmatpush1.msra.mxu0 0.0
        %3121 = vmatprep.subr.mxu0 0.0
        %3122 = vmatpush1.msra.mxu0 0.0
        %3123 = vmatprep.mubr.f32.mxu0 0.0
        %3124 = vmatmul.mubr.f32.gmra.mrb[0].mxu0 %v1934
        %v3125 = vpop.f32.mrb[0].mxu0
        %v3126 = vadd.f32 0.0, %v3125
        %v3127 = vpop.f32.mrb[0].mxu0
        %3128 = vmatprep.mubr.f32.mxu0 0.0
        %3129 = vmatmul.mubr.f32.gmra.mrb[0].mxu0 %v1937
        %v3130 = vpop.f32.mrb[0].mxu0
        %v3131 = vadd.f32 0.0, %v3130
        %v3132 = vpop.f32.mrb[0].mxu0
        %3133 = vmatprep.mubr.f32.mxu0 0.0
        %3134 = vmatmul.mubr.f32.gmra.mrb[0].mxu0 %v1940
        %v3135 = vpop.f32.mrb[0].mxu0
        %v3136 = vadd.f32 0.0, %v3135
        %v3137 = vpop.f32.mrb[0].mxu0
        %3138 = vmatprep.mubr.f32.mxu0 0.0
        %3139 = vmatmul.mubr.f32.gmra.mrb[0].mxu0 %v1943
        %v3140 = vpop.f32.mrb[0].mxu0
        %v3141 = vadd.f32 0.0, %v3140
        %v3142 = vpop.f32.mrb[0].mxu0
        %3143 = vmatprep.mubr.f32.mxu0 0.0
        %3144 = vmatmul.mubr.f32.gmra.mrb[0].mxu0 %v1946
        %v3145 = vpop.f32.mrb[0].mxu0
        %v3146 = vadd.f32 0.0, %v3145
        %v3147 = vpop.f32.mrb[0].mxu0
        %3148 = vmatprep.mubr.f32.mxu0 0.0
        %3149 = vmatmul.mubr.f32.gmra.mrb[0].mxu0 %v1949
        %v3150 = vpop.f32.mrb[0].mxu0
        %v3151 = vadd.f32 0.0, %v3150
        %v3152 = vpop.f32.mrb[0].mxu0
        %3153 = vmatprep.mubr.f32.mxu0 0.0
        %3154 = vmatmul.mubr.f32.gmra.mrb[0].mxu0 %v1952
        %v3155 = vpop.f32.mrb[0].mxu0
        %v3156 = vadd.f32 0.0, %v3155
        %v3157 = vpop.f32.mrb[0].mxu0
        %3158 = vmatprep.mubr.f32.mxu0 0.0
        %3159 = vmatmul.mubr.f32.gmra.mrb[0].mxu0 %v1955
        %v3160 = vpop.f32.mrb[0].mxu0
        %v3161 = vadd.f32 0.0, %v3160
        %v3162 = vpop.f32.mrb[0].mxu0
        %3163 = vmatprep.mubr.f32.mxu0 0.0
        %3164 = vmatmul.mubr.f32.gmra.mrb[0].mxu0 %v1958
        %v3165 = vpop.f32.mrb[0].mxu0
        %v3166 = vadd.f32 0.0, %v3165
        %v3167 = vpop.f32.mrb[0].mxu0
        %3168 = vmatprep.mubr.f32.mxu0 0.0
        %3169 = vmatmul.mubr.f32.gmra.mrb[0].mxu0 %v1961
        %v3170 = vpop.f32.mrb[0].mxu0
        %v3171 = vadd.f32 0.0, %v3170
        %v3172 = vpop.f32.mrb[0].mxu0
        %3173 = vmatprep.mubr.f32.mxu0 0.0
        %3174 = vmatmul.mubr.f32.gmra.mrb[0].mxu0 %v1964
        %v3175 = vpop.f32.mrb[0].mxu0
        %v3176 = vadd.f32 0.0, %v3175
        %v3177 = vpop.f32.mrb[0].mxu0
        %3178 = vmatprep.mubr.f32.mxu0 0.0
        %3179 = vmatmul.mubr.f32.gmra.mrb[0].mxu0 %v1967
        %v3180 = vpop.f32.mrb[0].mxu0
        %v3181 = vadd.f32 0.0, %v3180
        %v3182 = vpop.f32.mrb[0].mxu0
        %3183 = vmatprep.mubr.f32.mxu0 0.0
        %3184 = vmatmul.mubr.f32.gmra.mrb[0].mxu0 %v1970
        %v3185 = vpop.f32.mrb[0].mxu0
        %v3186 = vadd.f32 0.0, %v3185
        %v3187 = vpop.f32.mrb[0].mxu0
        %3188 = vmatprep.mubr.f32.mxu0 0.0
        %3189 = vmatmul.mubr.f32.gmra.mrb[0].mxu0 %v1973
        %v3190 = vpop.f32.mrb[0].mxu0
        %v3191 = vadd.f32 0.0, %v3190
        %v3192 = vpop.f32.mrb[0].mxu0
        %3193 = vmatprep.mubr.f32.mxu0 0.0
        %3194 = vmatmul.mubr.f32.gmra.mrb[0].mxu0 %v1976
        %v3195 = vpop.f32.mrb[0].mxu0
        %v3196 = vadd.f32 0.0, %v3195
        %v3197 = vpop.f32.mrb[0].mxu0
        %3198 = vmatprep.mubr.f32.mxu0 0.0
        %3199 = vmatmul.mubr.f32.gmra.mrb[0].mxu0 %v1979
        %v3200 = vpop.f32.mrb[0].mxu0
        %v3201 = vadd.f32 0.0, %v3200
        %v3202 = vpop.f32.mrb[0].mxu0
        %3203 = vdwg.mxu0
        %s3204 = scalar_lea.vmem %s5, 512
        %v3205 = vld [vmem:[%s3204] sm:$0xff]
        %v3206 = vld [vmem:[%s3204 + $0x8] sm:$0xff]
        %v3207 = vld [vmem:[%s3204 + $0x10] sm:$0xff]
        %v3208 = vld [vmem:[%s3204 + $0x18] sm:$0xff]
        %v3209 = vld [vmem:[%s3204 + $0x20] sm:$0xff]
        %v3210 = vld [vmem:[%s3204 + $0x28] sm:$0xff]
        %v3211 = vld [vmem:[%s3204 + $0x30] sm:$0xff]
        %v3212 = vld [vmem:[%s3204 + $0x38] sm:$0xff]
        %3213 = vmatprep.subr.mxu0 0.0
        %3214 = vmatpush1.msra.mxu0 %v3205
        %3215 = vmatprep.subr.mxu0 0.0
        %3216 = vmatpush1.msra.mxu0 %v3206
        %3217 = vmatprep.subr.mxu0 0.0
        %3218 = vmatpush1.msra.mxu0 %v3207
        %3219 = vmatprep.subr.mxu0 0.0
        %3220 = vmatpush1.msra.mxu0 %v3208
        %3221 = vmatprep.subr.mxu0 0.0
        %3222 = vmatpush1.msra.mxu0 %v3209
        %3223 = vmatprep.subr.mxu0 0.0
        %3224 = vmatpush1.msra.mxu0 %v3210
        %3225 = vmatprep.subr.mxu0 0.0
        %3226 = vmatpush1.msra.mxu0 %v3211
        %3227 = vmatprep.subr.mxu0 0.0
        %3228 = vmatpush1.msra.mxu0 %v3212
        %3229 = vmatprep.subr.mxu0 0.0
        %3230 = vmatpush1.msra.mxu0 0.0
        %3231 = vmatprep.subr.mxu0 0.0
        %3232 = vmatpush1.msra.mxu0 0.0
        %3233 = vmatprep.subr.mxu0 0.0
        %3234 = vmatpush1.msra.mxu0 0.0
        %3235 = vmatprep.subr.mxu0 0.0
        %3236 = vmatpush1.msra.mxu0 0.0
        %3237 = vmatprep.subr.mxu0 0.0
        %3238 = vmatpush1.msra.mxu0 0.0
        %3239 = vmatprep.subr.mxu0 0.0
        %3240 = vmatpush1.msra.mxu0 0.0
        %3241 = vmatprep.subr.mxu0 0.0
        %3242 = vmatpush1.msra.mxu0 0.0
        %3243 = vmatprep.subr.mxu0 0.0
        %3244 = vmatpush1.msra.mxu0 0.0
        %3245 = vmatprep.subr.mxu0 0.0
        %3246 = vmatpush1.msra.mxu0 0.0
        %3247 = vmatprep.subr.mxu0 0.0
        %3248 = vmatpush1.msra.mxu0 0.0
        %3249 = vmatprep.subr.mxu0 0.0
        %3250 = vmatpush1.msra.mxu0 0.0
        %3251 = vmatprep.subr.mxu0 0.0
        %3252 = vmatpush1.msra.mxu0 0.0
        %3253 = vmatprep.subr.mxu0 0.0
        %3254 = vmatpush1.msra.mxu0 0.0
        %3255 = vmatprep.subr.mxu0 0.0
        %3256 = vmatpush1.msra.mxu0 0.0
        %3257 = vmatprep.subr.mxu0 0.0
        %3258 = vmatpush1.msra.mxu0 0.0
        %3259 = vmatprep.subr.mxu0 0.0
        %3260 = vmatpush1.msra.mxu0 0.0
        %3261 = vmatprep.subr.mxu0 0.0
        %3262 = vmatpush1.msra.mxu0 0.0
        %3263 = vmatprep.subr.mxu0 0.0
        %3264 = vmatpush1.msra.mxu0 0.0
        %3265 = vmatprep.subr.mxu0 0.0
        %3266 = vmatpush1.msra.mxu0 0.0
        %3267 = vmatprep.subr.mxu0 0.0
        %3268 = vmatpush1.msra.mxu0 0.0
        %3269 = vmatprep.subr.mxu0 0.0
        %3270 = vmatpush1.msra.mxu0 0.0
        %3271 = vmatprep.subr.mxu0 0.0
        %3272 = vmatpush1.msra.mxu0 0.0
        %3273 = vmatprep.subr.mxu0 0.0
        %3274 = vmatpush1.msra.mxu0 0.0
        %3275 = vmatprep.subr.mxu0 0.0
        %3276 = vmatpush1.msra.mxu0 0.0
        %3277 = vmatprep.mubr.f32.mxu0 0.0
        %3278 = vmatmul.mubr.f32.gmra.mrb[0].mxu0 %v1934
        %v3279 = vpop.f32.mrb[0].mxu0
        %v3280 = vadd.f32 0.0, %v3279
        %v3281 = vpop.f32.mrb[0].mxu0
        %3282 = vmatprep.mubr.f32.mxu0 0.0
        %3283 = vmatmul.mubr.f32.gmra.mrb[0].mxu0 %v1937
        %v3284 = vpop.f32.mrb[0].mxu0
        %v3285 = vadd.f32 0.0, %v3284
        %v3286 = vpop.f32.mrb[0].mxu0
        %3287 = vmatprep.mubr.f32.mxu0 0.0
        %3288 = vmatmul.mubr.f32.gmra.mrb[0].mxu0 %v1940
        %v3289 = vpop.f32.mrb[0].mxu0
        %v3290 = vadd.f32 0.0, %v3289
        %v3291 = vpop.f32.mrb[0].mxu0
        %3292 = vmatprep.mubr.f32.mxu0 0.0
        %3293 = vmatmul.mubr.f32.gmra.mrb[0].mxu0 %v1943
        %v3294 = vpop.f32.mrb[0].mxu0
        %v3295 = vadd.f32 0.0, %v3294
        %v3296 = vpop.f32.mrb[0].mxu0
        %3297 = vmatprep.mubr.f32.mxu0 0.0
        %3298 = vmatmul.mubr.f32.gmra.mrb[0].mxu0 %v1946
        %v3299 = vpop.f32.mrb[0].mxu0
        %v3300 = vadd.f32 0.0, %v3299
        %v3301 = vpop.f32.mrb[0].mxu0
        %3302 = vmatprep.mubr.f32.mxu0 0.0
        %3303 = vmatmul.mubr.f32.gmra.mrb[0].mxu0 %v1949
        %v3304 = vpop.f32.mrb[0].mxu0
        %v3305 = vadd.f32 0.0, %v3304
        %v3306 = vpop.f32.mrb[0].mxu0
        %3307 = vmatprep.mubr.f32.mxu0 0.0
        %3308 = vmatmul.mubr.f32.gmra.mrb[0].mxu0 %v1952
        %v3309 = vpop.f32.mrb[0].mxu0
        %v3310 = vadd.f32 0.0, %v3309
        %v3311 = vpop.f32.mrb[0].mxu0
        %3312 = vmatprep.mubr.f32.mxu0 0.0
        %3313 = vmatmul.mubr.f32.gmra.mrb[0].mxu0 %v1955
        %v3314 = vpop.f32.mrb[0].mxu0
        %v3315 = vadd.f32 0.0, %v3314
        %v3316 = vpop.f32.mrb[0].mxu0
        %3317 = vmatprep.mubr.f32.mxu0 0.0
        %3318 = vmatmul.mubr.f32.gmra.mrb[0].mxu0 %v1958
        %v3319 = vpop.f32.mrb[0].mxu0
        %v3320 = vadd.f32 0.0, %v3319
        %v3321 = vpop.f32.mrb[0].mxu0
        %3322 = vmatprep.mubr.f32.mxu0 0.0
        %3323 = vmatmul.mubr.f32.gmra.mrb[0].mxu0 %v1961
        %v3324 = vpop.f32.mrb[0].mxu0
        %v3325 = vadd.f32 0.0, %v3324
        %v3326 = vpop.f32.mrb[0].mxu0
        %3327 = vmatprep.mubr.f32.mxu0 0.0
        %3328 = vmatmul.mubr.f32.gmra.mrb[0].mxu0 %v1964
        %v3329 = vpop.f32.mrb[0].mxu0
        %v3330 = vadd.f32 0.0, %v3329
        %v3331 = vpop.f32.mrb[0].mxu0
        %3332 = vmatprep.mubr.f32.mxu0 0.0
        %3333 = vmatmul.mubr.f32.gmra.mrb[0].mxu0 %v1967
        %v3334 = vpop.f32.mrb[0].mxu0
        %v3335 = vadd.f32 0.0, %v3334
        %v3336 = vpop.f32.mrb[0].mxu0
        %3337 = vmatprep.mubr.f32.mxu0 0.0
        %3338 = vmatmul.mubr.f32.gmra.mrb[0].mxu0 %v1970
        %v3339 = vpop.f32.mrb[0].mxu0
        %v3340 = vadd.f32 0.0, %v3339
        %v3341 = vpop.f32.mrb[0].mxu0
        %3342 = vmatprep.mubr.f32.mxu0 0.0
        %3343 = vmatmul.mubr.f32.gmra.mrb[0].mxu0 %v1973
        %v3344 = vpop.f32.mrb[0].mxu0
        %v3345 = vadd.f32 0.0, %v3344
        %v3346 = vpop.f32.mrb[0].mxu0
        %3347 = vmatprep.mubr.f32.mxu0 0.0
        %3348 = vmatmul.mubr.f32.gmra.mrb[0].mxu0 %v1976
        %v3349 = vpop.f32.mrb[0].mxu0
        %v3350 = vadd.f32 0.0, %v3349
        %v3351 = vpop.f32.mrb[0].mxu0
        %3352 = vmatprep.mubr.f32.mxu0 0.0
        %3353 = vmatmul.mubr.f32.gmra.mrb[0].mxu0 %v1979
        %v3354 = vpop.f32.mrb[0].mxu0
        %v3355 = vadd.f32 0.0, %v3354
        %v3356 = vpop.f32.mrb[0].mxu0
        %3357 = vdwg.mxu0
        %v3358 = vld [vmem:[#allocation9] sm:$0xff]
        %v3359 = vld [vmem:[#allocation9 + $0x8] sm:$0xff]
        %v3360 = vld [vmem:[#allocation9 + $0x10] sm:$0xff]
        %v3361 = vld [vmem:[#allocation9 + $0x18] sm:$0xff]
        %v3362 = vld [vmem:[#allocation9 + $0x20] sm:$0xff]
        %v3363 = vld [vmem:[#allocation9 + $0x28] sm:$0xff]
        %v3364 = vld [vmem:[#allocation9 + $0x30] sm:$0xff]
        %v3365 = vld [vmem:[#allocation9 + $0x38] sm:$0xff]
        %v3366 = vld [vmem:[#allocation9 + $0x40] sm:$0xff]
        %v3367 = vld [vmem:[#allocation9 + $0x48] sm:$0xff]
        %v3368 = vld [vmem:[#allocation9 + $0x50] sm:$0xff]
        %v3369 = vld [vmem:[#allocation9 + $0x58] sm:$0xff]
        %v3370 = vld [vmem:[#allocation9 + $0x60] sm:$0xff]
        %v3371 = vld [vmem:[#allocation9 + $0x68] sm:$0xff]
        %v3372 = vld [vmem:[#allocation9 + $0x70] sm:$0xff]
        %v3373 = vld [vmem:[#allocation9 + $0x78] sm:$0xff]
        %v3374 = vld [vmem:[#allocation9 + $0x80] sm:$0xff]
        %v3375 = vld [vmem:[#allocation9 + $0x88] sm:$0xff]
        %v3376 = vld [vmem:[#allocation9 + $0x90] sm:$0xff]
        %v3377 = vld [vmem:[#allocation9 + $0x98] sm:$0xff]
        %v3378 = vld [vmem:[#allocation9 + $0xa0] sm:$0xff]
        %v3379 = vld [vmem:[#allocation9 + $0xa8] sm:$0xff]
        %v3380 = vld [vmem:[#allocation9 + $0xb0] sm:$0xff]
        %v3381 = vld [vmem:[#allocation9 + $0xb8] sm:$0xff]
        %v3382 = vld [vmem:[#allocation9 + $0xc0] sm:$0xff]
        %v3383 = vld [vmem:[#allocation9 + $0xc8] sm:$0xff]
        %v3384 = vld [vmem:[#allocation9 + $0xd0] sm:$0xff]
        %v3385 = vld [vmem:[#allocation9 + $0xd8] sm:$0xff]
        %v3386 = vld [vmem:[#allocation9 + $0xe0] sm:$0xff]
        %v3387 = vld [vmem:[#allocation9 + $0xe8] sm:$0xff]
        %v3388 = vld [vmem:[#allocation9 + $0xf0] sm:$0xff]
        %v3389 = vld [vmem:[#allocation9 + $0xf8] sm:$0xff]
        %v3390 = vld [vmem:[#allocation9 + $0x100] sm:$0xff]
        %v3391 = vld [vmem:[#allocation9 + $0x108] sm:$0xff]
        %v3392 = vld [vmem:[#allocation9 + $0x110] sm:$0xff]
        %v3393 = vld [vmem:[#allocation9 + $0x118] sm:$0xff]
        %v3394 = vld [vmem:[#allocation10] sm:$0xff]
        %v3395 = vld [vmem:[#allocation10 + $0x8] sm:$0xff]
        %v3396 = vld [vmem:[#allocation10 + $0x10] sm:$0xff]
        %v3397 = vld [vmem:[#allocation10 + $0x18] sm:$0xff]
        %3399 = vset.pattern.permute.xlu0 0
        %3400 = vperm.xlu0 %3399, %v3394
        %v3401 = vpop.permute.xlu0 %3400
        %3404 = vset.pattern.permute.xlu0 0
        %3405 = vperm.xlu0 %3404, %v3395
        %v3406 = vpop.permute.xlu0 %3405
        %3409 = vset.pattern.permute.xlu0 0
        %3410 = vperm.xlu0 %3409, %v3396
        %v3411 = vpop.permute.xlu0 %3410
        %3414 = vset.pattern.permute.xlu0 0
        %3415 = vperm.xlu0 %3414, %v3397
        %v3416 = vpop.permute.xlu0 %3415
        %3418 = vmatprep.subr.mxu0 0.0
        %3419 = vmatpush1.msra.mxu0 %v2048
        %3420 = vmatprep.subr.mxu0 0.0
        %3421 = vmatpush1.msra.mxu0 %v2053
        %3422 = vmatprep.subr.mxu0 0.0
        %3423 = vmatpush1.msra.mxu0 %v2058
        %3424 = vmatprep.subr.mxu0 0.0
        %3425 = vmatpush1.msra.mxu0 %v2063
        %3426 = vmatprep.subr.mxu0 0.0
        %3427 = vmatpush1.msra.mxu0 %v2068
        %3428 = vmatprep.subr.mxu0 0.0
        %3429 = vmatpush1.msra.mxu0 %v2073
        %3430 = vmatprep.subr.mxu0 0.0
        %3431 = vmatpush1.msra.mxu0 %v2078
        %3432 = vmatprep.subr.mxu0 0.0
        %3433 = vmatpush1.msra.mxu0 %v2083
        %3434 = vmatprep.subr.mxu0 0.0
        %3435 = vmatpush1.msra.mxu0 %v2088
        %3436 = vmatprep.subr.mxu0 0.0
        %3437 = vmatpush1.msra.mxu0 %v2093
        %3438 = vmatprep.subr.mxu0 0.0
        %3439 = vmatpush1.msra.mxu0 %v2098
        %3440 = vmatprep.subr.mxu0 0.0
        %3441 = vmatpush1.msra.mxu0 %v2103
        %3442 = vmatprep.subr.mxu0 0.0
        %3443 = vmatpush1.msra.mxu0 %v2108
        %3444 = vmatprep.subr.mxu0 0.0
        %3445 = vmatpush1.msra.mxu0 %v2113
        %3446 = vmatprep.subr.mxu0 0.0
        %3447 = vmatpush1.msra.mxu0 %v2118
        %3448 = vmatprep.subr.mxu0 0.0
        %3449 = vmatpush1.msra.mxu0 %v2123
        %3450 = vmatprep.subr.mxu0 0.0
        %3451 = vmatpush1.msra.mxu0 %v2202
        %3452 = vmatprep.subr.mxu0 0.0
        %3453 = vmatpush1.msra.mxu0 %v2207
        %3454 = vmatprep.subr.mxu0 0.0
        %3455 = vmatpush1.msra.mxu0 %v2212
        %3456 = vmatprep.subr.mxu0 0.0
        %3457 = vmatpush1.msra.mxu0 %v2217
        %3458 = vmatprep.subr.mxu0 0.0
        %3459 = vmatpush1.msra.mxu0 %v2222
        %3460 = vmatprep.subr.mxu0 0.0
        %3461 = vmatpush1.msra.mxu0 %v2227
        %3462 = vmatprep.subr.mxu0 0.0
        %3463 = vmatpush1.msra.mxu0 %v2232
        %3464 = vmatprep.subr.mxu0 0.0
        %3465 = vmatpush1.msra.mxu0 %v2237
        %3466 = vmatprep.subr.mxu0 0.0
        %3467 = vmatpush1.msra.mxu0 %v2242
        %3468 = vmatprep.subr.mxu0 0.0
        %3469 = vmatpush1.msra.mxu0 %v2247
        %3470 = vmatprep.subr.mxu0 0.0
        %3471 = vmatpush1.msra.mxu0 %v2252
        %3472 = vmatprep.subr.mxu0 0.0
        %3473 = vmatpush1.msra.mxu0 %v2257
        %3474 = vmatprep.subr.mxu0 0.0
        %3475 = vmatpush1.msra.mxu0 %v2262
        %3476 = vmatprep.subr.mxu0 0.0
        %3477 = vmatpush1.msra.mxu0 %v2267
        %3478 = vmatprep.subr.mxu0 0.0
        %3479 = vmatpush1.msra.mxu0 %v2272
        %3480 = vmatprep.subr.mxu0 0.0
        %3481 = vmatpush1.msra.mxu0 %v2277
        %3482 = vmatprep.mubr.f32.mxu0 %v3359
        %3483 = vmatmul.mubr.f32.gmra.mrb[0].mxu0 %v3358
        %v3484 = vpop.f32.mrb[0].mxu0
        %v3485 = vadd.f32 %v3401, %v3484
        %v3486 = vpop.f32.mrb[0].mxu0
        %3487 = vmatprep.mubr.f32.mxu0 %v3368
        %3488 = vmatmul.mubr.f32.gmra.mrb[0].mxu0 %v3367
        %v3489 = vpop.f32.mrb[0].mxu0
        %v3490 = vadd.f32 %v3406, %v3489
        %v3491 = vpop.f32.mrb[0].mxu0
        %3492 = vmatprep.mubr.f32.mxu0 %v3377
        %3493 = vmatmul.mubr.f32.gmra.mrb[0].mxu0 %v3376
        %v3494 = vpop.f32.mrb[0].mxu0
        %v3495 = vadd.f32 %v3411, %v3494
        %v3496 = vpop.f32.mrb[0].mxu0
        %3497 = vmatprep.mubr.f32.mxu0 %v3386
        %3498 = vmatmul.mubr.f32.gmra.mrb[0].mxu0 %v3385
        %v3499 = vpop.f32.mrb[0].mxu0
        %v3500 = vadd.f32 %v3416, %v3499
        %v3501 = vpop.f32.mrb[0].mxu0
        %3502 = vdwg.mxu0
        %3503 = vmatprep.subr.mxu0 0.0
        %3504 = vmatpush1.msra.mxu0 %v2356
        %3505 = vmatprep.subr.mxu0 0.0
        %3506 = vmatpush1.msra.mxu0 %v2361
        %3507 = vmatprep.subr.mxu0 0.0
        %3508 = vmatpush1.msra.mxu0 %v2366
        %3509 = vmatprep.subr.mxu0 0.0
        %3510 = vmatpush1.msra.mxu0 %v2371
        %3511 = vmatprep.subr.mxu0 0.0
        %3512 = vmatpush1.msra.mxu0 %v2376
        %3513 = vmatprep.subr.mxu0 0.0
        %3514 = vmatpush1.msra.mxu0 %v2381
        %3515 = vmatprep.subr.mxu0 0.0
        %3516 = vmatpush1.msra.mxu0 %v2386
        %3517 = vmatprep.subr.mxu0 0.0
        %3518 = vmatpush1.msra.mxu0 %v2391
        %3519 = vmatprep.subr.mxu0 0.0
        %3520 = vmatpush1.msra.mxu0 %v2396
        %3521 = vmatprep.subr.mxu0 0.0
        %3522 = vmatpush1.msra.mxu0 %v2401
        %3523 = vmatprep.subr.mxu0 0.0
        %3524 = vmatpush1.msra.mxu0 %v2406
        %3525 = vmatprep.subr.mxu0 0.0
        %3526 = vmatpush1.msra.mxu0 %v2411
        %3527 = vmatprep.subr.mxu0 0.0
        %3528 = vmatpush1.msra.mxu0 %v2416
        %3529 = vmatprep.subr.mxu0 0.0
        %3530 = vmatpush1.msra.mxu0 %v2421
        %3531 = vmatprep.subr.mxu0 0.0
        %3532 = vmatpush1.msra.mxu0 %v2426
        %3533 = vmatprep.subr.mxu0 0.0
        %3534 = vmatpush1.msra.mxu0 %v2431
        %3535 = vmatprep.subr.mxu0 0.0
        %3536 = vmatpush1.msra.mxu0 %v2510
        %3537 = vmatprep.subr.mxu0 0.0
        %3538 = vmatpush1.msra.mxu0 %v2515
        %3539 = vmatprep.subr.mxu0 0.0
        %3540 = vmatpush1.msra.mxu0 %v2520
        %3541 = vmatprep.subr.mxu0 0.0
        %3542 = vmatpush1.msra.mxu0 %v2525
        %3543 = vmatprep.subr.mxu0 0.0
        %3544 = vmatpush1.msra.mxu0 %v2530
        %3545 = vmatprep.subr.mxu0 0.0
        %3546 = vmatpush1.msra.mxu0 %v2535
        %3547 = vmatprep.subr.mxu0 0.0
        %3548 = vmatpush1.msra.mxu0 %v2540
        %3549 = vmatprep.subr.mxu0 0.0
        %3550 = vmatpush1.msra.mxu0 %v2545
        %3551 = vmatprep.subr.mxu0 0.0
        %3552 = vmatpush1.msra.mxu0 %v2550
        %3553 = vmatprep.subr.mxu0 0.0
        %3554 = vmatpush1.msra.mxu0 %v2555
        %3555 = vmatprep.subr.mxu0 0.0
        %3556 = vmatpush1.msra.mxu0 %v2560
        %3557 = vmatprep.subr.mxu0 0.0
        %3558 = vmatpush1.msra.mxu0 %v2565
        %3559 = vmatprep.subr.mxu0 0.0
        %3560 = vmatpush1.msra.mxu0 %v2570
        %3561 = vmatprep.subr.mxu0 0.0
        %3562 = vmatpush1.msra.mxu0 %v2575
        %3563 = vmatprep.subr.mxu0 0.0
        %3564 = vmatpush1.msra.mxu0 %v2580
        %3565 = vmatprep.subr.mxu0 0.0
        %3566 = vmatpush1.msra.mxu0 %v2585
        %3567 = vmatprep.mubr.f32.mxu0 %v3361
        %3568 = vmatmul.mubr.f32.gmra.mrb[0].mxu0 %v3360
        %v3569 = vpop.f32.mrb[0].mxu0
        %v3570 = vadd.f32 %v3485, %v3569
        %v3571 = vpop.f32.mrb[0].mxu0
        %3572 = vmatprep.mubr.f32.mxu0 %v3370
        %3573 = vmatmul.mubr.f32.gmra.mrb[0].mxu0 %v3369
        %v3574 = vpop.f32.mrb[0].mxu0
        %v3575 = vadd.f32 %v3490, %v3574
        %v3576 = vpop.f32.mrb[0].mxu0
        %3577 = vmatprep.mubr.f32.mxu0 %v3379
        %3578 = vmatmul.mubr.f32.gmra.mrb[0].mxu0 %v3378
        %v3579 = vpop.f32.mrb[0].mxu0
        %v3580 = vadd.f32 %v3495, %v3579
        %v3581 = vpop.f32.mrb[0].mxu0
        %3582 = vmatprep.mubr.f32.mxu0 %v3388
        %3583 = vmatmul.mubr.f32.gmra.mrb[0].mxu0 %v3387
        %v3584 = vpop.f32.mrb[0].mxu0
        %v3585 = vadd.f32 %v3500, %v3584
        %v3586 = vpop.f32.mrb[0].mxu0
        %3587 = vdwg.mxu0
        %3588 = vmatprep.subr.mxu0 0.0
        %3589 = vmatpush1.msra.mxu0 %v2664
        %3590 = vmatprep.subr.mxu0 0.0
        %3591 = vmatpush1.msra.mxu0 %v2669
        %3592 = vmatprep.subr.mxu0 0.0
        %3593 = vmatpush1.msra.mxu0 %v2674
        %3594 = vmatprep.subr.mxu0 0.0
        %3595 = vmatpush1.msra.mxu0 %v2679
        %3596 = vmatprep.subr.mxu0 0.0
        %3597 = vmatpush1.msra.mxu0 %v2684
        %3598 = vmatprep.subr.mxu0 0.0
        %3599 = vmatpush1.msra.mxu0 %v2689
        %3600 = vmatprep.subr.mxu0 0.0
        %3601 = vmatpush1.msra.mxu0 %v2694
        %3602 = vmatprep.subr.mxu0 0.0
        %3603 = vmatpush1.msra.mxu0 %v2699
        %3604 = vmatprep.subr.mxu0 0.0
        %3605 = vmatpush1.msra.mxu0 %v2704
        %3606 = vmatprep.subr.mxu0 0.0
        %3607 = vmatpush1.msra.mxu0 %v2709
        %3608 = vmatprep.subr.mxu0 0.0
        %3609 = vmatpush1.msra.mxu0 %v2714
        %3610 = vmatprep.subr.mxu0 0.0
        %3611 = vmatpush1.msra.mxu0 %v2719
        %3612 = vmatprep.subr.mxu0 0.0
        %3613 = vmatpush1.msra.mxu0 %v2724
        %3614 = vmatprep.subr.mxu0 0.0
        %3615 = vmatpush1.msra.mxu0 %v2729
        %3616 = vmatprep.subr.mxu0 0.0
        %3617 = vmatpush1.msra.mxu0 %v2734
        %3618 = vmatprep.subr.mxu0 0.0
        %3619 = vmatpush1.msra.mxu0 %v2739
        %3620 = vmatprep.subr.mxu0 0.0
        %3621 = vmatpush1.msra.mxu0 %v2818
        %3622 = vmatprep.subr.mxu0 0.0
        %3623 = vmatpush1.msra.mxu0 %v2823
        %3624 = vmatprep.subr.mxu0 0.0
        %3625 = vmatpush1.msra.mxu0 %v2828
        %3626 = vmatprep.subr.mxu0 0.0
        %3627 = vmatpush1.msra.mxu0 %v2833
        %3628 = vmatprep.subr.mxu0 0.0
        %3629 = vmatpush1.msra.mxu0 %v2838
        %3630 = vmatprep.subr.mxu0 0.0
        %3631 = vmatpush1.msra.mxu0 %v2843
        %3632 = vmatprep.subr.mxu0 0.0
        %3633 = vmatpush1.msra.mxu0 %v2848
        %3634 = vmatprep.subr.mxu0 0.0
        %3635 = vmatpush1.msra.mxu0 %v2853
        %3636 = vmatprep.subr.mxu0 0.0
        %3637 = vmatpush1.msra.mxu0 %v2858
        %3638 = vmatprep.subr.mxu0 0.0
        %3639 = vmatpush1.msra.mxu0 %v2863
        %3640 = vmatprep.subr.mxu0 0.0
        %3641 = vmatpush1.msra.mxu0 %v2868
        %3642 = vmatprep.subr.mxu0 0.0
        %3643 = vmatpush1.msra.mxu0 %v2873
        %3644 = vmatprep.subr.mxu0 0.0
        %3645 = vmatpush1.msra.mxu0 %v2878
        %3646 = vmatprep.subr.mxu0 0.0
        %3647 = vmatpush1.msra.mxu0 %v2883
        %3648 = vmatprep.subr.mxu0 0.0
        %3649 = vmatpush1.msra.mxu0 %v2888
        %3650 = vmatprep.subr.mxu0 0.0
        %3651 = vmatpush1.msra.mxu0 %v2893
        %3652 = vmatprep.mubr.f32.mxu0 %v3363
        %3653 = vmatmul.mubr.f32.gmra.mrb[0].mxu0 %v3362
        %v3654 = vpop.f32.mrb[0].mxu0
        %v3655 = vadd.f32 %v3570, %v3654
        %v3656 = vpop.f32.mrb[0].mxu0
        %3657 = vmatprep.mubr.f32.mxu0 %v3372
        %3658 = vmatmul.mubr.f32.gmra.mrb[0].mxu0 %v3371
        %v3659 = vpop.f32.mrb[0].mxu0
        %v3660 = vadd.f32 %v3575, %v3659
        %v3661 = vpop.f32.mrb[0].mxu0
        %3662 = vmatprep.mubr.f32.mxu0 %v3381
        %3663 = vmatmul.mubr.f32.gmra.mrb[0].mxu0 %v3380
        %v3664 = vpop.f32.mrb[0].mxu0
        %v3665 = vadd.f32 %v3580, %v3664
        %v3666 = vpop.f32.mrb[0].mxu0
        %3667 = vmatprep.mubr.f32.mxu0 %v3390
        %3668 = vmatmul.mubr.f32.gmra.mrb[0].mxu0 %v3389
        %v3669 = vpop.f32.mrb[0].mxu0
        %v3670 = vadd.f32 %v3585, %v3669
        %v3671 = vpop.f32.mrb[0].mxu0
        %3672 = vdwg.mxu0
        %3673 = vmatprep.subr.mxu0 0.0
        %3674 = vmatpush1.msra.mxu0 %v2972
        %3675 = vmatprep.subr.mxu0 0.0
        %3676 = vmatpush1.msra.mxu0 %v2977
        %3677 = vmatprep.subr.mxu0 0.0
        %3678 = vmatpush1.msra.mxu0 %v2982
        %3679 = vmatprep.subr.mxu0 0.0
        %3680 = vmatpush1.msra.mxu0 %v2987
        %3681 = vmatprep.subr.mxu0 0.0
        %3682 = vmatpush1.msra.mxu0 %v2992
        %3683 = vmatprep.subr.mxu0 0.0
        %3684 = vmatpush1.msra.mxu0 %v2997
        %3685 = vmatprep.subr.mxu0 0.0
        %3686 = vmatpush1.msra.mxu0 %v3002
        %3687 = vmatprep.subr.mxu0 0.0
        %3688 = vmatpush1.msra.mxu0 %v3007
        %3689 = vmatprep.subr.mxu0 0.0
        %3690 = vmatpush1.msra.mxu0 %v3012
        %3691 = vmatprep.subr.mxu0 0.0
        %3692 = vmatpush1.msra.mxu0 %v3017
        %3693 = vmatprep.subr.mxu0 0.0
        %3694 = vmatpush1.msra.mxu0 %v3022
        %3695 = vmatprep.subr.mxu0 0.0
        %3696 = vmatpush1.msra.mxu0 %v3027
        %3697 = vmatprep.subr.mxu0 0.0
        %3698 = vmatpush1.msra.mxu0 %v3032
        %3699 = vmatprep.subr.mxu0 0.0
        %3700 = vmatpush1.msra.mxu0 %v3037
        %3701 = vmatprep.subr.mxu0 0.0
        %3702 = vmatpush1.msra.mxu0 %v3042
        %3703 = vmatprep.subr.mxu0 0.0
        %3704 = vmatpush1.msra.mxu0 %v3047
        %3705 = vmatprep.subr.mxu0 0.0
        %3706 = vmatpush1.msra.mxu0 %v3126
        %3707 = vmatprep.subr.mxu0 0.0
        %3708 = vmatpush1.msra.mxu0 %v3131
        %3709 = vmatprep.subr.mxu0 0.0
        %3710 = vmatpush1.msra.mxu0 %v3136
        %3711 = vmatprep.subr.mxu0 0.0
        %3712 = vmatpush1.msra.mxu0 %v3141
        %3713 = vmatprep.subr.mxu0 0.0
        %3714 = vmatpush1.msra.mxu0 %v3146
        %3715 = vmatprep.subr.mxu0 0.0
        %3716 = vmatpush1.msra.mxu0 %v3151
        %3717 = vmatprep.subr.mxu0 0.0
        %3718 = vmatpush1.msra.mxu0 %v3156
        %3719 = vmatprep.subr.mxu0 0.0
        %3720 = vmatpush1.msra.mxu0 %v3161
        %3721 = vmatprep.subr.mxu0 0.0
        %3722 = vmatpush1.msra.mxu0 %v3166
        %3723 = vmatprep.subr.mxu0 0.0
        %3724 = vmatpush1.msra.mxu0 %v3171
        %3725 = vmatprep.subr.mxu0 0.0
        %3726 = vmatpush1.msra.mxu0 %v3176
        %3727 = vmatprep.subr.mxu0 0.0
        %3728 = vmatpush1.msra.mxu0 %v3181
        %3729 = vmatprep.subr.mxu0 0.0
        %3730 = vmatpush1.msra.mxu0 %v3186
        %3731 = vmatprep.subr.mxu0 0.0
        %3732 = vmatpush1.msra.mxu0 %v3191
        %3733 = vmatprep.subr.mxu0 0.0
        %3734 = vmatpush1.msra.mxu0 %v3196
        %3735 = vmatprep.subr.mxu0 0.0
        %3736 = vmatpush1.msra.mxu0 %v3201
        %3737 = vmatprep.mubr.f32.mxu0 %v3365
        %3738 = vmatmul.mubr.f32.gmra.mrb[0].mxu0 %v3364
        %v3739 = vpop.f32.mrb[0].mxu0
        %v3740 = vadd.f32 %v3655, %v3739
        %v3741 = vpop.f32.mrb[0].mxu0
        %3742 = vmatprep.mubr.f32.mxu0 %v3374
        %3743 = vmatmul.mubr.f32.gmra.mrb[0].mxu0 %v3373
        %v3744 = vpop.f32.mrb[0].mxu0
        %v3745 = vadd.f32 %v3660, %v3744
        %v3746 = vpop.f32.mrb[0].mxu0
        %3747 = vmatprep.mubr.f32.mxu0 %v3383
        %3748 = vmatmul.mubr.f32.gmra.mrb[0].mxu0 %v3382
        %v3749 = vpop.f32.mrb[0].mxu0
        %v3750 = vadd.f32 %v3665, %v3749
        %v3751 = vpop.f32.mrb[0].mxu0
        %3752 = vmatprep.mubr.f32.mxu0 %v3392
        %3753 = vmatmul.mubr.f32.gmra.mrb[0].mxu0 %v3391
        %v3754 = vpop.f32.mrb[0].mxu0
        %v3755 = vadd.f32 %v3670, %v3754
        %v3756 = vpop.f32.mrb[0].mxu0
        %3757 = vdwg.mxu0
        %3758 = vmatprep.subr.mxu0 0.0
        %3759 = vmatpush1.msra.mxu0 %v3280
        %3760 = vmatprep.subr.mxu0 0.0
        %3761 = vmatpush1.msra.mxu0 %v3285
        %3762 = vmatprep.subr.mxu0 0.0
        %3763 = vmatpush1.msra.mxu0 %v3290
        %3764 = vmatprep.subr.mxu0 0.0
        %3765 = vmatpush1.msra.mxu0 %v3295
        %3766 = vmatprep.subr.mxu0 0.0
        %3767 = vmatpush1.msra.mxu0 %v3300
        %3768 = vmatprep.subr.mxu0 0.0
        %3769 = vmatpush1.msra.mxu0 %v3305
        %3770 = vmatprep.subr.mxu0 0.0
        %3771 = vmatpush1.msra.mxu0 %v3310
        %3772 = vmatprep.subr.mxu0 0.0
        %3773 = vmatpush1.msra.mxu0 %v3315
        %3774 = vmatprep.subr.mxu0 0.0
        %3775 = vmatpush1.msra.mxu0 %v3320
        %3776 = vmatprep.subr.mxu0 0.0
        %3777 = vmatpush1.msra.mxu0 %v3325
        %3778 = vmatprep.subr.mxu0 0.0
        %3779 = vmatpush1.msra.mxu0 %v3330
        %3780 = vmatprep.subr.mxu0 0.0
        %3781 = vmatpush1.msra.mxu0 %v3335
        %3782 = vmatprep.subr.mxu0 0.0
        %3783 = vmatpush1.msra.mxu0 %v3340
        %3784 = vmatprep.subr.mxu0 0.0
        %3785 = vmatpush1.msra.mxu0 %v3345
        %3786 = vmatprep.subr.mxu0 0.0
        %3787 = vmatpush1.msra.mxu0 %v3350
        %3788 = vmatprep.subr.mxu0 0.0
        %3789 = vmatpush1.msra.mxu0 %v3355
        %3790 = vmatprep.subr.mxu0 0.0
        %3791 = vmatpush1.msra.mxu0 0.0
        %3792 = vmatprep.subr.mxu0 0.0
        %3793 = vmatpush1.msra.mxu0 0.0
        %3794 = vmatprep.subr.mxu0 0.0
        %3795 = vmatpush1.msra.mxu0 0.0
        %3796 = vmatprep.subr.mxu0 0.0
        %3797 = vmatpush1.msra.mxu0 0.0
        %3798 = vmatprep.subr.mxu0 0.0
        %3799 = vmatpush1.msra.mxu0 0.0
        %3800 = vmatprep.subr.mxu0 0.0
        %3801 = vmatpush1.msra.mxu0 0.0
        %3802 = vmatprep.subr.mxu0 0.0
        %3803 = vmatpush1.msra.mxu0 0.0
        %3804 = vmatprep.subr.mxu0 0.0
        %3805 = vmatpush1.msra.mxu0 0.0
        %3806 = vmatprep.subr.mxu0 0.0
        %3807 = vmatpush1.msra.mxu0 0.0
        %3808 = vmatprep.subr.mxu0 0.0
        %3809 = vmatpush1.msra.mxu0 0.0
        %3810 = vmatprep.subr.mxu0 0.0
        %3811 = vmatpush1.msra.mxu0 0.0
        %3812 = vmatprep.subr.mxu0 0.0
        %3813 = vmatpush1.msra.mxu0 0.0
        %3814 = vmatprep.subr.mxu0 0.0
        %3815 = vmatpush1.msra.mxu0 0.0
        %3816 = vmatprep.subr.mxu0 0.0
        %3817 = vmatpush1.msra.mxu0 0.0
        %3818 = vmatprep.subr.mxu0 0.0
        %3819 = vmatpush1.msra.mxu0 0.0
        %3820 = vmatprep.subr.mxu0 0.0
        %3821 = vmatpush1.msra.mxu0 0.0
        %3822 = vmatprep.mubr.f32.mxu0 0.0
        %3823 = vmatmul.mubr.f32.gmra.mrb[0].mxu0 %v3366
        %v3824 = vpop.f32.mrb[0].mxu0
        %v3825 = vadd.f32 %v3740, %v3824
        %v3826 = vpop.f32.mrb[0].mxu0
        %3827 = vmatprep.mubr.f32.mxu0 0.0
        %3828 = vmatmul.mubr.f32.gmra.mrb[0].mxu0 %v3375
        %v3829 = vpop.f32.mrb[0].mxu0
        %v3830 = vadd.f32 %v3745, %v3829
        %v3831 = vpop.f32.mrb[0].mxu0
        %3832 = vmatprep.mubr.f32.mxu0 0.0
        %3833 = vmatmul.mubr.f32.gmra.mrb[0].mxu0 %v3384
        %v3834 = vpop.f32.mrb[0].mxu0
        %v3835 = vadd.f32 %v3750, %v3834
        %v3836 = vpop.f32.mrb[0].mxu0
        %3837 = vmatprep.mubr.f32.mxu0 0.0
        %3838 = vmatmul.mubr.f32.gmra.mrb[0].mxu0 %v3393
        %v3839 = vpop.f32.mrb[0].mxu0
        %v3840 = vadd.f32 %v3755, %v3839
        %v3841 = vpop.f32.mrb[0].mxu0
        %3842 = vdwg.mxu0
        %v3843 = vmax.f32 %v3825, 0.0
        %v3844 = vmax.f32 %v3830, 0.0
        %v3845 = vmax.f32 %v3835, 0.0
        %v3846 = vmax.f32 %v3840, 0.0
        %v3847 = vld [vmem:[%s8] sm:$0xff]
        %v3848 = vld [vmem:[%s8 + $0x8] sm:$0xff]
        %v3849 = vld [vmem:[%s8 + $0x10] sm:$0xff]
        %v3850 = vld [vmem:[%s8 + $0x18] sm:$0xff]
        %v3851 = vld [vmem:[%s8 + $0x20] sm:$0xff]
        %v3852 = vld [vmem:[%s8 + $0x28] sm:$0xff]
        %v3853 = vld [vmem:[%s8 + $0x30] sm:$0xff]
        %v3854 = vld [vmem:[%s8 + $0x38] sm:$0xff]
        %v3856 = vsel %vm1932, %v3843, 0
        %v3859 = vsel %vm1932, %v3844, 0
        %v3862 = vsel %vm1932, %v3845, 0
        %v3865 = vsel %vm1932, %v3846, 0
        %3867 = vmatprep.subr.mxu0 0.0
        %3868 = vmatpush1.msra.mxu0 %v3847
        %3869 = vmatprep.subr.mxu0 0.0
        %3870 = vmatpush1.msra.mxu0 %v3848
        %3871 = vmatprep.subr.mxu0 0.0
        %3872 = vmatpush1.msra.mxu0 %v3849
        %3873 = vmatprep.subr.mxu0 0.0
        %3874 = vmatpush1.msra.mxu0 %v3850
        %3875 = vmatprep.subr.mxu0 0.0
        %3876 = vmatpush1.msra.mxu0 %v3851
        %3877 = vmatprep.subr.mxu0 0.0
        %3878 = vmatpush1.msra.mxu0 %v3852
        %3879 = vmatprep.subr.mxu0 0.0
        %3880 = vmatpush1.msra.mxu0 %v3853
        %3881 = vmatprep.subr.mxu0 0.0
        %3882 = vmatpush1.msra.mxu0 %v3854
        %3883 = vmatprep.subr.mxu0 0.0
        %3884 = vmatpush1.msra.mxu0 0.0
        %3885 = vmatprep.subr.mxu0 0.0
        %3886 = vmatpush1.msra.mxu0 0.0
        %3887 = vmatprep.subr.mxu0 0.0
        %3888 = vmatpush1.msra.mxu0 0.0
        %3889 = vmatprep.subr.mxu0 0.0
        %3890 = vmatpush1.msra.mxu0 0.0
        %3891 = vmatprep.subr.mxu0 0.0
        %3892 = vmatpush1.msra.mxu0 0.0
        %3893 = vmatprep.subr.mxu0 0.0
        %3894 = vmatpush1.msra.mxu0 0.0
        %3895 = vmatprep.subr.mxu0 0.0
        %3896 = vmatpush1.msra.mxu0 0.0
        %3897 = vmatprep.subr.mxu0 0.0
        %3898 = vmatpush1.msra.mxu0 0.0
        %3899 = vmatprep.subr.mxu0 0.0
        %3900 = vmatpush1.msra.mxu0 0.0
        %3901 = vmatprep.subr.mxu0 0.0
        %3902 = vmatpush1.msra.mxu0 0.0
        %3903 = vmatprep.subr.mxu0 0.0
        %3904 = vmatpush1.msra.mxu0 0.0
        %3905 = vmatprep.subr.mxu0 0.0
        %3906 = vmatpush1.msra.mxu0 0.0
        %3907 = vmatprep.subr.mxu0 0.0
        %3908 = vmatpush1.msra.mxu0 0.0
        %3909 = vmatprep.subr.mxu0 0.0
        %3910 = vmatpush1.msra.mxu0 0.0
        %3911 = vmatprep.subr.mxu0 0.0
        %3912 = vmatpush1.msra.mxu0 0.0
        %3913 = vmatprep.subr.mxu0 0.0
        %3914 = vmatpush1.msra.mxu0 0.0
        %3915 = vmatprep.subr.mxu0 0.0
        %3916 = vmatpush1.msra.mxu0 0.0
        %3917 = vmatprep.subr.mxu0 0.0
        %3918 = vmatpush1.msra.mxu0 0.0
        %3919 = vmatprep.subr.mxu0 0.0
        %3920 = vmatpush1.msra.mxu0 0.0
        %3921 = vmatprep.subr.mxu0 0.0
        %3922 = vmatpush1.msra.mxu0 0.0
        %3923 = vmatprep.subr.mxu0 0.0
        %3924 = vmatpush1.msra.mxu0 0.0
        %3925 = vmatprep.subr.mxu0 0.0
        %3926 = vmatpush1.msra.mxu0 0.0
        %3927 = vmatprep.subr.mxu0 0.0
        %3928 = vmatpush1.msra.mxu0 0.0
        %3929 = vmatprep.subr.mxu0 0.0
        %3930 = vmatpush1.msra.mxu0 0.0
        %3931 = vmatprep.mubr.f32.mxu0 0.0
        %3932 = vmatmul.mubr.f32.gmra.mrb[0].mxu0 %v3856
        %v3933 = vpop.f32.mrb[0].mxu0
        %v3934 = vadd.f32 0.0, %v3933
        %v3935 = vpop.f32.mrb[0].mxu0
        %3936 = vmatprep.mubr.f32.mxu0 0.0
        %3937 = vmatmul.mubr.f32.gmra.mrb[0].mxu0 %v3859
        %v3938 = vpop.f32.mrb[0].mxu0
        %v3939 = vadd.f32 0.0, %v3938
        %v3940 = vpop.f32.mrb[0].mxu0
        %3941 = vmatprep.mubr.f32.mxu0 0.0
        %3942 = vmatmul.mubr.f32.gmra.mrb[0].mxu0 %v3862
        %v3943 = vpop.f32.mrb[0].mxu0
        %v3944 = vadd.f32 0.0, %v3943
        %v3945 = vpop.f32.mrb[0].mxu0
        %3946 = vmatprep.mubr.f32.mxu0 0.0
        %3947 = vmatmul.mubr.f32.gmra.mrb[0].mxu0 %v3865
        %v3948 = vpop.f32.mrb[0].mxu0
        %v3949 = vadd.f32 0.0, %v3948
        %v3950 = vpop.f32.mrb[0].mxu0
        %3951 = vdwg.mxu0
        %s3952 = scalar_lea.vmem %s8, 64
        %v3953 = vld [vmem:[%s3952] sm:$0xff]
        %v3954 = vld [vmem:[%s3952 + $0x8] sm:$0xff]
        %v3955 = vld [vmem:[%s3952 + $0x10] sm:$0xff]
        %v3956 = vld [vmem:[%s3952 + $0x18] sm:$0xff]
        %v3957 = vld [vmem:[%s3952 + $0x20] sm:$0xff]
        %v3958 = vld [vmem:[%s3952 + $0x28] sm:$0xff]
        %v3959 = vld [vmem:[%s3952 + $0x30] sm:$0xff]
        %v3960 = vld [vmem:[%s3952 + $0x38] sm:$0xff]
        %3961 = vmatprep.subr.mxu0 0.0
        %3962 = vmatpush1.msra.mxu0 %v3953
        %3963 = vmatprep.subr.mxu0 0.0
        %3964 = vmatpush1.msra.mxu0 %v3954
        %3965 = vmatprep.subr.mxu0 0.0
        %3966 = vmatpush1.msra.mxu0 %v3955
        %3967 = vmatprep.subr.mxu0 0.0
        %3968 = vmatpush1.msra.mxu0 %v3956
        %3969 = vmatprep.subr.mxu0 0.0
        %3970 = vmatpush1.msra.mxu0 %v3957
        %3971 = vmatprep.subr.mxu0 0.0
        %3972 = vmatpush1.msra.mxu0 %v3958
        %3973 = vmatprep.subr.mxu0 0.0
        %3974 = vmatpush1.msra.mxu0 %v3959
        %3975 = vmatprep.subr.mxu0 0.0
        %3976 = vmatpush1.msra.mxu0 %v3960
        %3977 = vmatprep.subr.mxu0 0.0
        %3978 = vmatpush1.msra.mxu0 0.0
        %3979 = vmatprep.subr.mxu0 0.0
        %3980 = vmatpush1.msra.mxu0 0.0
        %3981 = vmatprep.subr.mxu0 0.0
        %3982 = vmatpush1.msra.mxu0 0.0
        %3983 = vmatprep.subr.mxu0 0.0
        %3984 = vmatpush1.msra.mxu0 0.0
        %3985 = vmatprep.subr.mxu0 0.0
        %3986 = vmatpush1.msra.mxu0 0.0
        %3987 = vmatprep.subr.mxu0 0.0
        %3988 = vmatpush1.msra.mxu0 0.0
        %3989 = vmatprep.subr.mxu0 0.0
        %3990 = vmatpush1.msra.mxu0 0.0
        %3991 = vmatprep.subr.mxu0 0.0
        %3992 = vmatpush1.msra.mxu0 0.0
        %3993 = vmatprep.subr.mxu0 0.0
        %3994 = vmatpush1.msra.mxu0 0.0
        %3995 = vmatprep.subr.mxu0 0.0
        %3996 = vmatpush1.msra.mxu0 0.0
        %3997 = vmatprep.subr.mxu0 0.0
        %3998 = vmatpush1.msra.mxu0 0.0
        %3999 = vmatprep.subr.mxu0 0.0
        %4000 = vmatpush1.msra.mxu0 0.0
        %4001 = vmatprep.subr.mxu0 0.0
        %4002 = vmatpush1.msra.mxu0 0.0
        %4003 = vmatprep.subr.mxu0 0.0
        %4004 = vmatpush1.msra.mxu0 0.0
        %4005 = vmatprep.subr.mxu0 0.0
        %4006 = vmatpush1.msra.mxu0 0.0
        %4007 = vmatprep.subr.mxu0 0.0
        %4008 = vmatpush1.msra.mxu0 0.0
        %4009 = vmatprep.subr.mxu0 0.0
        %4010 = vmatpush1.msra.mxu0 0.0
        %4011 = vmatprep.subr.mxu0 0.0
        %4012 = vmatpush1.msra.mxu0 0.0
        %4013 = vmatprep.subr.mxu0 0.0
        %4014 = vmatpush1.msra.mxu0 0.0
        %4015 = vmatprep.subr.mxu0 0.0
        %4016 = vmatpush1.msra.mxu0 0.0
        %4017 = vmatprep.subr.mxu0 0.0
        %4018 = vmatpush1.msra.mxu0 0.0
        %4019 = vmatprep.subr.mxu0 0.0
        %4020 = vmatpush1.msra.mxu0 0.0
        %4021 = vmatprep.subr.mxu0 0.0
        %4022 = vmatpush1.msra.mxu0 0.0
        %4023 = vmatprep.subr.mxu0 0.0
        %4024 = vmatpush1.msra.mxu0 0.0
        %4025 = vmatprep.mubr.f32.mxu0 0.0
        %4026 = vmatmul.mubr.f32.gmra.mrb[0].mxu0 %v3856
        %v4027 = vpop.f32.mrb[0].mxu0
        %v4028 = vadd.f32 0.0, %v4027
        %v4029 = vpop.f32.mrb[0].mxu0
        %4030 = vmatprep.mubr.f32.mxu0 0.0
        %4031 = vmatmul.mubr.f32.gmra.mrb[0].mxu0 %v3859
        %v4032 = vpop.f32.mrb[0].mxu0
        %v4033 = vadd.f32 0.0, %v4032
        %v4034 = vpop.f32.mrb[0].mxu0
        %4035 = vmatprep.mubr.f32.mxu0 0.0
        %4036 = vmatmul.mubr.f32.gmra.mrb[0].mxu0 %v3862
        %v4037 = vpop.f32.mrb[0].mxu0
        %v4038 = vadd.f32 0.0, %v4037
        %v4039 = vpop.f32.mrb[0].mxu0
        %4040 = vmatprep.mubr.f32.mxu0 0.0
        %4041 = vmatmul.mubr.f32.gmra.mrb[0].mxu0 %v3865
        %v4042 = vpop.f32.mrb[0].mxu0
        %v4043 = vadd.f32 0.0, %v4042
        %v4044 = vpop.f32.mrb[0].mxu0
        %4045 = vdwg.mxu0
        %v4046 = vmax.f32 %v3934, %v4028
        %v4047 = vmax.f32 %v3939, %v4033
        %v4048 = vmax.f32 %v3944, %v4038
        %v4049 = vmax.f32 %v3949, %v4043
        %s4050 = scalar_lea.vmem %s8, 128
        %v4051 = vld [vmem:[%s4050] sm:$0xff]
        %v4052 = vld [vmem:[%s4050 + $0x8] sm:$0xff]
        %v4053 = vld [vmem:[%s4050 + $0x10] sm:$0xff]
        %v4054 = vld [vmem:[%s4050 + $0x18] sm:$0xff]
        %v4055 = vld [vmem:[%s4050 + $0x20] sm:$0xff]
        %v4056 = vld [vmem:[%s4050 + $0x28] sm:$0xff]
        %v4057 = vld [vmem:[%s4050 + $0x30] sm:$0xff]
        %v4058 = vld [vmem:[%s4050 + $0x38] sm:$0xff]
        %4059 = vmatprep.subr.mxu0 0.0
        %4060 = vmatpush1.msra.mxu0 %v4051
        %4061 = vmatprep.subr.mxu0 0.0
        %4062 = vmatpush1.msra.mxu0 %v4052
        %4063 = vmatprep.subr.mxu0 0.0
        %4064 = vmatpush1.msra.mxu0 %v4053
        %4065 = vmatprep.subr.mxu0 0.0
        %4066 = vmatpush1.msra.mxu0 %v4054
        %4067 = vmatprep.subr.mxu0 0.0
        %4068 = vmatpush1.msra.mxu0 %v4055
        %4069 = vmatprep.subr.mxu0 0.0
        %4070 = vmatpush1.msra.mxu0 %v4056
        %4071 = vmatprep.subr.mxu0 0.0
        %4072 = vmatpush1.msra.mxu0 %v4057
        %4073 = vmatprep.subr.mxu0 0.0
        %4074 = vmatpush1.msra.mxu0 %v4058
        %4075 = vmatprep.subr.mxu0 0.0
        %4076 = vmatpush1.msra.mxu0 0.0
        %4077 = vmatprep.subr.mxu0 0.0
        %4078 = vmatpush1.msra.mxu0 0.0
        %4079 = vmatprep.subr.mxu0 0.0
        %4080 = vmatpush1.msra.mxu0 0.0
        %4081 = vmatprep.subr.mxu0 0.0
        %4082 = vmatpush1.msra.mxu0 0.0
        %4083 = vmatprep.subr.mxu0 0.0
        %4084 = vmatpush1.msra.mxu0 0.0
        %4085 = vmatprep.subr.mxu0 0.0
        %4086 = vmatpush1.msra.mxu0 0.0
        %4087 = vmatprep.subr.mxu0 0.0
        %4088 = vmatpush1.msra.mxu0 0.0
        %4089 = vmatprep.subr.mxu0 0.0
        %4090 = vmatpush1.msra.mxu0 0.0
        %4091 = vmatprep.subr.mxu0 0.0
        %4092 = vmatpush1.msra.mxu0 0.0
        %4093 = vmatprep.subr.mxu0 0.0
        %4094 = vmatpush1.msra.mxu0 0.0
        %4095 = vmatprep.subr.mxu0 0.0
        %4096 = vmatpush1.msra.mxu0 0.0
        %4097 = vmatprep.subr.mxu0 0.0
        %4098 = vmatpush1.msra.mxu0 0.0
        %4099 = vmatprep.subr.mxu0 0.0
        %4100 = vmatpush1.msra.mxu0 0.0
        %4101 = vmatprep.subr.mxu0 0.0
        %4102 = vmatpush1.msra.mxu0 0.0
        %4103 = vmatprep.subr.mxu0 0.0
        %4104 = vmatpush1.msra.mxu0 0.0
        %4105 = vmatprep.subr.mxu0 0.0
        %4106 = vmatpush1.msra.mxu0 0.0
        %4107 = vmatprep.subr.mxu0 0.0
        %4108 = vmatpush1.msra.mxu0 0.0
        %4109 = vmatprep.subr.mxu0 0.0
        %4110 = vmatpush1.msra.mxu0 0.0
        %4111 = vmatprep.subr.mxu0 0.0
        %4112 = vmatpush1.msra.mxu0 0.0
        %4113 = vmatprep.subr.mxu0 0.0
        %4114 = vmatpush1.msra.mxu0 0.0
        %4115 = vmatprep.subr.mxu0 0.0
        %4116 = vmatpush1.msra.mxu0 0.0
        %4117 = vmatprep.subr.mxu0 0.0
        %4118 = vmatpush1.msra.mxu0 0.0
        %4119 = vmatprep.subr.mxu0 0.0
        %4120 = vmatpush1.msra.mxu0 0.0
        %4121 = vmatprep.subr.mxu0 0.0
        %4122 = vmatpush1.msra.mxu0 0.0
        %4123 = vmatprep.mubr.f32.mxu0 0.0
        %4124 = vmatmul.mubr.f32.gmra.mrb[0].mxu0 %v3856
        %v4125 = vpop.f32.mrb[0].mxu0
        %v4126 = vadd.f32 0.0, %v4125
        %v4127 = vpop.f32.mrb[0].mxu0
        %4128 = vmatprep.mubr.f32.mxu0 0.0
        %4129 = vmatmul.mubr.f32.gmra.mrb[0].mxu0 %v3859
        %v4130 = vpop.f32.mrb[0].mxu0
        %v4131 = vadd.f32 0.0, %v4130
        %v4132 = vpop.f32.mrb[0].mxu0
        %4133 = vmatprep.mubr.f32.mxu0 0.0
        %4134 = vmatmul.mubr.f32.gmra.mrb[0].mxu0 %v3862
        %v4135 = vpop.f32.mrb[0].mxu0
        %v4136 = vadd.f32 0.0, %v4135
        %v4137 = vpop.f32.mrb[0].mxu0
        %4138 = vmatprep.mubr.f32.mxu0 0.0
        %4139 = vmatmul.mubr.f32.gmra.mrb[0].mxu0 %v3865
        %v4140 = vpop.f32.mrb[0].mxu0
        %v4141 = vadd.f32 0.0, %v4140
        %v4142 = vpop.f32.mrb[0].mxu0
        %4143 = vdwg.mxu0
        %v4144 = vmax.f32 %v4046, %v4126
        %v4145 = vmax.f32 %v4047, %v4131
        %v4146 = vmax.f32 %v4048, %v4136
        %v4147 = vmax.f32 %v4049, %v4141
        %s4148 = scalar_lea.vmem %s8, 192
        %v4149 = vld [vmem:[%s4148] sm:$0xff]
        %v4150 = vld [vmem:[%s4148 + $0x8] sm:$0xff]
        %v4151 = vld [vmem:[%s4148 + $0x10] sm:$0xff]
        %v4152 = vld [vmem:[%s4148 + $0x18] sm:$0xff]
        %v4153 = vld [vmem:[%s4148 + $0x20] sm:$0xff]
        %v4154 = vld [vmem:[%s4148 + $0x28] sm:$0xff]
        %v4155 = vld [vmem:[%s4148 + $0x30] sm:$0xff]
        %v4156 = vld [vmem:[%s4148 + $0x38] sm:$0xff]
        %4157 = vmatprep.subr.mxu0 0.0
        %4158 = vmatpush1.msra.mxu0 %v4149
        %4159 = vmatprep.subr.mxu0 0.0
        %4160 = vmatpush1.msra.mxu0 %v4150
        %4161 = vmatprep.subr.mxu0 0.0
        %4162 = vmatpush1.msra.mxu0 %v4151
        %4163 = vmatprep.subr.mxu0 0.0
        %4164 = vmatpush1.msra.mxu0 %v4152
        %4165 = vmatprep.subr.mxu0 0.0
        %4166 = vmatpush1.msra.mxu0 %v4153
        %4167 = vmatprep.subr.mxu0 0.0
        %4168 = vmatpush1.msra.mxu0 %v4154
        %4169 = vmatprep.subr.mxu0 0.0
        %4170 = vmatpush1.msra.mxu0 %v4155
        %4171 = vmatprep.subr.mxu0 0.0
        %4172 = vmatpush1.msra.mxu0 %v4156
        %4173 = vmatprep.subr.mxu0 0.0
        %4174 = vmatpush1.msra.mxu0 0.0
        %4175 = vmatprep.subr.mxu0 0.0
        %4176 = vmatpush1.msra.mxu0 0.0
        %4177 = vmatprep.subr.mxu0 0.0
        %4178 = vmatpush1.msra.mxu0 0.0
        %4179 = vmatprep.subr.mxu0 0.0
        %4180 = vmatpush1.msra.mxu0 0.0
        %4181 = vmatprep.subr.mxu0 0.0
        %4182 = vmatpush1.msra.mxu0 0.0
        %4183 = vmatprep.subr.mxu0 0.0
        %4184 = vmatpush1.msra.mxu0 0.0
        %4185 = vmatprep.subr.mxu0 0.0
        %4186 = vmatpush1.msra.mxu0 0.0
        %4187 = vmatprep.subr.mxu0 0.0
        %4188 = vmatpush1.msra.mxu0 0.0
        %4189 = vmatprep.subr.mxu0 0.0
        %4190 = vmatpush1.msra.mxu0 0.0
        %4191 = vmatprep.subr.mxu0 0.0
        %4192 = vmatpush1.msra.mxu0 0.0
        %4193 = vmatprep.subr.mxu0 0.0
        %4194 = vmatpush1.msra.mxu0 0.0
        %4195 = vmatprep.subr.mxu0 0.0
        %4196 = vmatpush1.msra.mxu0 0.0
        %4197 = vmatprep.subr.mxu0 0.0
        %4198 = vmatpush1.msra.mxu0 0.0
        %4199 = vmatprep.subr.mxu0 0.0
        %4200 = vmatpush1.msra.mxu0 0.0
        %4201 = vmatprep.subr.mxu0 0.0
        %4202 = vmatpush1.msra.mxu0 0.0
        %4203 = vmatprep.subr.mxu0 0.0
        %4204 = vmatpush1.msra.mxu0 0.0
        %4205 = vmatprep.subr.mxu0 0.0
        %4206 = vmatpush1.msra.mxu0 0.0
        %4207 = vmatprep.subr.mxu0 0.0
        %4208 = vmatpush1.msra.mxu0 0.0
        %4209 = vmatprep.subr.mxu0 0.0
        %4210 = vmatpush1.msra.mxu0 0.0
        %4211 = vmatprep.subr.mxu0 0.0
        %4212 = vmatpush1.msra.mxu0 0.0
        %4213 = vmatprep.subr.mxu0 0.0
        %4214 = vmatpush1.msra.mxu0 0.0
        %4215 = vmatprep.subr.mxu0 0.0
        %4216 = vmatpush1.msra.mxu0 0.0
        %4217 = vmatprep.subr.mxu0 0.0
        %4218 = vmatpush1.msra.mxu0 0.0
        %4219 = vmatprep.subr.mxu0 0.0
        %4220 = vmatpush1.msra.mxu0 0.0
        %4221 = vmatprep.mubr.f32.mxu0 0.0
        %4222 = vmatmul.mubr.f32.gmra.mrb[0].mxu0 %v3856
        %v4223 = vpop.f32.mrb[0].mxu0
        %v4224 = vadd.f32 0.0, %v4223
        %v4225 = vpop.f32.mrb[0].mxu0
        %4226 = vmatprep.mubr.f32.mxu0 0.0
        %4227 = vmatmul.mubr.f32.gmra.mrb[0].mxu0 %v3859
        %v4228 = vpop.f32.mrb[0].mxu0
        %v4229 = vadd.f32 0.0, %v4228
        %v4230 = vpop.f32.mrb[0].mxu0
        %4231 = vmatprep.mubr.f32.mxu0 0.0
        %4232 = vmatmul.mubr.f32.gmra.mrb[0].mxu0 %v3862
        %v4233 = vpop.f32.mrb[0].mxu0
        %v4234 = vadd.f32 0.0, %v4233
        %v4235 = vpop.f32.mrb[0].mxu0
        %4236 = vmatprep.mubr.f32.mxu0 0.0
        %4237 = vmatmul.mubr.f32.gmra.mrb[0].mxu0 %v3865
        %v4238 = vpop.f32.mrb[0].mxu0
        %v4239 = vadd.f32 0.0, %v4238
        %v4240 = vpop.f32.mrb[0].mxu0
        %4241 = vdwg.mxu0
        %v4242 = vmax.f32 %v4144, %v4224
        %v4243 = vmax.f32 %v4145, %v4229
        %v4244 = vmax.f32 %v4146, %v4234
        %v4245 = vmax.f32 %v4147, %v4239
        %v4246 = vld [vmem:[#allocation12] sm:$0xff]
        %v4247 = vld [vmem:[#allocation12 + $0x8] sm:$0xff]
        %v4248 = vld [vmem:[#allocation12 + $0x10] sm:$0xff]
        %v4249 = vld [vmem:[#allocation12 + $0x18] sm:$0xff]
        %v4250 = vld [vmem:[#allocation12 + $0x20] sm:$0xff]
        %v4251 = vld [vmem:[#allocation12 + $0x28] sm:$0xff]
        %v4252 = vld [vmem:[#allocation12 + $0x30] sm:$0xff]
        %v4253 = vld [vmem:[#allocation12 + $0x38] sm:$0xff]
        %v4254 = vld [vmem:[#allocation12 + $0x40] sm:$0xff]
        %v4255 = vld [vmem:[#allocation12 + $0x48] sm:$0xff]
        %v4256 = vld [vmem:[#allocation12 + $0x50] sm:$0xff]
        %v4257 = vld [vmem:[#allocation12 + $0x58] sm:$0xff]
        %v4258 = vld [vmem:[#allocation12 + $0x60] sm:$0xff]
        %v4259 = vld [vmem:[#allocation12 + $0x68] sm:$0xff]
        %v4260 = vld [vmem:[#allocation12 + $0x70] sm:$0xff]
        %v4261 = vld [vmem:[#allocation12 + $0x78] sm:$0xff]
        %vm4262 = vcmask 261120
        %v4264 = vsel %vm4262, %v4246, 0
        %v4267 = vsel %vm4262, %v4247, 0
        %v4270 = vsel %vm4262, %v4248, 0
        %v4273 = vsel %vm4262, %v4249, 0
        %v4276 = vsel %vm4262, %v4250, 0
        %v4279 = vsel %vm4262, %v4251, 0
        %v4282 = vsel %vm4262, %v4252, 0
        %v4285 = vsel %vm4262, %v4253, 0
        %v4288 = vsel %vm4262, %v4254, 0
        %v4291 = vsel %vm4262, %v4255, 0
        %v4294 = vsel %vm4262, %v4256, 0
        %v4297 = vsel %vm4262, %v4257, 0
        %v4300 = vsel %vm4262, %v4258, 0
        %v4303 = vsel %vm4262, %v4259, 0
        %v4306 = vsel %vm4262, %v4260, 0
        %v4309 = vsel %vm4262, %v4261, 0
        %4311 = vmatprep.subr.mxu0 0.0
        %4312 = vmatpush1.msra.mxu0 %v4242
        %4313 = vmatprep.subr.mxu0 0.0
        %4314 = vmatpush1.msra.mxu0 %v4243
        %4315 = vmatprep.subr.mxu0 0.0
        %4316 = vmatpush1.msra.mxu0 %v4244
        %4317 = vmatprep.subr.mxu0 0.0
        %4318 = vmatpush1.msra.mxu0 %v4245
        %4319 = vmatprep.subr.mxu0 0.0
        %4320 = vmatpush1.msra.mxu0 0.0
        %4321 = vmatprep.subr.mxu0 0.0
        %4322 = vmatpush1.msra.mxu0 0.0
        %4323 = vmatprep.subr.mxu0 0.0
        %4324 = vmatpush1.msra.mxu0 0.0
        %4325 = vmatprep.subr.mxu0 0.0
        %4326 = vmatpush1.msra.mxu0 0.0
        %4327 = vmatprep.subr.mxu0 0.0
        %4328 = vmatpush1.msra.mxu0 0.0
        %4329 = vmatprep.subr.mxu0 0.0
        %4330 = vmatpush1.msra.mxu0 0.0
        %4331 = vmatprep.subr.mxu0 0.0
        %4332 = vmatpush1.msra.mxu0 0.0
        %4333 = vmatprep.subr.mxu0 0.0
        %4334 = vmatpush1.msra.mxu0 0.0
        %4335 = vmatprep.subr.mxu0 0.0
        %4336 = vmatpush1.msra.mxu0 0.0
        %4337 = vmatprep.subr.mxu0 0.0
        %4338 = vmatpush1.msra.mxu0 0.0
        %4339 = vmatprep.subr.mxu0 0.0
        %4340 = vmatpush1.msra.mxu0 0.0
        %4341 = vmatprep.subr.mxu0 0.0
        %4342 = vmatpush1.msra.mxu0 0.0
        %4343 = vmatprep.subr.mxu0 0.0
        %4344 = vmatpush1.msra.mxu0 0.0
        %4345 = vmatprep.subr.mxu0 0.0
        %4346 = vmatpush1.msra.mxu0 0.0
        %4347 = vmatprep.subr.mxu0 0.0
        %4348 = vmatpush1.msra.mxu0 0.0
        %4349 = vmatprep.subr.mxu0 0.0
        %4350 = vmatpush1.msra.mxu0 0.0
        %4351 = vmatprep.subr.mxu0 0.0
        %4352 = vmatpush1.msra.mxu0 0.0
        %4353 = vmatprep.subr.mxu0 0.0
        %4354 = vmatpush1.msra.mxu0 0.0
        %4355 = vmatprep.subr.mxu0 0.0
        %4356 = vmatpush1.msra.mxu0 0.0
        %4357 = vmatprep.subr.mxu0 0.0
        %4358 = vmatpush1.msra.mxu0 0.0
        %4359 = vmatprep.subr.mxu0 0.0
        %4360 = vmatpush1.msra.mxu0 0.0
        %4361 = vmatprep.subr.mxu0 0.0
        %4362 = vmatpush1.msra.mxu0 0.0
        %4363 = vmatprep.subr.mxu0 0.0
        %4364 = vmatpush1.msra.mxu0 0.0
        %4365 = vmatprep.subr.mxu0 0.0
        %4366 = vmatpush1.msra.mxu0 0.0
        %4367 = vmatprep.subr.mxu0 0.0
        %4368 = vmatpush1.msra.mxu0 0.0
        %4369 = vmatprep.subr.mxu0 0.0
        %4370 = vmatpush1.msra.mxu0 0.0
        %4371 = vmatprep.subr.mxu0 0.0
        %4372 = vmatpush1.msra.mxu0 0.0
        %4373 = vmatprep.subr.mxu0 0.0
        %4374 = vmatpush1.msra.mxu0 0.0
        %4375 = vmatprep.mubr.f32.mxu0 0.0
        %4376 = vmatmul.mubr.f32.gmra.mrb[0].mxu0 %v4264
        %v4377 = vpop.f32.mrb[0].mxu0
        %v4378 = vadd.f32 0.0, %v4377
        %v4379 = vpop.f32.mrb[0].mxu0
        %4380 = vmatprep.mubr.f32.mxu0 0.0
        %4381 = vmatmul.mubr.f32.gmra.mrb[0].mxu0 %v4267
        %v4382 = vpop.f32.mrb[0].mxu0
        %v4383 = vadd.f32 0.0, %v4382
        %v4384 = vpop.f32.mrb[0].mxu0
        %4385 = vmatprep.mubr.f32.mxu0 0.0
        %4386 = vmatmul.mubr.f32.gmra.mrb[0].mxu0 %v4270
        %v4387 = vpop.f32.mrb[0].mxu0
        %v4388 = vadd.f32 0.0, %v4387
        %v4389 = vpop.f32.mrb[0].mxu0
        %4390 = vmatprep.mubr.f32.mxu0 0.0
        %4391 = vmatmul.mubr.f32.gmra.mrb[0].mxu0 %v4273
        %v4392 = vpop.f32.mrb[0].mxu0
        %v4393 = vadd.f32 0.0, %v4392
        %v4394 = vpop.f32.mrb[0].mxu0
        %4395 = vmatprep.mubr.f32.mxu0 0.0
        %4396 = vmatmul.mubr.f32.gmra.mrb[0].mxu0 %v4276
        %v4397 = vpop.f32.mrb[0].mxu0
        %v4398 = vadd.f32 0.0, %v4397
        %v4399 = vpop.f32.mrb[0].mxu0
        %4400 = vmatprep.mubr.f32.mxu0 0.0
        %4401 = vmatmul.mubr.f32.gmra.mrb[0].mxu0 %v4279
        %v4402 = vpop.f32.mrb[0].mxu0
        %v4403 = vadd.f32 0.0, %v4402
        %v4404 = vpop.f32.mrb[0].mxu0
        %4405 = vmatprep.mubr.f32.mxu0 0.0
        %4406 = vmatmul.mubr.f32.gmra.mrb[0].mxu0 %v4282
        %v4407 = vpop.f32.mrb[0].mxu0
        %v4408 = vadd.f32 0.0, %v4407
        %v4409 = vpop.f32.mrb[0].mxu0
        %4410 = vmatprep.mubr.f32.mxu0 0.0
        %4411 = vmatmul.mubr.f32.gmra.mrb[0].mxu0 %v4285
        %v4412 = vpop.f32.mrb[0].mxu0
        %v4413 = vadd.f32 0.0, %v4412
        %v4414 = vpop.f32.mrb[0].mxu0
        %4415 = vmatprep.mubr.f32.mxu0 0.0
        %4416 = vmatmul.mubr.f32.gmra.mrb[0].mxu0 %v4288
        %v4417 = vpop.f32.mrb[0].mxu0
        %v4418 = vadd.f32 0.0, %v4417
        %v4419 = vpop.f32.mrb[0].mxu0
        %4420 = vmatprep.mubr.f32.mxu0 0.0
        %4421 = vmatmul.mubr.f32.gmra.mrb[0].mxu0 %v4291
        %v4422 = vpop.f32.mrb[0].mxu0
        %v4423 = vadd.f32 0.0, %v4422
        %v4424 = vpop.f32.mrb[0].mxu0
        %4425 = vmatprep.mubr.f32.mxu0 0.0
        %4426 = vmatmul.mubr.f32.gmra.mrb[0].mxu0 %v4294
        %v4427 = vpop.f32.mrb[0].mxu0
        %v4428 = vadd.f32 0.0, %v4427
        %v4429 = vpop.f32.mrb[0].mxu0
        %4430 = vmatprep.mubr.f32.mxu0 0.0
        %4431 = vmatmul.mubr.f32.gmra.mrb[0].mxu0 %v4297
        %v4432 = vpop.f32.mrb[0].mxu0
        %v4433 = vadd.f32 0.0, %v4432
        %v4434 = vpop.f32.mrb[0].mxu0
        %4435 = vmatprep.mubr.f32.mxu0 0.0
        %4436 = vmatmul.mubr.f32.gmra.mrb[0].mxu0 %v4300
        %v4437 = vpop.f32.mrb[0].mxu0
        %v4438 = vadd.f32 0.0, %v4437
        %v4439 = vpop.f32.mrb[0].mxu0
        %4440 = vmatprep.mubr.f32.mxu0 0.0
        %4441 = vmatmul.mubr.f32.gmra.mrb[0].mxu0 %v4303
        %v4442 = vpop.f32.mrb[0].mxu0
        %v4443 = vadd.f32 0.0, %v4442
        %v4444 = vpop.f32.mrb[0].mxu0
        %4445 = vmatprep.mubr.f32.mxu0 0.0
        %4446 = vmatmul.mubr.f32.gmra.mrb[0].mxu0 %v4306
        %v4447 = vpop.f32.mrb[0].mxu0
        %v4448 = vadd.f32 0.0, %v4447
        %v4449 = vpop.f32.mrb[0].mxu0
        %4450 = vmatprep.mubr.f32.mxu0 0.0
        %4451 = vmatmul.mubr.f32.gmra.mrb[0].mxu0 %v4309
        %v4452 = vpop.f32.mrb[0].mxu0
        %v4453 = vadd.f32 0.0, %v4452
        %v4454 = vpop.f32.mrb[0].mxu0
        %4455 = vdwg.mxu0
        %v4456 = vld [vmem:[#allocation13] sm:$0xff]
        %v4457 = vld [vmem:[#allocation13 + $0x8] sm:$0xff]
        %s4458 = scalar_lea.vmem [#allocation12], 128
        %v4459 = vld [vmem:[%s4458] sm:$0xff]
        %v4460 = vld [vmem:[%s4458 + $0x8] sm:$0xff]
        %v4461 = vld [vmem:[%s4458 + $0x10] sm:$0xff]
        %v4462 = vld [vmem:[%s4458 + $0x18] sm:$0xff]
        %v4463 = vld [vmem:[%s4458 + $0x20] sm:$0xff]
        %v4464 = vld [vmem:[%s4458 + $0x28] sm:$0xff]
        %v4465 = vld [vmem:[%s4458 + $0x30] sm:$0xff]
        %v4466 = vld [vmem:[%s4458 + $0x38] sm:$0xff]
        %v4467 = vld [vmem:[%s4458 + $0x40] sm:$0xff]
        %v4468 = vld [vmem:[%s4458 + $0x48] sm:$0xff]
        %v4469 = vld [vmem:[%s4458 + $0x50] sm:$0xff]
        %v4470 = vld [vmem:[%s4458 + $0x58] sm:$0xff]
        %v4471 = vld [vmem:[%s4458 + $0x60] sm:$0xff]
        %v4472 = vld [vmem:[%s4458 + $0x68] sm:$0xff]
        %v4473 = vld [vmem:[%s4458 + $0x70] sm:$0xff]
        %v4474 = vld [vmem:[%s4458 + $0x78] sm:$0xff]
        %v4476 = vsel %vm4262, %v4459, 0
        %v4479 = vsel %vm4262, %v4460, 0
        %v4482 = vsel %vm4262, %v4461, 0
        %v4485 = vsel %vm4262, %v4462, 0
        %v4488 = vsel %vm4262, %v4463, 0
        %v4491 = vsel %vm4262, %v4464, 0
        %v4494 = vsel %vm4262, %v4465, 0
        %v4497 = vsel %vm4262, %v4466, 0
        %v4500 = vsel %vm4262, %v4467, 0
        %v4503 = vsel %vm4262, %v4468, 0
        %v4506 = vsel %vm4262, %v4469, 0
        %v4509 = vsel %vm4262, %v4470, 0
        %v4512 = vsel %vm4262, %v4471, 0
        %v4515 = vsel %vm4262, %v4472, 0
        %v4518 = vsel %vm4262, %v4473, 0
        %v4521 = vsel %vm4262, %v4474, 0
        %4523 = vmatprep.subr.mxu0 0.0
        %4524 = vmatpush1.msra.mxu0 %v4242
        %4525 = vmatprep.subr.mxu0 0.0
        %4526 = vmatpush1.msra.mxu0 %v4243
        %4527 = vmatprep.subr.mxu0 0.0
        %4528 = vmatpush1.msra.mxu0 %v4244
        %4529 = vmatprep.subr.mxu0 0.0
        %4530 = vmatpush1.msra.mxu0 %v4245
        %4531 = vmatprep.subr.mxu0 0.0
        %4532 = vmatpush1.msra.mxu0 0.0
        %4533 = vmatprep.subr.mxu0 0.0
        %4534 = vmatpush1.msra.mxu0 0.0
        %4535 = vmatprep.subr.mxu0 0.0
        %4536 = vmatpush1.msra.mxu0 0.0
        %4537 = vmatprep.subr.mxu0 0.0
        %4538 = vmatpush1.msra.mxu0 0.0
        %4539 = vmatprep.subr.mxu0 0.0
        %4540 = vmatpush1.msra.mxu0 0.0
        %4541 = vmatprep.subr.mxu0 0.0
        %4542 = vmatpush1.msra.mxu0 0.0
        %4543 = vmatprep.subr.mxu0 0.0
        %4544 = vmatpush1.msra.mxu0 0.0
        %4545 = vmatprep.subr.mxu0 0.0
        %4546 = vmatpush1.msra.mxu0 0.0
        %4547 = vmatprep.subr.mxu0 0.0
        %4548 = vmatpush1.msra.mxu0 0.0
        %4549 = vmatprep.subr.mxu0 0.0
        %4550 = vmatpush1.msra.mxu0 0.0
        %4551 = vmatprep.subr.mxu0 0.0
        %4552 = vmatpush1.msra.mxu0 0.0
        %4553 = vmatprep.subr.mxu0 0.0
        %4554 = vmatpush1.msra.mxu0 0.0
        %4555 = vmatprep.subr.mxu0 0.0
        %4556 = vmatpush1.msra.mxu0 0.0
        %4557 = vmatprep.subr.mxu0 0.0
        %4558 = vmatpush1.msra.mxu0 0.0
        %4559 = vmatprep.subr.mxu0 0.0
        %4560 = vmatpush1.msra.mxu0 0.0
        %4561 = vmatprep.subr.mxu0 0.0
        %4562 = vmatpush1.msra.mxu0 0.0
        %4563 = vmatprep.subr.mxu0 0.0
        %4564 = vmatpush1.msra.mxu0 0.0
        %4565 = vmatprep.subr.mxu0 0.0
        %4566 = vmatpush1.msra.mxu0 0.0
        %4567 = vmatprep.subr.mxu0 0.0
        %4568 = vmatpush1.msra.mxu0 0.0
        %4569 = vmatprep.subr.mxu0 0.0
        %4570 = vmatpush1.msra.mxu0 0.0
        %4571 = vmatprep.subr.mxu0 0.0
        %4572 = vmatpush1.msra.mxu0 0.0
        %4573 = vmatprep.subr.mxu0 0.0
        %4574 = vmatpush1.msra.mxu0 0.0
        %4575 = vmatprep.subr.mxu0 0.0
        %4576 = vmatpush1.msra.mxu0 0.0
        %4577 = vmatprep.subr.mxu0 0.0
        %4578 = vmatpush1.msra.mxu0 0.0
        %4579 = vmatprep.subr.mxu0 0.0
        %4580 = vmatpush1.msra.mxu0 0.0
        %4581 = vmatprep.subr.mxu0 0.0
        %4582 = vmatpush1.msra.mxu0 0.0
        %4583 = vmatprep.subr.mxu0 0.0
        %4584 = vmatpush1.msra.mxu0 0.0
        %4585 = vmatprep.subr.mxu0 0.0
        %4586 = vmatpush1.msra.mxu0 0.0
        %4587 = vmatprep.mubr.f32.mxu0 0.0
        %4588 = vmatmul.mubr.f32.gmra.mrb[0].mxu0 %v4476
        %v4589 = vpop.f32.mrb[0].mxu0
        %v4590 = vadd.f32 0.0, %v4589
        %v4591 = vpop.f32.mrb[0].mxu0
        %4592 = vmatprep.mubr.f32.mxu0 0.0
        %4593 = vmatmul.mubr.f32.gmra.mrb[0].mxu0 %v4479
        %v4594 = vpop.f32.mrb[0].mxu0
        %v4595 = vadd.f32 0.0, %v4594
        %v4596 = vpop.f32.mrb[0].mxu0
        %4597 = vmatprep.mubr.f32.mxu0 0.0
        %4598 = vmatmul.mubr.f32.gmra.mrb[0].mxu0 %v4482
        %v4599 = vpop.f32.mrb[0].mxu0
        %v4600 = vadd.f32 0.0, %v4599
        %v4601 = vpop.f32.mrb[0].mxu0
        %4602 = vmatprep.mubr.f32.mxu0 0.0
        %4603 = vmatmul.mubr.f32.gmra.mrb[0].mxu0 %v4485
        %v4604 = vpop.f32.mrb[0].mxu0
        %v4605 = vadd.f32 0.0, %v4604
        %v4606 = vpop.f32.mrb[0].mxu0
        %4607 = vmatprep.mubr.f32.mxu0 0.0
        %4608 = vmatmul.mubr.f32.gmra.mrb[0].mxu0 %v4488
        %v4609 = vpop.f32.mrb[0].mxu0
        %v4610 = vadd.f32 0.0, %v4609
        %v4611 = vpop.f32.mrb[0].mxu0
        %4612 = vmatprep.mubr.f32.mxu0 0.0
        %4613 = vmatmul.mubr.f32.gmra.mrb[0].mxu0 %v4491
        %v4614 = vpop.f32.mrb[0].mxu0
        %v4615 = vadd.f32 0.0, %v4614
        %v4616 = vpop.f32.mrb[0].mxu0
        %4617 = vmatprep.mubr.f32.mxu0 0.0
        %4618 = vmatmul.mubr.f32.gmra.mrb[0].mxu0 %v4494
        %v4619 = vpop.f32.mrb[0].mxu0
        %v4620 = vadd.f32 0.0, %v4619
        %v4621 = vpop.f32.mrb[0].mxu0
        %4622 = vmatprep.mubr.f32.mxu0 0.0
        %4623 = vmatmul.mubr.f32.gmra.mrb[0].mxu0 %v4497
        %v4624 = vpop.f32.mrb[0].mxu0
        %v4625 = vadd.f32 0.0, %v4624
        %v4626 = vpop.f32.mrb[0].mxu0
        %4627 = vmatprep.mubr.f32.mxu0 0.0
        %4628 = vmatmul.mubr.f32.gmra.mrb[0].mxu0 %v4500
        %v4629 = vpop.f32.mrb[0].mxu0
        %v4630 = vadd.f32 0.0, %v4629
        %v4631 = vpop.f32.mrb[0].mxu0
        %4632 = vmatprep.mubr.f32.mxu0 0.0
        %4633 = vmatmul.mubr.f32.gmra.mrb[0].mxu0 %v4503
        %v4634 = vpop.f32.mrb[0].mxu0
        %v4635 = vadd.f32 0.0, %v4634
        %v4636 = vpop.f32.mrb[0].mxu0
        %4637 = vmatprep.mubr.f32.mxu0 0.0
        %4638 = vmatmul.mubr.f32.gmra.mrb[0].mxu0 %v4506
        %v4639 = vpop.f32.mrb[0].mxu0
        %v4640 = vadd.f32 0.0, %v4639
        %v4641 = vpop.f32.mrb[0].mxu0
        %4642 = vmatprep.mubr.f32.mxu0 0.0
        %4643 = vmatmul.mubr.f32.gmra.mrb[0].mxu0 %v4509
        %v4644 = vpop.f32.mrb[0].mxu0
        %v4645 = vadd.f32 0.0, %v4644
        %v4646 = vpop.f32.mrb[0].mxu0
        %4647 = vmatprep.mubr.f32.mxu0 0.0
        %4648 = vmatmul.mubr.f32.gmra.mrb[0].mxu0 %v4512
        %v4649 = vpop.f32.mrb[0].mxu0
        %v4650 = vadd.f32 0.0, %v4649
        %v4651 = vpop.f32.mrb[0].mxu0
        %4652 = vmatprep.mubr.f32.mxu0 0.0
        %4653 = vmatmul.mubr.f32.gmra.mrb[0].mxu0 %v4515
        %v4654 = vpop.f32.mrb[0].mxu0
        %v4655 = vadd.f32 0.0, %v4654
        %v4656 = vpop.f32.mrb[0].mxu0
        %4657 = vmatprep.mubr.f32.mxu0 0.0
        %4658 = vmatmul.mubr.f32.gmra.mrb[0].mxu0 %v4518
        %v4659 = vpop.f32.mrb[0].mxu0
        %v4660 = vadd.f32 0.0, %v4659
        %v4661 = vpop.f32.mrb[0].mxu0
        %4662 = vmatprep.mubr.f32.mxu0 0.0
        %4663 = vmatmul.mubr.f32.gmra.mrb[0].mxu0 %v4521
        %v4664 = vpop.f32.mrb[0].mxu0
        %v4665 = vadd.f32 0.0, %v4664
        %v4666 = vpop.f32.mrb[0].mxu0
        %4667 = vdwg.mxu0
        %s4668 = scalar_lea.vmem [#allocation13], 16
        %v4669 = vld [vmem:[%s4668] sm:$0xff]
        %v4670 = vld [vmem:[%s4668 + $0x8] sm:$0xff]
        %vm4671 = vcmask 130048
        %v4673 = vsel %vm4671, %v4590, 0
        %v4676 = vsel %vm4671, %v4595, 0
        %v4679 = vsel %vm4671, %v4600, 0
        %v4682 = vsel %vm4671, %v4605, 0
        %v4685 = vsel %vm4671, %v4610, 0
        %v4688 = vsel %vm4671, %v4615, 0
        %v4691 = vsel %vm4671, %v4620, 0
        %v4694 = vsel %vm4671, %v4625, 0
        %v4697 = vsel %vm4671, %v4630, 0
        %v4700 = vsel %vm4671, %v4635, 0
        %v4703 = vsel %vm4671, %v4640, 0
        %v4706 = vsel %vm4671, %v4645, 0
        %v4709 = vsel %vm4671, %v4650, 0
        %v4712 = vsel %vm4671, %v4655, 0
        %v4715 = vsel %vm4671, %v4660, 0
        %v4718 = vsel %vm4671, %v4665, 0
        %4720 = vmatprep.subr.mxu0 0.0
        %4721 = vmatpush1.msra.mxu0 %v4669
        %4722 = vmatprep.subr.mxu0 0.0
        %4723 = vmatpush1.msra.mxu0 %v4670
        %4724 = vmatprep.subr.mxu0 0.0
        %4725 = vmatpush1.msra.mxu0 0.0
        %4726 = vmatprep.subr.mxu0 0.0
        %4727 = vmatpush1.msra.mxu0 0.0
        %4728 = vmatprep.subr.mxu0 0.0
        %4729 = vmatpush1.msra.mxu0 0.0
        %4730 = vmatprep.subr.mxu0 0.0
        %4731 = vmatpush1.msra.mxu0 0.0
        %4732 = vmatprep.subr.mxu0 0.0
        %4733 = vmatpush1.msra.mxu0 0.0
        %4734 = vmatprep.subr.mxu0 0.0
        %4735 = vmatpush1.msra.mxu0 0.0
        %4736 = vmatprep.subr.mxu0 0.0
        %4737 = vmatpush1.msra.mxu0 0.0
        %4738 = vmatprep.subr.mxu0 0.0
        %4739 = vmatpush1.msra.mxu0 0.0
        %4740 = vmatprep.subr.mxu0 0.0
        %4741 = vmatpush1.msra.mxu0 0.0
        %4742 = vmatprep.subr.mxu0 0.0
        %4743 = vmatpush1.msra.mxu0 0.0
        %4744 = vmatprep.subr.mxu0 0.0
        %4745 = vmatpush1.msra.mxu0 0.0
        %4746 = vmatprep.subr.mxu0 0.0
        %4747 = vmatpush1.msra.mxu0 0.0
        %4748 = vmatprep.subr.mxu0 0.0
        %4749 = vmatpush1.msra.mxu0 0.0
        %4750 = vmatprep.subr.mxu0 0.0
        %4751 = vmatpush1.msra.mxu0 0.0
        %4752 = vmatprep.subr.mxu0 0.0
        %4753 = vmatpush1.msra.mxu0 0.0
        %4754 = vmatprep.subr.mxu0 0.0
        %4755 = vmatpush1.msra.mxu0 0.0
        %4756 = vmatprep.subr.mxu0 0.0
        %4757 = vmatpush1.msra.mxu0 0.0
        %4758 = vmatprep.subr.mxu0 0.0
        %4759 = vmatpush1.msra.mxu0 0.0
        %4760 = vmatprep.subr.mxu0 0.0
        %4761 = vmatpush1.msra.mxu0 0.0
        %4762 = vmatprep.subr.mxu0 0.0
        %4763 = vmatpush1.msra.mxu0 0.0
        %4764 = vmatprep.subr.mxu0 0.0
        %4765 = vmatpush1.msra.mxu0 0.0
        %4766 = vmatprep.subr.mxu0 0.0
        %4767 = vmatpush1.msra.mxu0 0.0
        %4768 = vmatprep.subr.mxu0 0.0
        %4769 = vmatpush1.msra.mxu0 0.0
        %4770 = vmatprep.subr.mxu0 0.0
        %4771 = vmatpush1.msra.mxu0 0.0
        %4772 = vmatprep.subr.mxu0 0.0
        %4773 = vmatpush1.msra.mxu0 0.0
        %4774 = vmatprep.subr.mxu0 0.0
        %4775 = vmatpush1.msra.mxu0 0.0
        %4776 = vmatprep.subr.mxu0 0.0
        %4777 = vmatpush1.msra.mxu0 0.0
        %4778 = vmatprep.subr.mxu0 0.0
        %4779 = vmatpush1.msra.mxu0 0.0
        %4780 = vmatprep.subr.mxu0 0.0
        %4781 = vmatpush1.msra.mxu0 0.0
        %4782 = vmatprep.subr.mxu0 0.0
        %4783 = vmatpush1.msra.mxu0 0.0
        %4784 = vmatprep.mubr.f32.mxu0 0.0
        %4785 = vmatmul.mubr.f32.gmra.mrb[0].mxu0 %v4673
        %v4786 = vpop.f32.mrb[0].mxu0
        %v4787 = vadd.f32 0.0, %v4786
        %v4788 = vpop.f32.mrb[0].mxu0
        %4789 = vmatprep.mubr.f32.mxu0 0.0
        %4790 = vmatmul.mubr.f32.gmra.mrb[0].mxu0 %v4676
        %v4791 = vpop.f32.mrb[0].mxu0
        %v4792 = vadd.f32 0.0, %v4791
        %v4793 = vpop.f32.mrb[0].mxu0
        %4794 = vmatprep.mubr.f32.mxu0 0.0
        %4795 = vmatmul.mubr.f32.gmra.mrb[0].mxu0 %v4679
        %v4796 = vpop.f32.mrb[0].mxu0
        %v4797 = vadd.f32 0.0, %v4796
        %v4798 = vpop.f32.mrb[0].mxu0
        %4799 = vmatprep.mubr.f32.mxu0 0.0
        %4800 = vmatmul.mubr.f32.gmra.mrb[0].mxu0 %v4682
        %v4801 = vpop.f32.mrb[0].mxu0
        %v4802 = vadd.f32 0.0, %v4801
        %v4803 = vpop.f32.mrb[0].mxu0
        %4804 = vmatprep.mubr.f32.mxu0 0.0
        %4805 = vmatmul.mubr.f32.gmra.mrb[0].mxu0 %v4685
        %v4806 = vpop.f32.mrb[0].mxu0
        %v4807 = vadd.f32 0.0, %v4806
        %v4808 = vpop.f32.mrb[0].mxu0
        %4809 = vmatprep.mubr.f32.mxu0 0.0
        %4810 = vmatmul.mubr.f32.gmra.mrb[0].mxu0 %v4688
        %v4811 = vpop.f32.mrb[0].mxu0
        %v4812 = vadd.f32 0.0, %v4811
        %v4813 = vpop.f32.mrb[0].mxu0
        %4814 = vmatprep.mubr.f32.mxu0 0.0
        %4815 = vmatmul.mubr.f32.gmra.mrb[0].mxu0 %v4691
        %v4816 = vpop.f32.mrb[0].mxu0
        %v4817 = vadd.f32 0.0, %v4816
        %v4818 = vpop.f32.mrb[0].mxu0
        %4819 = vmatprep.mubr.f32.mxu0 0.0
        %4820 = vmatmul.mubr.f32.gmra.mrb[0].mxu0 %v4694
        %v4821 = vpop.f32.mrb[0].mxu0
        %v4822 = vadd.f32 0.0, %v4821
        %v4823 = vpop.f32.mrb[0].mxu0
        %4824 = vmatprep.mubr.f32.mxu0 0.0
        %4825 = vmatmul.mubr.f32.gmra.mrb[0].mxu0 %v4697
        %v4826 = vpop.f32.mrb[0].mxu0
        %v4827 = vadd.f32 0.0, %v4826
        %v4828 = vpop.f32.mrb[0].mxu0
        %4829 = vmatprep.mubr.f32.mxu0 0.0
        %4830 = vmatmul.mubr.f32.gmra.mrb[0].mxu0 %v4700
        %v4831 = vpop.f32.mrb[0].mxu0
        %v4832 = vadd.f32 0.0, %v4831
        %v4833 = vpop.f32.mrb[0].mxu0
        %4834 = vmatprep.mubr.f32.mxu0 0.0
        %4835 = vmatmul.mubr.f32.gmra.mrb[0].mxu0 %v4703
        %v4836 = vpop.f32.mrb[0].mxu0
        %v4837 = vadd.f32 0.0, %v4836
        %v4838 = vpop.f32.mrb[0].mxu0
        %4839 = vmatprep.mubr.f32.mxu0 0.0
        %4840 = vmatmul.mubr.f32.gmra.mrb[0].mxu0 %v4706
        %v4841 = vpop.f32.mrb[0].mxu0
        %v4842 = vadd.f32 0.0, %v4841
        %v4843 = vpop.f32.mrb[0].mxu0
        %4844 = vmatprep.mubr.f32.mxu0 0.0
        %4845 = vmatmul.mubr.f32.gmra.mrb[0].mxu0 %v4709
        %v4846 = vpop.f32.mrb[0].mxu0
        %v4847 = vadd.f32 0.0, %v4846
        %v4848 = vpop.f32.mrb[0].mxu0
        %4849 = vmatprep.mubr.f32.mxu0 0.0
        %4850 = vmatmul.mubr.f32.gmra.mrb[0].mxu0 %v4712
        %v4851 = vpop.f32.mrb[0].mxu0
        %v4852 = vadd.f32 0.0, %v4851
        %v4853 = vpop.f32.mrb[0].mxu0
        %4854 = vmatprep.mubr.f32.mxu0 0.0
        %4855 = vmatmul.mubr.f32.gmra.mrb[0].mxu0 %v4715
        %v4856 = vpop.f32.mrb[0].mxu0
        %v4857 = vadd.f32 0.0, %v4856
        %v4858 = vpop.f32.mrb[0].mxu0
        %4859 = vmatprep.mubr.f32.mxu0 0.0
        %4860 = vmatmul.mubr.f32.gmra.mrb[0].mxu0 %v4718
        %v4861 = vpop.f32.mrb[0].mxu0
        %v4862 = vadd.f32 0.0, %v4861
        %v4863 = vpop.f32.mrb[0].mxu0
        %4864 = vdwg.mxu0
        %v4866 = vsel %vm4671, %v4378, 0
        %v4869 = vsel %vm4671, %v4383, 0
        %v4872 = vsel %vm4671, %v4388, 0
        %v4875 = vsel %vm4671, %v4393, 0
        %v4878 = vsel %vm4671, %v4398, 0
        %v4881 = vsel %vm4671, %v4403, 0
        %v4884 = vsel %vm4671, %v4408, 0
        %v4887 = vsel %vm4671, %v4413, 0
        %v4890 = vsel %vm4671, %v4418, 0
        %v4893 = vsel %vm4671, %v4423, 0
        %v4896 = vsel %vm4671, %v4428, 0
        %v4899 = vsel %vm4671, %v4433, 0
        %v4902 = vsel %vm4671, %v4438, 0
        %v4905 = vsel %vm4671, %v4443, 0
        %v4908 = vsel %vm4671, %v4448, 0
        %v4911 = vsel %vm4671, %v4453, 0
        %4913 = vmatprep.subr.mxu0 0.0
        %4914 = vmatpush1.msra.mxu0 %v4456
        %4915 = vmatprep.subr.mxu0 0.0
        %4916 = vmatpush1.msra.mxu0 %v4457
        %4917 = vmatprep.subr.mxu0 0.0
        %4918 = vmatpush1.msra.mxu0 0.0
        %4919 = vmatprep.subr.mxu0 0.0
        %4920 = vmatpush1.msra.mxu0 0.0
        %4921 = vmatprep.subr.mxu0 0.0
        %4922 = vmatpush1.msra.mxu0 0.0
        %4923 = vmatprep.subr.mxu0 0.0
        %4924 = vmatpush1.msra.mxu0 0.0
        %4925 = vmatprep.subr.mxu0 0.0
        %4926 = vmatpush1.msra.mxu0 0.0
        %4927 = vmatprep.subr.mxu0 0.0
        %4928 = vmatpush1.msra.mxu0 0.0
        %4929 = vmatprep.subr.mxu0 0.0
        %4930 = vmatpush1.msra.mxu0 0.0
        %4931 = vmatprep.subr.mxu0 0.0
        %4932 = vmatpush1.msra.mxu0 0.0
        %4933 = vmatprep.subr.mxu0 0.0
        %4934 = vmatpush1.msra.mxu0 0.0
        %4935 = vmatprep.subr.mxu0 0.0
        %4936 = vmatpush1.msra.mxu0 0.0
        %4937 = vmatprep.subr.mxu0 0.0
        %4938 = vmatpush1.msra.mxu0 0.0
        %4939 = vmatprep.subr.mxu0 0.0
        %4940 = vmatpush1.msra.mxu0 0.0
        %4941 = vmatprep.subr.mxu0 0.0
        %4942 = vmatpush1.msra.mxu0 0.0
        %4943 = vmatprep.subr.mxu0 0.0
        %4944 = vmatpush1.msra.mxu0 0.0
        %4945 = vmatprep.subr.mxu0 0.0
        %4946 = vmatpush1.msra.mxu0 0.0
        %4947 = vmatprep.subr.mxu0 0.0
        %4948 = vmatpush1.msra.mxu0 0.0
        %4949 = vmatprep.subr.mxu0 0.0
        %4950 = vmatpush1.msra.mxu0 0.0
        %4951 = vmatprep.subr.mxu0 0.0
        %4952 = vmatpush1.msra.mxu0 0.0
        %4953 = vmatprep.subr.mxu0 0.0
        %4954 = vmatpush1.msra.mxu0 0.0
        %4955 = vmatprep.subr.mxu0 0.0
        %4956 = vmatpush1.msra.mxu0 0.0
        %4957 = vmatprep.subr.mxu0 0.0
        %4958 = vmatpush1.msra.mxu0 0.0
        %4959 = vmatprep.subr.mxu0 0.0
        %4960 = vmatpush1.msra.mxu0 0.0
        %4961 = vmatprep.subr.mxu0 0.0
        %4962 = vmatpush1.msra.mxu0 0.0
        %4963 = vmatprep.subr.mxu0 0.0
        %4964 = vmatpush1.msra.mxu0 0.0
        %4965 = vmatprep.subr.mxu0 0.0
        %4966 = vmatpush1.msra.mxu0 0.0
        %4967 = vmatprep.subr.mxu0 0.0
        %4968 = vmatpush1.msra.mxu0 0.0
        %4969 = vmatprep.subr.mxu0 0.0
        %4970 = vmatpush1.msra.mxu0 0.0
        %4971 = vmatprep.subr.mxu0 0.0
        %4972 = vmatpush1.msra.mxu0 0.0
        %4973 = vmatprep.subr.mxu0 0.0
        %4974 = vmatpush1.msra.mxu0 0.0
        %4975 = vmatprep.subr.mxu0 0.0
        %4976 = vmatpush1.msra.mxu0 0.0
        %4977 = vmatprep.mubr.f32.mxu0 0.0
        %4978 = vmatmul.mubr.f32.gmra.mrb[0].mxu0 %v4866
        %v4979 = vpop.f32.mrb[0].mxu0
        %v4980 = vadd.f32 %v4787, %v4979
        %v4981 = vpop.f32.mrb[0].mxu0
        %4982 = vmatprep.mubr.f32.mxu0 0.0
        %4983 = vmatmul.mubr.f32.gmra.mrb[0].mxu0 %v4869
        %v4984 = vpop.f32.mrb[0].mxu0
        %v4985 = vadd.f32 %v4792, %v4984
        %v4986 = vpop.f32.mrb[0].mxu0
        %4987 = vmatprep.mubr.f32.mxu0 0.0
        %4988 = vmatmul.mubr.f32.gmra.mrb[0].mxu0 %v4872
        %v4989 = vpop.f32.mrb[0].mxu0
        %v4990 = vadd.f32 %v4797, %v4989
        %v4991 = vpop.f32.mrb[0].mxu0
        %4992 = vmatprep.mubr.f32.mxu0 0.0
        %4993 = vmatmul.mubr.f32.gmra.mrb[0].mxu0 %v4875
        %v4994 = vpop.f32.mrb[0].mxu0
        %v4995 = vadd.f32 %v4802, %v4994
        %v4996 = vpop.f32.mrb[0].mxu0
        %4997 = vmatprep.mubr.f32.mxu0 0.0
        %4998 = vmatmul.mubr.f32.gmra.mrb[0].mxu0 %v4878
        %v4999 = vpop.f32.mrb[0].mxu0
        %v5000 = vadd.f32 %v4807, %v4999
        %v5001 = vpop.f32.mrb[0].mxu0
        %5002 = vmatprep.mubr.f32.mxu0 0.0
        %5003 = vmatmul.mubr.f32.gmra.mrb[0].mxu0 %v4881
        %v5004 = vpop.f32.mrb[0].mxu0
        %v5005 = vadd.f32 %v4812, %v5004
        %v5006 = vpop.f32.mrb[0].mxu0
        %5007 = vmatprep.mubr.f32.mxu0 0.0
        %5008 = vmatmul.mubr.f32.gmra.mrb[0].mxu0 %v4884
        %v5009 = vpop.f32.mrb[0].mxu0
        %v5010 = vadd.f32 %v4817, %v5009
        %v5011 = vpop.f32.mrb[0].mxu0
        %5012 = vmatprep.mubr.f32.mxu0 0.0
        %5013 = vmatmul.mubr.f32.gmra.mrb[0].mxu0 %v4887
        %v5014 = vpop.f32.mrb[0].mxu0
        %v5015 = vadd.f32 %v4822, %v5014
        %v5016 = vpop.f32.mrb[0].mxu0
        %5017 = vmatprep.mubr.f32.mxu0 0.0
        %5018 = vmatmul.mubr.f32.gmra.mrb[0].mxu0 %v4890
        %v5019 = vpop.f32.mrb[0].mxu0
        %v5020 = vadd.f32 %v4827, %v5019
        %v5021 = vpop.f32.mrb[0].mxu0
        %5022 = vmatprep.mubr.f32.mxu0 0.0
        %5023 = vmatmul.mubr.f32.gmra.mrb[0].mxu0 %v4893
        %v5024 = vpop.f32.mrb[0].mxu0
        %v5025 = vadd.f32 %v4832, %v5024
        %v5026 = vpop.f32.mrb[0].mxu0
        %5027 = vmatprep.mubr.f32.mxu0 0.0
        %5028 = vmatmul.mubr.f32.gmra.mrb[0].mxu0 %v4896
        %v5029 = vpop.f32.mrb[0].mxu0
        %v5030 = vadd.f32 %v4837, %v5029
        %v5031 = vpop.f32.mrb[0].mxu0
        %5032 = vmatprep.mubr.f32.mxu0 0.0
        %5033 = vmatmul.mubr.f32.gmra.mrb[0].mxu0 %v4899
        %v5034 = vpop.f32.mrb[0].mxu0
        %v5035 = vadd.f32 %v4842, %v5034
        %v5036 = vpop.f32.mrb[0].mxu0
        %5037 = vmatprep.mubr.f32.mxu0 0.0
        %5038 = vmatmul.mubr.f32.gmra.mrb[0].mxu0 %v4902
        %v5039 = vpop.f32.mrb[0].mxu0
        %v5040 = vadd.f32 %v4847, %v5039
        %v5041 = vpop.f32.mrb[0].mxu0
        %5042 = vmatprep.mubr.f32.mxu0 0.0
        %5043 = vmatmul.mubr.f32.gmra.mrb[0].mxu0 %v4905
        %v5044 = vpop.f32.mrb[0].mxu0
        %v5045 = vadd.f32 %v4852, %v5044
        %v5046 = vpop.f32.mrb[0].mxu0
        %5047 = vmatprep.mubr.f32.mxu0 0.0
        %5048 = vmatmul.mubr.f32.gmra.mrb[0].mxu0 %v4908
        %v5049 = vpop.f32.mrb[0].mxu0
        %v5050 = vadd.f32 %v4857, %v5049
        %v5051 = vpop.f32.mrb[0].mxu0
        %5052 = vmatprep.mubr.f32.mxu0 0.0
        %5053 = vmatmul.mubr.f32.gmra.mrb[0].mxu0 %v4911
        %v5054 = vpop.f32.mrb[0].mxu0
        %v5055 = vadd.f32 %v4862, %v5054
        %v5056 = vpop.f32.mrb[0].mxu0
        %5057 = vdwg.mxu0
        %s5058 = scalar_lea.vmem [#allocation12], 256
        %v5059 = vld [vmem:[%s5058] sm:$0xff]
        %v5060 = vld [vmem:[%s5058 + $0x8] sm:$0xff]
        %v5061 = vld [vmem:[%s5058 + $0x10] sm:$0xff]
        %v5062 = vld [vmem:[%s5058 + $0x18] sm:$0xff]
        %v5063 = vld [vmem:[%s5058 + $0x20] sm:$0xff]
        %v5064 = vld [vmem:[%s5058 + $0x28] sm:$0xff]
        %v5065 = vld [vmem:[%s5058 + $0x30] sm:$0xff]
        %v5066 = vld [vmem:[%s5058 + $0x38] sm:$0xff]
        %v5067 = vld [vmem:[%s5058 + $0x40] sm:$0xff]
        %v5068 = vld [vmem:[%s5058 + $0x48] sm:$0xff]
        %v5069 = vld [vmem:[%s5058 + $0x50] sm:$0xff]
        %v5070 = vld [vmem:[%s5058 + $0x58] sm:$0xff]
        %v5071 = vld [vmem:[%s5058 + $0x60] sm:$0xff]
        %v5072 = vld [vmem:[%s5058 + $0x68] sm:$0xff]
        %v5073 = vld [vmem:[%s5058 + $0x70] sm:$0xff]
        %v5074 = vld [vmem:[%s5058 + $0x78] sm:$0xff]
        %v5076 = vsel %vm4262, %v5059, 0
        %v5079 = vsel %vm4262, %v5060, 0
        %v5082 = vsel %vm4262, %v5061, 0
        %v5085 = vsel %vm4262, %v5062, 0
        %v5088 = vsel %vm4262, %v5063, 0
        %v5091 = vsel %vm4262, %v5064, 0
        %v5094 = vsel %vm4262, %v5065, 0
        %v5097 = vsel %vm4262, %v5066, 0
        %v5100 = vsel %vm4262, %v5067, 0
        %v5103 = vsel %vm4262, %v5068, 0
        %v5106 = vsel %vm4262, %v5069, 0
        %v5109 = vsel %vm4262, %v5070, 0
        %v5112 = vsel %vm4262, %v5071, 0
        %v5115 = vsel %vm4262, %v5072, 0
        %v5118 = vsel %vm4262, %v5073, 0
        %v5121 = vsel %vm4262, %v5074, 0
        %5123 = vmatprep.subr.mxu0 0.0
        %5124 = vmatpush1.msra.mxu0 %v4242
        %5125 = vmatprep.subr.mxu0 0.0
        %5126 = vmatpush1.msra.mxu0 %v4243
        %5127 = vmatprep.subr.mxu0 0.0
        %5128 = vmatpush1.msra.mxu0 %v4244
        %5129 = vmatprep.subr.mxu0 0.0
        %5130 = vmatpush1.msra.mxu0 %v4245
        %5131 = vmatprep.subr.mxu0 0.0
        %5132 = vmatpush1.msra.mxu0 0.0
        %5133 = vmatprep.subr.mxu0 0.0
        %5134 = vmatpush1.msra.mxu0 0.0
        %5135 = vmatprep.subr.mxu0 0.0
        %5136 = vmatpush1.msra.mxu0 0.0
        %5137 = vmatprep.subr.mxu0 0.0
        %5138 = vmatpush1.msra.mxu0 0.0
        %5139 = vmatprep.subr.mxu0 0.0
        %5140 = vmatpush1.msra.mxu0 0.0
        %5141 = vmatprep.subr.mxu0 0.0
        %5142 = vmatpush1.msra.mxu0 0.0
        %5143 = vmatprep.subr.mxu0 0.0
        %5144 = vmatpush1.msra.mxu0 0.0
        %5145 = vmatprep.subr.mxu0 0.0
        %5146 = vmatpush1.msra.mxu0 0.0
        %5147 = vmatprep.subr.mxu0 0.0
        %5148 = vmatpush1.msra.mxu0 0.0
        %5149 = vmatprep.subr.mxu0 0.0
        %5150 = vmatpush1.msra.mxu0 0.0
        %5151 = vmatprep.subr.mxu0 0.0
        %5152 = vmatpush1.msra.mxu0 0.0
        %5153 = vmatprep.subr.mxu0 0.0
        %5154 = vmatpush1.msra.mxu0 0.0
        %5155 = vmatprep.subr.mxu0 0.0
        %5156 = vmatpush1.msra.mxu0 0.0
        %5157 = vmatprep.subr.mxu0 0.0
        %5158 = vmatpush1.msra.mxu0 0.0
        %5159 = vmatprep.subr.mxu0 0.0
        %5160 = vmatpush1.msra.mxu0 0.0
        %5161 = vmatprep.subr.mxu0 0.0
        %5162 = vmatpush1.msra.mxu0 0.0
        %5163 = vmatprep.subr.mxu0 0.0
        %5164 = vmatpush1.msra.mxu0 0.0
        %5165 = vmatprep.subr.mxu0 0.0
        %5166 = vmatpush1.msra.mxu0 0.0
        %5167 = vmatprep.subr.mxu0 0.0
        %5168 = vmatpush1.msra.mxu0 0.0
        %5169 = vmatprep.subr.mxu0 0.0
        %5170 = vmatpush1.msra.mxu0 0.0
        %5171 = vmatprep.subr.mxu0 0.0
        %5172 = vmatpush1.msra.mxu0 0.0
        %5173 = vmatprep.subr.mxu0 0.0
        %5174 = vmatpush1.msra.mxu0 0.0
        %5175 = vmatprep.subr.mxu0 0.0
        %5176 = vmatpush1.msra.mxu0 0.0
        %5177 = vmatprep.subr.mxu0 0.0
        %5178 = vmatpush1.msra.mxu0 0.0
        %5179 = vmatprep.subr.mxu0 0.0
        %5180 = vmatpush1.msra.mxu0 0.0
        %5181 = vmatprep.subr.mxu0 0.0
        %5182 = vmatpush1.msra.mxu0 0.0
        %5183 = vmatprep.subr.mxu0 0.0
        %5184 = vmatpush1.msra.mxu0 0.0
        %5185 = vmatprep.subr.mxu0 0.0
        %5186 = vmatpush1.msra.mxu0 0.0
        %5187 = vmatprep.mubr.f32.mxu0 0.0
        %5188 = vmatmul.mubr.f32.gmra.mrb[0].mxu0 %v5076
        %v5189 = vpop.f32.mrb[0].mxu0
        %v5190 = vadd.f32 0.0, %v5189
        %v5191 = vpop.f32.mrb[0].mxu0
        %5192 = vmatprep.mubr.f32.mxu0 0.0
        %5193 = vmatmul.mubr.f32.gmra.mrb[0].mxu0 %v5079
        %v5194 = vpop.f32.mrb[0].mxu0
        %v5195 = vadd.f32 0.0, %v5194
        %v5196 = vpop.f32.mrb[0].mxu0
        %5197 = vmatprep.mubr.f32.mxu0 0.0
        %5198 = vmatmul.mubr.f32.gmra.mrb[0].mxu0 %v5082
        %v5199 = vpop.f32.mrb[0].mxu0
        %v5200 = vadd.f32 0.0, %v5199
        %v5201 = vpop.f32.mrb[0].mxu0
        %5202 = vmatprep.mubr.f32.mxu0 0.0
        %5203 = vmatmul.mubr.f32.gmra.mrb[0].mxu0 %v5085
        %v5204 = vpop.f32.mrb[0].mxu0
        %v5205 = vadd.f32 0.0, %v5204
        %v5206 = vpop.f32.mrb[0].mxu0
        %5207 = vmatprep.mubr.f32.mxu0 0.0
        %5208 = vmatmul.mubr.f32.gmra.mrb[0].mxu0 %v5088
        %v5209 = vpop.f32.mrb[0].mxu0
        %v5210 = vadd.f32 0.0, %v5209
        %v5211 = vpop.f32.mrb[0].mxu0
        %5212 = vmatprep.mubr.f32.mxu0 0.0
        %5213 = vmatmul.mubr.f32.gmra.mrb[0].mxu0 %v5091
        %v5214 = vpop.f32.mrb[0].mxu0
        %v5215 = vadd.f32 0.0, %v5214
        %v5216 = vpop.f32.mrb[0].mxu0
        %5217 = vmatprep.mubr.f32.mxu0 0.0
        %5218 = vmatmul.mubr.f32.gmra.mrb[0].mxu0 %v5094
        %v5219 = vpop.f32.mrb[0].mxu0
        %v5220 = vadd.f32 0.0, %v5219
        %v5221 = vpop.f32.mrb[0].mxu0
        %5222 = vmatprep.mubr.f32.mxu0 0.0
        %5223 = vmatmul.mubr.f32.gmra.mrb[0].mxu0 %v5097
        %v5224 = vpop.f32.mrb[0].mxu0
        %v5225 = vadd.f32 0.0, %v5224
        %v5226 = vpop.f32.mrb[0].mxu0
        %5227 = vmatprep.mubr.f32.mxu0 0.0
        %5228 = vmatmul.mubr.f32.gmra.mrb[0].mxu0 %v5100
        %v5229 = vpop.f32.mrb[0].mxu0
        %v5230 = vadd.f32 0.0, %v5229
        %v5231 = vpop.f32.mrb[0].mxu0
        %5232 = vmatprep.mubr.f32.mxu0 0.0
        %5233 = vmatmul.mubr.f32.gmra.mrb[0].mxu0 %v5103
        %v5234 = vpop.f32.mrb[0].mxu0
        %v5235 = vadd.f32 0.0, %v5234
        %v5236 = vpop.f32.mrb[0].mxu0
        %5237 = vmatprep.mubr.f32.mxu0 0.0
        %5238 = vmatmul.mubr.f32.gmra.mrb[0].mxu0 %v5106
        %v5239 = vpop.f32.mrb[0].mxu0
        %v5240 = vadd.f32 0.0, %v5239
        %v5241 = vpop.f32.mrb[0].mxu0
        %5242 = vmatprep.mubr.f32.mxu0 0.0
        %5243 = vmatmul.mubr.f32.gmra.mrb[0].mxu0 %v5109
        %v5244 = vpop.f32.mrb[0].mxu0
        %v5245 = vadd.f32 0.0, %v5244
        %v5246 = vpop.f32.mrb[0].mxu0
        %5247 = vmatprep.mubr.f32.mxu0 0.0
        %5248 = vmatmul.mubr.f32.gmra.mrb[0].mxu0 %v5112
        %v5249 = vpop.f32.mrb[0].mxu0
        %v5250 = vadd.f32 0.0, %v5249
        %v5251 = vpop.f32.mrb[0].mxu0
        %5252 = vmatprep.mubr.f32.mxu0 0.0
        %5253 = vmatmul.mubr.f32.gmra.mrb[0].mxu0 %v5115
        %v5254 = vpop.f32.mrb[0].mxu0
        %v5255 = vadd.f32 0.0, %v5254
        %v5256 = vpop.f32.mrb[0].mxu0
        %5257 = vmatprep.mubr.f32.mxu0 0.0
        %5258 = vmatmul.mubr.f32.gmra.mrb[0].mxu0 %v5118
        %v5259 = vpop.f32.mrb[0].mxu0
        %v5260 = vadd.f32 0.0, %v5259
        %v5261 = vpop.f32.mrb[0].mxu0
        %5262 = vmatprep.mubr.f32.mxu0 0.0
        %5263 = vmatmul.mubr.f32.gmra.mrb[0].mxu0 %v5121
        %v5264 = vpop.f32.mrb[0].mxu0
        %v5265 = vadd.f32 0.0, %v5264
        %v5266 = vpop.f32.mrb[0].mxu0
        %5267 = vdwg.mxu0
        %s5268 = scalar_lea.vmem [#allocation13], 32
        %v5269 = vld [vmem:[%s5268] sm:$0xff]
        %v5270 = vld [vmem:[%s5268 + $0x8] sm:$0xff]
        %v5272 = vsel %vm4671, %v5190, 0
        %v5275 = vsel %vm4671, %v5195, 0
        %v5278 = vsel %vm4671, %v5200, 0
        %v5281 = vsel %vm4671, %v5205, 0
        %v5284 = vsel %vm4671, %v5210, 0
        %v5287 = vsel %vm4671, %v5215, 0
        %v5290 = vsel %vm4671, %v5220, 0
        %v5293 = vsel %vm4671, %v5225, 0
        %v5296 = vsel %vm4671, %v5230, 0
        %v5299 = vsel %vm4671, %v5235, 0
        %v5302 = vsel %vm4671, %v5240, 0
        %v5305 = vsel %vm4671, %v5245, 0
        %v5308 = vsel %vm4671, %v5250, 0
        %v5311 = vsel %vm4671, %v5255, 0
        %v5314 = vsel %vm4671, %v5260, 0
        %v5317 = vsel %vm4671, %v5265, 0
        %5319 = vmatprep.subr.mxu0 0.0
        %5320 = vmatpush1.msra.mxu0 %v5269
        %5321 = vmatprep.subr.mxu0 0.0
        %5322 = vmatpush1.msra.mxu0 %v5270
        %5323 = vmatprep.subr.mxu0 0.0
        %5324 = vmatpush1.msra.mxu0 0.0
        %5325 = vmatprep.subr.mxu0 0.0
        %5326 = vmatpush1.msra.mxu0 0.0
        %5327 = vmatprep.subr.mxu0 0.0
        %5328 = vmatpush1.msra.mxu0 0.0
        %5329 = vmatprep.subr.mxu0 0.0
        %5330 = vmatpush1.msra.mxu0 0.0
        %5331 = vmatprep.subr.mxu0 0.0
        %5332 = vmatpush1.msra.mxu0 0.0
        %5333 = vmatprep.subr.mxu0 0.0
        %5334 = vmatpush1.msra.mxu0 0.0
        %5335 = vmatprep.subr.mxu0 0.0
        %5336 = vmatpush1.msra.mxu0 0.0
        %5337 = vmatprep.subr.mxu0 0.0
        %5338 = vmatpush1.msra.mxu0 0.0
        %5339 = vmatprep.subr.mxu0 0.0
        %5340 = vmatpush1.msra.mxu0 0.0
        %5341 = vmatprep.subr.mxu0 0.0
        %5342 = vmatpush1.msra.mxu0 0.0
        %5343 = vmatprep.subr.mxu0 0.0
        %5344 = vmatpush1.msra.mxu0 0.0
        %5345 = vmatprep.subr.mxu0 0.0
        %5346 = vmatpush1.msra.mxu0 0.0
        %5347 = vmatprep.subr.mxu0 0.0
        %5348 = vmatpush1.msra.mxu0 0.0
        %5349 = vmatprep.subr.mxu0 0.0
        %5350 = vmatpush1.msra.mxu0 0.0
        %5351 = vmatprep.subr.mxu0 0.0
        %5352 = vmatpush1.msra.mxu0 0.0
        %5353 = vmatprep.subr.mxu0 0.0
        %5354 = vmatpush1.msra.mxu0 0.0
        %5355 = vmatprep.subr.mxu0 0.0
        %5356 = vmatpush1.msra.mxu0 0.0
        %5357 = vmatprep.subr.mxu0 0.0
        %5358 = vmatpush1.msra.mxu0 0.0
        %5359 = vmatprep.subr.mxu0 0.0
        %5360 = vmatpush1.msra.mxu0 0.0
        %5361 = vmatprep.subr.mxu0 0.0
        %5362 = vmatpush1.msra.mxu0 0.0
        %5363 = vmatprep.subr.mxu0 0.0
        %5364 = vmatpush1.msra.mxu0 0.0
        %5365 = vmatprep.subr.mxu0 0.0
        %5366 = vmatpush1.msra.mxu0 0.0
        %5367 = vmatprep.subr.mxu0 0.0
        %5368 = vmatpush1.msra.mxu0 0.0
        %5369 = vmatprep.subr.mxu0 0.0
        %5370 = vmatpush1.msra.mxu0 0.0
        %5371 = vmatprep.subr.mxu0 0.0
        %5372 = vmatpush1.msra.mxu0 0.0
        %5373 = vmatprep.subr.mxu0 0.0
        %5374 = vmatpush1.msra.mxu0 0.0
        %5375 = vmatprep.subr.mxu0 0.0
        %5376 = vmatpush1.msra.mxu0 0.0
        %5377 = vmatprep.subr.mxu0 0.0
        %5378 = vmatpush1.msra.mxu0 0.0
        %5379 = vmatprep.subr.mxu0 0.0
        %5380 = vmatpush1.msra.mxu0 0.0
        %5381 = vmatprep.subr.mxu0 0.0
        %5382 = vmatpush1.msra.mxu0 0.0
        %5383 = vmatprep.mubr.f32.mxu0 0.0
        %5384 = vmatmul.mubr.f32.gmra.mrb[0].mxu0 %v5272
        %v5385 = vpop.f32.mrb[0].mxu0
        %v5386 = vadd.f32 0.0, %v5385
        %v5387 = vpop.f32.mrb[0].mxu0
        %5388 = vmatprep.mubr.f32.mxu0 0.0
        %5389 = vmatmul.mubr.f32.gmra.mrb[0].mxu0 %v5275
        %v5390 = vpop.f32.mrb[0].mxu0
        %v5391 = vadd.f32 0.0, %v5390
        %v5392 = vpop.f32.mrb[0].mxu0
        %5393 = vmatprep.mubr.f32.mxu0 0.0
        %5394 = vmatmul.mubr.f32.gmra.mrb[0].mxu0 %v5278
        %v5395 = vpop.f32.mrb[0].mxu0
        %v5396 = vadd.f32 0.0, %v5395
        %v5397 = vpop.f32.mrb[0].mxu0
        %5398 = vmatprep.mubr.f32.mxu0 0.0
        %5399 = vmatmul.mubr.f32.gmra.mrb[0].mxu0 %v5281
        %v5400 = vpop.f32.mrb[0].mxu0
        %v5401 = vadd.f32 0.0, %v5400
        %v5402 = vpop.f32.mrb[0].mxu0
        %5403 = vmatprep.mubr.f32.mxu0 0.0
        %5404 = vmatmul.mubr.f32.gmra.mrb[0].mxu0 %v5284
        %v5405 = vpop.f32.mrb[0].mxu0
        %v5406 = vadd.f32 0.0, %v5405
        %v5407 = vpop.f32.mrb[0].mxu0
        %5408 = vmatprep.mubr.f32.mxu0 0.0
        %5409 = vmatmul.mubr.f32.gmra.mrb[0].mxu0 %v5287
        %v5410 = vpop.f32.mrb[0].mxu0
        %v5411 = vadd.f32 0.0, %v5410
        %v5412 = vpop.f32.mrb[0].mxu0
        %5413 = vmatprep.mubr.f32.mxu0 0.0
        %5414 = vmatmul.mubr.f32.gmra.mrb[0].mxu0 %v5290
        %v5415 = vpop.f32.mrb[0].mxu0
        %v5416 = vadd.f32 0.0, %v5415
        %v5417 = vpop.f32.mrb[0].mxu0
        %5418 = vmatprep.mubr.f32.mxu0 0.0
        %5419 = vmatmul.mubr.f32.gmra.mrb[0].mxu0 %v5293
        %v5420 = vpop.f32.mrb[0].mxu0
        %v5421 = vadd.f32 0.0, %v5420
        %v5422 = vpop.f32.mrb[0].mxu0
        %5423 = vmatprep.mubr.f32.mxu0 0.0
        %5424 = vmatmul.mubr.f32.gmra.mrb[0].mxu0 %v5296
        %v5425 = vpop.f32.mrb[0].mxu0
        %v5426 = vadd.f32 0.0, %v5425
        %v5427 = vpop.f32.mrb[0].mxu0
        %5428 = vmatprep.mubr.f32.mxu0 0.0
        %5429 = vmatmul.mubr.f32.gmra.mrb[0].mxu0 %v5299
        %v5430 = vpop.f32.mrb[0].mxu0
        %v5431 = vadd.f32 0.0, %v5430
        %v5432 = vpop.f32.mrb[0].mxu0
        %5433 = vmatprep.mubr.f32.mxu0 0.0
        %5434 = vmatmul.mubr.f32.gmra.mrb[0].mxu0 %v5302
        %v5435 = vpop.f32.mrb[0].mxu0
        %v5436 = vadd.f32 0.0, %v5435
        %v5437 = vpop.f32.mrb[0].mxu0
        %5438 = vmatprep.mubr.f32.mxu0 0.0
        %5439 = vmatmul.mubr.f32.gmra.mrb[0].mxu0 %v5305
        %v5440 = vpop.f32.mrb[0].mxu0
        %v5441 = vadd.f32 0.0, %v5440
        %v5442 = vpop.f32.mrb[0].mxu0
        %5443 = vmatprep.mubr.f32.mxu0 0.0
        %5444 = vmatmul.mubr.f32.gmra.mrb[0].mxu0 %v5308
        %v5445 = vpop.f32.mrb[0].mxu0
        %v5446 = vadd.f32 0.0, %v5445
        %v5447 = vpop.f32.mrb[0].mxu0
        %5448 = vmatprep.mubr.f32.mxu0 0.0
        %5449 = vmatmul.mubr.f32.gmra.mrb[0].mxu0 %v5311
        %v5450 = vpop.f32.mrb[0].mxu0
        %v5451 = vadd.f32 0.0, %v5450
        %v5452 = vpop.f32.mrb[0].mxu0
        %5453 = vmatprep.mubr.f32.mxu0 0.0
        %5454 = vmatmul.mubr.f32.gmra.mrb[0].mxu0 %v5314
        %v5455 = vpop.f32.mrb[0].mxu0
        %v5456 = vadd.f32 0.0, %v5455
        %v5457 = vpop.f32.mrb[0].mxu0
        %5458 = vmatprep.mubr.f32.mxu0 0.0
        %5459 = vmatmul.mubr.f32.gmra.mrb[0].mxu0 %v5317
        %v5460 = vpop.f32.mrb[0].mxu0
        %v5461 = vadd.f32 0.0, %v5460
        %v5462 = vpop.f32.mrb[0].mxu0
        %5463 = vdwg.mxu0
        %v5464 = vadd.f32 %v4980, %v5386
        %v5465 = vadd.f32 %v4985, %v5391
        %v5466 = vadd.f32 %v4990, %v5396
        %v5467 = vadd.f32 %v4995, %v5401
        %v5468 = vadd.f32 %v5000, %v5406
        %v5469 = vadd.f32 %v5005, %v5411
        %v5470 = vadd.f32 %v5010, %v5416
        %v5471 = vadd.f32 %v5015, %v5421
        %v5472 = vadd.f32 %v5020, %v5426
        %v5473 = vadd.f32 %v5025, %v5431
        %v5474 = vadd.f32 %v5030, %v5436
        %v5475 = vadd.f32 %v5035, %v5441
        %v5476 = vadd.f32 %v5040, %v5446
        %v5477 = vadd.f32 %v5045, %v5451
        %v5478 = vadd.f32 %v5050, %v5456
        %v5479 = vadd.f32 %v5055, %v5461
        %s5480 = scalar_lea.vmem [#allocation12], 384
        %v5481 = vld [vmem:[%s5480] sm:$0xff]
        %v5482 = vld [vmem:[%s5480 + $0x8] sm:$0xff]
        %v5483 = vld [vmem:[%s5480 + $0x10] sm:$0xff]
        %v5484 = vld [vmem:[%s5480 + $0x18] sm:$0xff]
        %v5485 = vld [vmem:[%s5480 + $0x20] sm:$0xff]
        %v5486 = vld [vmem:[%s5480 + $0x28] sm:$0xff]
        %v5487 = vld [vmem:[%s5480 + $0x30] sm:$0xff]
        %v5488 = vld [vmem:[%s5480 + $0x38] sm:$0xff]
        %v5489 = vld [vmem:[%s5480 + $0x40] sm:$0xff]
        %v5490 = vld [vmem:[%s5480 + $0x48] sm:$0xff]
        %v5491 = vld [vmem:[%s5480 + $0x50] sm:$0xff]
        %v5492 = vld [vmem:[%s5480 + $0x58] sm:$0xff]
        %v5493 = vld [vmem:[%s5480 + $0x60] sm:$0xff]
        %v5494 = vld [vmem:[%s5480 + $0x68] sm:$0xff]
        %v5495 = vld [vmem:[%s5480 + $0x70] sm:$0xff]
        %v5496 = vld [vmem:[%s5480 + $0x78] sm:$0xff]
        %v5498 = vsel %vm4262, %v5481, 0
        %v5501 = vsel %vm4262, %v5482, 0
        %v5504 = vsel %vm4262, %v5483, 0
        %v5507 = vsel %vm4262, %v5484, 0
        %v5510 = vsel %vm4262, %v5485, 0
        %v5513 = vsel %vm4262, %v5486, 0
        %v5516 = vsel %vm4262, %v5487, 0
        %v5519 = vsel %vm4262, %v5488, 0
        %v5522 = vsel %vm4262, %v5489, 0
        %v5525 = vsel %vm4262, %v5490, 0
        %v5528 = vsel %vm4262, %v5491, 0
        %v5531 = vsel %vm4262, %v5492, 0
        %v5534 = vsel %vm4262, %v5493, 0
        %v5537 = vsel %vm4262, %v5494, 0
        %v5540 = vsel %vm4262, %v5495, 0
        %v5543 = vsel %vm4262, %v5496, 0
        %5545 = vmatprep.subr.mxu0 0.0
        %5546 = vmatpush1.msra.mxu0 %v4242
        %5547 = vmatprep.subr.mxu0 0.0
        %5548 = vmatpush1.msra.mxu0 %v4243
        %5549 = vmatprep.subr.mxu0 0.0
        %5550 = vmatpush1.msra.mxu0 %v4244
        %5551 = vmatprep.subr.mxu0 0.0
        %5552 = vmatpush1.msra.mxu0 %v4245
        %5553 = vmatprep.subr.mxu0 0.0
        %5554 = vmatpush1.msra.mxu0 0.0
        %5555 = vmatprep.subr.mxu0 0.0
        %5556 = vmatpush1.msra.mxu0 0.0
        %5557 = vmatprep.subr.mxu0 0.0
        %5558 = vmatpush1.msra.mxu0 0.0
        %5559 = vmatprep.subr.mxu0 0.0
        %5560 = vmatpush1.msra.mxu0 0.0
        %5561 = vmatprep.subr.mxu0 0.0
        %5562 = vmatpush1.msra.mxu0 0.0
        %5563 = vmatprep.subr.mxu0 0.0
        %5564 = vmatpush1.msra.mxu0 0.0
        %5565 = vmatprep.subr.mxu0 0.0
        %5566 = vmatpush1.msra.mxu0 0.0
        %5567 = vmatprep.subr.mxu0 0.0
        %5568 = vmatpush1.msra.mxu0 0.0
        %5569 = vmatprep.subr.mxu0 0.0
        %5570 = vmatpush1.msra.mxu0 0.0
        %5571 = vmatprep.subr.mxu0 0.0
        %5572 = vmatpush1.msra.mxu0 0.0
        %5573 = vmatprep.subr.mxu0 0.0
        %5574 = vmatpush1.msra.mxu0 0.0
        %5575 = vmatprep.subr.mxu0 0.0
        %5576 = vmatpush1.msra.mxu0 0.0
        %5577 = vmatprep.subr.mxu0 0.0
        %5578 = vmatpush1.msra.mxu0 0.0
        %5579 = vmatprep.subr.mxu0 0.0
        %5580 = vmatpush1.msra.mxu0 0.0
        %5581 = vmatprep.subr.mxu0 0.0
        %5582 = vmatpush1.msra.mxu0 0.0
        %5583 = vmatprep.subr.mxu0 0.0
        %5584 = vmatpush1.msra.mxu0 0.0
        %5585 = vmatprep.subr.mxu0 0.0
        %5586 = vmatpush1.msra.mxu0 0.0
        %5587 = vmatprep.subr.mxu0 0.0
        %5588 = vmatpush1.msra.mxu0 0.0
        %5589 = vmatprep.subr.mxu0 0.0
        %5590 = vmatpush1.msra.mxu0 0.0
        %5591 = vmatprep.subr.mxu0 0.0
        %5592 = vmatpush1.msra.mxu0 0.0
        %5593 = vmatprep.subr.mxu0 0.0
        %5594 = vmatpush1.msra.mxu0 0.0
        %5595 = vmatprep.subr.mxu0 0.0
        %5596 = vmatpush1.msra.mxu0 0.0
        %5597 = vmatprep.subr.mxu0 0.0
        %5598 = vmatpush1.msra.mxu0 0.0
        %5599 = vmatprep.subr.mxu0 0.0
        %5600 = vmatpush1.msra.mxu0 0.0
        %5601 = vmatprep.subr.mxu0 0.0
        %5602 = vmatpush1.msra.mxu0 0.0
        %5603 = vmatprep.subr.mxu0 0.0
        %5604 = vmatpush1.msra.mxu0 0.0
        %5605 = vmatprep.subr.mxu0 0.0
        %5606 = vmatpush1.msra.mxu0 0.0
        %5607 = vmatprep.subr.mxu0 0.0
        %5608 = vmatpush1.msra.mxu0 0.0
        %5609 = vmatprep.mubr.f32.mxu0 0.0
        %5610 = vmatmul.mubr.f32.gmra.mrb[0].mxu0 %v5498
        %v5611 = vpop.f32.mrb[0].mxu0
        %v5612 = vadd.f32 0.0, %v5611
        %v5613 = vpop.f32.mrb[0].mxu0
        %5614 = vmatprep.mubr.f32.mxu0 0.0
        %5615 = vmatmul.mubr.f32.gmra.mrb[0].mxu0 %v5501
        %v5616 = vpop.f32.mrb[0].mxu0
        %v5617 = vadd.f32 0.0, %v5616
        %v5618 = vpop.f32.mrb[0].mxu0
        %5619 = vmatprep.mubr.f32.mxu0 0.0
        %5620 = vmatmul.mubr.f32.gmra.mrb[0].mxu0 %v5504
        %v5621 = vpop.f32.mrb[0].mxu0
        %v5622 = vadd.f32 0.0, %v5621
        %v5623 = vpop.f32.mrb[0].mxu0
        %5624 = vmatprep.mubr.f32.mxu0 0.0
        %5625 = vmatmul.mubr.f32.gmra.mrb[0].mxu0 %v5507
        %v5626 = vpop.f32.mrb[0].mxu0
        %v5627 = vadd.f32 0.0, %v5626
        %v5628 = vpop.f32.mrb[0].mxu0
        %5629 = vmatprep.mubr.f32.mxu0 0.0
        %5630 = vmatmul.mubr.f32.gmra.mrb[0].mxu0 %v5510
        %v5631 = vpop.f32.mrb[0].mxu0
        %v5632 = vadd.f32 0.0, %v5631
        %v5633 = vpop.f32.mrb[0].mxu0
        %5634 = vmatprep.mubr.f32.mxu0 0.0
        %5635 = vmatmul.mubr.f32.gmra.mrb[0].mxu0 %v5513
        %v5636 = vpop.f32.mrb[0].mxu0
        %v5637 = vadd.f32 0.0, %v5636
        %v5638 = vpop.f32.mrb[0].mxu0
        %5639 = vmatprep.mubr.f32.mxu0 0.0
        %5640 = vmatmul.mubr.f32.gmra.mrb[0].mxu0 %v5516
        %v5641 = vpop.f32.mrb[0].mxu0
        %v5642 = vadd.f32 0.0, %v5641
        %v5643 = vpop.f32.mrb[0].mxu0
        %5644 = vmatprep.mubr.f32.mxu0 0.0
        %5645 = vmatmul.mubr.f32.gmra.mrb[0].mxu0 %v5519
        %v5646 = vpop.f32.mrb[0].mxu0
        %v5647 = vadd.f32 0.0, %v5646
        %v5648 = vpop.f32.mrb[0].mxu0
        %5649 = vmatprep.mubr.f32.mxu0 0.0
        %5650 = vmatmul.mubr.f32.gmra.mrb[0].mxu0 %v5522
        %v5651 = vpop.f32.mrb[0].mxu0
        %v5652 = vadd.f32 0.0, %v5651
        %v5653 = vpop.f32.mrb[0].mxu0
        %5654 = vmatprep.mubr.f32.mxu0 0.0
        %5655 = vmatmul.mubr.f32.gmra.mrb[0].mxu0 %v5525
        %v5656 = vpop.f32.mrb[0].mxu0
        %v5657 = vadd.f32 0.0, %v5656
        %v5658 = vpop.f32.mrb[0].mxu0
        %5659 = vmatprep.mubr.f32.mxu0 0.0
        %5660 = vmatmul.mubr.f32.gmra.mrb[0].mxu0 %v5528
        %v5661 = vpop.f32.mrb[0].mxu0
        %v5662 = vadd.f32 0.0, %v5661
        %v5663 = vpop.f32.mrb[0].mxu0
        %5664 = vmatprep.mubr.f32.mxu0 0.0
        %5665 = vmatmul.mubr.f32.gmra.mrb[0].mxu0 %v5531
        %v5666 = vpop.f32.mrb[0].mxu0
        %v5667 = vadd.f32 0.0, %v5666
        %v5668 = vpop.f32.mrb[0].mxu0
        %5669 = vmatprep.mubr.f32.mxu0 0.0
        %5670 = vmatmul.mubr.f32.gmra.mrb[0].mxu0 %v5534
        %v5671 = vpop.f32.mrb[0].mxu0
        %v5672 = vadd.f32 0.0, %v5671
        %v5673 = vpop.f32.mrb[0].mxu0
        %5674 = vmatprep.mubr.f32.mxu0 0.0
        %5675 = vmatmul.mubr.f32.gmra.mrb[0].mxu0 %v5537
        %v5676 = vpop.f32.mrb[0].mxu0
        %v5677 = vadd.f32 0.0, %v5676
        %v5678 = vpop.f32.mrb[0].mxu0
        %5679 = vmatprep.mubr.f32.mxu0 0.0
        %5680 = vmatmul.mubr.f32.gmra.mrb[0].mxu0 %v5540
        %v5681 = vpop.f32.mrb[0].mxu0
        %v5682 = vadd.f32 0.0, %v5681
        %v5683 = vpop.f32.mrb[0].mxu0
        %5684 = vmatprep.mubr.f32.mxu0 0.0
        %5685 = vmatmul.mubr.f32.gmra.mrb[0].mxu0 %v5543
        %v5686 = vpop.f32.mrb[0].mxu0
        %v5687 = vadd.f32 0.0, %v5686
        %v5688 = vpop.f32.mrb[0].mxu0
        %5689 = vdwg.mxu0
        %s5690 = scalar_lea.vmem [#allocation13], 48
        %v5691 = vld [vmem:[%s5690] sm:$0xff]
        %v5692 = vld [vmem:[%s5690 + $0x8] sm:$0xff]
        %v5694 = vsel %vm4671, %v5612, 0
        %v5697 = vsel %vm4671, %v5617, 0
        %v5700 = vsel %vm4671, %v5622, 0
        %v5703 = vsel %vm4671, %v5627, 0
        %v5706 = vsel %vm4671, %v5632, 0
        %v5709 = vsel %vm4671, %v5637, 0
        %v5712 = vsel %vm4671, %v5642, 0
        %v5715 = vsel %vm4671, %v5647, 0
        %v5718 = vsel %vm4671, %v5652, 0
        %v5721 = vsel %vm4671, %v5657, 0
        %v5724 = vsel %vm4671, %v5662, 0
        %v5727 = vsel %vm4671, %v5667, 0
        %v5730 = vsel %vm4671, %v5672, 0
        %v5733 = vsel %vm4671, %v5677, 0
        %v5736 = vsel %vm4671, %v5682, 0
        %v5739 = vsel %vm4671, %v5687, 0
        %5741 = vmatprep.subr.mxu0 0.0
        %5742 = vmatpush1.msra.mxu0 %v5691
        %5743 = vmatprep.subr.mxu0 0.0
        %5744 = vmatpush1.msra.mxu0 %v5692
        %5745 = vmatprep.subr.mxu0 0.0
        %5746 = vmatpush1.msra.mxu0 0.0
        %5747 = vmatprep.subr.mxu0 0.0
        %5748 = vmatpush1.msra.mxu0 0.0
        %5749 = vmatprep.subr.mxu0 0.0
        %5750 = vmatpush1.msra.mxu0 0.0
        %5751 = vmatprep.subr.mxu0 0.0
        %5752 = vmatpush1.msra.mxu0 0.0
        %5753 = vmatprep.subr.mxu0 0.0
        %5754 = vmatpush1.msra.mxu0 0.0
        %5755 = vmatprep.subr.mxu0 0.0
        %5756 = vmatpush1.msra.mxu0 0.0
        %5757 = vmatprep.subr.mxu0 0.0
        %5758 = vmatpush1.msra.mxu0 0.0
        %5759 = vmatprep.subr.mxu0 0.0
        %5760 = vmatpush1.msra.mxu0 0.0
        %5761 = vmatprep.subr.mxu0 0.0
        %5762 = vmatpush1.msra.mxu0 0.0
        %5763 = vmatprep.subr.mxu0 0.0
        %5764 = vmatpush1.msra.mxu0 0.0
        %5765 = vmatprep.subr.mxu0 0.0
        %5766 = vmatpush1.msra.mxu0 0.0
        %5767 = vmatprep.subr.mxu0 0.0
        %5768 = vmatpush1.msra.mxu0 0.0
        %5769 = vmatprep.subr.mxu0 0.0
        %5770 = vmatpush1.msra.mxu0 0.0
        %5771 = vmatprep.subr.mxu0 0.0
        %5772 = vmatpush1.msra.mxu0 0.0
        %5773 = vmatprep.subr.mxu0 0.0
        %5774 = vmatpush1.msra.mxu0 0.0
        %5775 = vmatprep.subr.mxu0 0.0
        %5776 = vmatpush1.msra.mxu0 0.0
        %5777 = vmatprep.subr.mxu0 0.0
        %5778 = vmatpush1.msra.mxu0 0.0
        %5779 = vmatprep.subr.mxu0 0.0
        %5780 = vmatpush1.msra.mxu0 0.0
        %5781 = vmatprep.subr.mxu0 0.0
        %5782 = vmatpush1.msra.mxu0 0.0
        %5783 = vmatprep.subr.mxu0 0.0
        %5784 = vmatpush1.msra.mxu0 0.0
        %5785 = vmatprep.subr.mxu0 0.0
        %5786 = vmatpush1.msra.mxu0 0.0
        %5787 = vmatprep.subr.mxu0 0.0
        %5788 = vmatpush1.msra.mxu0 0.0
        %5789 = vmatprep.subr.mxu0 0.0
        %5790 = vmatpush1.msra.mxu0 0.0
        %5791 = vmatprep.subr.mxu0 0.0
        %5792 = vmatpush1.msra.mxu0 0.0
        %5793 = vmatprep.subr.mxu0 0.0
        %5794 = vmatpush1.msra.mxu0 0.0
        %5795 = vmatprep.subr.mxu0 0.0
        %5796 = vmatpush1.msra.mxu0 0.0
        %5797 = vmatprep.subr.mxu0 0.0
        %5798 = vmatpush1.msra.mxu0 0.0
        %5799 = vmatprep.subr.mxu0 0.0
        %5800 = vmatpush1.msra.mxu0 0.0
        %5801 = vmatprep.subr.mxu0 0.0
        %5802 = vmatpush1.msra.mxu0 0.0
        %5803 = vmatprep.subr.mxu0 0.0
        %5804 = vmatpush1.msra.mxu0 0.0
        %5805 = vmatprep.mubr.f32.mxu0 0.0
        %5806 = vmatmul.mubr.f32.gmra.mrb[0].mxu0 %v5694
        %v5807 = vpop.f32.mrb[0].mxu0
        %v5808 = vadd.f32 0.0, %v5807
        %v5809 = vpop.f32.mrb[0].mxu0
        %5810 = vmatprep.mubr.f32.mxu0 0.0
        %5811 = vmatmul.mubr.f32.gmra.mrb[0].mxu0 %v5697
        %v5812 = vpop.f32.mrb[0].mxu0
        %v5813 = vadd.f32 0.0, %v5812
        %v5814 = vpop.f32.mrb[0].mxu0
        %5815 = vmatprep.mubr.f32.mxu0 0.0
        %5816 = vmatmul.mubr.f32.gmra.mrb[0].mxu0 %v5700
        %v5817 = vpop.f32.mrb[0].mxu0
        %v5818 = vadd.f32 0.0, %v5817
        %v5819 = vpop.f32.mrb[0].mxu0
        %5820 = vmatprep.mubr.f32.mxu0 0.0
        %5821 = vmatmul.mubr.f32.gmra.mrb[0].mxu0 %v5703
        %v5822 = vpop.f32.mrb[0].mxu0
        %v5823 = vadd.f32 0.0, %v5822
        %v5824 = vpop.f32.mrb[0].mxu0
        %5825 = vmatprep.mubr.f32.mxu0 0.0
        %5826 = vmatmul.mubr.f32.gmra.mrb[0].mxu0 %v5706
        %v5827 = vpop.f32.mrb[0].mxu0
        %v5828 = vadd.f32 0.0, %v5827
        %v5829 = vpop.f32.mrb[0].mxu0
        %5830 = vmatprep.mubr.f32.mxu0 0.0
        %5831 = vmatmul.mubr.f32.gmra.mrb[0].mxu0 %v5709
        %v5832 = vpop.f32.mrb[0].mxu0
        %v5833 = vadd.f32 0.0, %v5832
        %v5834 = vpop.f32.mrb[0].mxu0
        %5835 = vmatprep.mubr.f32.mxu0 0.0
        %5836 = vmatmul.mubr.f32.gmra.mrb[0].mxu0 %v5712
        %v5837 = vpop.f32.mrb[0].mxu0
        %v5838 = vadd.f32 0.0, %v5837
        %v5839 = vpop.f32.mrb[0].mxu0
        %5840 = vmatprep.mubr.f32.mxu0 0.0
        %5841 = vmatmul.mubr.f32.gmra.mrb[0].mxu0 %v5715
        %v5842 = vpop.f32.mrb[0].mxu0
        %v5843 = vadd.f32 0.0, %v5842
        %v5844 = vpop.f32.mrb[0].mxu0
        %5845 = vmatprep.mubr.f32.mxu0 0.0
        %5846 = vmatmul.mubr.f32.gmra.mrb[0].mxu0 %v5718
        %v5847 = vpop.f32.mrb[0].mxu0
        %v5848 = vadd.f32 0.0, %v5847
        %v5849 = vpop.f32.mrb[0].mxu0
        %5850 = vmatprep.mubr.f32.mxu0 0.0
        %5851 = vmatmul.mubr.f32.gmra.mrb[0].mxu0 %v5721
        %v5852 = vpop.f32.mrb[0].mxu0
        %v5853 = vadd.f32 0.0, %v5852
        %v5854 = vpop.f32.mrb[0].mxu0
        %5855 = vmatprep.mubr.f32.mxu0 0.0
        %5856 = vmatmul.mubr.f32.gmra.mrb[0].mxu0 %v5724
        %v5857 = vpop.f32.mrb[0].mxu0
        %v5858 = vadd.f32 0.0, %v5857
        %v5859 = vpop.f32.mrb[0].mxu0
        %5860 = vmatprep.mubr.f32.mxu0 0.0
        %5861 = vmatmul.mubr.f32.gmra.mrb[0].mxu0 %v5727
        %v5862 = vpop.f32.mrb[0].mxu0
        %v5863 = vadd.f32 0.0, %v5862
        %v5864 = vpop.f32.mrb[0].mxu0
        %5865 = vmatprep.mubr.f32.mxu0 0.0
        %5866 = vmatmul.mubr.f32.gmra.mrb[0].mxu0 %v5730
        %v5867 = vpop.f32.mrb[0].mxu0
        %v5868 = vadd.f32 0.0, %v5867
        %v5869 = vpop.f32.mrb[0].mxu0
        %5870 = vmatprep.mubr.f32.mxu0 0.0
        %5871 = vmatmul.mubr.f32.gmra.mrb[0].mxu0 %v5733
        %v5872 = vpop.f32.mrb[0].mxu0
        %v5873 = vadd.f32 0.0, %v5872
        %v5874 = vpop.f32.mrb[0].mxu0
        %5875 = vmatprep.mubr.f32.mxu0 0.0
        %5876 = vmatmul.mubr.f32.gmra.mrb[0].mxu0 %v5736
        %v5877 = vpop.f32.mrb[0].mxu0
        %v5878 = vadd.f32 0.0, %v5877
        %v5879 = vpop.f32.mrb[0].mxu0
        %5880 = vmatprep.mubr.f32.mxu0 0.0
        %5881 = vmatmul.mubr.f32.gmra.mrb[0].mxu0 %v5739
        %v5882 = vpop.f32.mrb[0].mxu0
        %v5883 = vadd.f32 0.0, %v5882
        %v5884 = vpop.f32.mrb[0].mxu0
        %5885 = vdwg.mxu0
        %v5886 = vadd.f32 %v5464, %v5808
        %v5887 = vadd.f32 %v5465, %v5813
        %v5888 = vadd.f32 %v5466, %v5818
        %v5889 = vadd.f32 %v5467, %v5823
        %v5890 = vadd.f32 %v5468, %v5828
        %v5891 = vadd.f32 %v5469, %v5833
        %v5892 = vadd.f32 %v5470, %v5838
        %v5893 = vadd.f32 %v5471, %v5843
        %v5894 = vadd.f32 %v5472, %v5848
        %v5895 = vadd.f32 %v5473, %v5853
        %v5896 = vadd.f32 %v5474, %v5858
        %v5897 = vadd.f32 %v5475, %v5863
        %v5898 = vadd.f32 %v5476, %v5868
        %v5899 = vadd.f32 %v5477, %v5873
        %v5900 = vadd.f32 %v5478, %v5878
        %v5901 = vadd.f32 %v5479, %v5883
        %v5902 = vld [vmem:[#allocation15] sm:$0xff]
        %v5903 = vld [vmem:[#allocation15 + $0x8] sm:$0xff]
        %v5904 = vld [vmem:[#allocation15 + $0x10] sm:$0xff]
        %v5905 = vld [vmem:[#allocation15 + $0x18] sm:$0xff]
        %v5906 = vld [vmem:[#allocation15 + $0x20] sm:$0xff]
        %v5907 = vld [vmem:[#allocation15 + $0x28] sm:$0xff]
        %v5908 = vld [vmem:[#allocation15 + $0x30] sm:$0xff]
        %v5909 = vld [vmem:[#allocation15 + $0x38] sm:$0xff]
        %v5910 = vld [vmem:[#allocation15 + $0x40] sm:$0xff]
        %v5911 = vld [vmem:[#allocation15 + $0x48] sm:$0xff]
        %v5912 = vld [vmem:[#allocation15 + $0x50] sm:$0xff]
        %v5913 = vld [vmem:[#allocation15 + $0x58] sm:$0xff]
        %v5914 = vld [vmem:[#allocation15 + $0x60] sm:$0xff]
        %v5915 = vld [vmem:[#allocation15 + $0x68] sm:$0xff]
        %v5916 = vld [vmem:[#allocation15 + $0x70] sm:$0xff]
        %v5917 = vld [vmem:[#allocation15 + $0x78] sm:$0xff]
        %5919 = vset.pattern.permute.xlu0 0
        %5920 = vperm.xlu0 %5919, %v5902
        %v5921 = vpop.permute.xlu0 %5920
        %5924 = vset.pattern.permute.xlu0 0
        %5925 = vperm.xlu0 %5924, %v5903
        %v5926 = vpop.permute.xlu0 %5925
        %5929 = vset.pattern.permute.xlu0 0
        %5930 = vperm.xlu0 %5929, %v5904
        %v5931 = vpop.permute.xlu0 %5930
        %5934 = vset.pattern.permute.xlu0 0
        %5935 = vperm.xlu0 %5934, %v5905
        %v5936 = vpop.permute.xlu0 %5935
        %5939 = vset.pattern.permute.xlu0 0
        %5940 = vperm.xlu0 %5939, %v5906
        %v5941 = vpop.permute.xlu0 %5940
        %5944 = vset.pattern.permute.xlu0 0
        %5945 = vperm.xlu0 %5944, %v5907
        %v5946 = vpop.permute.xlu0 %5945
        %5949 = vset.pattern.permute.xlu0 0
        %5950 = vperm.xlu0 %5949, %v5908
        %v5951 = vpop.permute.xlu0 %5950
        %5954 = vset.pattern.permute.xlu0 0
        %5955 = vperm.xlu0 %5954, %v5909
        %v5956 = vpop.permute.xlu0 %5955
        %5959 = vset.pattern.permute.xlu0 0
        %5960 = vperm.xlu0 %5959, %v5910
        %v5961 = vpop.permute.xlu0 %5960
        %5964 = vset.pattern.permute.xlu0 0
        %5965 = vperm.xlu0 %5964, %v5911
        %v5966 = vpop.permute.xlu0 %5965
        %5969 = vset.pattern.permute.xlu0 0
        %5970 = vperm.xlu0 %5969, %v5912
        %v5971 = vpop.permute.xlu0 %5970
        %5974 = vset.pattern.permute.xlu0 0
        %5975 = vperm.xlu0 %5974, %v5913
        %v5976 = vpop.permute.xlu0 %5975
        %5979 = vset.pattern.permute.xlu0 0
        %5980 = vperm.xlu0 %5979, %v5914
        %v5981 = vpop.permute.xlu0 %5980
        %5984 = vset.pattern.permute.xlu0 0
        %5985 = vperm.xlu0 %5984, %v5915
        %v5986 = vpop.permute.xlu0 %5985
        %5989 = vset.pattern.permute.xlu0 0
        %5990 = vperm.xlu0 %5989, %v5916
        %v5991 = vpop.permute.xlu0 %5990
        %5994 = vset.pattern.permute.xlu0 0
        %5995 = vperm.xlu0 %5994, %v5917
        %v5996 = vpop.permute.xlu0 %5995
        %v5998 = vadd.f32 %v5886, %v5921
        %v5999 = vadd.f32 %v5887, %v5926
        %v6000 = vadd.f32 %v5888, %v5931
        %v6001 = vadd.f32 %v5889, %v5936
        %v6002 = vadd.f32 %v5890, %v5941
        %v6003 = vadd.f32 %v5891, %v5946
        %v6004 = vadd.f32 %v5892, %v5951
        %v6005 = vadd.f32 %v5893, %v5956
        %v6006 = vadd.f32 %v5894, %v5961
        %v6007 = vadd.f32 %v5895, %v5966
        %v6008 = vadd.f32 %v5896, %v5971
        %v6009 = vadd.f32 %v5897, %v5976
        %v6010 = vadd.f32 %v5898, %v5981
        %v6011 = vadd.f32 %v5899, %v5986
        %v6012 = vadd.f32 %v5900, %v5991
        %v6013 = vadd.f32 %v5901, %v5996
        %v6014 = vmax.f32 %v5998, 0.0
        %v6015 = vmax.f32 %v5999, 0.0
        %v6016 = vmax.f32 %v6000, 0.0
        %v6017 = vmax.f32 %v6001, 0.0
        %v6018 = vmax.f32 %v6002, 0.0
        %v6019 = vmax.f32 %v6003, 0.0
        %v6020 = vmax.f32 %v6004, 0.0
        %v6021 = vmax.f32 %v6005, 0.0
        %v6022 = vmax.f32 %v6006, 0.0
        %v6023 = vmax.f32 %v6007, 0.0
        %v6024 = vmax.f32 %v6008, 0.0
        %v6025 = vmax.f32 %v6009, 0.0
        %v6026 = vmax.f32 %v6010, 0.0
        %v6027 = vmax.f32 %v6011, 0.0
        %v6028 = vmax.f32 %v6012, 0.0
        %v6029 = vmax.f32 %v6013, 0.0
        %v6030 = vld [vmem:[#allocation16] sm:$0xff]
        %v6031 = vld [vmem:[#allocation16 + $0x8] sm:$0xff]
        %v6032 = vld [vmem:[#allocation16 + $0x10] sm:$0xff]
        %6033 = vmatprep.subr.mxu0 0.0
        %6034 = vmatpush1.msra.mxu0 %v6014
        %6035 = vmatprep.subr.mxu0 0.0
        %6036 = vmatpush1.msra.mxu0 %v6015
        %6037 = vmatprep.subr.mxu0 0.0
        %6038 = vmatpush1.msra.mxu0 %v6016
        %6039 = vmatprep.subr.mxu0 0.0
        %6040 = vmatpush1.msra.mxu0 %v6017
        %6041 = vmatprep.subr.mxu0 0.0
        %6042 = vmatpush1.msra.mxu0 %v6018
        %6043 = vmatprep.subr.mxu0 0.0
        %6044 = vmatpush1.msra.mxu0 %v6019
        %6045 = vmatprep.subr.mxu0 0.0
        %6046 = vmatpush1.msra.mxu0 %v6020
        %6047 = vmatprep.subr.mxu0 0.0
        %6048 = vmatpush1.msra.mxu0 %v6021
        %6049 = vmatprep.subr.mxu0 0.0
        %6050 = vmatpush1.msra.mxu0 %v6022
        %6051 = vmatprep.subr.mxu0 0.0
        %6052 = vmatpush1.msra.mxu0 %v6023
        %6053 = vmatprep.subr.mxu0 0.0
        %6054 = vmatpush1.msra.mxu0 %v6024
        %6055 = vmatprep.subr.mxu0 0.0
        %6056 = vmatpush1.msra.mxu0 %v6025
        %6057 = vmatprep.subr.mxu0 0.0
        %6058 = vmatpush1.msra.mxu0 %v6026
        %6059 = vmatprep.subr.mxu0 0.0
        %6060 = vmatpush1.msra.mxu0 %v6027
        %6061 = vmatprep.subr.mxu0 0.0
        %6062 = vmatpush1.msra.mxu0 %v6028
        %6063 = vmatprep.subr.mxu0 0.0
        %6064 = vmatpush1.msra.mxu0 %v6029
        %6065 = vmatprep.subr.mxu0 0.0
        %6066 = vmatpush1.msra.mxu0 0.0
        %6067 = vmatprep.subr.mxu0 0.0
        %6068 = vmatpush1.msra.mxu0 0.0
        %6069 = vmatprep.subr.mxu0 0.0
        %6070 = vmatpush1.msra.mxu0 0.0
        %6071 = vmatprep.subr.mxu0 0.0
        %6072 = vmatpush1.msra.mxu0 0.0
        %6073 = vmatprep.subr.mxu0 0.0
        %6074 = vmatpush1.msra.mxu0 0.0
        %6075 = vmatprep.subr.mxu0 0.0
        %6076 = vmatpush1.msra.mxu0 0.0
        %6077 = vmatprep.subr.mxu0 0.0
        %6078 = vmatpush1.msra.mxu0 0.0
        %6079 = vmatprep.subr.mxu0 0.0
        %6080 = vmatpush1.msra.mxu0 0.0
        %6081 = vmatprep.subr.mxu0 0.0
        %6082 = vmatpush1.msra.mxu0 0.0
        %6083 = vmatprep.subr.mxu0 0.0
        %6084 = vmatpush1.msra.mxu0 0.0
        %6085 = vmatprep.subr.mxu0 0.0
        %6086 = vmatpush1.msra.mxu0 0.0
        %6087 = vmatprep.subr.mxu0 0.0
        %6088 = vmatpush1.msra.mxu0 0.0
        %6089 = vmatprep.subr.mxu0 0.0
        %6090 = vmatpush1.msra.mxu0 0.0
        %6091 = vmatprep.subr.mxu0 0.0
        %6092 = vmatpush1.msra.mxu0 0.0
        %6093 = vmatprep.subr.mxu0 0.0
        %6094 = vmatpush1.msra.mxu0 0.0
        %6095 = vmatprep.subr.mxu0 0.0
        %6096 = vmatpush1.msra.mxu0 0.0
        %6097 = vmatprep.mubr.f32.mxu0 0.0
        %6098 = vmatmul.mubr.f32.gmra.mrb[0].mxu0 %v6030
        %v6099 = vpop.f32.mrb[0].mxu0
        %v6100 = vadd.f32 0.0, %v6099
        %v6101 = vpop.f32.mrb[0].mxu0
        %6102 = vmatprep.mubr.f32.mxu0 0.0
        %6103 = vmatmul.mubr.f32.gmra.mrb[0].mxu0 %v6031
        %v6104 = vpop.f32.mrb[0].mxu0
        %v6105 = vadd.f32 0.0, %v6104
        %v6106 = vpop.f32.mrb[0].mxu0
        %6107 = vmatprep.mubr.f32.mxu0 0.0
        %6108 = vmatmul.mubr.f32.gmra.mrb[0].mxu0 %v6032
        %v6109 = vpop.f32.mrb[0].mxu0
        %v6110 = vadd.f32 0.0, %v6109
        %v6111 = vpop.f32.mrb[0].mxu0
        %6112 = vdwg.mxu0
        %v6113 = vld [vmem:[#allocation18] sm:$0xff]
        %v6114 = vld [vmem:[#allocation18 + $0x8] sm:$0xff]
        %v6115 = vld [vmem:[#allocation18 + $0x10] sm:$0xff]
        %v6116 = vld [vmem:[#allocation18 + $0x18] sm:$0xff]
        %v6117 = vld [vmem:[#allocation18 + $0x20] sm:$0xff]
        %v6118 = vld [vmem:[#allocation18 + $0x28] sm:$0xff]
        %v6119 = vld [vmem:[#allocation18 + $0x30] sm:$0xff]
        %v6120 = vld [vmem:[#allocation18 + $0x38] sm:$0xff]
        %v6121 = vld [vmem:[#allocation18 + $0x40] sm:$0xff]
        %v6122 = vld [vmem:[#allocation18 + $0x48] sm:$0xff]
        %v6123 = vld [vmem:[#allocation18 + $0x50] sm:$0xff]
        %v6124 = vld [vmem:[#allocation18 + $0x58] sm:$0xff]
        %v6125 = vld [vmem:[#allocation18 + $0x60] sm:$0xff]
        %v6126 = vld [vmem:[#allocation18 + $0x68] sm:$0xff]
        %v6127 = vld [vmem:[#allocation18 + $0x70] sm:$0xff]
        %v6128 = vld [vmem:[#allocation18 + $0x78] sm:$0xff]
        %s6129 = scalar_lea.vmem [#allocation16], 24
        %v6130 = vld [vmem:[%s6129] sm:$0xff]
        %v6131 = vld [vmem:[%s6129 + $0x8] sm:$0xff]
        %v6132 = vld [vmem:[%s6129 + $0x10] sm:$0xff]
        %6133 = vmatprep.subr.mxu0 0.0
        %6134 = vmatpush1.msra.mxu0 %v6014
        %6135 = vmatprep.subr.mxu0 0.0
        %6136 = vmatpush1.msra.mxu0 %v6015
        %6137 = vmatprep.subr.mxu0 0.0
        %6138 = vmatpush1.msra.mxu0 %v6016
        %6139 = vmatprep.subr.mxu0 0.0
        %6140 = vmatpush1.msra.mxu0 %v6017
        %6141 = vmatprep.subr.mxu0 0.0
        %6142 = vmatpush1.msra.mxu0 %v6018
        %6143 = vmatprep.subr.mxu0 0.0
        %6144 = vmatpush1.msra.mxu0 %v6019
        %6145 = vmatprep.subr.mxu0 0.0
        %6146 = vmatpush1.msra.mxu0 %v6020
        %6147 = vmatprep.subr.mxu0 0.0
        %6148 = vmatpush1.msra.mxu0 %v6021
        %6149 = vmatprep.subr.mxu0 0.0
        %6150 = vmatpush1.msra.mxu0 %v6022
        %6151 = vmatprep.subr.mxu0 0.0
        %6152 = vmatpush1.msra.mxu0 %v6023
        %6153 = vmatprep.subr.mxu0 0.0
        %6154 = vmatpush1.msra.mxu0 %v6024
        %6155 = vmatprep.subr.mxu0 0.0
        %6156 = vmatpush1.msra.mxu0 %v6025
        %6157 = vmatprep.subr.mxu0 0.0
        %6158 = vmatpush1.msra.mxu0 %v6026
        %6159 = vmatprep.subr.mxu0 0.0
        %6160 = vmatpush1.msra.mxu0 %v6027
        %6161 = vmatprep.subr.mxu0 0.0
        %6162 = vmatpush1.msra.mxu0 %v6028
        %6163 = vmatprep.subr.mxu0 0.0
        %6164 = vmatpush1.msra.mxu0 %v6029
        %6165 = vmatprep.subr.mxu0 0.0
        %6166 = vmatpush1.msra.mxu0 0.0
        %6167 = vmatprep.subr.mxu0 0.0
        %6168 = vmatpush1.msra.mxu0 0.0
        %6169 = vmatprep.subr.mxu0 0.0
        %6170 = vmatpush1.msra.mxu0 0.0
        %6171 = vmatprep.subr.mxu0 0.0
        %6172 = vmatpush1.msra.mxu0 0.0
        %6173 = vmatprep.subr.mxu0 0.0
        %6174 = vmatpush1.msra.mxu0 0.0
        %6175 = vmatprep.subr.mxu0 0.0
        %6176 = vmatpush1.msra.mxu0 0.0
        %6177 = vmatprep.subr.mxu0 0.0
        %6178 = vmatpush1.msra.mxu0 0.0
        %6179 = vmatprep.subr.mxu0 0.0
        %6180 = vmatpush1.msra.mxu0 0.0
        %6181 = vmatprep.subr.mxu0 0.0
        %6182 = vmatpush1.msra.mxu0 0.0
        %6183 = vmatprep.subr.mxu0 0.0
        %6184 = vmatpush1.msra.mxu0 0.0
        %6185 = vmatprep.subr.mxu0 0.0
        %6186 = vmatpush1.msra.mxu0 0.0
        %6187 = vmatprep.subr.mxu0 0.0
        %6188 = vmatpush1.msra.mxu0 0.0
        %6189 = vmatprep.subr.mxu0 0.0
        %6190 = vmatpush1.msra.mxu0 0.0
        %6191 = vmatprep.subr.mxu0 0.0
        %6192 = vmatpush1.msra.mxu0 0.0
        %6193 = vmatprep.subr.mxu0 0.0
        %6194 = vmatpush1.msra.mxu0 0.0
        %6195 = vmatprep.subr.mxu0 0.0
        %6196 = vmatpush1.msra.mxu0 0.0
        %6197 = vmatprep.mubr.f32.mxu0 0.0
        %6198 = vmatmul.mubr.f32.gmra.mrb[0].mxu0 %v6130
        %v6199 = vpop.f32.mrb[0].mxu0
        %v6200 = vadd.f32 0.0, %v6199
        %v6201 = vpop.f32.mrb[0].mxu0
        %6202 = vmatprep.mubr.f32.mxu0 0.0
        %6203 = vmatmul.mubr.f32.gmra.mrb[0].mxu0 %v6131
        %v6204 = vpop.f32.mrb[0].mxu0
        %v6205 = vadd.f32 0.0, %v6204
        %v6206 = vpop.f32.mrb[0].mxu0
        %6207 = vmatprep.mubr.f32.mxu0 0.0
        %6208 = vmatmul.mubr.f32.gmra.mrb[0].mxu0 %v6132
        %v6209 = vpop.f32.mrb[0].mxu0
        %v6210 = vadd.f32 0.0, %v6209
        %v6211 = vpop.f32.mrb[0].mxu0
        %6212 = vdwg.mxu0
        %s6213 = scalar_lea.vmem [#allocation18], 128
        %v6214 = vld [vmem:[%s6213] sm:$0xff]
        %v6215 = vld [vmem:[%s6213 + $0x8] sm:$0xff]
        %v6216 = vld [vmem:[%s6213 + $0x10] sm:$0xff]
        %v6217 = vld [vmem:[%s6213 + $0x18] sm:$0xff]
        %v6218 = vld [vmem:[%s6213 + $0x20] sm:$0xff]
        %v6219 = vld [vmem:[%s6213 + $0x28] sm:$0xff]
        %v6220 = vld [vmem:[%s6213 + $0x30] sm:$0xff]
        %v6221 = vld [vmem:[%s6213 + $0x38] sm:$0xff]
        %v6222 = vld [vmem:[%s6213 + $0x40] sm:$0xff]
        %v6223 = vld [vmem:[%s6213 + $0x48] sm:$0xff]
        %v6224 = vld [vmem:[%s6213 + $0x50] sm:$0xff]
        %v6225 = vld [vmem:[%s6213 + $0x58] sm:$0xff]
        %v6226 = vld [vmem:[%s6213 + $0x60] sm:$0xff]
        %v6227 = vld [vmem:[%s6213 + $0x68] sm:$0xff]
        %v6228 = vld [vmem:[%s6213 + $0x70] sm:$0xff]
        %v6229 = vld [vmem:[%s6213 + $0x78] sm:$0xff]
        %v6231 = vsel %vm1932, %v6200, 0
        %v6234 = vsel %vm1932, %v6205, 0
        %v6237 = vsel %vm1932, %v6210, 0
        %6239 = vmatprep.subr.mxu0 %v6215
        %6240 = vmatpush1.msra.mxu0 %v6214
        %6241 = vmatprep.subr.mxu0 %v6217
        %6242 = vmatpush1.msra.mxu0 %v6216
        %6243 = vmatprep.subr.mxu0 %v6219
        %6244 = vmatpush1.msra.mxu0 %v6218
        %6245 = vmatprep.subr.mxu0 %v6221
        %6246 = vmatpush1.msra.mxu0 %v6220
        %6247 = vmatprep.subr.mxu0 %v6223
        %6248 = vmatpush1.msra.mxu0 %v6222
        %6249 = vmatprep.subr.mxu0 %v6225
        %6250 = vmatpush1.msra.mxu0 %v6224
        %6251 = vmatprep.subr.mxu0 %v6227
        %6252 = vmatpush1.msra.mxu0 %v6226
        %6253 = vmatprep.subr.mxu0 %v6229
        %6254 = vmatpush1.msra.mxu0 %v6228
        %6255 = vmatprep.subr.mxu0 0.0
        %6256 = vmatpush1.msra.mxu0 0.0
        %6257 = vmatprep.subr.mxu0 0.0
        %6258 = vmatpush1.msra.mxu0 0.0
        %6259 = vmatprep.subr.mxu0 0.0
        %6260 = vmatpush1.msra.mxu0 0.0
        %6261 = vmatprep.subr.mxu0 0.0
        %6262 = vmatpush1.msra.mxu0 0.0
        %6263 = vmatprep.subr.mxu0 0.0
        %6264 = vmatpush1.msra.mxu0 0.0
        %6265 = vmatprep.subr.mxu0 0.0
        %6266 = vmatpush1.msra.mxu0 0.0
        %6267 = vmatprep.subr.mxu0 0.0
        %6268 = vmatpush1.msra.mxu0 0.0
        %6269 = vmatprep.subr.mxu0 0.0
        %6270 = vmatpush1.msra.mxu0 0.0
        %6271 = vmatprep.subr.mxu0 0.0
        %6272 = vmatpush1.msra.mxu0 0.0
        %6273 = vmatprep.subr.mxu0 0.0
        %6274 = vmatpush1.msra.mxu0 0.0
        %6275 = vmatprep.subr.mxu0 0.0
        %6276 = vmatpush1.msra.mxu0 0.0
        %6277 = vmatprep.subr.mxu0 0.0
        %6278 = vmatpush1.msra.mxu0 0.0
        %6279 = vmatprep.subr.mxu0 0.0
        %6280 = vmatpush1.msra.mxu0 0.0
        %6281 = vmatprep.subr.mxu0 0.0
        %6282 = vmatpush1.msra.mxu0 0.0
        %6283 = vmatprep.subr.mxu0 0.0
        %6284 = vmatpush1.msra.mxu0 0.0
        %6285 = vmatprep.subr.mxu0 0.0
        %6286 = vmatpush1.msra.mxu0 0.0
        %6287 = vmatprep.subr.mxu0 0.0
        %6288 = vmatpush1.msra.mxu0 0.0
        %6289 = vmatprep.subr.mxu0 0.0
        %6290 = vmatpush1.msra.mxu0 0.0
        %6291 = vmatprep.subr.mxu0 0.0
        %6292 = vmatpush1.msra.mxu0 0.0
        %6293 = vmatprep.subr.mxu0 0.0
        %6294 = vmatpush1.msra.mxu0 0.0
        %6295 = vmatprep.subr.mxu0 0.0
        %6296 = vmatpush1.msra.mxu0 0.0
        %6297 = vmatprep.subr.mxu0 0.0
        %6298 = vmatpush1.msra.mxu0 0.0
        %6299 = vmatprep.subr.mxu0 0.0
        %6300 = vmatpush1.msra.mxu0 0.0
        %6301 = vmatprep.subr.mxu0 0.0
        %6302 = vmatpush1.msra.mxu0 0.0
        %6303 = vmatprep.mubr.f32.mxu0 0.0
        %6304 = vmatmul.mubr.f32.gmra.mrb[0].mxu0 %v6231
        %v6305 = vpop.f32.mrb[0].mxu0
        %v6306 = vadd.f32 0.0, %v6305
        %v6307 = vpop.f32.mrb[0].mxu0
        %v6308 = vadd.f32 0.0, %v6307
        %6309 = vmatprep.mubr.f32.mxu0 0.0
        %6310 = vmatmul.mubr.f32.gmra.mrb[0].mxu0 %v6234
        %v6311 = vpop.f32.mrb[0].mxu0
        %v6312 = vadd.f32 0.0, %v6311
        %v6313 = vpop.f32.mrb[0].mxu0
        %v6314 = vadd.f32 0.0, %v6313
        %6315 = vmatprep.mubr.f32.mxu0 0.0
        %6316 = vmatmul.mubr.f32.gmra.mrb[0].mxu0 %v6237
        %v6317 = vpop.f32.mrb[0].mxu0
        %v6318 = vadd.f32 0.0, %v6317
        %v6319 = vpop.f32.mrb[0].mxu0
        %v6320 = vadd.f32 0.0, %v6319
        %6321 = vdwg.mxu0
        %v6323 = vsel %vm1932, %v6100, 0
        %v6326 = vsel %vm1932, %v6105, 0
        %v6329 = vsel %vm1932, %v6110, 0
        %6331 = vmatprep.subr.mxu0 %v6114
        %6332 = vmatpush1.msra.mxu0 %v6113
        %6333 = vmatprep.subr.mxu0 %v6116
        %6334 = vmatpush1.msra.mxu0 %v6115
        %6335 = vmatprep.subr.mxu0 %v6118
        %6336 = vmatpush1.msra.mxu0 %v6117
        %6337 = vmatprep.subr.mxu0 %v6120
        %6338 = vmatpush1.msra.mxu0 %v6119
        %6339 = vmatprep.subr.mxu0 %v6122
        %6340 = vmatpush1.msra.mxu0 %v6121
        %6341 = vmatprep.subr.mxu0 %v6124
        %6342 = vmatpush1.msra.mxu0 %v6123
        %6343 = vmatprep.subr.mxu0 %v6126
        %6344 = vmatpush1.msra.mxu0 %v6125
        %6345 = vmatprep.subr.mxu0 %v6128
        %6346 = vmatpush1.msra.mxu0 %v6127
        %6347 = vmatprep.subr.mxu0 0.0
        %6348 = vmatpush1.msra.mxu0 0.0
        %6349 = vmatprep.subr.mxu0 0.0
        %6350 = vmatpush1.msra.mxu0 0.0
        %6351 = vmatprep.subr.mxu0 0.0
        %6352 = vmatpush1.msra.mxu0 0.0
        %6353 = vmatprep.subr.mxu0 0.0
        %6354 = vmatpush1.msra.mxu0 0.0
        %6355 = vmatprep.subr.mxu0 0.0
        %6356 = vmatpush1.msra.mxu0 0.0
        %6357 = vmatprep.subr.mxu0 0.0
        %6358 = vmatpush1.msra.mxu0 0.0
        %6359 = vmatprep.subr.mxu0 0.0
        %6360 = vmatpush1.msra.mxu0 0.0
        %6361 = vmatprep.subr.mxu0 0.0
        %6362 = vmatpush1.msra.mxu0 0.0
        %6363 = vmatprep.subr.mxu0 0.0
        %6364 = vmatpush1.msra.mxu0 0.0
        %6365 = vmatprep.subr.mxu0 0.0
        %6366 = vmatpush1.msra.mxu0 0.0
        %6367 = vmatprep.subr.mxu0 0.0
        %6368 = vmatpush1.msra.mxu0 0.0
        %6369 = vmatprep.subr.mxu0 0.0
        %6370 = vmatpush1.msra.mxu0 0.0
        %6371 = vmatprep.subr.mxu0 0.0
        %6372 = vmatpush1.msra.mxu0 0.0
        %6373 = vmatprep.subr.mxu0 0.0
        %6374 = vmatpush1.msra.mxu0 0.0
        %6375 = vmatprep.subr.mxu0 0.0
        %6376 = vmatpush1.msra.mxu0 0.0
        %6377 = vmatprep.subr.mxu0 0.0
        %6378 = vmatpush1.msra.mxu0 0.0
        %6379 = vmatprep.subr.mxu0 0.0
        %6380 = vmatpush1.msra.mxu0 0.0
        %6381 = vmatprep.subr.mxu0 0.0
        %6382 = vmatpush1.msra.mxu0 0.0
        %6383 = vmatprep.subr.mxu0 0.0
        %6384 = vmatpush1.msra.mxu0 0.0
        %6385 = vmatprep.subr.mxu0 0.0
        %6386 = vmatpush1.msra.mxu0 0.0
        %6387 = vmatprep.subr.mxu0 0.0
        %6388 = vmatpush1.msra.mxu0 0.0
        %6389 = vmatprep.subr.mxu0 0.0
        %6390 = vmatpush1.msra.mxu0 0.0
        %6391 = vmatprep.subr.mxu0 0.0
        %6392 = vmatpush1.msra.mxu0 0.0
        %6393 = vmatprep.subr.mxu0 0.0
        %6394 = vmatpush1.msra.mxu0 0.0
        %6395 = vmatprep.mubr.f32.mxu0 0.0
        %6396 = vmatmul.mubr.f32.gmra.mrb[0].mxu0 %v6323
        %v6397 = vpop.f32.mrb[0].mxu0
        %v6398 = vadd.f32 %v6306, %v6397
        %v6399 = vpop.f32.mrb[0].mxu0
        %v6400 = vadd.f32 %v6308, %v6399
        %6401 = vmatprep.mubr.f32.mxu0 0.0
        %6402 = vmatmul.mubr.f32.gmra.mrb[0].mxu0 %v6326
        %v6403 = vpop.f32.mrb[0].mxu0
        %v6404 = vadd.f32 %v6312, %v6403
        %v6405 = vpop.f32.mrb[0].mxu0
        %v6406 = vadd.f32 %v6314, %v6405
        %6407 = vmatprep.mubr.f32.mxu0 0.0
        %6408 = vmatmul.mubr.f32.gmra.mrb[0].mxu0 %v6329
        %v6409 = vpop.f32.mrb[0].mxu0
        %v6410 = vadd.f32 %v6318, %v6409
        %v6411 = vpop.f32.mrb[0].mxu0
        %v6412 = vadd.f32 %v6320, %v6411
        %6413 = vdwg.mxu0
        %s6414 = scalar_lea.vmem [#allocation16], 48
        %v6415 = vld [vmem:[%s6414] sm:$0xff]
        %v6416 = vld [vmem:[%s6414 + $0x8] sm:$0xff]
        %v6417 = vld [vmem:[%s6414 + $0x10] sm:$0xff]
        %6418 = vmatprep.subr.mxu0 0.0
        %6419 = vmatpush1.msra.mxu0 %v6014
        %6420 = vmatprep.subr.mxu0 0.0
        %6421 = vmatpush1.msra.mxu0 %v6015
        %6422 = vmatprep.subr.mxu0 0.0
        %6423 = vmatpush1.msra.mxu0 %v6016
        %6424 = vmatprep.subr.mxu0 0.0
        %6425 = vmatpush1.msra.mxu0 %v6017
        %6426 = vmatprep.subr.mxu0 0.0
        %6427 = vmatpush1.msra.mxu0 %v6018
        %6428 = vmatprep.subr.mxu0 0.0
        %6429 = vmatpush1.msra.mxu0 %v6019
        %6430 = vmatprep.subr.mxu0 0.0
        %6431 = vmatpush1.msra.mxu0 %v6020
        %6432 = vmatprep.subr.mxu0 0.0
        %6433 = vmatpush1.msra.mxu0 %v6021
        %6434 = vmatprep.subr.mxu0 0.0
        %6435 = vmatpush1.msra.mxu0 %v6022
        %6436 = vmatprep.subr.mxu0 0.0
        %6437 = vmatpush1.msra.mxu0 %v6023
        %6438 = vmatprep.subr.mxu0 0.0
        %6439 = vmatpush1.msra.mxu0 %v6024
        %6440 = vmatprep.subr.mxu0 0.0
        %6441 = vmatpush1.msra.mxu0 %v6025
        %6442 = vmatprep.subr.mxu0 0.0
        %6443 = vmatpush1.msra.mxu0 %v6026
        %6444 = vmatprep.subr.mxu0 0.0
        %6445 = vmatpush1.msra.mxu0 %v6027
        %6446 = vmatprep.subr.mxu0 0.0
        %6447 = vmatpush1.msra.mxu0 %v6028
        %6448 = vmatprep.subr.mxu0 0.0
        %6449 = vmatpush1.msra.mxu0 %v6029
        %6450 = vmatprep.subr.mxu0 0.0
        %6451 = vmatpush1.msra.mxu0 0.0
        %6452 = vmatprep.subr.mxu0 0.0
        %6453 = vmatpush1.msra.mxu0 0.0
        %6454 = vmatprep.subr.mxu0 0.0
        %6455 = vmatpush1.msra.mxu0 0.0
        %6456 = vmatprep.subr.mxu0 0.0
        %6457 = vmatpush1.msra.mxu0 0.0
        %6458 = vmatprep.subr.mxu0 0.0
        %6459 = vmatpush1.msra.mxu0 0.0
        %6460 = vmatprep.subr.mxu0 0.0
        %6461 = vmatpush1.msra.mxu0 0.0
        %6462 = vmatprep.subr.mxu0 0.0
        %6463 = vmatpush1.msra.mxu0 0.0
        %6464 = vmatprep.subr.mxu0 0.0
        %6465 = vmatpush1.msra.mxu0 0.0
        %6466 = vmatprep.subr.mxu0 0.0
        %6467 = vmatpush1.msra.mxu0 0.0
        %6468 = vmatprep.subr.mxu0 0.0
        %6469 = vmatpush1.msra.mxu0 0.0
        %6470 = vmatprep.subr.mxu0 0.0
        %6471 = vmatpush1.msra.mxu0 0.0
        %6472 = vmatprep.subr.mxu0 0.0
        %6473 = vmatpush1.msra.mxu0 0.0
        %6474 = vmatprep.subr.mxu0 0.0
        %6475 = vmatpush1.msra.mxu0 0.0
        %6476 = vmatprep.subr.mxu0 0.0
        %6477 = vmatpush1.msra.mxu0 0.0
        %6478 = vmatprep.subr.mxu0 0.0
        %6479 = vmatpush1.msra.mxu0 0.0
        %6480 = vmatprep.subr.mxu0 0.0
        %6481 = vmatpush1.msra.mxu0 0.0
        %6482 = vmatprep.mubr.f32.mxu0 0.0
        %6483 = vmatmul.mubr.f32.gmra.mrb[0].mxu0 %v6415
        %v6484 = vpop.f32.mrb[0].mxu0
        %v6485 = vadd.f32 0.0, %v6484
        %v6486 = vpop.f32.mrb[0].mxu0
        %6487 = vmatprep.mubr.f32.mxu0 0.0
        %6488 = vmatmul.mubr.f32.gmra.mrb[0].mxu0 %v6416
        %v6489 = vpop.f32.mrb[0].mxu0
        %v6490 = vadd.f32 0.0, %v6489
        %v6491 = vpop.f32.mrb[0].mxu0
        %6492 = vmatprep.mubr.f32.mxu0 0.0
        %6493 = vmatmul.mubr.f32.gmra.mrb[0].mxu0 %v6417
        %v6494 = vpop.f32.mrb[0].mxu0
        %v6495 = vadd.f32 0.0, %v6494
        %v6496 = vpop.f32.mrb[0].mxu0
        %6497 = vdwg.mxu0
        %s6498 = scalar_lea.vmem [#allocation18], 256
        %v6499 = vld [vmem:[%s6498] sm:$0xff]
        %v6500 = vld [vmem:[%s6498 + $0x8] sm:$0xff]
        %v6501 = vld [vmem:[%s6498 + $0x10] sm:$0xff]
        %v6502 = vld [vmem:[%s6498 + $0x18] sm:$0xff]
        %v6503 = vld [vmem:[%s6498 + $0x20] sm:$0xff]
        %v6504 = vld [vmem:[%s6498 + $0x28] sm:$0xff]
        %v6505 = vld [vmem:[%s6498 + $0x30] sm:$0xff]
        %v6506 = vld [vmem:[%s6498 + $0x38] sm:$0xff]
        %v6507 = vld [vmem:[%s6498 + $0x40] sm:$0xff]
        %v6508 = vld [vmem:[%s6498 + $0x48] sm:$0xff]
        %v6509 = vld [vmem:[%s6498 + $0x50] sm:$0xff]
        %v6510 = vld [vmem:[%s6498 + $0x58] sm:$0xff]
        %v6511 = vld [vmem:[%s6498 + $0x60] sm:$0xff]
        %v6512 = vld [vmem:[%s6498 + $0x68] sm:$0xff]
        %v6513 = vld [vmem:[%s6498 + $0x70] sm:$0xff]
        %v6514 = vld [vmem:[%s6498 + $0x78] sm:$0xff]
        %v6516 = vsel %vm1932, %v6485, 0
        %v6519 = vsel %vm1932, %v6490, 0
        %v6522 = vsel %vm1932, %v6495, 0
        %6524 = vmatprep.subr.mxu0 %v6500
        %6525 = vmatpush1.msra.mxu0 %v6499
        %6526 = vmatprep.subr.mxu0 %v6502
        %6527 = vmatpush1.msra.mxu0 %v6501
        %6528 = vmatprep.subr.mxu0 %v6504
        %6529 = vmatpush1.msra.mxu0 %v6503
        %6530 = vmatprep.subr.mxu0 %v6506
        %6531 = vmatpush1.msra.mxu0 %v6505
        %6532 = vmatprep.subr.mxu0 %v6508
        %6533 = vmatpush1.msra.mxu0 %v6507
        %6534 = vmatprep.subr.mxu0 %v6510
        %6535 = vmatpush1.msra.mxu0 %v6509
        %6536 = vmatprep.subr.mxu0 %v6512
        %6537 = vmatpush1.msra.mxu0 %v6511
        %6538 = vmatprep.subr.mxu0 %v6514
        %6539 = vmatpush1.msra.mxu0 %v6513
        %6540 = vmatprep.subr.mxu0 0.0
        %6541 = vmatpush1.msra.mxu0 0.0
        %6542 = vmatprep.subr.mxu0 0.0
        %6543 = vmatpush1.msra.mxu0 0.0
        %6544 = vmatprep.subr.mxu0 0.0
        %6545 = vmatpush1.msra.mxu0 0.0
        %6546 = vmatprep.subr.mxu0 0.0
        %6547 = vmatpush1.msra.mxu0 0.0
        %6548 = vmatprep.subr.mxu0 0.0
        %6549 = vmatpush1.msra.mxu0 0.0
        %6550 = vmatprep.subr.mxu0 0.0
        %6551 = vmatpush1.msra.mxu0 0.0
        %6552 = vmatprep.subr.mxu0 0.0
        %6553 = vmatpush1.msra.mxu0 0.0
        %6554 = vmatprep.subr.mxu0 0.0
        %6555 = vmatpush1.msra.mxu0 0.0
        %6556 = vmatprep.subr.mxu0 0.0
        %6557 = vmatpush1.msra.mxu0 0.0
        %6558 = vmatprep.subr.mxu0 0.0
        %6559 = vmatpush1.msra.mxu0 0.0
        %6560 = vmatprep.subr.mxu0 0.0
        %6561 = vmatpush1.msra.mxu0 0.0
        %6562 = vmatprep.subr.mxu0 0.0
        %6563 = vmatpush1.msra.mxu0 0.0
        %6564 = vmatprep.subr.mxu0 0.0
        %6565 = vmatpush1.msra.mxu0 0.0
        %6566 = vmatprep.subr.mxu0 0.0
        %6567 = vmatpush1.msra.mxu0 0.0
        %6568 = vmatprep.subr.mxu0 0.0
        %6569 = vmatpush1.msra.mxu0 0.0
        %6570 = vmatprep.subr.mxu0 0.0
        %6571 = vmatpush1.msra.mxu0 0.0
        %6572 = vmatprep.subr.mxu0 0.0
        %6573 = vmatpush1.msra.mxu0 0.0
        %6574 = vmatprep.subr.mxu0 0.0
        %6575 = vmatpush1.msra.mxu0 0.0
        %6576 = vmatprep.subr.mxu0 0.0
        %6577 = vmatpush1.msra.mxu0 0.0
        %6578 = vmatprep.subr.mxu0 0.0
        %6579 = vmatpush1.msra.mxu0 0.0
        %6580 = vmatprep.subr.mxu0 0.0
        %6581 = vmatpush1.msra.mxu0 0.0
        %6582 = vmatprep.subr.mxu0 0.0
        %6583 = vmatpush1.msra.mxu0 0.0
        %6584 = vmatprep.subr.mxu0 0.0
        %6585 = vmatpush1.msra.mxu0 0.0
        %6586 = vmatprep.subr.mxu0 0.0
        %6587 = vmatpush1.msra.mxu0 0.0
        %6588 = vmatprep.mubr.f32.mxu0 0.0
        %6589 = vmatmul.mubr.f32.gmra.mrb[0].mxu0 %v6516
        %v6590 = vpop.f32.mrb[0].mxu0
        %v6591 = vadd.f32 0.0, %v6590
        %v6592 = vpop.f32.mrb[0].mxu0
        %v6593 = vadd.f32 0.0, %v6592
        %6594 = vmatprep.mubr.f32.mxu0 0.0
        %6595 = vmatmul.mubr.f32.gmra.mrb[0].mxu0 %v6519
        %v6596 = vpop.f32.mrb[0].mxu0
        %v6597 = vadd.f32 0.0, %v6596
        %v6598 = vpop.f32.mrb[0].mxu0
        %v6599 = vadd.f32 0.0, %v6598
        %6600 = vmatprep.mubr.f32.mxu0 0.0
        %6601 = vmatmul.mubr.f32.gmra.mrb[0].mxu0 %v6522
        %v6602 = vpop.f32.mrb[0].mxu0
        %v6603 = vadd.f32 0.0, %v6602
        %v6604 = vpop.f32.mrb[0].mxu0
        %v6605 = vadd.f32 0.0, %v6604
        %6606 = vdwg.mxu0
        %v6607 = vadd.f32 %v6398, %v6591
        %v6608 = vadd.f32 %v6400, %v6593
        %v6609 = vadd.f32 %v6404, %v6597
        %v6610 = vadd.f32 %v6406, %v6599
        %v6611 = vadd.f32 %v6410, %v6603
        %v6612 = vadd.f32 %v6412, %v6605
        %s6613 = scalar_lea.vmem [#allocation16], 72
        %v6614 = vld [vmem:[%s6613] sm:$0xff]
        %v6615 = vld [vmem:[%s6613 + $0x8] sm:$0xff]
        %v6616 = vld [vmem:[%s6613 + $0x10] sm:$0xff]
        %6617 = vmatprep.subr.mxu0 0.0
        %6618 = vmatpush1.msra.mxu0 %v6014
        %6619 = vmatprep.subr.mxu0 0.0
        %6620 = vmatpush1.msra.mxu0 %v6015
        %6621 = vmatprep.subr.mxu0 0.0
        %6622 = vmatpush1.msra.mxu0 %v6016
        %6623 = vmatprep.subr.mxu0 0.0
        %6624 = vmatpush1.msra.mxu0 %v6017
        %6625 = vmatprep.subr.mxu0 0.0
        %6626 = vmatpush1.msra.mxu0 %v6018
        %6627 = vmatprep.subr.mxu0 0.0
        %6628 = vmatpush1.msra.mxu0 %v6019
        %6629 = vmatprep.subr.mxu0 0.0
        %6630 = vmatpush1.msra.mxu0 %v6020
        %6631 = vmatprep.subr.mxu0 0.0
        %6632 = vmatpush1.msra.mxu0 %v6021
        %6633 = vmatprep.subr.mxu0 0.0
        %6634 = vmatpush1.msra.mxu0 %v6022
        %6635 = vmatprep.subr.mxu0 0.0
        %6636 = vmatpush1.msra.mxu0 %v6023
        %6637 = vmatprep.subr.mxu0 0.0
        %6638 = vmatpush1.msra.mxu0 %v6024
        %6639 = vmatprep.subr.mxu0 0.0
        %6640 = vmatpush1.msra.mxu0 %v6025
        %6641 = vmatprep.subr.mxu0 0.0
        %6642 = vmatpush1.msra.mxu0 %v6026
        %6643 = vmatprep.subr.mxu0 0.0
        %6644 = vmatpush1.msra.mxu0 %v6027
        %6645 = vmatprep.subr.mxu0 0.0
        %6646 = vmatpush1.msra.mxu0 %v6028
        %6647 = vmatprep.subr.mxu0 0.0
        %6648 = vmatpush1.msra.mxu0 %v6029
        %6649 = vmatprep.subr.mxu0 0.0
        %6650 = vmatpush1.msra.mxu0 0.0
        %6651 = vmatprep.subr.mxu0 0.0
        %6652 = vmatpush1.msra.mxu0 0.0
        %6653 = vmatprep.subr.mxu0 0.0
        %6654 = vmatpush1.msra.mxu0 0.0
        %6655 = vmatprep.subr.mxu0 0.0
        %6656 = vmatpush1.msra.mxu0 0.0
        %6657 = vmatprep.subr.mxu0 0.0
        %6658 = vmatpush1.msra.mxu0 0.0
        %6659 = vmatprep.subr.mxu0 0.0
        %6660 = vmatpush1.msra.mxu0 0.0
        %6661 = vmatprep.subr.mxu0 0.0
        %6662 = vmatpush1.msra.mxu0 0.0
        %6663 = vmatprep.subr.mxu0 0.0
        %6664 = vmatpush1.msra.mxu0 0.0
        %6665 = vmatprep.subr.mxu0 0.0
        %6666 = vmatpush1.msra.mxu0 0.0
        %6667 = vmatprep.subr.mxu0 0.0
        %6668 = vmatpush1.msra.mxu0 0.0
        %6669 = vmatprep.subr.mxu0 0.0
        %6670 = vmatpush1.msra.mxu0 0.0
        %6671 = vmatprep.subr.mxu0 0.0
        %6672 = vmatpush1.msra.mxu0 0.0
        %6673 = vmatprep.subr.mxu0 0.0
        %6674 = vmatpush1.msra.mxu0 0.0
        %6675 = vmatprep.subr.mxu0 0.0
        %6676 = vmatpush1.msra.mxu0 0.0
        %6677 = vmatprep.subr.mxu0 0.0
        %6678 = vmatpush1.msra.mxu0 0.0
        %6679 = vmatprep.subr.mxu0 0.0
        %6680 = vmatpush1.msra.mxu0 0.0
        %6681 = vmatprep.mubr.f32.mxu0 0.0
        %6682 = vmatmul.mubr.f32.gmra.mrb[0].mxu0 %v6614
        %v6683 = vpop.f32.mrb[0].mxu0
        %v6684 = vadd.f32 0.0, %v6683
        %v6685 = vpop.f32.mrb[0].mxu0
        %6686 = vmatprep.mubr.f32.mxu0 0.0
        %6687 = vmatmul.mubr.f32.gmra.mrb[0].mxu0 %v6615
        %v6688 = vpop.f32.mrb[0].mxu0
        %v6689 = vadd.f32 0.0, %v6688
        %v6690 = vpop.f32.mrb[0].mxu0
        %6691 = vmatprep.mubr.f32.mxu0 0.0
        %6692 = vmatmul.mubr.f32.gmra.mrb[0].mxu0 %v6616
        %v6693 = vpop.f32.mrb[0].mxu0
        %v6694 = vadd.f32 0.0, %v6693
        %v6695 = vpop.f32.mrb[0].mxu0
        %6696 = vdwg.mxu0
        %s6697 = scalar_lea.vmem [#allocation18], 384
        %v6698 = vld [vmem:[%s6697] sm:$0xff]
        %v6699 = vld [vmem:[%s6697 + $0x8] sm:$0xff]
        %v6700 = vld [vmem:[%s6697 + $0x10] sm:$0xff]
        %v6701 = vld [vmem:[%s6697 + $0x18] sm:$0xff]
        %v6702 = vld [vmem:[%s6697 + $0x20] sm:$0xff]
        %v6703 = vld [vmem:[%s6697 + $0x28] sm:$0xff]
        %v6704 = vld [vmem:[%s6697 + $0x30] sm:$0xff]
        %v6705 = vld [vmem:[%s6697 + $0x38] sm:$0xff]
        %v6706 = vld [vmem:[%s6697 + $0x40] sm:$0xff]
        %v6707 = vld [vmem:[%s6697 + $0x48] sm:$0xff]
        %v6708 = vld [vmem:[%s6697 + $0x50] sm:$0xff]
        %v6709 = vld [vmem:[%s6697 + $0x58] sm:$0xff]
        %v6710 = vld [vmem:[%s6697 + $0x60] sm:$0xff]
        %v6711 = vld [vmem:[%s6697 + $0x68] sm:$0xff]
        %v6712 = vld [vmem:[%s6697 + $0x70] sm:$0xff]
        %v6713 = vld [vmem:[%s6697 + $0x78] sm:$0xff]
        %v6715 = vsel %vm1932, %v6684, 0
        %v6718 = vsel %vm1932, %v6689, 0
        %v6721 = vsel %vm1932, %v6694, 0
        %6723 = vmatprep.subr.mxu0 %v6699
        %6724 = vmatpush1.msra.mxu0 %v6698
        %6725 = vmatprep.subr.mxu0 %v6701
        %6726 = vmatpush1.msra.mxu0 %v6700
        %6727 = vmatprep.subr.mxu0 %v6703
        %6728 = vmatpush1.msra.mxu0 %v6702
        %6729 = vmatprep.subr.mxu0 %v6705
        %6730 = vmatpush1.msra.mxu0 %v6704
        %6731 = vmatprep.subr.mxu0 %v6707
        %6732 = vmatpush1.msra.mxu0 %v6706
        %6733 = vmatprep.subr.mxu0 %v6709
        %6734 = vmatpush1.msra.mxu0 %v6708
        %6735 = vmatprep.subr.mxu0 %v6711
        %6736 = vmatpush1.msra.mxu0 %v6710
        %6737 = vmatprep.subr.mxu0 %v6713
        %6738 = vmatpush1.msra.mxu0 %v6712
        %6739 = vmatprep.subr.mxu0 0.0
        %6740 = vmatpush1.msra.mxu0 0.0
        %6741 = vmatprep.subr.mxu0 0.0
        %6742 = vmatpush1.msra.mxu0 0.0
        %6743 = vmatprep.subr.mxu0 0.0
        %6744 = vmatpush1.msra.mxu0 0.0
        %6745 = vmatprep.subr.mxu0 0.0
        %6746 = vmatpush1.msra.mxu0 0.0
        %6747 = vmatprep.subr.mxu0 0.0
        %6748 = vmatpush1.msra.mxu0 0.0
        %6749 = vmatprep.subr.mxu0 0.0
        %6750 = vmatpush1.msra.mxu0 0.0
        %6751 = vmatprep.subr.mxu0 0.0
        %6752 = vmatpush1.msra.mxu0 0.0
        %6753 = vmatprep.subr.mxu0 0.0
        %6754 = vmatpush1.msra.mxu0 0.0
        %6755 = vmatprep.subr.mxu0 0.0
        %6756 = vmatpush1.msra.mxu0 0.0
        %6757 = vmatprep.subr.mxu0 0.0
        %6758 = vmatpush1.msra.mxu0 0.0
        %6759 = vmatprep.subr.mxu0 0.0
        %6760 = vmatpush1.msra.mxu0 0.0
        %6761 = vmatprep.subr.mxu0 0.0
        %6762 = vmatpush1.msra.mxu0 0.0
        %6763 = vmatprep.subr.mxu0 0.0
        %6764 = vmatpush1.msra.mxu0 0.0
        %6765 = vmatprep.subr.mxu0 0.0
        %6766 = vmatpush1.msra.mxu0 0.0
        %6767 = vmatprep.subr.mxu0 0.0
        %6768 = vmatpush1.msra.mxu0 0.0
        %6769 = vmatprep.subr.mxu0 0.0
        %6770 = vmatpush1.msra.mxu0 0.0
        %6771 = vmatprep.subr.mxu0 0.0
        %6772 = vmatpush1.msra.mxu0 0.0
        %6773 = vmatprep.subr.mxu0 0.0
        %6774 = vmatpush1.msra.mxu0 0.0
        %6775 = vmatprep.subr.mxu0 0.0
        %6776 = vmatpush1.msra.mxu0 0.0
        %6777 = vmatprep.subr.mxu0 0.0
        %6778 = vmatpush1.msra.mxu0 0.0
        %6779 = vmatprep.subr.mxu0 0.0
        %6780 = vmatpush1.msra.mxu0 0.0
        %6781 = vmatprep.subr.mxu0 0.0
        %6782 = vmatpush1.msra.mxu0 0.0
        %6783 = vmatprep.subr.mxu0 0.0
        %6784 = vmatpush1.msra.mxu0 0.0
        %6785 = vmatprep.subr.mxu0 0.0
        %6786 = vmatpush1.msra.mxu0 0.0
        %6787 = vmatprep.mubr.f32.mxu0 0.0
        %6788 = vmatmul.mubr.f32.gmra.mrb[0].mxu0 %v6715
        %v6789 = vpop.f32.mrb[0].mxu0
        %v6790 = vadd.f32 0.0, %v6789
        %v6791 = vpop.f32.mrb[0].mxu0
        %v6792 = vadd.f32 0.0, %v6791
        %6793 = vmatprep.mubr.f32.mxu0 0.0
        %6794 = vmatmul.mubr.f32.gmra.mrb[0].mxu0 %v6718
        %v6795 = vpop.f32.mrb[0].mxu0
        %v6796 = vadd.f32 0.0, %v6795
        %v6797 = vpop.f32.mrb[0].mxu0
        %v6798 = vadd.f32 0.0, %v6797
        %6799 = vmatprep.mubr.f32.mxu0 0.0
        %6800 = vmatmul.mubr.f32.gmra.mrb[0].mxu0 %v6721
        %v6801 = vpop.f32.mrb[0].mxu0
        %v6802 = vadd.f32 0.0, %v6801
        %v6803 = vpop.f32.mrb[0].mxu0
        %v6804 = vadd.f32 0.0, %v6803
        %6805 = vdwg.mxu0
        %v6806 = vadd.f32 %v6607, %v6790
        %v6807 = vadd.f32 %v6608, %v6792
        %v6808 = vadd.f32 %v6609, %v6796
        %v6809 = vadd.f32 %v6610, %v6798
        %v6810 = vadd.f32 %v6611, %v6802
        %v6811 = vadd.f32 %v6612, %v6804
        %v6812 = vld [vmem:[%s14] sm:$0xff]
        %v6813 = vld [vmem:[%s14 + $0x8] sm:$0xff]
        %v6814 = vld [vmem:[%s14 + $0x10] sm:$0xff]
        %6816 = vset.pattern.permute.xlu0 0
        %6817 = vperm.xlu0 %6816, %v6812
        %v6818 = vpop.permute.xlu0 %6817
        %6821 = vset.pattern.permute.xlu0 0
        %6822 = vperm.xlu0 %6821, %v6813
        %v6823 = vpop.permute.xlu0 %6822
        %6826 = vset.pattern.permute.xlu0 0
        %6827 = vperm.xlu0 %6826, %v6814
        %v6828 = vpop.permute.xlu0 %6827
        %v6830 = vadd.f32 %v6806, %v6818
        %v6831 = vadd.f32 %v6807, %v6818
        %v6832 = vadd.f32 %v6808, %v6823
        %v6833 = vadd.f32 %v6809, %v6823
        %v6834 = vadd.f32 %v6810, %v6828
        %v6835 = vadd.f32 %v6811, %v6828
        %v6836 = vxor.u32 %v6830, 2147483648
        %v6837 = vxor.u32 %v6831, 2147483648
        %v6838 = vxor.u32 %v6832, 2147483648
        %v6839 = vxor.u32 %v6833, 2147483648
        %v6840 = vxor.u32 %v6834, 2147483648
        %v6841 = vxor.u32 %v6835, 2147483648
        %v6842 = vmul.f32 %v6836, 1.442695
        %v6843 = vpow.pop %v6842
        %v6844 = vmul.f32 %v6837, 1.442695
        %v6845 = vpow.pop %v6844
        %v6846 = vmul.f32 %v6838, 1.442695
        %v6847 = vpow.pop %v6846
        %v6848 = vmul.f32 %v6839, 1.442695
        %v6849 = vpow.pop %v6848
        %v6850 = vmul.f32 %v6840, 1.442695
        %v6851 = vpow.pop %v6850
        %v6852 = vmul.f32 %v6841, 1.442695
        %v6853 = vpow.pop %v6852
        %v6854 = vadd.f32 %v6843, 1.0
        %v6855 = vadd.f32 %v6845, 1.0
        %v6856 = vadd.f32 %v6847, 1.0
        %v6857 = vadd.f32 %v6849, 1.0
        %v6858 = vadd.f32 %v6851, 1.0
        %v6859 = vadd.f32 %v6853, 1.0
        %v6860 = vrcp.pop %v6854
        %v6861 = vmul.f32 1.0, %v6860
        %v6862 = vrcp.pop %v6855
        %v6863 = vmul.f32 1.0, %v6862
        %v6864 = vrcp.pop %v6856
        %v6865 = vmul.f32 1.0, %v6864
        %v6866 = vrcp.pop %v6857
        %v6867 = vmul.f32 1.0, %v6866
        %v6868 = vrcp.pop %v6858
        %v6869 = vmul.f32 1.0, %v6868
        %v6870 = vrcp.pop %v6859
        %v6871 = vmul.f32 1.0, %v6870
        %6872 = vst [vmem:[%s661] sm:$0xff] %v6861
        %6873 = vst [vmem:[%s661 + $0x8] sm:$0xff] %v6863
        %6874 = vst [vmem:[%s661 + $0x10] sm:$0xff] %v6865
        %6875 = vst [vmem:[%s661 + $0x18] sm:$0xff] %v6867
        %6876 = vst [vmem:[%s661 + $0x20] sm:$0xff] %v6869
        %6877 = vst [vmem:[%s661 + $0x28] sm:$0xff] %v6871
        %s6878 = smul.u32 3, %s32
        %p6879 = scmp.lt.s32.totalorder %s6878, 5
        %s6880 = scalar_select %p6879, %s6878, 5
        %s6881 = smul.addr %s6880, 2
        %s6882 = smul.addr %s6881, 8
        %s6883 = scalar_lea.vmem %s15, %s6882
        // Predicated region
        $region125: #{forward.1} parent=79 // pred_check
          %p6884 = pneg %p370
        $region126: #{forward.1} parent=79 // pred_check_branch
          %6886 = sbr.rel (%p6884) target = $region128
        $region127: #{forward.1} parent=79 // pred_region
          %s6887 = smul.u32 3, %s32
        $region128: #{forward.1} parent=79 // pred_fallthru
          _
      $region80: #{forward.1} parent=5 // pred_fallthru
        _
      %p6888 = scmp.le.s32.totalorder 2, %s27
      // Predicated region
      $region129: #{forward.1} parent=5 // pred_check
        %p6889 = pneg %p6888
      $region130: #{forward.1} parent=5 // pred_check_branch
        %6891 = sbr.rel (%p6889) target = $region132
      $region131: #{forward.1} parent=5 // pred_region
        %s6892 = ssub.s32 %s27, 2
        // Predicated region
        $region133: #{forward.1} parent=131 // pred_check
          %p6893 = pneg %p376
        $region134: #{forward.1} parent=131 // pred_check_branch
          %6895 = sbr.rel (%p6893) target = $region136
        $region135: #{forward.1} parent=131 // pred_region
          %s6896 = smul.u32 3, %s33
          %p6897 = scmp.lt.s32.totalorder %s6896, 5
          %s6898 = scalar_select %p6897, %s6896, 5
          %s6899 = smul.addr %s6898, 2
          %s6900 = smul.addr %s6899, 8
          %s6901 = scalar_lea.vmem %s15, %s6900
        $region136: #{forward.1} parent=131 // pred_fallthru
          _
      $region132: #{forward.1} parent=5 // pred_fallthru
        _
    $region6: #{forward.1} parent=1 // loop_footer
      %s31 = sadd.s32 1, %s27
    $region7: #{forward.1} parent=1 // loop_footer_branch
      %26 = sbr.rel target = $region3
    $region8: #{forward.1} parent=1 // loop_exit
      _
    %6902 = vsyncpa [#allocation3], 1
    %s6903 = scalar_lea.sflag [#allocation3], 1
    %6904 = vsyncpa %s6903, 1
    %6905 = vsyncpa [#allocation5], 1
    %6906 = vsyncpa [#allocation8], 1
    %6907 = vsyncpa [#allocation11], 1
    %6908 = vsyncpa [#allocation14], 1
    %6909 = vsyncpa [#allocation17], 1

</llo_original>
